<compile_context>
chip_gen: v5e
topology: v5e:2x2
jax: 0.10.0
libtpu: 0.0.40
codegen_flags: <defaults>
</compile_context>

<pallas_src>
import jax
import jax.numpy as jnp
import numpy as np
from jax.experimental import pallas as pl
from jax.experimental.pallas import tpu as pltpu  # noqa: F401  (TPU backend)

# Make the pure-JAX reference use full-f32 matmuls (matches PyTorch numerics
# and the Pallas kernel's f32 MXU math).
jax.config.update("jax_default_matmul_precision", "highest")

# ----- model / problem sizes (small, consistent with the module's forward) ---
B, N, D = 2, 8, 32          # batch, seq_len, d_model
NUM_HEADS = 4
HEAD_DIM = D // NUM_HEADS
FF = 64                     # dim_feedforward
NUM_LAYERS = 2
EPS = 1e-5                  # PyTorch LayerNorm default eps
SCALE = HEAD_DIM ** -0.5

# ----- packed-parameter layout ------------------------------------------------
# weight slab per layer: [ Wqkv (D,3D) | Wproj (D,D) | W1 (D,FF) ]  -> (D, 192)
W_SLAB_COLS = 3 * D + D + FF
# vector slab: one row per 1-D parameter, padded to the widest (fused qkv bias)
VEC_W = 3 * D
VEC_ROWS_PER_LAYER = 8      # ln1w, ln1b, bqkv, bproj, ln2w, ln2b, b1, b2
VEC_ROWS = NUM_LAYERS * VEC_ROWS_PER_LAYER + 2   # + final lnw, lnb


def _layer_norm(h, w, b):
    mu = jnp.mean(h, axis=-1, keepdims=True)
    var = jnp.mean((h - mu) ** 2, axis=-1, keepdims=True)
    return (h - mu) * jax.lax.rsqrt(var + EPS) * w + b


def _gelu_exact(x):
    # PyTorch F.gelu default (erf-based, exact)
    return 0.5 * x * (1.0 + jax.lax.erf(x * (2.0 ** -0.5)))


# --------------------------- Pallas kernel ----------------------------------
# Single gridless invocation. x_ref is the flattened (B*N, D) activation; the
# three parameter slabs are loaded whole into registers and sliced with static
# offsets. The layer loop is unrolled statically (NUM_LAYERS=2).
def encoder_kernel(x_ref, w_ref, w2_ref, vec_ref, out_ref):
    x = x_ref[...]                       # (B*N, D)
    w_all = w_ref[...]                   # (L, D, W_SLAB_COLS)
    w2_all = w2_ref[...]                 # (L, FF, D)
    vec = vec_ref[...]                   # (VEC_ROWS, VEC_W)

    def vrow(r, width):
        return vec[r:r + 1, :width]      # (1, width) -- broadcasts over rows

    for l in range(NUM_LAYERS):
        vb = l * VEC_ROWS_PER_LAYER
        ln1w, ln1b = vrow(vb + 0, D), vrow(vb + 1, D)
        bqkv = vrow(vb + 2, 3 * D)
        bp = vrow(vb + 3, D)
        ln2w, ln2b = vrow(vb + 4, D), vrow(vb + 5, D)
        b1 = vrow(vb + 6, FF)
        b2 = vrow(vb + 7, D)

        w_l = w_all[l]                               # (D, W_SLAB_COLS)
        wqkv = w_l[:, 0:3 * D]                       # (D, 3D)
        wp = w_l[:, 3 * D:4 * D]                     # (D, D)
        w1 = w_l[:, 4 * D:4 * D + FF]                # (D, FF)
        w2 = w2_all[l]                               # (FF, D)

        # ---- self-attention sub-block (pre-norm) ----
        h = _layer_norm(x, ln1w, ln1b)                                   # (BN, D)
        qkv = jnp.dot(h, wqkv, preferred_element_type=jnp.float32) + bqkv  # (BN, 3D)
        qkv = qkv.reshape(B, N, 3 * D)

        # Fold heads into the batch axis: (NUM_HEADS*B, N, HEAD_DIM), head-major.
        q_bh = jnp.concatenate(
            [qkv[:, :, hh * HEAD_DIM:(hh + 1) * HEAD_DIM]
             for hh in range(NUM_HEADS)], axis=0)
        k_bh = jnp.concatenate(
            [qkv[:, :, D + hh * HEAD_DIM:D + (hh + 1) * HEAD_DIM]
             for hh in range(NUM_HEADS)], axis=0)
        v_bh = jnp.concatenate(
            [qkv[:, :, 2 * D + hh * HEAD_DIM:2 * D + (hh + 1) * HEAD_DIM]
             for hh in range(NUM_HEADS)], axis=0)

        # One batched attention for all heads / batches.
        s = jnp.einsum('bnd,bmd->bnm', q_bh, k_bh,
                       preferred_element_type=jnp.float32) * SCALE        # (HB, N, N)
        s = s - jnp.max(s, axis=-1, keepdims=True)
        p = jnp.exp(s)
        p = p / jnp.sum(p, axis=-1, keepdims=True)        # exact softmax (parity)
        o_bh = jnp.einsum('bnm,bmd->bnd', p, v_bh,
                          preferred_element_type=jnp.float32)             # (HB, N, Hd)

        # Concatenate heads back along the feature (lane) axis as a value.
        o = jnp.concatenate([o_bh[hh * B:(hh + 1) * B]
                             for hh in range(NUM_HEADS)], axis=-1)        # (B, N, D)
        o = o.reshape(B * N, D)

        x = x + jnp.dot(o, wp, preferred_element_type=jnp.float32) + bp
        # TODO(synk): dropout layers are identity in eval mode, omitted.

        # ---- feed-forward sub-block (pre-norm) ----
        h2 = _layer_norm(x, ln2w, ln2b)
        f = _gelu_exact(jnp.dot(h2, w1, preferred_element_type=jnp.float32) + b1)
        x = x + jnp.dot(f, w2, preferred_element_type=jnp.float32) + b2

    # final LayerNorm of the encoder
    lnfw = vrow(NUM_LAYERS * VEC_ROWS_PER_LAYER + 0, D)
    lnfb = vrow(NUM_LAYERS * VEC_ROWS_PER_LAYER + 1, D)
    out_ref[...] = _layer_norm(x, lnfw, lnfb)


# ----------------------------- wrapper ---------------------------------------
def pack_params(params):
    """Pack the 15 logical parameters into 3 VMEM slabs (fewer, fatter DMAs)."""
    (ln1w, ln1b, wqkv, bqkv, wp, bp,
     ln2w, ln2b, w1, b1, w2, b2, lnfw, lnfb) = params

    w_slab = jnp.concatenate([wqkv, wp, w1], axis=-1)    # (L, D, 192)
    w2_slab = w2                                         # (L, FF, D)

    def row(v):
        return jnp.pad(v, (0, VEC_W - v.shape[0]))

    rows = []
    for l in range(NUM_LAYERS):
        rows += [row(ln1w[l]), row(ln1b[l]), row(bqkv[l]), row(bp[l]),
                 row(ln2w[l]), row(ln2b[l]), row(b1[l]), row(b2[l])]
    rows += [row(lnfw[0]), row(lnfb[0])]
    vec_slab = jnp.stack(rows, axis=0)                   # (VEC_ROWS, 96)
    return w_slab, w2_slab, vec_slab


def transformer_encoder_pallas(x, params):
    w_slab, w2_slab, vec_slab = pack_params(params)
    xf = x.reshape(B * N, D)                             # flatten in the wrapper
    outf = pl.pallas_call(
        encoder_kernel,
        out_shape=jax.ShapeDtypeStruct((B * N, D), jnp.float32),
    )(xf, w_slab, w2_slab, vec_slab)
    return outf.reshape(B, N, D)


# --------------------- deterministic parameter init --------------------------
def init_params(key):
    it = iter(jax.random.split(key, 32))

    def rnd(shape, scale=0.05):
        return (scale * jax.random.normal(next(it), shape)).astype(jnp.float32)

    ln1w = 1.0 + rnd((NUM_LAYERS, D));   ln1b = rnd((NUM_LAYERS, D))
    # fused [Wq | Wk | Wv] along the output-feature axis
    wqkv = rnd((NUM_LAYERS, D, 3 * D));  bqkv = rnd((NUM_LAYERS, 3 * D))
    wp = rnd((NUM_LAYERS, D, D));        bp = rnd((NUM_LAYERS, D))
    ln2w = 1.0 + rnd((NUM_LAYERS, D));   ln2b = rnd((NUM_LAYERS, D))
    w1 = rnd((NUM_LAYERS, D, FF));       b1 = rnd((NUM_LAYERS, FF))
    w2 = rnd((NUM_LAYERS, FF, D));       b2 = rnd((NUM_LAYERS, D))
    lnfw = 1.0 + rnd((1, D));            lnfb = rnd((1, D))

    return [ln1w, ln1b, wqkv, bqkv, wp, bp,
            ln2w, ln2b, w1, b1, w2, b2, lnfw, lnfb]


# --------------------------- pure-JAX reference -------------------------------
def transformer_encoder_ref(x, params):
    (ln1w, ln1b, wqkv, bqkv, wp, bp,
     ln2w, ln2b, w1, b1, w2, b2, lnfw, lnfb) = params

    for l in range(NUM_LAYERS):
        h = _layer_norm(x, ln1w[l], ln1b[l])
        qkv = h @ wqkv[l] + bqkv[l]
        q, k, v = qkv[..., :D], qkv[..., D:2 * D], qkv[..., 2 * D:]
        q = q.reshape(B, N, NUM_HEADS, HEAD_DIM).transpose(0, 2, 1, 3)
        k = k.reshape(B, N, NUM_HEADS, HEAD_DIM).transpose(0, 2, 1, 3)
        v = v.reshape(B, N, NUM_HEADS, HEAD_DIM).transpose(0, 2, 1, 3)
        attn = jnp.einsum('bhnd,bhmd->bhnm', q, k) * SCALE
        attn = jax.nn.softmax(attn, axis=-1)
        o = jnp.einsum('bhnm,bhmd->bhnd', attn, v)
        o = o.transpose(0, 2, 1, 3).reshape(B, N, D)
        x = x + o @ wp[l] + bp[l]

        h2 = _layer_norm(x, ln2w[l], ln2b[l])
        x = x + _gelu_exact(h2 @ w1[l] + b1[l]) @ w2[l] + b2[l]

    return _layer_norm(x, lnfw[0], lnfb[0])


if __name__ == "__main__":
    key = jax.random.PRNGKey(0)
    k_x, k_p = jax.random.split(key)
    x = jax.random.normal(k_x, (B, N, D), dtype=jnp.float32)
    params = init_params(k_p)

    out = transformer_encoder_pallas(x, params)
    out = jax.block_until_ready(out)

    ref = transformer_encoder_ref(x, params)
    # Exact softmax + full-f32 matmuls on both sides -> tight tolerance.
    np.testing.assert_allclose(np.asarray(out), np.asarray(ref),
                               rtol=1e-4, atol=1e-4)
    print("KERNEL_OK")
</pallas_src>

<mosaic_0001>
module attributes {stable_mosaic.version = 11 : i64} {
  func.func @encoder_kernel(%arg0: memref<16x32xf32, #tpu.memory_space<vmem>>, %arg1: memref<2x32x192xf32, #tpu.memory_space<vmem>>, %arg2: memref<2x64x32xf32, #tpu.memory_space<vmem>>, %arg3: memref<18x96xf32, #tpu.memory_space<vmem>>, %arg4: memref<16x32xf32, #tpu.memory_space<vmem>>) attributes {dimension_semantics = [], scalar_prefetch = 0 : i64, scratch_operands = 0 : i64, tpu.core_type = #tpu.core_type<tc>} {
    %c0 = arith.constant 0 : index
    %c0_0 = arith.constant 0 : index
    %0 = vector.load %arg0[%c0, %c0_0] : memref<16x32xf32, #tpu.memory_space<vmem>>, vector<16x32xf32>
    %c0_1 = arith.constant 0 : index
    %c0_2 = arith.constant 0 : index
    %c0_3 = arith.constant 0 : index
    %1 = vector.load %arg1[%c0_1, %c0_2, %c0_3] : memref<2x32x192xf32, #tpu.memory_space<vmem>>, vector<2x32x192xf32>
    %c0_4 = arith.constant 0 : index
    %c0_5 = arith.constant 0 : index
    %c0_6 = arith.constant 0 : index
    %2 = vector.load %arg2[%c0_4, %c0_5, %c0_6] : memref<2x64x32xf32, #tpu.memory_space<vmem>>, vector<2x64x32xf32>
    %c0_7 = arith.constant 0 : index
    %c0_8 = arith.constant 0 : index
    %3 = vector.load %arg3[%c0_7, %c0_8] : memref<18x96xf32, #tpu.memory_space<vmem>>, vector<18x96xf32>
    %4 = vector.extract_strided_slice %3 {offsets = [0, 0], sizes = [1, 32], strides = [1, 1]} : vector<18x96xf32> to vector<1x32xf32>
    %5 = vector.extract_strided_slice %3 {offsets = [1, 0], sizes = [1, 32], strides = [1, 1]} : vector<18x96xf32> to vector<1x32xf32>
    %6 = vector.extract_strided_slice %3 {offsets = [2, 0], sizes = [1, 96], strides = [1, 1]} : vector<18x96xf32> to vector<1x96xf32>
    %7 = vector.extract_strided_slice %3 {offsets = [3, 0], sizes = [1, 32], strides = [1, 1]} : vector<18x96xf32> to vector<1x32xf32>
    %8 = vector.extract_strided_slice %3 {offsets = [4, 0], sizes = [1, 32], strides = [1, 1]} : vector<18x96xf32> to vector<1x32xf32>
    %9 = vector.extract_strided_slice %3 {offsets = [5, 0], sizes = [1, 32], strides = [1, 1]} : vector<18x96xf32> to vector<1x32xf32>
    %10 = vector.extract_strided_slice %3 {offsets = [6, 0], sizes = [1, 64], strides = [1, 1]} : vector<18x96xf32> to vector<1x64xf32>
    %11 = vector.extract_strided_slice %3 {offsets = [7, 0], sizes = [1, 32], strides = [1, 1]} : vector<18x96xf32> to vector<1x32xf32>
    %12 = vector.extract_strided_slice %1 {offsets = [0, 0, 0], sizes = [1, 32, 192], strides = [1, 1, 1]} : vector<2x32x192xf32> to vector<1x32x192xf32>
    %13 = vector.shape_cast %12 : vector<1x32x192xf32> to vector<32x192xf32>
    %14 = vector.extract_strided_slice %13 {offsets = [0, 0], sizes = [32, 96], strides = [1, 1]} : vector<32x192xf32> to vector<32x96xf32>
    %15 = vector.extract_strided_slice %13 {offsets = [0, 96], sizes = [32, 32], strides = [1, 1]} : vector<32x192xf32> to vector<32x32xf32>
    %16 = vector.extract_strided_slice %13 {offsets = [0, 128], sizes = [32, 64], strides = [1, 1]} : vector<32x192xf32> to vector<32x64xf32>
    %17 = vector.extract_strided_slice %2 {offsets = [0, 0, 0], sizes = [1, 64, 32], strides = [1, 1, 1]} : vector<2x64x32xf32> to vector<1x64x32xf32>
    %18 = vector.shape_cast %17 : vector<1x64x32xf32> to vector<64x32xf32>
    %cst = arith.constant dense<0.000000e+00> : vector<16xf32>
    %19 = vector.multi_reduction <add>, %0, %cst [1] : vector<16x32xf32> to vector<16xf32>
    %20 = vector.shape_cast %19 : vector<16xf32> to vector<16x1xf32>
    %cst_9 = arith.constant 3.200000e+01 : f32
    %21 = vector.broadcast %cst_9 : f32 to vector<16x1xf32>
    %22 = arith.divf %20, %21 : vector<16x1xf32>
    %23 = vector.broadcast %22 : vector<16x1xf32> to vector<16x32xf32>
    %24 = arith.subf %0, %23 : vector<16x32xf32>
    %25 = arith.mulf %24, %24 : vector<16x32xf32>
    %cst_10 = arith.constant dense<0.000000e+00> : vector<16xf32>
    %26 = vector.multi_reduction <add>, %25, %cst_10 [1] : vector<16x32xf32> to vector<16xf32>
    %27 = vector.shape_cast %26 : vector<16xf32> to vector<16x1xf32>
    %cst_11 = arith.constant 3.200000e+01 : f32
    %28 = vector.broadcast %cst_11 : f32 to vector<16x1xf32>
    %29 = arith.divf %27, %28 : vector<16x1xf32>
    %30 = vector.broadcast %22 : vector<16x1xf32> to vector<16x32xf32>
    %31 = arith.subf %0, %30 : vector<16x32xf32>
    %cst_12 = arith.constant 9.99999974E-6 : f32
    %32 = vector.broadcast %cst_12 : f32 to vector<16x1xf32>
    %33 = arith.addf %29, %32 : vector<16x1xf32>
    %34 = math.rsqrt %33 : vector<16x1xf32>
    %35 = vector.broadcast %34 : vector<16x1xf32> to vector<16x32xf32>
    %36 = arith.mulf %31, %35 : vector<16x32xf32>
    %37 = vector.broadcast %4 : vector<1x32xf32> to vector<16x32xf32>
    %38 = arith.mulf %36, %37 : vector<16x32xf32>
    %39 = vector.broadcast %5 : vector<1x32xf32> to vector<16x32xf32>
    %40 = arith.addf %38, %39 : vector<16x32xf32>
    %cst_13 = arith.constant dense<0.000000e+00> : vector<16x96xf32>
    %41 = tpu.matmul %40, %14, %cst_13 {dimension_numbers = #tpu.dot_dimension_numbers<[1], [0], [0], [1], [0, 0, 1, 1], [], []>, precision = #tpu.contract_precision<fp32>} : vector<16x32xf32>, vector<32x96xf32>, vector<16x96xf32> -> vector<16x96xf32>
    %42 = vector.broadcast %6 : vector<1x96xf32> to vector<16x96xf32>
    %43 = arith.addf %41, %42 : vector<16x96xf32>
    %44 = vector.shape_cast %43 : vector<16x96xf32> to vector<2x8x96xf32>
    %45 = vector.extract_strided_slice %44 {offsets = [0, 0, 0], sizes = [2, 8, 8], strides = [1, 1, 1]} : vector<2x8x96xf32> to vector<2x8x8xf32>
    %46 = vector.extract_strided_slice %44 {offsets = [0, 0, 8], sizes = [2, 8, 8], strides = [1, 1, 1]} : vector<2x8x96xf32> to vector<2x8x8xf32>
    %47 = vector.extract_strided_slice %44 {offsets = [0, 0, 16], sizes = [2, 8, 8], strides = [1, 1, 1]} : vector<2x8x96xf32> to vector<2x8x8xf32>
    %48 = vector.extract_strided_slice %44 {offsets = [0, 0, 24], sizes = [2, 8, 8], strides = [1, 1, 1]} : vector<2x8x96xf32> to vector<2x8x8xf32>
    %49 = tpu.concatenate %45, %46, %47, %48 in 0 : vector<2x8x8xf32>, vector<2x8x8xf32>, vector<2x8x8xf32>, vector<2x8x8xf32> -> vector<8x8x8xf32>
    %50 = vector.extract_strided_slice %44 {offsets = [0, 0, 32], sizes = [2, 8, 8], strides = [1, 1, 1]} : vector<2x8x96xf32> to vector<2x8x8xf32>
    %51 = vector.extract_strided_slice %44 {offsets = [0, 0, 40], sizes = [2, 8, 8], strides = [1, 1, 1]} : vector<2x8x96xf32> to vector<2x8x8xf32>
    %52 = vector.extract_strided_slice %44 {offsets = [0, 0, 48], sizes = [2, 8, 8], strides = [1, 1, 1]} : vector<2x8x96xf32> to vector<2x8x8xf32>
    %53 = vector.extract_strided_slice %44 {offsets = [0, 0, 56], sizes = [2, 8, 8], strides = [1, 1, 1]} : vector<2x8x96xf32> to vector<2x8x8xf32>
    %54 = tpu.concatenate %50, %51, %52, %53 in 0 : vector<2x8x8xf32>, vector<2x8x8xf32>, vector<2x8x8xf32>, vector<2x8x8xf32> -> vector<8x8x8xf32>
    %55 = vector.extract_strided_slice %44 {offsets = [0, 0, 64], sizes = [2, 8, 8], strides = [1, 1, 1]} : vector<2x8x96xf32> to vector<2x8x8xf32>
    %56 = vector.extract_strided_slice %44 {offsets = [0, 0, 72], sizes = [2, 8, 8], strides = [1, 1, 1]} : vector<2x8x96xf32> to vector<2x8x8xf32>
    %57 = vector.extract_strided_slice %44 {offsets = [0, 0, 80], sizes = [2, 8, 8], strides = [1, 1, 1]} : vector<2x8x96xf32> to vector<2x8x8xf32>
    %58 = vector.extract_strided_slice %44 {offsets = [0, 0, 88], sizes = [2, 8, 8], strides = [1, 1, 1]} : vector<2x8x96xf32> to vector<2x8x8xf32>
    %59 = tpu.concatenate %55, %56, %57, %58 in 0 : vector<2x8x8xf32>, vector<2x8x8xf32>, vector<2x8x8xf32>, vector<2x8x8xf32> -> vector<8x8x8xf32>
    "tpu.trace_start"() <{level = 10 : i32, message = "bnd,bmd->bnm"}> : () -> ()
    %cst_14 = arith.constant dense<0.000000e+00> : vector<8x8x8xf32>
    %60 = tpu.matmul %49, %54, %cst_14 {dimension_numbers = #tpu.dot_dimension_numbers<[2], [2], [1], [1], [0, 0, 0, 1, 1, 1], [0], [0]>, precision = #tpu.contract_precision<fp32>} : vector<8x8x8xf32>, vector<8x8x8xf32>, vector<8x8x8xf32> -> vector<8x8x8xf32>
    "tpu.trace_stop"() : () -> ()
    %cst_15 = arith.constant 0.353553385 : f32
    %61 = vector.broadcast %cst_15 : f32 to vector<8x8x8xf32>
    %62 = arith.mulf %60, %61 : vector<8x8x8xf32>
    %cst_16 = arith.constant dense<0xFF800000> : vector<8x8xf32>
    %63 = vector.multi_reduction <maximumf>, %62, %cst_16 [2] : vector<8x8x8xf32> to vector<8x8xf32>
    %64 = vector.shape_cast %63 : vector<8x8xf32> to vector<8x8x1xf32>
    %65 = vector.broadcast %64 : vector<8x8x1xf32> to vector<8x8x8xf32>
    %66 = arith.subf %62, %65 : vector<8x8x8xf32>
    %67 = math.exp %66 : vector<8x8x8xf32>
    %cst_17 = arith.constant dense<0.000000e+00> : vector<8x8xf32>
    %68 = vector.multi_reduction <add>, %67, %cst_17 [2] : vector<8x8x8xf32> to vector<8x8xf32>
    %69 = vector.shape_cast %68 : vector<8x8xf32> to vector<8x8x1xf32>
    %70 = vector.broadcast %69 : vector<8x8x1xf32> to vector<8x8x8xf32>
    %71 = arith.divf %67, %70 : vector<8x8x8xf32>
    "tpu.trace_start"() <{level = 10 : i32, message = "bnm,bmd->bnd"}> : () -> ()
    %cst_18 = arith.constant dense<0.000000e+00> : vector<8x8x8xf32>
    %72 = tpu.matmul %71, %59, %cst_18 {dimension_numbers = #tpu.dot_dimension_numbers<[2], [1], [1], [2], [0, 0, 0, 1, 1, 2], [0], [0]>, precision = #tpu.contract_precision<fp32>} : vector<8x8x8xf32>, vector<8x8x8xf32>, vector<8x8x8xf32> -> vector<8x8x8xf32>
    "tpu.trace_stop"() : () -> ()
    %73 = vector.extract_strided_slice %72 {offsets = [0, 0, 0], sizes = [2, 8, 8], strides = [1, 1, 1]} : vector<8x8x8xf32> to vector<2x8x8xf32>
    %74 = vector.extract_strided_slice %72 {offsets = [2, 0, 0], sizes = [2, 8, 8], strides = [1, 1, 1]} : vector<8x8x8xf32> to vector<2x8x8xf32>
    %75 = vector.extract_strided_slice %72 {offsets = [4, 0, 0], sizes = [2, 8, 8], strides = [1, 1, 1]} : vector<8x8x8xf32> to vector<2x8x8xf32>
    %76 = vector.extract_strided_slice %72 {offsets = [6, 0, 0], sizes = [2, 8, 8], strides = [1, 1, 1]} : vector<8x8x8xf32> to vector<2x8x8xf32>
    %77 = tpu.concatenate %73, %74, %75, %76 in 2 : vector<2x8x8xf32>, vector<2x8x8xf32>, vector<2x8x8xf32>, vector<2x8x8xf32> -> vector<2x8x32xf32>
    %78 = vector.shape_cast %77 : vector<2x8x32xf32> to vector<16x32xf32>
    %cst_19 = arith.constant dense<0.000000e+00> : vector<16x32xf32>
    %79 = tpu.matmul %78, %15, %cst_19 {dimension_numbers = #tpu.dot_dimension_numbers<[1], [0], [0], [1], [0, 0, 1, 1], [], []>, precision = #tpu.contract_precision<fp32>} : vector<16x32xf32>, vector<32x32xf32>, vector<16x32xf32> -> vector<16x32xf32>
    %80 = arith.addf %0, %79 : vector<16x32xf32>
    %81 = vector.broadcast %7 : vector<1x32xf32> to vector<16x32xf32>
    %82 = arith.addf %80, %81 : vector<16x32xf32>
    %cst_20 = arith.constant dense<0.000000e+00> : vector<16xf32>
    %83 = vector.multi_reduction <add>, %82, %cst_20 [1] : vector<16x32xf32> to vector<16xf32>
    %84 = vector.shape_cast %83 : vector<16xf32> to vector<16x1xf32>
    %cst_21 = arith.constant 3.200000e+01 : f32
    %85 = vector.broadcast %cst_21 : f32 to vector<16x1xf32>
    %86 = arith.divf %84, %85 : vector<16x1xf32>
    %87 = vector.broadcast %86 : vector<16x1xf32> to vector<16x32xf32>
    %88 = arith.subf %82, %87 : vector<16x32xf32>
    %89 = arith.mulf %88, %88 : vector<16x32xf32>
    %cst_22 = arith.constant dense<0.000000e+00> : vector<16xf32>
    %90 = vector.multi_reduction <add>, %89, %cst_22 [1] : vector<16x32xf32> to vector<16xf32>
    %91 = vector.shape_cast %90 : vector<16xf32> to vector<16x1xf32>
    %cst_23 = arith.constant 3.200000e+01 : f32
    %92 = vector.broadcast %cst_23 : f32 to vector<16x1xf32>
    %93 = arith.divf %91, %92 : vector<16x1xf32>
    %94 = vector.broadcast %86 : vector<16x1xf32> to vector<16x32xf32>
    %95 = arith.subf %82, %94 : vector<16x32xf32>
    %cst_24 = arith.constant 9.99999974E-6 : f32
    %96 = vector.broadcast %cst_24 : f32 to vector<16x1xf32>
    %97 = arith.addf %93, %96 : vector<16x1xf32>
    %98 = math.rsqrt %97 : vector<16x1xf32>
    %99 = vector.broadcast %98 : vector<16x1xf32> to vector<16x32xf32>
    %100 = arith.mulf %95, %99 : vector<16x32xf32>
    %101 = vector.broadcast %8 : vector<1x32xf32> to vector<16x32xf32>
    %102 = arith.mulf %100, %101 : vector<16x32xf32>
    %103 = vector.broadcast %9 : vector<1x32xf32> to vector<16x32xf32>
    %104 = arith.addf %102, %103 : vector<16x32xf32>
    %cst_25 = arith.constant dense<0.000000e+00> : vector<16x64xf32>
    %105 = tpu.matmul %104, %16, %cst_25 {dimension_numbers = #tpu.dot_dimension_numbers<[1], [0], [0], [1], [0, 0, 1, 1], [], []>, precision = #tpu.contract_precision<fp32>} : vector<16x32xf32>, vector<32x64xf32>, vector<16x64xf32> -> vector<16x64xf32>
    %106 = vector.broadcast %10 : vector<1x64xf32> to vector<16x64xf32>
    %107 = arith.addf %105, %106 : vector<16x64xf32>
    %cst_26 = arith.constant 5.000000e-01 : f32
    %108 = vector.broadcast %cst_26 : f32 to vector<16x64xf32>
    %109 = arith.mulf %108, %107 : vector<16x64xf32>
    %cst_27 = arith.constant 0.707106769 : f32
    %110 = vector.broadcast %cst_27 : f32 to vector<16x64xf32>
    %111 = arith.mulf %107, %110 : vector<16x64xf32>
    %112 = math.erf %111 : vector<16x64xf32>
    %cst_28 = arith.constant 1.000000e+00 : f32
    %113 = vector.broadcast %cst_28 : f32 to vector<16x64xf32>
    %114 = arith.addf %113, %112 : vector<16x64xf32>
    %115 = arith.mulf %109, %114 : vector<16x64xf32>
    %cst_29 = arith.constant dense<0.000000e+00> : vector<16x32xf32>
    %116 = tpu.matmul %115, %18, %cst_29 {dimension_numbers = #tpu.dot_dimension_numbers<[1], [0], [0], [1], [0, 0, 1, 1], [], []>, precision = #tpu.contract_precision<fp32>} : vector<16x64xf32>, vector<64x32xf32>, vector<16x32xf32> -> vector<16x32xf32>
    %117 = arith.addf %82, %116 : vector<16x32xf32>
    %118 = vector.broadcast %11 : vector<1x32xf32> to vector<16x32xf32>
    %119 = arith.addf %117, %118 : vector<16x32xf32>
    %120 = vector.extract_strided_slice %3 {offsets = [8, 0], sizes = [1, 32], strides = [1, 1]} : vector<18x96xf32> to vector<1x32xf32>
    %121 = vector.extract_strided_slice %3 {offsets = [9, 0], sizes = [1, 32], strides = [1, 1]} : vector<18x96xf32> to vector<1x32xf32>
    %122 = vector.extract_strided_slice %3 {offsets = [10, 0], sizes = [1, 96], strides = [1, 1]} : vector<18x96xf32> to vector<1x96xf32>
    %123 = vector.extract_strided_slice %3 {offsets = [11, 0], sizes = [1, 32], strides = [1, 1]} : vector<18x96xf32> to vector<1x32xf32>
    %124 = vector.extract_strided_slice %3 {offsets = [12, 0], sizes = [1, 32], strides = [1, 1]} : vector<18x96xf32> to vector<1x32xf32>
    %125 = vector.extract_strided_slice %3 {offsets = [13, 0], sizes = [1, 32], strides = [1, 1]} : vector<18x96xf32> to vector<1x32xf32>
    %126 = vector.extract_strided_slice %3 {offsets = [14, 0], sizes = [1, 64], strides = [1, 1]} : vector<18x96xf32> to vector<1x64xf32>
    %127 = vector.extract_strided_slice %3 {offsets = [15, 0], sizes = [1, 32], strides = [1, 1]} : vector<18x96xf32> to vector<1x32xf32>
    %128 = vector.extract_strided_slice %1 {offsets = [1, 0, 0], sizes = [1, 32, 192], strides = [1, 1, 1]} : vector<2x32x192xf32> to vector<1x32x192xf32>
    %129 = vector.shape_cast %128 : vector<1x32x192xf32> to vector<32x192xf32>
    %130 = vector.extract_strided_slice %129 {offsets = [0, 0], sizes = [32, 96], strides = [1, 1]} : vector<32x192xf32> to vector<32x96xf32>
    %131 = vector.extract_strided_slice %129 {offsets = [0, 96], sizes = [32, 32], strides = [1, 1]} : vector<32x192xf32> to vector<32x32xf32>
    %132 = vector.extract_strided_slice %129 {offsets = [0, 128], sizes = [32, 64], strides = [1, 1]} : vector<32x192xf32> to vector<32x64xf32>
    %133 = vector.extract_strided_slice %2 {offsets = [1, 0, 0], sizes = [1, 64, 32], strides = [1, 1, 1]} : vector<2x64x32xf32> to vector<1x64x32xf32>
    %134 = vector.shape_cast %133 : vector<1x64x32xf32> to vector<64x32xf32>
    %cst_30 = arith.constant dense<0.000000e+00> : vector<16xf32>
    %135 = vector.multi_reduction <add>, %119, %cst_30 [1] : vector<16x32xf32> to vector<16xf32>
    %136 = vector.shape_cast %135 : vector<16xf32> to vector<16x1xf32>
    %cst_31 = arith.constant 3.200000e+01 : f32
    %137 = vector.broadcast %cst_31 : f32 to vector<16x1xf32>
    %138 = arith.divf %136, %137 : vector<16x1xf32>
    %139 = vector.broadcast %138 : vector<16x1xf32> to vector<16x32xf32>
    %140 = arith.subf %119, %139 : vector<16x32xf32>
    %141 = arith.mulf %140, %140 : vector<16x32xf32>
    %cst_32 = arith.constant dense<0.000000e+00> : vector<16xf32>
    %142 = vector.multi_reduction <add>, %141, %cst_32 [1] : vector<16x32xf32> to vector<16xf32>
    %143 = vector.shape_cast %142 : vector<16xf32> to vector<16x1xf32>
    %cst_33 = arith.constant 3.200000e+01 : f32
    %144 = vector.broadcast %cst_33 : f32 to vector<16x1xf32>
    %145 = arith.divf %143, %144 : vector<16x1xf32>
    %146 = vector.broadcast %138 : vector<16x1xf32> to vector<16x32xf32>
    %147 = arith.subf %119, %146 : vector<16x32xf32>
    %cst_34 = arith.constant 9.99999974E-6 : f32
    %148 = vector.broadcast %cst_34 : f32 to vector<16x1xf32>
    %149 = arith.addf %145, %148 : vector<16x1xf32>
    %150 = math.rsqrt %149 : vector<16x1xf32>
    %151 = vector.broadcast %150 : vector<16x1xf32> to vector<16x32xf32>
    %152 = arith.mulf %147, %151 : vector<16x32xf32>
    %153 = vector.broadcast %120 : vector<1x32xf32> to vector<16x32xf32>
    %154 = arith.mulf %152, %153 : vector<16x32xf32>
    %155 = vector.broadcast %121 : vector<1x32xf32> to vector<16x32xf32>
    %156 = arith.addf %154, %155 : vector<16x32xf32>
    %cst_35 = arith.constant dense<0.000000e+00> : vector<16x96xf32>
    %157 = tpu.matmul %156, %130, %cst_35 {dimension_numbers = #tpu.dot_dimension_numbers<[1], [0], [0], [1], [0, 0, 1, 1], [], []>, precision = #tpu.contract_precision<fp32>} : vector<16x32xf32>, vector<32x96xf32>, vector<16x96xf32> -> vector<16x96xf32>
    %158 = vector.broadcast %122 : vector<1x96xf32> to vector<16x96xf32>
    %159 = arith.addf %157, %158 : vector<16x96xf32>
    %160 = vector.shape_cast %159 : vector<16x96xf32> to vector<2x8x96xf32>
    %161 = vector.extract_strided_slice %160 {offsets = [0, 0, 0], sizes = [2, 8, 8], strides = [1, 1, 1]} : vector<2x8x96xf32> to vector<2x8x8xf32>
    %162 = vector.extract_strided_slice %160 {offsets = [0, 0, 8], sizes = [2, 8, 8], strides = [1, 1, 1]} : vector<2x8x96xf32> to vector<2x8x8xf32>
    %163 = vector.extract_strided_slice %160 {offsets = [0, 0, 16], sizes = [2, 8, 8], strides = [1, 1, 1]} : vector<2x8x96xf32> to vector<2x8x8xf32>
    %164 = vector.extract_strided_slice %160 {offsets = [0, 0, 24], sizes = [2, 8, 8], strides = [1, 1, 1]} : vector<2x8x96xf32> to vector<2x8x8xf32>
    %165 = tpu.concatenate %161, %162, %163, %164 in 0 : vector<2x8x8xf32>, vector<2x8x8xf32>, vector<2x8x8xf32>, vector<2x8x8xf32> -> vector<8x8x8xf32>
    %166 = vector.extract_strided_slice %160 {offsets = [0, 0, 32], sizes = [2, 8, 8], strides = [1, 1, 1]} : vector<2x8x96xf32> to vector<2x8x8xf32>
    %167 = vector.extract_strided_slice %160 {offsets = [0, 0, 40], sizes = [2, 8, 8], strides = [1, 1, 1]} : vector<2x8x96xf32> to vector<2x8x8xf32>
    %168 = vector.extract_strided_slice %160 {offsets = [0, 0, 48], sizes = [2, 8, 8], strides = [1, 1, 1]} : vector<2x8x96xf32> to vector<2x8x8xf32>
    %169 = vector.extract_strided_slice %160 {offsets = [0, 0, 56], sizes = [2, 8, 8], strides = [1, 1, 1]} : vector<2x8x96xf32> to vector<2x8x8xf32>
    %170 = tpu.concatenate %166, %167, %168, %169 in 0 : vector<2x8x8xf32>, vector<2x8x8xf32>, vector<2x8x8xf32>, vector<2x8x8xf32> -> vector<8x8x8xf32>
    %171 = vector.extract_strided_slice %160 {offsets = [0, 0, 64], sizes = [2, 8, 8], strides = [1, 1, 1]} : vector<2x8x96xf32> to vector<2x8x8xf32>
    %172 = vector.extract_strided_slice %160 {offsets = [0, 0, 72], sizes = [2, 8, 8], strides = [1, 1, 1]} : vector<2x8x96xf32> to vector<2x8x8xf32>
    %173 = vector.extract_strided_slice %160 {offsets = [0, 0, 80], sizes = [2, 8, 8], strides = [1, 1, 1]} : vector<2x8x96xf32> to vector<2x8x8xf32>
    %174 = vector.extract_strided_slice %160 {offsets = [0, 0, 88], sizes = [2, 8, 8], strides = [1, 1, 1]} : vector<2x8x96xf32> to vector<2x8x8xf32>
    %175 = tpu.concatenate %171, %172, %173, %174 in 0 : vector<2x8x8xf32>, vector<2x8x8xf32>, vector<2x8x8xf32>, vector<2x8x8xf32> -> vector<8x8x8xf32>
    "tpu.trace_start"() <{level = 10 : i32, message = "bnd,bmd->bnm"}> : () -> ()
    %cst_36 = arith.constant dense<0.000000e+00> : vector<8x8x8xf32>
    %176 = tpu.matmul %165, %170, %cst_36 {dimension_numbers = #tpu.dot_dimension_numbers<[2], [2], [1], [1], [0, 0, 0, 1, 1, 1], [0], [0]>, precision = #tpu.contract_precision<fp32>} : vector<8x8x8xf32>, vector<8x8x8xf32>, vector<8x8x8xf32> -> vector<8x8x8xf32>
    "tpu.trace_stop"() : () -> ()
    %cst_37 = arith.constant 0.353553385 : f32
    %177 = vector.broadcast %cst_37 : f32 to vector<8x8x8xf32>
    %178 = arith.mulf %176, %177 : vector<8x8x8xf32>
    %cst_38 = arith.constant dense<0xFF800000> : vector<8x8xf32>
    %179 = vector.multi_reduction <maximumf>, %178, %cst_38 [2] : vector<8x8x8xf32> to vector<8x8xf32>
    %180 = vector.shape_cast %179 : vector<8x8xf32> to vector<8x8x1xf32>
    %181 = vector.broadcast %180 : vector<8x8x1xf32> to vector<8x8x8xf32>
    %182 = arith.subf %178, %181 : vector<8x8x8xf32>
    %183 = math.exp %182 : vector<8x8x8xf32>
    %cst_39 = arith.constant dense<0.000000e+00> : vector<8x8xf32>
    %184 = vector.multi_reduction <add>, %183, %cst_39 [2] : vector<8x8x8xf32> to vector<8x8xf32>
    %185 = vector.shape_cast %184 : vector<8x8xf32> to vector<8x8x1xf32>
    %186 = vector.broadcast %185 : vector<8x8x1xf32> to vector<8x8x8xf32>
    %187 = arith.divf %183, %186 : vector<8x8x8xf32>
    "tpu.trace_start"() <{level = 10 : i32, message = "bnm,bmd->bnd"}> : () -> ()
    %cst_40 = arith.constant dense<0.000000e+00> : vector<8x8x8xf32>
    %188 = tpu.matmul %187, %175, %cst_40 {dimension_numbers = #tpu.dot_dimension_numbers<[2], [1], [1], [2], [0, 0, 0, 1, 1, 2], [0], [0]>, precision = #tpu.contract_precision<fp32>} : vector<8x8x8xf32>, vector<8x8x8xf32>, vector<8x8x8xf32> -> vector<8x8x8xf32>
    "tpu.trace_stop"() : () -> ()
    %189 = vector.extract_strided_slice %188 {offsets = [0, 0, 0], sizes = [2, 8, 8], strides = [1, 1, 1]} : vector<8x8x8xf32> to vector<2x8x8xf32>
    %190 = vector.extract_strided_slice %188 {offsets = [2, 0, 0], sizes = [2, 8, 8], strides = [1, 1, 1]} : vector<8x8x8xf32> to vector<2x8x8xf32>
    %191 = vector.extract_strided_slice %188 {offsets = [4, 0, 0], sizes = [2, 8, 8], strides = [1, 1, 1]} : vector<8x8x8xf32> to vector<2x8x8xf32>
    %192 = vector.extract_strided_slice %188 {offsets = [6, 0, 0], sizes = [2, 8, 8], strides = [1, 1, 1]} : vector<8x8x8xf32> to vector<2x8x8xf32>
    %193 = tpu.concatenate %189, %190, %191, %192 in 2 : vector<2x8x8xf32>, vector<2x8x8xf32>, vector<2x8x8xf32>, vector<2x8x8xf32> -> vector<2x8x32xf32>
    %194 = vector.shape_cast %193 : vector<2x8x32xf32> to vector<16x32xf32>
    %cst_41 = arith.constant dense<0.000000e+00> : vector<16x32xf32>
    %195 = tpu.matmul %194, %131, %cst_41 {dimension_numbers = #tpu.dot_dimension_numbers<[1], [0], [0], [1], [0, 0, 1, 1], [], []>, precision = #tpu.contract_precision<fp32>} : vector<16x32xf32>, vector<32x32xf32>, vector<16x32xf32> -> vector<16x32xf32>
    %196 = arith.addf %119, %195 : vector<16x32xf32>
    %197 = vector.broadcast %123 : vector<1x32xf32> to vector<16x32xf32>
    %198 = arith.addf %196, %197 : vector<16x32xf32>
    %cst_42 = arith.constant dense<0.000000e+00> : vector<16xf32>
    %199 = vector.multi_reduction <add>, %198, %cst_42 [1] : vector<16x32xf32> to vector<16xf32>
    %200 = vector.shape_cast %199 : vector<16xf32> to vector<16x1xf32>
    %cst_43 = arith.constant 3.200000e+01 : f32
    %201 = vector.broadcast %cst_43 : f32 to vector<16x1xf32>
    %202 = arith.divf %200, %201 : vector<16x1xf32>
    %203 = vector.broadcast %202 : vector<16x1xf32> to vector<16x32xf32>
    %204 = arith.subf %198, %203 : vector<16x32xf32>
    %205 = arith.mulf %204, %204 : vector<16x32xf32>
    %cst_44 = arith.constant dense<0.000000e+00> : vector<16xf32>
    %206 = vector.multi_reduction <add>, %205, %cst_44 [1] : vector<16x32xf32> to vector<16xf32>
    %207 = vector.shape_cast %206 : vector<16xf32> to vector<16x1xf32>
    %cst_45 = arith.constant 3.200000e+01 : f32
    %208 = vector.broadcast %cst_45 : f32 to vector<16x1xf32>
    %209 = arith.divf %207, %208 : vector<16x1xf32>
    %210 = vector.broadcast %202 : vector<16x1xf32> to vector<16x32xf32>
    %211 = arith.subf %198, %210 : vector<16x32xf32>
    %cst_46 = arith.constant 9.99999974E-6 : f32
    %212 = vector.broadcast %cst_46 : f32 to vector<16x1xf32>
    %213 = arith.addf %209, %212 : vector<16x1xf32>
    %214 = math.rsqrt %213 : vector<16x1xf32>
    %215 = vector.broadcast %214 : vector<16x1xf32> to vector<16x32xf32>
    %216 = arith.mulf %211, %215 : vector<16x32xf32>
    %217 = vector.broadcast %124 : vector<1x32xf32> to vector<16x32xf32>
    %218 = arith.mulf %216, %217 : vector<16x32xf32>
    %219 = vector.broadcast %125 : vector<1x32xf32> to vector<16x32xf32>
    %220 = arith.addf %218, %219 : vector<16x32xf32>
    %cst_47 = arith.constant dense<0.000000e+00> : vector<16x64xf32>
    %221 = tpu.matmul %220, %132, %cst_47 {dimension_numbers = #tpu.dot_dimension_numbers<[1], [0], [0], [1], [0, 0, 1, 1], [], []>, precision = #tpu.contract_precision<fp32>} : vector<16x32xf32>, vector<32x64xf32>, vector<16x64xf32> -> vector<16x64xf32>
    %222 = vector.broadcast %126 : vector<1x64xf32> to vector<16x64xf32>
    %223 = arith.addf %221, %222 : vector<16x64xf32>
    %cst_48 = arith.constant 5.000000e-01 : f32
    %224 = vector.broadcast %cst_48 : f32 to vector<16x64xf32>
    %225 = arith.mulf %224, %223 : vector<16x64xf32>
    %cst_49 = arith.constant 0.707106769 : f32
    %226 = vector.broadcast %cst_49 : f32 to vector<16x64xf32>
    %227 = arith.mulf %223, %226 : vector<16x64xf32>
    %228 = math.erf %227 : vector<16x64xf32>
    %cst_50 = arith.constant 1.000000e+00 : f32
    %229 = vector.broadcast %cst_50 : f32 to vector<16x64xf32>
    %230 = arith.addf %229, %228 : vector<16x64xf32>
    %231 = arith.mulf %225, %230 : vector<16x64xf32>
    %cst_51 = arith.constant dense<0.000000e+00> : vector<16x32xf32>
    %232 = tpu.matmul %231, %134, %cst_51 {dimension_numbers = #tpu.dot_dimension_numbers<[1], [0], [0], [1], [0, 0, 1, 1], [], []>, precision = #tpu.contract_precision<fp32>} : vector<16x64xf32>, vector<64x32xf32>, vector<16x32xf32> -> vector<16x32xf32>
    %233 = arith.addf %198, %232 : vector<16x32xf32>
    %234 = vector.broadcast %127 : vector<1x32xf32> to vector<16x32xf32>
    %235 = arith.addf %233, %234 : vector<16x32xf32>
    %236 = vector.extract_strided_slice %3 {offsets = [16, 0], sizes = [1, 32], strides = [1, 1]} : vector<18x96xf32> to vector<1x32xf32>
    %237 = vector.extract_strided_slice %3 {offsets = [17, 0], sizes = [1, 32], strides = [1, 1]} : vector<18x96xf32> to vector<1x32xf32>
    %cst_52 = arith.constant dense<0.000000e+00> : vector<16xf32>
    %238 = vector.multi_reduction <add>, %235, %cst_52 [1] : vector<16x32xf32> to vector<16xf32>
    %239 = vector.shape_cast %238 : vector<16xf32> to vector<16x1xf32>
    %cst_53 = arith.constant 3.200000e+01 : f32
    %240 = vector.broadcast %cst_53 : f32 to vector<16x1xf32>
    %241 = arith.divf %239, %240 : vector<16x1xf32>
    %242 = vector.broadcast %241 : vector<16x1xf32> to vector<16x32xf32>
    %243 = arith.subf %235, %242 : vector<16x32xf32>
    %244 = arith.mulf %243, %243 : vector<16x32xf32>
    %cst_54 = arith.constant dense<0.000000e+00> : vector<16xf32>
    %245 = vector.multi_reduction <add>, %244, %cst_54 [1] : vector<16x32xf32> to vector<16xf32>
    %246 = vector.shape_cast %245 : vector<16xf32> to vector<16x1xf32>
    %cst_55 = arith.constant 3.200000e+01 : f32
    %247 = vector.broadcast %cst_55 : f32 to vector<16x1xf32>
    %248 = arith.divf %246, %247 : vector<16x1xf32>
    %249 = vector.broadcast %241 : vector<16x1xf32> to vector<16x32xf32>
    %250 = arith.subf %235, %249 : vector<16x32xf32>
    %cst_56 = arith.constant 9.99999974E-6 : f32
    %251 = vector.broadcast %cst_56 : f32 to vector<16x1xf32>
    %252 = arith.addf %248, %251 : vector<16x1xf32>
    %253 = math.rsqrt %252 : vector<16x1xf32>
    %254 = vector.broadcast %253 : vector<16x1xf32> to vector<16x32xf32>
    %255 = arith.mulf %250, %254 : vector<16x32xf32>
    %256 = vector.broadcast %236 : vector<1x32xf32> to vector<16x32xf32>
    %257 = arith.mulf %255, %256 : vector<16x32xf32>
    %258 = vector.broadcast %237 : vector<1x32xf32> to vector<16x32xf32>
    %259 = arith.addf %257, %258 : vector<16x32xf32>
    %c0_57 = arith.constant 0 : index
    %c0_58 = arith.constant 0 : index
    %260 = vector.load %arg4[%c0_57, %c0_58] : memref<16x32xf32, #tpu.memory_space<vmem>>, vector<16x32xf32>
    tpu.vector_store %arg4[%c0_57, %c0_58], %259 {strides = array<i32>} : memref<16x32xf32, #tpu.memory_space<vmem>>, vector<16x32xf32>,
    return
  }
}

</mosaic_0001>

<llo_original>
// kernel: tpu_custom_call.1
$region0: #{tpu_custom_call.1}
  #allocation0 [shape = 'u32[]', space=smem, size = 0x4, offset = 0x4, fixed_abs, tag = 'smem constant byte address 0x4 - core index']
  #allocation1 [shape = 'u32[72,128]{1,0:T(1,128)}', space=vmem, size = 0x9000, scoped, tag = 'internal scratch']
  %s0 = inlined_call_operand.vmem [shape: f32[16,32], index: 0, kind: input, shape index: {}]
  %s1 = inlined_call_operand.vmem [shape: f32[2,32,192], index: 1, kind: input, shape index: {}]
  %s2 = inlined_call_operand.vmem [shape: f32[2,64,32], index: 2, kind: input, shape index: {}]
  %s3 = inlined_call_operand.vmem [shape: f32[18,96], index: 3, kind: input, shape index: {}]
  %s4 = inlined_call_operand.hbm [shape: f32[16,32], index: 4, kind: output, shape index: {}]
  %s5 = sld [smem:[#allocation0]]
  $region26: #{tpu_custom_call.1} parent=0
    _
  %s7 = ssub.s32 1, %s5
  %s8 = scalar_select 0, %s7, %s5
  $region1: #{tpu_custom_call.1} parent=0
    #allocation2 [shape = 'u8[8192]{0}', space=vmem, size = 0x2000, scoped, tag = 'output window, operand 0, single buffered']
    #allocation3 [shape = 's32[1]{0}', space=sflag, size = 0x4, scoped, tag = 'scoped memory for tpu_custom_call.1']
    %9 = vsyncpa [#allocation3], 0
    // Predicated region
    $region2: #{tpu_custom_call.1} parent=1 // pred_check
      _
    $region3: #{tpu_custom_call.1} parent=1 // pred_check_branch
      %11 = sbr.rel (0) target = $region5
    $region4: #{tpu_custom_call.1} parent=1 // pred_region
      _
    $region5: #{tpu_custom_call.1} parent=1 // pred_fallthru
      _
    // Predicated region
    $region6: #{tpu_custom_call.1} parent=1 // pred_check
      _
    $region7: #{tpu_custom_call.1} parent=1 // pred_check_branch
      %13 = sbr.rel (0) target = $region9
    $region8: #{tpu_custom_call.1} parent=1 // pred_region
      _
    $region9: #{tpu_custom_call.1} parent=1 // pred_fallthru
      _
    // Predicated region
    $region10: #{tpu_custom_call.1} parent=1 // pred_check
      _
    $region11: #{tpu_custom_call.1} parent=1 // pred_check_branch
      %15 = sbr.rel (0) target = $region13
    $region12: #{tpu_custom_call.1} parent=1 // pred_region
      _
    $region13: #{tpu_custom_call.1} parent=1 // pred_fallthru
      _
    // Predicated region
    $region14: #{tpu_custom_call.1} parent=1 // pred_check
      _
    $region15: #{tpu_custom_call.1} parent=1 // pred_check_branch
      %17 = sbr.rel (0) target = $region17
    $region16: #{tpu_custom_call.1} parent=1 // pred_region
      _
    $region17: #{tpu_custom_call.1} parent=1 // pred_fallthru
      _
    %v18 = vld [vmem:[%s0] sm:$0xff]
    %v19 = vld [vmem:[%s0 + $0x8] sm:$0xff]
    %v20 = vld [vmem:[%s1] sm:$0xff]
    %v21 = vld [vmem:[%s1 + $0x8] sm:$0xff]
    %v22 = vld [vmem:[%s1 + $0x10] sm:$0xff]
    %v23 = vld [vmem:[%s1 + $0x18] sm:$0xff]
    %v24 = vld [vmem:[%s1 + $0x20] sm:$0xff]
    %v25 = vld [vmem:[%s1 + $0x28] sm:$0xff]
    %v26 = vld [vmem:[%s1 + $0x30] sm:$0xff]
    %v27 = vld [vmem:[%s1 + $0x38] sm:$0xff]
    %v28 = vld [vmem:[%s1 + $0x40] sm:$0xff]
    %v29 = vld [vmem:[%s1 + $0x48] sm:$0xff]
    %v30 = vld [vmem:[%s1 + $0x50] sm:$0xff]
    %v31 = vld [vmem:[%s1 + $0x58] sm:$0xff]
    %v32 = vld [vmem:[%s1 + $0x60] sm:$0xff]
    %v33 = vld [vmem:[%s1 + $0x68] sm:$0xff]
    %v34 = vld [vmem:[%s1 + $0x70] sm:$0xff]
    %v35 = vld [vmem:[%s1 + $0x78] sm:$0xff]
    %v36 = vld [vmem:[%s2] sm:$0xff]
    %v37 = vld [vmem:[%s2 + $0x8] sm:$0xff]
    %v38 = vld [vmem:[%s2 + $0x10] sm:$0xff]
    %v39 = vld [vmem:[%s2 + $0x18] sm:$0xff]
    %v40 = vld [vmem:[%s2 + $0x20] sm:$0xff]
    %v41 = vld [vmem:[%s2 + $0x28] sm:$0xff]
    %v42 = vld [vmem:[%s2 + $0x30] sm:$0xff]
    %v43 = vld [vmem:[%s2 + $0x38] sm:$0xff]
    %v44 = vld [vmem:[%s2 + $0x40] sm:$0xff]
    %v45 = vld [vmem:[%s2 + $0x48] sm:$0xff]
    %v46 = vld [vmem:[%s2 + $0x50] sm:$0xff]
    %v47 = vld [vmem:[%s2 + $0x58] sm:$0xff]
    %v48 = vld [vmem:[%s2 + $0x60] sm:$0xff]
    %v49 = vld [vmem:[%s2 + $0x68] sm:$0xff]
    %v50 = vld [vmem:[%s2 + $0x70] sm:$0xff]
    %v51 = vld [vmem:[%s2 + $0x78] sm:$0xff]
    %v52 = vld [vmem:[%s3] sm:$0xff]
    %v53 = vld [vmem:[%s3 + $0x8] sm:$0xff]
    %v54 = vld [vmem:[%s3 + $0x10] sm:$0x3]
    %vm55 = vcmask 261120
    %v56 = vsel %vm55, %v18, 0.0
    %57 = vadd.xlane.f32.xlu0 %v56
    %v58 = vpop.xlane.xlu0 %57
    %v59 = vsel %vm55, %v19, 0.0
    %60 = vadd.xlane.f32.xlu0 %v59
    %v61 = vpop.xlane.xlu0 %60
    %v62 = vrcp.pop 32.0
    %v63 = vmul.f32 32.0, %v62
    %v64 = vsub.f32 1.0, %v63
    %v65 = vmul.f32 %v62, %v64
    %v66 = vadd.f32 %v62, %v65
    %vm67 = vweird.f32 %v62
    %v68 = vsel %vm67, %v62, %v66
    %v69 = vmul.f32 %v58, %v68
    %v70 = vmul.f32 %v61, %v68
    %v71 = vsub.f32 %v18, %v69
    %v72 = vsub.f32 %v19, %v70
    %v73 = vmul.f32 %v71, %v71
    %v74 = vmul.f32 %v72, %v72
    %v75 = vsel %vm55, %v73, 0.0
    %76 = vadd.xlane.f32.xlu0 %v75
    %v77 = vpop.xlane.xlu0 %76
    %v78 = vsel %vm55, %v74, 0.0
    %79 = vadd.xlane.f32.xlu0 %v78
    %v80 = vpop.xlane.xlu0 %79
    %v81 = vmul.f32 %v77, %v68
    %v82 = vmul.f32 %v80, %v68
    %v83 = vadd.f32 %v81, 1e-05
    %v84 = vadd.f32 %v82, 1e-05
    %v85 = vrsqrt.pop %v83
    %v86 = vmul.f32 %v85, %v83
    %v87 = vmul.f32 %v86, %v85
    %v88 = vmul.f32 0.5, %v87
    %v89 = vsub.f32 1.5, %v88
    %v90 = vmul.f32 %v85, %v89
    %vm91 = vweird.f32 %v83
    %vm92 = vweird.f32 %v85
    %vm93 = vmor %vm91, %vm92
    %v94 = vsel %vm93, %v85, %v90
    %v95 = vrsqrt.pop %v84
    %v96 = vmul.f32 %v95, %v84
    %v97 = vmul.f32 %v96, %v95
    %v98 = vmul.f32 0.5, %v97
    %v99 = vsub.f32 1.5, %v98
    %v100 = vmul.f32 %v95, %v99
    %vm101 = vweird.f32 %v84
    %vm102 = vweird.f32 %v95
    %vm103 = vmor %vm101, %vm102
    %v104 = vsel %vm103, %v95, %v100
    %v105 = vmul.f32 %v71, %v94
    %v106 = vmul.f32 %v72, %v104
    %v107 = vperm.slane %v52, 0
    %v108 = vmul.f32 %v105, %v107
    %v109 = vmul.f32 %v106, %v107
    %v110 = vperm.slane %v52, 1
    %v111 = vadd.f32 %v108, %v110
    %v112 = vadd.f32 %v109, %v110
    %v113 = vperm.slane %v52, 2
    %v115 = vsel %vm55, %v111, 0
    %v118 = vsel %vm55, %v112, 0
    %120 = vmatpush.msra.mxu0 0.0
    %121 = vmatpush.msra.mxu0 0.0
    %122 = vmatpush.msra.mxu0 0.0
    %123 = vmatpush.msra.mxu0 0.0
    %124 = vmatpush.msra.mxu0 0.0
    %125 = vmatpush.msra.mxu0 0.0
    %126 = vmatpush.msra.mxu0 0.0
    %127 = vmatpush.msra.mxu0 0.0
    %128 = vmatpush.msra.mxu0 0.0
    %129 = vmatpush.msra.mxu0 0.0
    %130 = vmatpush.msra.mxu0 0.0
    %131 = vmatpush.msra.mxu0 0.0
    %v132 = vand.u32 %v26, 4294901760
    %133 = vmatpush.msra.mxu0 %v132
    %v134 = vand.u32 %v24, 4294901760
    %135 = vmatpush.msra.mxu0 %v134
    %v136 = vand.u32 %v22, 4294901760
    %137 = vmatpush.msra.mxu0 %v136
    %v138 = vand.u32 %v20, 4294901760
    %139 = vmatpush.msra.mxu0 %v138
    %v140 = vand.u32 %v115, 4294901760
    %v141 = vsub.f32 %v115, %v140
    %v142 = vand.u32 %v141, 4294901760
    %v143 = vsub.f32 %v141, %v142
    %v144 = vand.u32 %v143, 4294901760
    %145 = vmatmul.f32.gmra.mxu0 %v144
    %v146 = vpop.f32.mrf.mxu0
    %v147 = vadd.f32 %v113, %v146
    %v148 = vand.u32 %v118, 4294901760
    %v149 = vsub.f32 %v118, %v148
    %v150 = vand.u32 %v149, 4294901760
    %v151 = vsub.f32 %v149, %v150
    %v152 = vand.u32 %v151, 4294901760
    %153 = vmatmul.f32.gmra.mxu0 %v152
    %v154 = vpop.f32.mrf.mxu0
    %v155 = vadd.f32 %v113, %v154
    %156 = vdwg.mxu0
    %157 = vmatpush.msra.mxu0 0.0
    %158 = vmatpush.msra.mxu0 0.0
    %159 = vmatpush.msra.mxu0 0.0
    %160 = vmatpush.msra.mxu0 0.0
    %161 = vmatpush.msra.mxu0 0.0
    %162 = vmatpush.msra.mxu0 0.0
    %163 = vmatpush.msra.mxu0 0.0
    %164 = vmatpush.msra.mxu0 0.0
    %165 = vmatpush.msra.mxu0 0.0
    %166 = vmatpush.msra.mxu0 0.0
    %167 = vmatpush.msra.mxu0 0.0
    %168 = vmatpush.msra.mxu0 0.0
    %v169 = vand.u32 %v26, 4294901760
    %v170 = vsub.f32 %v26, %v169
    %v171 = vand.u32 %v170, 4294901760
    %v172 = vsub.f32 %v170, %v171
    %v173 = vand.u32 %v172, 4294901760
    %174 = vmatpush.msra.mxu0 %v173
    %v175 = vand.u32 %v24, 4294901760
    %v176 = vsub.f32 %v24, %v175
    %v177 = vand.u32 %v176, 4294901760
    %v178 = vsub.f32 %v176, %v177
    %v179 = vand.u32 %v178, 4294901760
    %180 = vmatpush.msra.mxu0 %v179
    %v181 = vand.u32 %v22, 4294901760
    %v182 = vsub.f32 %v22, %v181
    %v183 = vand.u32 %v182, 4294901760
    %v184 = vsub.f32 %v182, %v183
    %v185 = vand.u32 %v184, 4294901760
    %186 = vmatpush.msra.mxu0 %v185
    %v187 = vand.u32 %v20, 4294901760
    %v188 = vsub.f32 %v20, %v187
    %v189 = vand.u32 %v188, 4294901760
    %v190 = vsub.f32 %v188, %v189
    %v191 = vand.u32 %v190, 4294901760
    %192 = vmatpush.msra.mxu0 %v191
    %v193 = vand.u32 %v115, 4294901760
    %194 = vmatmul.f32.gmra.mxu0 %v193
    %v195 = vpop.f32.mrf.mxu0
    %v196 = vadd.f32 %v147, %v195
    %v197 = vand.u32 %v118, 4294901760
    %198 = vmatmul.f32.gmra.mxu0 %v197
    %v199 = vpop.f32.mrf.mxu0
    %v200 = vadd.f32 %v155, %v199
    %201 = vdwg.mxu0
    %202 = vmatpush.msra.mxu0 0.0
    %203 = vmatpush.msra.mxu0 0.0
    %204 = vmatpush.msra.mxu0 0.0
    %205 = vmatpush.msra.mxu0 0.0
    %206 = vmatpush.msra.mxu0 0.0
    %207 = vmatpush.msra.mxu0 0.0
    %208 = vmatpush.msra.mxu0 0.0
    %209 = vmatpush.msra.mxu0 0.0
    %210 = vmatpush.msra.mxu0 0.0
    %211 = vmatpush.msra.mxu0 0.0
    %212 = vmatpush.msra.mxu0 0.0
    %213 = vmatpush.msra.mxu0 0.0
    %v214 = vand.u32 %v26, 4294901760
    %v215 = vsub.f32 %v26, %v214
    %216 = vmatpush.msra.mxu0 %v215
    %v217 = vand.u32 %v24, 4294901760
    %v218 = vsub.f32 %v24, %v217
    %219 = vmatpush.msra.mxu0 %v218
    %v220 = vand.u32 %v22, 4294901760
    %v221 = vsub.f32 %v22, %v220
    %222 = vmatpush.msra.mxu0 %v221
    %v223 = vand.u32 %v20, 4294901760
    %v224 = vsub.f32 %v20, %v223
    %225 = vmatpush.msra.mxu0 %v224
    %v226 = vand.u32 %v115, 4294901760
    %v227 = vsub.f32 %v115, %v226
    %228 = vmatmul.f32.gmra.mxu0 %v227
    %v229 = vpop.f32.mrf.mxu0
    %v230 = vadd.f32 %v196, %v229
    %v231 = vand.u32 %v118, 4294901760
    %v232 = vsub.f32 %v118, %v231
    %233 = vmatmul.f32.gmra.mxu0 %v232
    %v234 = vpop.f32.mrf.mxu0
    %v235 = vadd.f32 %v200, %v234
    %236 = vdwg.mxu0
    %237 = vmatpush.msra.mxu0 0.0
    %238 = vmatpush.msra.mxu0 0.0
    %239 = vmatpush.msra.mxu0 0.0
    %240 = vmatpush.msra.mxu0 0.0
    %241 = vmatpush.msra.mxu0 0.0
    %242 = vmatpush.msra.mxu0 0.0
    %243 = vmatpush.msra.mxu0 0.0
    %244 = vmatpush.msra.mxu0 0.0
    %245 = vmatpush.msra.mxu0 0.0
    %246 = vmatpush.msra.mxu0 0.0
    %247 = vmatpush.msra.mxu0 0.0
    %248 = vmatpush.msra.mxu0 0.0
    %v249 = vand.u32 %v26, 4294901760
    %250 = vmatpush.msra.mxu0 %v249
    %v251 = vand.u32 %v24, 4294901760
    %252 = vmatpush.msra.mxu0 %v251
    %v253 = vand.u32 %v22, 4294901760
    %254 = vmatpush.msra.mxu0 %v253
    %v255 = vand.u32 %v20, 4294901760
    %256 = vmatpush.msra.mxu0 %v255
    %v257 = vand.u32 %v115, 4294901760
    %v258 = vsub.f32 %v115, %v257
    %v259 = vand.u32 %v258, 4294901760
    %260 = vmatmul.f32.gmra.mxu0 %v259
    %v261 = vpop.f32.mrf.mxu0
    %v262 = vadd.f32 %v230, %v261
    %v263 = vand.u32 %v118, 4294901760
    %v264 = vsub.f32 %v118, %v263
    %v265 = vand.u32 %v264, 4294901760
    %266 = vmatmul.f32.gmra.mxu0 %v265
    %v267 = vpop.f32.mrf.mxu0
    %v268 = vadd.f32 %v235, %v267
    %269 = vdwg.mxu0
    %270 = vmatpush.msra.mxu0 0.0
    %271 = vmatpush.msra.mxu0 0.0
    %272 = vmatpush.msra.mxu0 0.0
    %273 = vmatpush.msra.mxu0 0.0
    %274 = vmatpush.msra.mxu0 0.0
    %275 = vmatpush.msra.mxu0 0.0
    %276 = vmatpush.msra.mxu0 0.0
    %277 = vmatpush.msra.mxu0 0.0
    %278 = vmatpush.msra.mxu0 0.0
    %279 = vmatpush.msra.mxu0 0.0
    %280 = vmatpush.msra.mxu0 0.0
    %281 = vmatpush.msra.mxu0 0.0
    %v282 = vand.u32 %v26, 4294901760
    %v283 = vsub.f32 %v26, %v282
    %v284 = vand.u32 %v283, 4294901760
    %285 = vmatpush.msra.mxu0 %v284
    %v286 = vand.u32 %v24, 4294901760
    %v287 = vsub.f32 %v24, %v286
    %v288 = vand.u32 %v287, 4294901760
    %289 = vmatpush.msra.mxu0 %v288
    %v290 = vand.u32 %v22, 4294901760
    %v291 = vsub.f32 %v22, %v290
    %v292 = vand.u32 %v291, 4294901760
    %293 = vmatpush.msra.mxu0 %v292
    %v294 = vand.u32 %v20, 4294901760
    %v295 = vsub.f32 %v20, %v294
    %v296 = vand.u32 %v295, 4294901760
    %297 = vmatpush.msra.mxu0 %v296
    %v298 = vand.u32 %v115, 4294901760
    %299 = vmatmul.f32.gmra.mxu0 %v298
    %v300 = vpop.f32.mrf.mxu0
    %v301 = vadd.f32 %v262, %v300
    %v302 = vand.u32 %v118, 4294901760
    %303 = vmatmul.f32.gmra.mxu0 %v302
    %v304 = vpop.f32.mrf.mxu0
    %v305 = vadd.f32 %v268, %v304
    %306 = vdwg.mxu0
    %307 = vmatpush.msra.mxu0 0.0
    %308 = vmatpush.msra.mxu0 0.0
    %309 = vmatpush.msra.mxu0 0.0
    %310 = vmatpush.msra.mxu0 0.0
    %311 = vmatpush.msra.mxu0 0.0
    %312 = vmatpush.msra.mxu0 0.0
    %313 = vmatpush.msra.mxu0 0.0
    %314 = vmatpush.msra.mxu0 0.0
    %315 = vmatpush.msra.mxu0 0.0
    %316 = vmatpush.msra.mxu0 0.0
    %317 = vmatpush.msra.mxu0 0.0
    %318 = vmatpush.msra.mxu0 0.0
    %v319 = vand.u32 %v26, 4294901760
    %320 = vmatpush.msra.mxu0 %v319
    %v321 = vand.u32 %v24, 4294901760
    %322 = vmatpush.msra.mxu0 %v321
    %v323 = vand.u32 %v22, 4294901760
    %324 = vmatpush.msra.mxu0 %v323
    %v325 = vand.u32 %v20, 4294901760
    %326 = vmatpush.msra.mxu0 %v325
    %v327 = vand.u32 %v115, 4294901760
    %328 = vmatmul.f32.gmra.mxu0 %v327
    %v329 = vpop.f32.mrf.mxu0
    %v330 = vadd.f32 %v301, %v329
    %v331 = vand.u32 %v118, 4294901760
    %332 = vmatmul.f32.gmra.mxu0 %v331
    %v333 = vpop.f32.mrf.mxu0
    %v334 = vadd.f32 %v305, %v333
    %335 = vdwg.mxu0
    %338 = vrot.lane.b32.xlu0 %v330, 120
    %v339 = vpop.permute.xlu0 %338
    %340 = vrot.lane.b32.xlu0 %v334, 120
    %v341 = vpop.permute.xlu0 %340
    %342 = vrot.lane.b32.xlu0 %v330, 112
    %v343 = vpop.permute.xlu0 %342
    %344 = vrot.lane.b32.xlu0 %v334, 112
    %v345 = vpop.permute.xlu0 %344
    %346 = vrot.lane.b32.xlu0 %v330, 104
    %v347 = vpop.permute.xlu0 %346
    %348 = vrot.lane.b32.xlu0 %v334, 104
    %v349 = vpop.permute.xlu0 %348
    %350 = vrot.lane.b32.xlu0 %v330, 96
    %v351 = vpop.permute.xlu0 %350
    %vm352 = vcmask 64512
    %v353 = vsel %vm352, %v330, 0
    %v355 = vsel %vm352, %v351, 0
    %357 = vmatpush.xpose.msra.mxu0 0.0
    %358 = vmatpush.xpose.msra.mxu0 0.0
    %359 = vmatpush.xpose.msra.mxu0 0.0
    %360 = vmatpush.xpose.msra.mxu0 0.0
    %361 = vmatpush.xpose.msra.mxu0 0.0
    %362 = vmatpush.xpose.msra.mxu0 0.0
    %363 = vmatpush.xpose.msra.mxu0 0.0
    %364 = vmatpush.xpose.msra.mxu0 0.0
    %365 = vmatpush.xpose.msra.mxu0 0.0
    %366 = vmatpush.xpose.msra.mxu0 0.0
    %367 = vmatpush.xpose.msra.mxu0 0.0
    %368 = vmatpush.xpose.msra.mxu0 0.0
    %369 = vmatpush.xpose.msra.mxu0 0.0
    %370 = vmatpush.xpose.msra.mxu0 0.0
    %371 = vmatpush.xpose.msra.mxu0 0.0
    %v372 = vand.u32 %v355, 4294901760
    %373 = vmatpush.xpose.msra.mxu0 %v372
    %v374 = vand.u32 %v353, 4294901760
    %v375 = vsub.f32 %v353, %v374
    %v376 = vand.u32 %v375, 4294901760
    %v377 = vsub.f32 %v375, %v376
    %v378 = vand.u32 %v377, 4294901760
    %379 = vmatmul.f32.gmra.mxu0 %v378
    %v380 = vpop.f32.mrf.mxu0
    %v381 = vadd.f32 0.0, %v380
    %382 = vdwg.mxu0
    %383 = vmatpush.xpose.msra.mxu0 0.0
    %384 = vmatpush.xpose.msra.mxu0 0.0
    %385 = vmatpush.xpose.msra.mxu0 0.0
    %386 = vmatpush.xpose.msra.mxu0 0.0
    %387 = vmatpush.xpose.msra.mxu0 0.0
    %388 = vmatpush.xpose.msra.mxu0 0.0
    %389 = vmatpush.xpose.msra.mxu0 0.0
    %390 = vmatpush.xpose.msra.mxu0 0.0
    %391 = vmatpush.xpose.msra.mxu0 0.0
    %392 = vmatpush.xpose.msra.mxu0 0.0
    %393 = vmatpush.xpose.msra.mxu0 0.0
    %394 = vmatpush.xpose.msra.mxu0 0.0
    %395 = vmatpush.xpose.msra.mxu0 0.0
    %396 = vmatpush.xpose.msra.mxu0 0.0
    %397 = vmatpush.xpose.msra.mxu0 0.0
    %v398 = vand.u32 %v355, 4294901760
    %v399 = vsub.f32 %v355, %v398
    %v400 = vand.u32 %v399, 4294901760
    %v401 = vsub.f32 %v399, %v400
    %v402 = vand.u32 %v401, 4294901760
    %403 = vmatpush.xpose.msra.mxu0 %v402
    %v404 = vand.u32 %v353, 4294901760
    %405 = vmatmul.f32.gmra.mxu0 %v404
    %v406 = vpop.f32.mrf.mxu0
    %v407 = vadd.f32 %v381, %v406
    %408 = vdwg.mxu0
    %409 = vmatpush.xpose.msra.mxu0 0.0
    %410 = vmatpush.xpose.msra.mxu0 0.0
    %411 = vmatpush.xpose.msra.mxu0 0.0
    %412 = vmatpush.xpose.msra.mxu0 0.0
    %413 = vmatpush.xpose.msra.mxu0 0.0
    %414 = vmatpush.xpose.msra.mxu0 0.0
    %415 = vmatpush.xpose.msra.mxu0 0.0
    %416 = vmatpush.xpose.msra.mxu0 0.0
    %417 = vmatpush.xpose.msra.mxu0 0.0
    %418 = vmatpush.xpose.msra.mxu0 0.0
    %419 = vmatpush.xpose.msra.mxu0 0.0
    %420 = vmatpush.xpose.msra.mxu0 0.0
    %421 = vmatpush.xpose.msra.mxu0 0.0
    %422 = vmatpush.xpose.msra.mxu0 0.0
    %423 = vmatpush.xpose.msra.mxu0 0.0
    %v424 = vand.u32 %v355, 4294901760
    %v425 = vsub.f32 %v355, %v424
    %426 = vmatpush.xpose.msra.mxu0 %v425
    %v427 = vand.u32 %v353, 4294901760
    %v428 = vsub.f32 %v353, %v427
    %429 = vmatmul.f32.gmra.mxu0 %v428
    %v430 = vpop.f32.mrf.mxu0
    %v431 = vadd.f32 %v407, %v430
    %432 = vdwg.mxu0
    %433 = vmatpush.xpose.msra.mxu0 0.0
    %434 = vmatpush.xpose.msra.mxu0 0.0
    %435 = vmatpush.xpose.msra.mxu0 0.0
    %436 = vmatpush.xpose.msra.mxu0 0.0
    %437 = vmatpush.xpose.msra.mxu0 0.0
    %438 = vmatpush.xpose.msra.mxu0 0.0
    %439 = vmatpush.xpose.msra.mxu0 0.0
    %440 = vmatpush.xpose.msra.mxu0 0.0
    %441 = vmatpush.xpose.msra.mxu0 0.0
    %442 = vmatpush.xpose.msra.mxu0 0.0
    %443 = vmatpush.xpose.msra.mxu0 0.0
    %444 = vmatpush.xpose.msra.mxu0 0.0
    %445 = vmatpush.xpose.msra.mxu0 0.0
    %446 = vmatpush.xpose.msra.mxu0 0.0
    %447 = vmatpush.xpose.msra.mxu0 0.0
    %v448 = vand.u32 %v355, 4294901760
    %449 = vmatpush.xpose.msra.mxu0 %v448
    %v450 = vand.u32 %v353, 4294901760
    %v451 = vsub.f32 %v353, %v450
    %v452 = vand.u32 %v451, 4294901760
    %453 = vmatmul.f32.gmra.mxu0 %v452
    %v454 = vpop.f32.mrf.mxu0
    %v455 = vadd.f32 %v431, %v454
    %456 = vdwg.mxu0
    %457 = vmatpush.xpose.msra.mxu0 0.0
    %458 = vmatpush.xpose.msra.mxu0 0.0
    %459 = vmatpush.xpose.msra.mxu0 0.0
    %460 = vmatpush.xpose.msra.mxu0 0.0
    %461 = vmatpush.xpose.msra.mxu0 0.0
    %462 = vmatpush.xpose.msra.mxu0 0.0
    %463 = vmatpush.xpose.msra.mxu0 0.0
    %464 = vmatpush.xpose.msra.mxu0 0.0
    %465 = vmatpush.xpose.msra.mxu0 0.0
    %466 = vmatpush.xpose.msra.mxu0 0.0
    %467 = vmatpush.xpose.msra.mxu0 0.0
    %468 = vmatpush.xpose.msra.mxu0 0.0
    %469 = vmatpush.xpose.msra.mxu0 0.0
    %470 = vmatpush.xpose.msra.mxu0 0.0
    %471 = vmatpush.xpose.msra.mxu0 0.0
    %v472 = vand.u32 %v355, 4294901760
    %v473 = vsub.f32 %v355, %v472
    %v474 = vand.u32 %v473, 4294901760
    %475 = vmatpush.xpose.msra.mxu0 %v474
    %v476 = vand.u32 %v353, 4294901760
    %477 = vmatmul.f32.gmra.mxu0 %v476
    %v478 = vpop.f32.mrf.mxu0
    %v479 = vadd.f32 %v455, %v478
    %480 = vdwg.mxu0
    %481 = vmatpush.xpose.msra.mxu0 0.0
    %482 = vmatpush.xpose.msra.mxu0 0.0
    %483 = vmatpush.xpose.msra.mxu0 0.0
    %484 = vmatpush.xpose.msra.mxu0 0.0
    %485 = vmatpush.xpose.msra.mxu0 0.0
    %486 = vmatpush.xpose.msra.mxu0 0.0
    %487 = vmatpush.xpose.msra.mxu0 0.0
    %488 = vmatpush.xpose.msra.mxu0 0.0
    %489 = vmatpush.xpose.msra.mxu0 0.0
    %490 = vmatpush.xpose.msra.mxu0 0.0
    %491 = vmatpush.xpose.msra.mxu0 0.0
    %492 = vmatpush.xpose.msra.mxu0 0.0
    %493 = vmatpush.xpose.msra.mxu0 0.0
    %494 = vmatpush.xpose.msra.mxu0 0.0
    %495 = vmatpush.xpose.msra.mxu0 0.0
    %v496 = vand.u32 %v355, 4294901760
    %497 = vmatpush.xpose.msra.mxu0 %v496
    %v498 = vand.u32 %v353, 4294901760
    %499 = vmatmul.f32.gmra.mxu0 %v498
    %v500 = vpop.f32.mrf.mxu0
    %v501 = vadd.f32 %v479, %v500
    %502 = vdwg.mxu0
    %503 = vrot.lane.b32.xlu0 %v334, 96
    %v504 = vpop.permute.xlu0 %503
    %v505 = vsel %vm352, %v334, 0
    %v507 = vsel %vm352, %v504, 0
    %509 = vmatpush.xpose.msra.mxu0 0.0
    %510 = vmatpush.xpose.msra.mxu0 0.0
    %511 = vmatpush.xpose.msra.mxu0 0.0
    %512 = vmatpush.xpose.msra.mxu0 0.0
    %513 = vmatpush.xpose.msra.mxu0 0.0
    %514 = vmatpush.xpose.msra.mxu0 0.0
    %515 = vmatpush.xpose.msra.mxu0 0.0
    %516 = vmatpush.xpose.msra.mxu0 0.0
    %517 = vmatpush.xpose.msra.mxu0 0.0
    %518 = vmatpush.xpose.msra.mxu0 0.0
    %519 = vmatpush.xpose.msra.mxu0 0.0
    %520 = vmatpush.xpose.msra.mxu0 0.0
    %521 = vmatpush.xpose.msra.mxu0 0.0
    %522 = vmatpush.xpose.msra.mxu0 0.0
    %523 = vmatpush.xpose.msra.mxu0 0.0
    %v524 = vand.u32 %v507, 4294901760
    %525 = vmatpush.xpose.msra.mxu0 %v524
    %v526 = vand.u32 %v505, 4294901760
    %v527 = vsub.f32 %v505, %v526
    %v528 = vand.u32 %v527, 4294901760
    %v529 = vsub.f32 %v527, %v528
    %v530 = vand.u32 %v529, 4294901760
    %531 = vmatmul.f32.gmra.mxu0 %v530
    %v532 = vpop.f32.mrf.mxu0
    %v533 = vadd.f32 0.0, %v532
    %534 = vdwg.mxu0
    %535 = vmatpush.xpose.msra.mxu0 0.0
    %536 = vmatpush.xpose.msra.mxu0 0.0
    %537 = vmatpush.xpose.msra.mxu0 0.0
    %538 = vmatpush.xpose.msra.mxu0 0.0
    %539 = vmatpush.xpose.msra.mxu0 0.0
    %540 = vmatpush.xpose.msra.mxu0 0.0
    %541 = vmatpush.xpose.msra.mxu0 0.0
    %542 = vmatpush.xpose.msra.mxu0 0.0
    %543 = vmatpush.xpose.msra.mxu0 0.0
    %544 = vmatpush.xpose.msra.mxu0 0.0
    %545 = vmatpush.xpose.msra.mxu0 0.0
    %546 = vmatpush.xpose.msra.mxu0 0.0
    %547 = vmatpush.xpose.msra.mxu0 0.0
    %548 = vmatpush.xpose.msra.mxu0 0.0
    %549 = vmatpush.xpose.msra.mxu0 0.0
    %v550 = vand.u32 %v507, 4294901760
    %v551 = vsub.f32 %v507, %v550
    %v552 = vand.u32 %v551, 4294901760
    %v553 = vsub.f32 %v551, %v552
    %v554 = vand.u32 %v553, 4294901760
    %555 = vmatpush.xpose.msra.mxu0 %v554
    %v556 = vand.u32 %v505, 4294901760
    %557 = vmatmul.f32.gmra.mxu0 %v556
    %v558 = vpop.f32.mrf.mxu0
    %v559 = vadd.f32 %v533, %v558
    %560 = vdwg.mxu0
    %561 = vmatpush.xpose.msra.mxu0 0.0
    %562 = vmatpush.xpose.msra.mxu0 0.0
    %563 = vmatpush.xpose.msra.mxu0 0.0
    %564 = vmatpush.xpose.msra.mxu0 0.0
    %565 = vmatpush.xpose.msra.mxu0 0.0
    %566 = vmatpush.xpose.msra.mxu0 0.0
    %567 = vmatpush.xpose.msra.mxu0 0.0
    %568 = vmatpush.xpose.msra.mxu0 0.0
    %569 = vmatpush.xpose.msra.mxu0 0.0
    %570 = vmatpush.xpose.msra.mxu0 0.0
    %571 = vmatpush.xpose.msra.mxu0 0.0
    %572 = vmatpush.xpose.msra.mxu0 0.0
    %573 = vmatpush.xpose.msra.mxu0 0.0
    %574 = vmatpush.xpose.msra.mxu0 0.0
    %575 = vmatpush.xpose.msra.mxu0 0.0
    %v576 = vand.u32 %v507, 4294901760
    %v577 = vsub.f32 %v507, %v576
    %578 = vmatpush.xpose.msra.mxu0 %v577
    %v579 = vand.u32 %v505, 4294901760
    %v580 = vsub.f32 %v505, %v579
    %581 = vmatmul.f32.gmra.mxu0 %v580
    %v582 = vpop.f32.mrf.mxu0
    %v583 = vadd.f32 %v559, %v582
    %584 = vdwg.mxu0
    %585 = vmatpush.xpose.msra.mxu0 0.0
    %586 = vmatpush.xpose.msra.mxu0 0.0
    %587 = vmatpush.xpose.msra.mxu0 0.0
    %588 = vmatpush.xpose.msra.mxu0 0.0
    %589 = vmatpush.xpose.msra.mxu0 0.0
    %590 = vmatpush.xpose.msra.mxu0 0.0
    %591 = vmatpush.xpose.msra.mxu0 0.0
    %592 = vmatpush.xpose.msra.mxu0 0.0
    %593 = vmatpush.xpose.msra.mxu0 0.0
    %594 = vmatpush.xpose.msra.mxu0 0.0
    %595 = vmatpush.xpose.msra.mxu0 0.0
    %596 = vmatpush.xpose.msra.mxu0 0.0
    %597 = vmatpush.xpose.msra.mxu0 0.0
    %598 = vmatpush.xpose.msra.mxu0 0.0
    %599 = vmatpush.xpose.msra.mxu0 0.0
    %v600 = vand.u32 %v507, 4294901760
    %601 = vmatpush.xpose.msra.mxu0 %v600
    %v602 = vand.u32 %v505, 4294901760
    %v603 = vsub.f32 %v505, %v602
    %v604 = vand.u32 %v603, 4294901760
    %605 = vmatmul.f32.gmra.mxu0 %v604
    %v606 = vpop.f32.mrf.mxu0
    %v607 = vadd.f32 %v583, %v606
    %608 = vdwg.mxu0
    %609 = vmatpush.xpose.msra.mxu0 0.0
    %610 = vmatpush.xpose.msra.mxu0 0.0
    %611 = vmatpush.xpose.msra.mxu0 0.0
    %612 = vmatpush.xpose.msra.mxu0 0.0
    %613 = vmatpush.xpose.msra.mxu0 0.0
    %614 = vmatpush.xpose.msra.mxu0 0.0
    %615 = vmatpush.xpose.msra.mxu0 0.0
    %616 = vmatpush.xpose.msra.mxu0 0.0
    %617 = vmatpush.xpose.msra.mxu0 0.0
    %618 = vmatpush.xpose.msra.mxu0 0.0
    %619 = vmatpush.xpose.msra.mxu0 0.0
    %620 = vmatpush.xpose.msra.mxu0 0.0
    %621 = vmatpush.xpose.msra.mxu0 0.0
    %622 = vmatpush.xpose.msra.mxu0 0.0
    %623 = vmatpush.xpose.msra.mxu0 0.0
    %v624 = vand.u32 %v507, 4294901760
    %v625 = vsub.f32 %v507, %v624
    %v626 = vand.u32 %v625, 4294901760
    %627 = vmatpush.xpose.msra.mxu0 %v626
    %v628 = vand.u32 %v505, 4294901760
    %629 = vmatmul.f32.gmra.mxu0 %v628
    %v630 = vpop.f32.mrf.mxu0
    %v631 = vadd.f32 %v607, %v630
    %632 = vdwg.mxu0
    %633 = vmatpush.xpose.msra.mxu0 0.0
    %634 = vmatpush.xpose.msra.mxu0 0.0
    %635 = vmatpush.xpose.msra.mxu0 0.0
    %636 = vmatpush.xpose.msra.mxu0 0.0
    %637 = vmatpush.xpose.msra.mxu0 0.0
    %638 = vmatpush.xpose.msra.mxu0 0.0
    %639 = vmatpush.xpose.msra.mxu0 0.0
    %640 = vmatpush.xpose.msra.mxu0 0.0
    %641 = vmatpush.xpose.msra.mxu0 0.0
    %642 = vmatpush.xpose.msra.mxu0 0.0
    %643 = vmatpush.xpose.msra.mxu0 0.0
    %644 = vmatpush.xpose.msra.mxu0 0.0
    %645 = vmatpush.xpose.msra.mxu0 0.0
    %646 = vmatpush.xpose.msra.mxu0 0.0
    %647 = vmatpush.xpose.msra.mxu0 0.0
    %v648 = vand.u32 %v507, 4294901760
    %649 = vmatpush.xpose.msra.mxu0 %v648
    %v650 = vand.u32 %v505, 4294901760
    %651 = vmatmul.f32.gmra.mxu0 %v650
    %v652 = vpop.f32.mrf.mxu0
    %v653 = vadd.f32 %v631, %v652
    %654 = vdwg.mxu0
    %655 = vrot.lane.b32.xlu0 %v339, 96
    %v656 = vpop.permute.xlu0 %655
    %v657 = vsel %vm352, %v339, 0
    %v659 = vsel %vm352, %v656, 0
    %661 = vmatpush.xpose.msra.mxu0 0.0
    %662 = vmatpush.xpose.msra.mxu0 0.0
    %663 = vmatpush.xpose.msra.mxu0 0.0
    %664 = vmatpush.xpose.msra.mxu0 0.0
    %665 = vmatpush.xpose.msra.mxu0 0.0
    %666 = vmatpush.xpose.msra.mxu0 0.0
    %667 = vmatpush.xpose.msra.mxu0 0.0
    %668 = vmatpush.xpose.msra.mxu0 0.0
    %669 = vmatpush.xpose.msra.mxu0 0.0
    %670 = vmatpush.xpose.msra.mxu0 0.0
    %671 = vmatpush.xpose.msra.mxu0 0.0
    %672 = vmatpush.xpose.msra.mxu0 0.0
    %673 = vmatpush.xpose.msra.mxu0 0.0
    %674 = vmatpush.xpose.msra.mxu0 0.0
    %675 = vmatpush.xpose.msra.mxu0 0.0
    %v676 = vand.u32 %v659, 4294901760
    %677 = vmatpush.xpose.msra.mxu0 %v676
    %v678 = vand.u32 %v657, 4294901760
    %v679 = vsub.f32 %v657, %v678
    %v680 = vand.u32 %v679, 4294901760
    %v681 = vsub.f32 %v679, %v680
    %v682 = vand.u32 %v681, 4294901760
    %683 = vmatmul.f32.gmra.mxu0 %v682
    %v684 = vpop.f32.mrf.mxu0
    %v685 = vadd.f32 0.0, %v684
    %686 = vdwg.mxu0
    %687 = vmatpush.xpose.msra.mxu0 0.0
    %688 = vmatpush.xpose.msra.mxu0 0.0
    %689 = vmatpush.xpose.msra.mxu0 0.0
    %690 = vmatpush.xpose.msra.mxu0 0.0
    %691 = vmatpush.xpose.msra.mxu0 0.0
    %692 = vmatpush.xpose.msra.mxu0 0.0
    %693 = vmatpush.xpose.msra.mxu0 0.0
    %694 = vmatpush.xpose.msra.mxu0 0.0
    %695 = vmatpush.xpose.msra.mxu0 0.0
    %696 = vmatpush.xpose.msra.mxu0 0.0
    %697 = vmatpush.xpose.msra.mxu0 0.0
    %698 = vmatpush.xpose.msra.mxu0 0.0
    %699 = vmatpush.xpose.msra.mxu0 0.0
    %700 = vmatpush.xpose.msra.mxu0 0.0
    %701 = vmatpush.xpose.msra.mxu0 0.0
    %v702 = vand.u32 %v659, 4294901760
    %v703 = vsub.f32 %v659, %v702
    %v704 = vand.u32 %v703, 4294901760
    %v705 = vsub.f32 %v703, %v704
    %v706 = vand.u32 %v705, 4294901760
    %707 = vmatpush.xpose.msra.mxu0 %v706
    %v708 = vand.u32 %v657, 4294901760
    %709 = vmatmul.f32.gmra.mxu0 %v708
    %v710 = vpop.f32.mrf.mxu0
    %v711 = vadd.f32 %v685, %v710
    %712 = vdwg.mxu0
    %713 = vmatpush.xpose.msra.mxu0 0.0
    %714 = vmatpush.xpose.msra.mxu0 0.0
    %715 = vmatpush.xpose.msra.mxu0 0.0
    %716 = vmatpush.xpose.msra.mxu0 0.0
    %717 = vmatpush.xpose.msra.mxu0 0.0
    %718 = vmatpush.xpose.msra.mxu0 0.0
    %719 = vmatpush.xpose.msra.mxu0 0.0
    %720 = vmatpush.xpose.msra.mxu0 0.0
    %721 = vmatpush.xpose.msra.mxu0 0.0
    %722 = vmatpush.xpose.msra.mxu0 0.0
    %723 = vmatpush.xpose.msra.mxu0 0.0
    %724 = vmatpush.xpose.msra.mxu0 0.0
    %725 = vmatpush.xpose.msra.mxu0 0.0
    %726 = vmatpush.xpose.msra.mxu0 0.0
    %727 = vmatpush.xpose.msra.mxu0 0.0
    %v728 = vand.u32 %v659, 4294901760
    %v729 = vsub.f32 %v659, %v728
    %730 = vmatpush.xpose.msra.mxu0 %v729
    %v731 = vand.u32 %v657, 4294901760
    %v732 = vsub.f32 %v657, %v731
    %733 = vmatmul.f32.gmra.mxu0 %v732
    %v734 = vpop.f32.mrf.mxu0
    %v735 = vadd.f32 %v711, %v734
    %736 = vdwg.mxu0
    %737 = vmatpush.xpose.msra.mxu0 0.0
    %738 = vmatpush.xpose.msra.mxu0 0.0
    %739 = vmatpush.xpose.msra.mxu0 0.0
    %740 = vmatpush.xpose.msra.mxu0 0.0
    %741 = vmatpush.xpose.msra.mxu0 0.0
    %742 = vmatpush.xpose.msra.mxu0 0.0
    %743 = vmatpush.xpose.msra.mxu0 0.0
    %744 = vmatpush.xpose.msra.mxu0 0.0
    %745 = vmatpush.xpose.msra.mxu0 0.0
    %746 = vmatpush.xpose.msra.mxu0 0.0
    %747 = vmatpush.xpose.msra.mxu0 0.0
    %748 = vmatpush.xpose.msra.mxu0 0.0
    %749 = vmatpush.xpose.msra.mxu0 0.0
    %750 = vmatpush.xpose.msra.mxu0 0.0
    %751 = vmatpush.xpose.msra.mxu0 0.0
    %v752 = vand.u32 %v659, 4294901760
    %753 = vmatpush.xpose.msra.mxu0 %v752
    %v754 = vand.u32 %v657, 4294901760
    %v755 = vsub.f32 %v657, %v754
    %v756 = vand.u32 %v755, 4294901760
    %757 = vmatmul.f32.gmra.mxu0 %v756
    %v758 = vpop.f32.mrf.mxu0
    %v759 = vadd.f32 %v735, %v758
    %760 = vdwg.mxu0
    %761 = vmatpush.xpose.msra.mxu0 0.0
    %762 = vmatpush.xpose.msra.mxu0 0.0
    %763 = vmatpush.xpose.msra.mxu0 0.0
    %764 = vmatpush.xpose.msra.mxu0 0.0
    %765 = vmatpush.xpose.msra.mxu0 0.0
    %766 = vmatpush.xpose.msra.mxu0 0.0
    %767 = vmatpush.xpose.msra.mxu0 0.0
    %768 = vmatpush.xpose.msra.mxu0 0.0
    %769 = vmatpush.xpose.msra.mxu0 0.0
    %770 = vmatpush.xpose.msra.mxu0 0.0
    %771 = vmatpush.xpose.msra.mxu0 0.0
    %772 = vmatpush.xpose.msra.mxu0 0.0
    %773 = vmatpush.xpose.msra.mxu0 0.0
    %774 = vmatpush.xpose.msra.mxu0 0.0
    %775 = vmatpush.xpose.msra.mxu0 0.0
    %v776 = vand.u32 %v659, 4294901760
    %v777 = vsub.f32 %v659, %v776
    %v778 = vand.u32 %v777, 4294901760
    %779 = vmatpush.xpose.msra.mxu0 %v778
    %v780 = vand.u32 %v657, 4294901760
    %781 = vmatmul.f32.gmra.mxu0 %v780
    %v782 = vpop.f32.mrf.mxu0
    %v783 = vadd.f32 %v759, %v782
    %784 = vdwg.mxu0
    %785 = vmatpush.xpose.msra.mxu0 0.0
    %786 = vmatpush.xpose.msra.mxu0 0.0
    %787 = vmatpush.xpose.msra.mxu0 0.0
    %788 = vmatpush.xpose.msra.mxu0 0.0
    %789 = vmatpush.xpose.msra.mxu0 0.0
    %790 = vmatpush.xpose.msra.mxu0 0.0
    %791 = vmatpush.xpose.msra.mxu0 0.0
    %792 = vmatpush.xpose.msra.mxu0 0.0
    %793 = vmatpush.xpose.msra.mxu0 0.0
    %794 = vmatpush.xpose.msra.mxu0 0.0
    %795 = vmatpush.xpose.msra.mxu0 0.0
    %796 = vmatpush.xpose.msra.mxu0 0.0
    %797 = vmatpush.xpose.msra.mxu0 0.0
    %798 = vmatpush.xpose.msra.mxu0 0.0
    %799 = vmatpush.xpose.msra.mxu0 0.0
    %v800 = vand.u32 %v659, 4294901760
    %801 = vmatpush.xpose.msra.mxu0 %v800
    %v802 = vand.u32 %v657, 4294901760
    %803 = vmatmul.f32.gmra.mxu0 %v802
    %v804 = vpop.f32.mrf.mxu0
    %v805 = vadd.f32 %v783, %v804
    %806 = vdwg.mxu0
    %807 = vrot.lane.b32.xlu0 %v341, 96
    %v808 = vpop.permute.xlu0 %807
    %v809 = vsel %vm352, %v341, 0
    %v811 = vsel %vm352, %v808, 0
    %813 = vmatpush.xpose.msra.mxu0 0.0
    %814 = vmatpush.xpose.msra.mxu0 0.0
    %815 = vmatpush.xpose.msra.mxu0 0.0
    %816 = vmatpush.xpose.msra.mxu0 0.0
    %817 = vmatpush.xpose.msra.mxu0 0.0
    %818 = vmatpush.xpose.msra.mxu0 0.0
    %819 = vmatpush.xpose.msra.mxu0 0.0
    %820 = vmatpush.xpose.msra.mxu0 0.0
    %821 = vmatpush.xpose.msra.mxu0 0.0
    %822 = vmatpush.xpose.msra.mxu0 0.0
    %823 = vmatpush.xpose.msra.mxu0 0.0
    %824 = vmatpush.xpose.msra.mxu0 0.0
    %825 = vmatpush.xpose.msra.mxu0 0.0
    %826 = vmatpush.xpose.msra.mxu0 0.0
    %827 = vmatpush.xpose.msra.mxu0 0.0
    %v828 = vand.u32 %v811, 4294901760
    %829 = vmatpush.xpose.msra.mxu0 %v828
    %v830 = vand.u32 %v809, 4294901760
    %v831 = vsub.f32 %v809, %v830
    %v832 = vand.u32 %v831, 4294901760
    %v833 = vsub.f32 %v831, %v832
    %v834 = vand.u32 %v833, 4294901760
    %835 = vmatmul.f32.gmra.mxu0 %v834
    %v836 = vpop.f32.mrf.mxu0
    %v837 = vadd.f32 0.0, %v836
    %838 = vdwg.mxu0
    %839 = vmatpush.xpose.msra.mxu0 0.0
    %840 = vmatpush.xpose.msra.mxu0 0.0
    %841 = vmatpush.xpose.msra.mxu0 0.0
    %842 = vmatpush.xpose.msra.mxu0 0.0
    %843 = vmatpush.xpose.msra.mxu0 0.0
    %844 = vmatpush.xpose.msra.mxu0 0.0
    %845 = vmatpush.xpose.msra.mxu0 0.0
    %846 = vmatpush.xpose.msra.mxu0 0.0
    %847 = vmatpush.xpose.msra.mxu0 0.0
    %848 = vmatpush.xpose.msra.mxu0 0.0
    %849 = vmatpush.xpose.msra.mxu0 0.0
    %850 = vmatpush.xpose.msra.mxu0 0.0
    %851 = vmatpush.xpose.msra.mxu0 0.0
    %852 = vmatpush.xpose.msra.mxu0 0.0
    %853 = vmatpush.xpose.msra.mxu0 0.0
    %v854 = vand.u32 %v811, 4294901760
    %v855 = vsub.f32 %v811, %v854
    %v856 = vand.u32 %v855, 4294901760
    %v857 = vsub.f32 %v855, %v856
    %v858 = vand.u32 %v857, 4294901760
    %859 = vmatpush.xpose.msra.mxu0 %v858
    %v860 = vand.u32 %v809, 4294901760
    %861 = vmatmul.f32.gmra.mxu0 %v860
    %v862 = vpop.f32.mrf.mxu0
    %v863 = vadd.f32 %v837, %v862
    %864 = vdwg.mxu0
    %865 = vmatpush.xpose.msra.mxu0 0.0
    %866 = vmatpush.xpose.msra.mxu0 0.0
    %867 = vmatpush.xpose.msra.mxu0 0.0
    %868 = vmatpush.xpose.msra.mxu0 0.0
    %869 = vmatpush.xpose.msra.mxu0 0.0
    %870 = vmatpush.xpose.msra.mxu0 0.0
    %871 = vmatpush.xpose.msra.mxu0 0.0
    %872 = vmatpush.xpose.msra.mxu0 0.0
    %873 = vmatpush.xpose.msra.mxu0 0.0
    %874 = vmatpush.xpose.msra.mxu0 0.0
    %875 = vmatpush.xpose.msra.mxu0 0.0
    %876 = vmatpush.xpose.msra.mxu0 0.0
    %877 = vmatpush.xpose.msra.mxu0 0.0
    %878 = vmatpush.xpose.msra.mxu0 0.0
    %879 = vmatpush.xpose.msra.mxu0 0.0
    %v880 = vand.u32 %v811, 4294901760
    %v881 = vsub.f32 %v811, %v880
    %882 = vmatpush.xpose.msra.mxu0 %v881
    %v883 = vand.u32 %v809, 4294901760
    %v884 = vsub.f32 %v809, %v883
    %885 = vmatmul.f32.gmra.mxu0 %v884
    %v886 = vpop.f32.mrf.mxu0
    %v887 = vadd.f32 %v863, %v886
    %888 = vdwg.mxu0
    %889 = vmatpush.xpose.msra.mxu0 0.0
    %890 = vmatpush.xpose.msra.mxu0 0.0
    %891 = vmatpush.xpose.msra.mxu0 0.0
    %892 = vmatpush.xpose.msra.mxu0 0.0
    %893 = vmatpush.xpose.msra.mxu0 0.0
    %894 = vmatpush.xpose.msra.mxu0 0.0
    %895 = vmatpush.xpose.msra.mxu0 0.0
    %896 = vmatpush.xpose.msra.mxu0 0.0
    %897 = vmatpush.xpose.msra.mxu0 0.0
    %898 = vmatpush.xpose.msra.mxu0 0.0
    %899 = vmatpush.xpose.msra.mxu0 0.0
    %900 = vmatpush.xpose.msra.mxu0 0.0
    %901 = vmatpush.xpose.msra.mxu0 0.0
    %902 = vmatpush.xpose.msra.mxu0 0.0
    %903 = vmatpush.xpose.msra.mxu0 0.0
    %v904 = vand.u32 %v811, 4294901760
    %905 = vmatpush.xpose.msra.mxu0 %v904
    %v906 = vand.u32 %v809, 4294901760
    %v907 = vsub.f32 %v809, %v906
    %v908 = vand.u32 %v907, 4294901760
    %909 = vmatmul.f32.gmra.mxu0 %v908
    %v910 = vpop.f32.mrf.mxu0
    %v911 = vadd.f32 %v887, %v910
    %912 = vdwg.mxu0
    %913 = vmatpush.xpose.msra.mxu0 0.0
    %914 = vmatpush.xpose.msra.mxu0 0.0
    %915 = vmatpush.xpose.msra.mxu0 0.0
    %916 = vmatpush.xpose.msra.mxu0 0.0
    %917 = vmatpush.xpose.msra.mxu0 0.0
    %918 = vmatpush.xpose.msra.mxu0 0.0
    %919 = vmatpush.xpose.msra.mxu0 0.0
    %920 = vmatpush.xpose.msra.mxu0 0.0
    %921 = vmatpush.xpose.msra.mxu0 0.0
    %922 = vmatpush.xpose.msra.mxu0 0.0
    %923 = vmatpush.xpose.msra.mxu0 0.0
    %924 = vmatpush.xpose.msra.mxu0 0.0
    %925 = vmatpush.xpose.msra.mxu0 0.0
    %926 = vmatpush.xpose.msra.mxu0 0.0
    %927 = vmatpush.xpose.msra.mxu0 0.0
    %v928 = vand.u32 %v811, 4294901760
    %v929 = vsub.f32 %v811, %v928
    %v930 = vand.u32 %v929, 4294901760
    %931 = vmatpush.xpose.msra.mxu0 %v930
    %v932 = vand.u32 %v809, 4294901760
    %933 = vmatmul.f32.gmra.mxu0 %v932
    %v934 = vpop.f32.mrf.mxu0
    %v935 = vadd.f32 %v911, %v934
    %936 = vdwg.mxu0
    %937 = vmatpush.xpose.msra.mxu0 0.0
    %938 = vmatpush.xpose.msra.mxu0 0.0
    %939 = vmatpush.xpose.msra.mxu0 0.0
    %940 = vmatpush.xpose.msra.mxu0 0.0
    %941 = vmatpush.xpose.msra.mxu0 0.0
    %942 = vmatpush.xpose.msra.mxu0 0.0
    %943 = vmatpush.xpose.msra.mxu0 0.0
    %944 = vmatpush.xpose.msra.mxu0 0.0
    %945 = vmatpush.xpose.msra.mxu0 0.0
    %946 = vmatpush.xpose.msra.mxu0 0.0
    %947 = vmatpush.xpose.msra.mxu0 0.0
    %948 = vmatpush.xpose.msra.mxu0 0.0
    %949 = vmatpush.xpose.msra.mxu0 0.0
    %950 = vmatpush.xpose.msra.mxu0 0.0
    %951 = vmatpush.xpose.msra.mxu0 0.0
    %v952 = vand.u32 %v811, 4294901760
    %953 = vmatpush.xpose.msra.mxu0 %v952
    %v954 = vand.u32 %v809, 4294901760
    %955 = vmatmul.f32.gmra.mxu0 %v954
    %v956 = vpop.f32.mrf.mxu0
    %v957 = vadd.f32 %v935, %v956
    %958 = vdwg.mxu0
    %959 = vrot.lane.b32.xlu0 %v343, 96
    %v960 = vpop.permute.xlu0 %959
    %v961 = vsel %vm352, %v343, 0
    %v963 = vsel %vm352, %v960, 0
    %965 = vmatpush.xpose.msra.mxu0 0.0
    %966 = vmatpush.xpose.msra.mxu0 0.0
    %967 = vmatpush.xpose.msra.mxu0 0.0
    %968 = vmatpush.xpose.msra.mxu0 0.0
    %969 = vmatpush.xpose.msra.mxu0 0.0
    %970 = vmatpush.xpose.msra.mxu0 0.0
    %971 = vmatpush.xpose.msra.mxu0 0.0
    %972 = vmatpush.xpose.msra.mxu0 0.0
    %973 = vmatpush.xpose.msra.mxu0 0.0
    %974 = vmatpush.xpose.msra.mxu0 0.0
    %975 = vmatpush.xpose.msra.mxu0 0.0
    %976 = vmatpush.xpose.msra.mxu0 0.0
    %977 = vmatpush.xpose.msra.mxu0 0.0
    %978 = vmatpush.xpose.msra.mxu0 0.0
    %979 = vmatpush.xpose.msra.mxu0 0.0
    %v980 = vand.u32 %v963, 4294901760
    %981 = vmatpush.xpose.msra.mxu0 %v980
    %v982 = vand.u32 %v961, 4294901760
    %v983 = vsub.f32 %v961, %v982
    %v984 = vand.u32 %v983, 4294901760
    %v985 = vsub.f32 %v983, %v984
    %v986 = vand.u32 %v985, 4294901760
    %987 = vmatmul.f32.gmra.mxu0 %v986
    %v988 = vpop.f32.mrf.mxu0
    %v989 = vadd.f32 0.0, %v988
    %990 = vdwg.mxu0
    %991 = vmatpush.xpose.msra.mxu0 0.0
    %992 = vmatpush.xpose.msra.mxu0 0.0
    %993 = vmatpush.xpose.msra.mxu0 0.0
    %994 = vmatpush.xpose.msra.mxu0 0.0
    %995 = vmatpush.xpose.msra.mxu0 0.0
    %996 = vmatpush.xpose.msra.mxu0 0.0
    %997 = vmatpush.xpose.msra.mxu0 0.0
    %998 = vmatpush.xpose.msra.mxu0 0.0
    %999 = vmatpush.xpose.msra.mxu0 0.0
    %1000 = vmatpush.xpose.msra.mxu0 0.0
    %1001 = vmatpush.xpose.msra.mxu0 0.0
    %1002 = vmatpush.xpose.msra.mxu0 0.0
    %1003 = vmatpush.xpose.msra.mxu0 0.0
    %1004 = vmatpush.xpose.msra.mxu0 0.0
    %1005 = vmatpush.xpose.msra.mxu0 0.0
    %v1006 = vand.u32 %v963, 4294901760
    %v1007 = vsub.f32 %v963, %v1006
    %v1008 = vand.u32 %v1007, 4294901760
    %v1009 = vsub.f32 %v1007, %v1008
    %v1010 = vand.u32 %v1009, 4294901760
    %1011 = vmatpush.xpose.msra.mxu0 %v1010
    %v1012 = vand.u32 %v961, 4294901760
    %1013 = vmatmul.f32.gmra.mxu0 %v1012
    %v1014 = vpop.f32.mrf.mxu0
    %v1015 = vadd.f32 %v989, %v1014
    %1016 = vdwg.mxu0
    %1017 = vmatpush.xpose.msra.mxu0 0.0
    %1018 = vmatpush.xpose.msra.mxu0 0.0
    %1019 = vmatpush.xpose.msra.mxu0 0.0
    %1020 = vmatpush.xpose.msra.mxu0 0.0
    %1021 = vmatpush.xpose.msra.mxu0 0.0
    %1022 = vmatpush.xpose.msra.mxu0 0.0
    %1023 = vmatpush.xpose.msra.mxu0 0.0
    %1024 = vmatpush.xpose.msra.mxu0 0.0
    %1025 = vmatpush.xpose.msra.mxu0 0.0
    %1026 = vmatpush.xpose.msra.mxu0 0.0
    %1027 = vmatpush.xpose.msra.mxu0 0.0
    %1028 = vmatpush.xpose.msra.mxu0 0.0
    %1029 = vmatpush.xpose.msra.mxu0 0.0
    %1030 = vmatpush.xpose.msra.mxu0 0.0
    %1031 = vmatpush.xpose.msra.mxu0 0.0
    %v1032 = vand.u32 %v963, 4294901760
    %v1033 = vsub.f32 %v963, %v1032
    %1034 = vmatpush.xpose.msra.mxu0 %v1033
    %v1035 = vand.u32 %v961, 4294901760
    %v1036 = vsub.f32 %v961, %v1035
    %1037 = vmatmul.f32.gmra.mxu0 %v1036
    %v1038 = vpop.f32.mrf.mxu0
    %v1039 = vadd.f32 %v1015, %v1038
    %1040 = vdwg.mxu0
    %1041 = vmatpush.xpose.msra.mxu0 0.0
    %1042 = vmatpush.xpose.msra.mxu0 0.0
    %1043 = vmatpush.xpose.msra.mxu0 0.0
    %1044 = vmatpush.xpose.msra.mxu0 0.0
    %1045 = vmatpush.xpose.msra.mxu0 0.0
    %1046 = vmatpush.xpose.msra.mxu0 0.0
    %1047 = vmatpush.xpose.msra.mxu0 0.0
    %1048 = vmatpush.xpose.msra.mxu0 0.0
    %1049 = vmatpush.xpose.msra.mxu0 0.0
    %1050 = vmatpush.xpose.msra.mxu0 0.0
    %1051 = vmatpush.xpose.msra.mxu0 0.0
    %1052 = vmatpush.xpose.msra.mxu0 0.0
    %1053 = vmatpush.xpose.msra.mxu0 0.0
    %1054 = vmatpush.xpose.msra.mxu0 0.0
    %1055 = vmatpush.xpose.msra.mxu0 0.0
    %v1056 = vand.u32 %v963, 4294901760
    %1057 = vmatpush.xpose.msra.mxu0 %v1056
    %v1058 = vand.u32 %v961, 4294901760
    %v1059 = vsub.f32 %v961, %v1058
    %v1060 = vand.u32 %v1059, 4294901760
    %1061 = vmatmul.f32.gmra.mxu0 %v1060
    %v1062 = vpop.f32.mrf.mxu0
    %v1063 = vadd.f32 %v1039, %v1062
    %1064 = vdwg.mxu0
    %1065 = vmatpush.xpose.msra.mxu0 0.0
    %1066 = vmatpush.xpose.msra.mxu0 0.0
    %1067 = vmatpush.xpose.msra.mxu0 0.0
    %1068 = vmatpush.xpose.msra.mxu0 0.0
    %1069 = vmatpush.xpose.msra.mxu0 0.0
    %1070 = vmatpush.xpose.msra.mxu0 0.0
    %1071 = vmatpush.xpose.msra.mxu0 0.0
    %1072 = vmatpush.xpose.msra.mxu0 0.0
    %1073 = vmatpush.xpose.msra.mxu0 0.0
    %1074 = vmatpush.xpose.msra.mxu0 0.0
    %1075 = vmatpush.xpose.msra.mxu0 0.0
    %1076 = vmatpush.xpose.msra.mxu0 0.0
    %1077 = vmatpush.xpose.msra.mxu0 0.0
    %1078 = vmatpush.xpose.msra.mxu0 0.0
    %1079 = vmatpush.xpose.msra.mxu0 0.0
    %v1080 = vand.u32 %v963, 4294901760
    %v1081 = vsub.f32 %v963, %v1080
    %v1082 = vand.u32 %v1081, 4294901760
    %1083 = vmatpush.xpose.msra.mxu0 %v1082
    %v1084 = vand.u32 %v961, 4294901760
    %1085 = vmatmul.f32.gmra.mxu0 %v1084
    %v1086 = vpop.f32.mrf.mxu0
    %v1087 = vadd.f32 %v1063, %v1086
    %1088 = vdwg.mxu0
    %1089 = vmatpush.xpose.msra.mxu0 0.0
    %1090 = vmatpush.xpose.msra.mxu0 0.0
    %1091 = vmatpush.xpose.msra.mxu0 0.0
    %1092 = vmatpush.xpose.msra.mxu0 0.0
    %1093 = vmatpush.xpose.msra.mxu0 0.0
    %1094 = vmatpush.xpose.msra.mxu0 0.0
    %1095 = vmatpush.xpose.msra.mxu0 0.0
    %1096 = vmatpush.xpose.msra.mxu0 0.0
    %1097 = vmatpush.xpose.msra.mxu0 0.0
    %1098 = vmatpush.xpose.msra.mxu0 0.0
    %1099 = vmatpush.xpose.msra.mxu0 0.0
    %1100 = vmatpush.xpose.msra.mxu0 0.0
    %1101 = vmatpush.xpose.msra.mxu0 0.0
    %1102 = vmatpush.xpose.msra.mxu0 0.0
    %1103 = vmatpush.xpose.msra.mxu0 0.0
    %v1104 = vand.u32 %v963, 4294901760
    %1105 = vmatpush.xpose.msra.mxu0 %v1104
    %v1106 = vand.u32 %v961, 4294901760
    %1107 = vmatmul.f32.gmra.mxu0 %v1106
    %v1108 = vpop.f32.mrf.mxu0
    %v1109 = vadd.f32 %v1087, %v1108
    %1110 = vdwg.mxu0
    %1111 = vrot.lane.b32.xlu0 %v345, 96
    %v1112 = vpop.permute.xlu0 %1111
    %v1113 = vsel %vm352, %v345, 0
    %v1115 = vsel %vm352, %v1112, 0
    %1117 = vmatpush.xpose.msra.mxu0 0.0
    %1118 = vmatpush.xpose.msra.mxu0 0.0
    %1119 = vmatpush.xpose.msra.mxu0 0.0
    %1120 = vmatpush.xpose.msra.mxu0 0.0
    %1121 = vmatpush.xpose.msra.mxu0 0.0
    %1122 = vmatpush.xpose.msra.mxu0 0.0
    %1123 = vmatpush.xpose.msra.mxu0 0.0
    %1124 = vmatpush.xpose.msra.mxu0 0.0
    %1125 = vmatpush.xpose.msra.mxu0 0.0
    %1126 = vmatpush.xpose.msra.mxu0 0.0
    %1127 = vmatpush.xpose.msra.mxu0 0.0
    %1128 = vmatpush.xpose.msra.mxu0 0.0
    %1129 = vmatpush.xpose.msra.mxu0 0.0
    %1130 = vmatpush.xpose.msra.mxu0 0.0
    %1131 = vmatpush.xpose.msra.mxu0 0.0
    %v1132 = vand.u32 %v1115, 4294901760
    %1133 = vmatpush.xpose.msra.mxu0 %v1132
    %v1134 = vand.u32 %v1113, 4294901760
    %v1135 = vsub.f32 %v1113, %v1134
    %v1136 = vand.u32 %v1135, 4294901760
    %v1137 = vsub.f32 %v1135, %v1136
    %v1138 = vand.u32 %v1137, 4294901760
    %1139 = vmatmul.f32.gmra.mxu0 %v1138
    %v1140 = vpop.f32.mrf.mxu0
    %v1141 = vadd.f32 0.0, %v1140
    %1142 = vdwg.mxu0
    %1143 = vmatpush.xpose.msra.mxu0 0.0
    %1144 = vmatpush.xpose.msra.mxu0 0.0
    %1145 = vmatpush.xpose.msra.mxu0 0.0
    %1146 = vmatpush.xpose.msra.mxu0 0.0
    %1147 = vmatpush.xpose.msra.mxu0 0.0
    %1148 = vmatpush.xpose.msra.mxu0 0.0
    %1149 = vmatpush.xpose.msra.mxu0 0.0
    %1150 = vmatpush.xpose.msra.mxu0 0.0
    %1151 = vmatpush.xpose.msra.mxu0 0.0
    %1152 = vmatpush.xpose.msra.mxu0 0.0
    %1153 = vmatpush.xpose.msra.mxu0 0.0
    %1154 = vmatpush.xpose.msra.mxu0 0.0
    %1155 = vmatpush.xpose.msra.mxu0 0.0
    %1156 = vmatpush.xpose.msra.mxu0 0.0
    %1157 = vmatpush.xpose.msra.mxu0 0.0
    %v1158 = vand.u32 %v1115, 4294901760
    %v1159 = vsub.f32 %v1115, %v1158
    %v1160 = vand.u32 %v1159, 4294901760
    %v1161 = vsub.f32 %v1159, %v1160
    %v1162 = vand.u32 %v1161, 4294901760
    %1163 = vmatpush.xpose.msra.mxu0 %v1162
    %v1164 = vand.u32 %v1113, 4294901760
    %1165 = vmatmul.f32.gmra.mxu0 %v1164
    %v1166 = vpop.f32.mrf.mxu0
    %v1167 = vadd.f32 %v1141, %v1166
    %1168 = vdwg.mxu0
    %1169 = vmatpush.xpose.msra.mxu0 0.0
    %1170 = vmatpush.xpose.msra.mxu0 0.0
    %1171 = vmatpush.xpose.msra.mxu0 0.0
    %1172 = vmatpush.xpose.msra.mxu0 0.0
    %1173 = vmatpush.xpose.msra.mxu0 0.0
    %1174 = vmatpush.xpose.msra.mxu0 0.0
    %1175 = vmatpush.xpose.msra.mxu0 0.0
    %1176 = vmatpush.xpose.msra.mxu0 0.0
    %1177 = vmatpush.xpose.msra.mxu0 0.0
    %1178 = vmatpush.xpose.msra.mxu0 0.0
    %1179 = vmatpush.xpose.msra.mxu0 0.0
    %1180 = vmatpush.xpose.msra.mxu0 0.0
    %1181 = vmatpush.xpose.msra.mxu0 0.0
    %1182 = vmatpush.xpose.msra.mxu0 0.0
    %1183 = vmatpush.xpose.msra.mxu0 0.0
    %v1184 = vand.u32 %v1115, 4294901760
    %v1185 = vsub.f32 %v1115, %v1184
    %1186 = vmatpush.xpose.msra.mxu0 %v1185
    %v1187 = vand.u32 %v1113, 4294901760
    %v1188 = vsub.f32 %v1113, %v1187
    %1189 = vmatmul.f32.gmra.mxu0 %v1188
    %v1190 = vpop.f32.mrf.mxu0
    %v1191 = vadd.f32 %v1167, %v1190
    %1192 = vdwg.mxu0
    %1193 = vmatpush.xpose.msra.mxu0 0.0
    %1194 = vmatpush.xpose.msra.mxu0 0.0
    %1195 = vmatpush.xpose.msra.mxu0 0.0
    %1196 = vmatpush.xpose.msra.mxu0 0.0
    %1197 = vmatpush.xpose.msra.mxu0 0.0
    %1198 = vmatpush.xpose.msra.mxu0 0.0
    %1199 = vmatpush.xpose.msra.mxu0 0.0
    %1200 = vmatpush.xpose.msra.mxu0 0.0
    %1201 = vmatpush.xpose.msra.mxu0 0.0
    %1202 = vmatpush.xpose.msra.mxu0 0.0
    %1203 = vmatpush.xpose.msra.mxu0 0.0
    %1204 = vmatpush.xpose.msra.mxu0 0.0
    %1205 = vmatpush.xpose.msra.mxu0 0.0
    %1206 = vmatpush.xpose.msra.mxu0 0.0
    %1207 = vmatpush.xpose.msra.mxu0 0.0
    %v1208 = vand.u32 %v1115, 4294901760
    %1209 = vmatpush.xpose.msra.mxu0 %v1208
    %v1210 = vand.u32 %v1113, 4294901760
    %v1211 = vsub.f32 %v1113, %v1210
    %v1212 = vand.u32 %v1211, 4294901760
    %1213 = vmatmul.f32.gmra.mxu0 %v1212
    %v1214 = vpop.f32.mrf.mxu0
    %v1215 = vadd.f32 %v1191, %v1214
    %1216 = vdwg.mxu0
    %1217 = vmatpush.xpose.msra.mxu0 0.0
    %1218 = vmatpush.xpose.msra.mxu0 0.0
    %1219 = vmatpush.xpose.msra.mxu0 0.0
    %1220 = vmatpush.xpose.msra.mxu0 0.0
    %1221 = vmatpush.xpose.msra.mxu0 0.0
    %1222 = vmatpush.xpose.msra.mxu0 0.0
    %1223 = vmatpush.xpose.msra.mxu0 0.0
    %1224 = vmatpush.xpose.msra.mxu0 0.0
    %1225 = vmatpush.xpose.msra.mxu0 0.0
    %1226 = vmatpush.xpose.msra.mxu0 0.0
    %1227 = vmatpush.xpose.msra.mxu0 0.0
    %1228 = vmatpush.xpose.msra.mxu0 0.0
    %1229 = vmatpush.xpose.msra.mxu0 0.0
    %1230 = vmatpush.xpose.msra.mxu0 0.0
    %1231 = vmatpush.xpose.msra.mxu0 0.0
    %v1232 = vand.u32 %v1115, 4294901760
    %v1233 = vsub.f32 %v1115, %v1232
    %v1234 = vand.u32 %v1233, 4294901760
    %1235 = vmatpush.xpose.msra.mxu0 %v1234
    %v1236 = vand.u32 %v1113, 4294901760
    %1237 = vmatmul.f32.gmra.mxu0 %v1236
    %v1238 = vpop.f32.mrf.mxu0
    %v1239 = vadd.f32 %v1215, %v1238
    %1240 = vdwg.mxu0
    %1241 = vmatpush.xpose.msra.mxu0 0.0
    %1242 = vmatpush.xpose.msra.mxu0 0.0
    %1243 = vmatpush.xpose.msra.mxu0 0.0
    %1244 = vmatpush.xpose.msra.mxu0 0.0
    %1245 = vmatpush.xpose.msra.mxu0 0.0
    %1246 = vmatpush.xpose.msra.mxu0 0.0
    %1247 = vmatpush.xpose.msra.mxu0 0.0
    %1248 = vmatpush.xpose.msra.mxu0 0.0
    %1249 = vmatpush.xpose.msra.mxu0 0.0
    %1250 = vmatpush.xpose.msra.mxu0 0.0
    %1251 = vmatpush.xpose.msra.mxu0 0.0
    %1252 = vmatpush.xpose.msra.mxu0 0.0
    %1253 = vmatpush.xpose.msra.mxu0 0.0
    %1254 = vmatpush.xpose.msra.mxu0 0.0
    %1255 = vmatpush.xpose.msra.mxu0 0.0
    %v1256 = vand.u32 %v1115, 4294901760
    %1257 = vmatpush.xpose.msra.mxu0 %v1256
    %v1258 = vand.u32 %v1113, 4294901760
    %1259 = vmatmul.f32.gmra.mxu0 %v1258
    %v1260 = vpop.f32.mrf.mxu0
    %v1261 = vadd.f32 %v1239, %v1260
    %1262 = vdwg.mxu0
    %1263 = vrot.lane.b32.xlu0 %v347, 96
    %v1264 = vpop.permute.xlu0 %1263
    %v1265 = vsel %vm352, %v347, 0
    %v1267 = vsel %vm352, %v1264, 0
    %1269 = vmatpush.xpose.msra.mxu0 0.0
    %1270 = vmatpush.xpose.msra.mxu0 0.0
    %1271 = vmatpush.xpose.msra.mxu0 0.0
    %1272 = vmatpush.xpose.msra.mxu0 0.0
    %1273 = vmatpush.xpose.msra.mxu0 0.0
    %1274 = vmatpush.xpose.msra.mxu0 0.0
    %1275 = vmatpush.xpose.msra.mxu0 0.0
    %1276 = vmatpush.xpose.msra.mxu0 0.0
    %1277 = vmatpush.xpose.msra.mxu0 0.0
    %1278 = vmatpush.xpose.msra.mxu0 0.0
    %1279 = vmatpush.xpose.msra.mxu0 0.0
    %1280 = vmatpush.xpose.msra.mxu0 0.0
    %1281 = vmatpush.xpose.msra.mxu0 0.0
    %1282 = vmatpush.xpose.msra.mxu0 0.0
    %1283 = vmatpush.xpose.msra.mxu0 0.0
    %v1284 = vand.u32 %v1267, 4294901760
    %1285 = vmatpush.xpose.msra.mxu0 %v1284
    %v1286 = vand.u32 %v1265, 4294901760
    %v1287 = vsub.f32 %v1265, %v1286
    %v1288 = vand.u32 %v1287, 4294901760
    %v1289 = vsub.f32 %v1287, %v1288
    %v1290 = vand.u32 %v1289, 4294901760
    %1291 = vmatmul.f32.gmra.mxu0 %v1290
    %v1292 = vpop.f32.mrf.mxu0
    %v1293 = vadd.f32 0.0, %v1292
    %1294 = vdwg.mxu0
    %1295 = vmatpush.xpose.msra.mxu0 0.0
    %1296 = vmatpush.xpose.msra.mxu0 0.0
    %1297 = vmatpush.xpose.msra.mxu0 0.0
    %1298 = vmatpush.xpose.msra.mxu0 0.0
    %1299 = vmatpush.xpose.msra.mxu0 0.0
    %1300 = vmatpush.xpose.msra.mxu0 0.0
    %1301 = vmatpush.xpose.msra.mxu0 0.0
    %1302 = vmatpush.xpose.msra.mxu0 0.0
    %1303 = vmatpush.xpose.msra.mxu0 0.0
    %1304 = vmatpush.xpose.msra.mxu0 0.0
    %1305 = vmatpush.xpose.msra.mxu0 0.0
    %1306 = vmatpush.xpose.msra.mxu0 0.0
    %1307 = vmatpush.xpose.msra.mxu0 0.0
    %1308 = vmatpush.xpose.msra.mxu0 0.0
    %1309 = vmatpush.xpose.msra.mxu0 0.0
    %v1310 = vand.u32 %v1267, 4294901760
    %v1311 = vsub.f32 %v1267, %v1310
    %v1312 = vand.u32 %v1311, 4294901760
    %v1313 = vsub.f32 %v1311, %v1312
    %v1314 = vand.u32 %v1313, 4294901760
    %1315 = vmatpush.xpose.msra.mxu0 %v1314
    %v1316 = vand.u32 %v1265, 4294901760
    %1317 = vmatmul.f32.gmra.mxu0 %v1316
    %v1318 = vpop.f32.mrf.mxu0
    %v1319 = vadd.f32 %v1293, %v1318
    %1320 = vdwg.mxu0
    %1321 = vmatpush.xpose.msra.mxu0 0.0
    %1322 = vmatpush.xpose.msra.mxu0 0.0
    %1323 = vmatpush.xpose.msra.mxu0 0.0
    %1324 = vmatpush.xpose.msra.mxu0 0.0
    %1325 = vmatpush.xpose.msra.mxu0 0.0
    %1326 = vmatpush.xpose.msra.mxu0 0.0
    %1327 = vmatpush.xpose.msra.mxu0 0.0
    %1328 = vmatpush.xpose.msra.mxu0 0.0
    %1329 = vmatpush.xpose.msra.mxu0 0.0
    %1330 = vmatpush.xpose.msra.mxu0 0.0
    %1331 = vmatpush.xpose.msra.mxu0 0.0
    %1332 = vmatpush.xpose.msra.mxu0 0.0
    %1333 = vmatpush.xpose.msra.mxu0 0.0
    %1334 = vmatpush.xpose.msra.mxu0 0.0
    %1335 = vmatpush.xpose.msra.mxu0 0.0
    %v1336 = vand.u32 %v1267, 4294901760
    %v1337 = vsub.f32 %v1267, %v1336
    %1338 = vmatpush.xpose.msra.mxu0 %v1337
    %v1339 = vand.u32 %v1265, 4294901760
    %v1340 = vsub.f32 %v1265, %v1339
    %1341 = vmatmul.f32.gmra.mxu0 %v1340
    %v1342 = vpop.f32.mrf.mxu0
    %v1343 = vadd.f32 %v1319, %v1342
    %1344 = vdwg.mxu0
    %1345 = vmatpush.xpose.msra.mxu0 0.0
    %1346 = vmatpush.xpose.msra.mxu0 0.0
    %1347 = vmatpush.xpose.msra.mxu0 0.0
    %1348 = vmatpush.xpose.msra.mxu0 0.0
    %1349 = vmatpush.xpose.msra.mxu0 0.0
    %1350 = vmatpush.xpose.msra.mxu0 0.0
    %1351 = vmatpush.xpose.msra.mxu0 0.0
    %1352 = vmatpush.xpose.msra.mxu0 0.0
    %1353 = vmatpush.xpose.msra.mxu0 0.0
    %1354 = vmatpush.xpose.msra.mxu0 0.0
    %1355 = vmatpush.xpose.msra.mxu0 0.0
    %1356 = vmatpush.xpose.msra.mxu0 0.0
    %1357 = vmatpush.xpose.msra.mxu0 0.0
    %1358 = vmatpush.xpose.msra.mxu0 0.0
    %1359 = vmatpush.xpose.msra.mxu0 0.0
    %v1360 = vand.u32 %v1267, 4294901760
    %1361 = vmatpush.xpose.msra.mxu0 %v1360
    %v1362 = vand.u32 %v1265, 4294901760
    %v1363 = vsub.f32 %v1265, %v1362
    %v1364 = vand.u32 %v1363, 4294901760
    %1365 = vmatmul.f32.gmra.mxu0 %v1364
    %v1366 = vpop.f32.mrf.mxu0
    %v1367 = vadd.f32 %v1343, %v1366
    %1368 = vdwg.mxu0
    %1369 = vmatpush.xpose.msra.mxu0 0.0
    %1370 = vmatpush.xpose.msra.mxu0 0.0
    %1371 = vmatpush.xpose.msra.mxu0 0.0
    %1372 = vmatpush.xpose.msra.mxu0 0.0
    %1373 = vmatpush.xpose.msra.mxu0 0.0
    %1374 = vmatpush.xpose.msra.mxu0 0.0
    %1375 = vmatpush.xpose.msra.mxu0 0.0
    %1376 = vmatpush.xpose.msra.mxu0 0.0
    %1377 = vmatpush.xpose.msra.mxu0 0.0
    %1378 = vmatpush.xpose.msra.mxu0 0.0
    %1379 = vmatpush.xpose.msra.mxu0 0.0
    %1380 = vmatpush.xpose.msra.mxu0 0.0
    %1381 = vmatpush.xpose.msra.mxu0 0.0
    %1382 = vmatpush.xpose.msra.mxu0 0.0
    %1383 = vmatpush.xpose.msra.mxu0 0.0
    %v1384 = vand.u32 %v1267, 4294901760
    %v1385 = vsub.f32 %v1267, %v1384
    %v1386 = vand.u32 %v1385, 4294901760
    %1387 = vmatpush.xpose.msra.mxu0 %v1386
    %v1388 = vand.u32 %v1265, 4294901760
    %1389 = vmatmul.f32.gmra.mxu0 %v1388
    %v1390 = vpop.f32.mrf.mxu0
    %v1391 = vadd.f32 %v1367, %v1390
    %1392 = vdwg.mxu0
    %1393 = vmatpush.xpose.msra.mxu0 0.0
    %1394 = vmatpush.xpose.msra.mxu0 0.0
    %1395 = vmatpush.xpose.msra.mxu0 0.0
    %1396 = vmatpush.xpose.msra.mxu0 0.0
    %1397 = vmatpush.xpose.msra.mxu0 0.0
    %1398 = vmatpush.xpose.msra.mxu0 0.0
    %1399 = vmatpush.xpose.msra.mxu0 0.0
    %1400 = vmatpush.xpose.msra.mxu0 0.0
    %1401 = vmatpush.xpose.msra.mxu0 0.0
    %1402 = vmatpush.xpose.msra.mxu0 0.0
    %1403 = vmatpush.xpose.msra.mxu0 0.0
    %1404 = vmatpush.xpose.msra.mxu0 0.0
    %1405 = vmatpush.xpose.msra.mxu0 0.0
    %1406 = vmatpush.xpose.msra.mxu0 0.0
    %1407 = vmatpush.xpose.msra.mxu0 0.0
    %v1408 = vand.u32 %v1267, 4294901760
    %1409 = vmatpush.xpose.msra.mxu0 %v1408
    %v1410 = vand.u32 %v1265, 4294901760
    %1411 = vmatmul.f32.gmra.mxu0 %v1410
    %v1412 = vpop.f32.mrf.mxu0
    %v1413 = vadd.f32 %v1391, %v1412
    %1414 = vdwg.mxu0
    %1415 = vrot.lane.b32.xlu0 %v349, 96
    %v1416 = vpop.permute.xlu0 %1415
    %v1417 = vsel %vm352, %v349, 0
    %v1419 = vsel %vm352, %v1416, 0
    %1421 = vmatpush.xpose.msra.mxu0 0.0
    %1422 = vmatpush.xpose.msra.mxu0 0.0
    %1423 = vmatpush.xpose.msra.mxu0 0.0
    %1424 = vmatpush.xpose.msra.mxu0 0.0
    %1425 = vmatpush.xpose.msra.mxu0 0.0
    %1426 = vmatpush.xpose.msra.mxu0 0.0
    %1427 = vmatpush.xpose.msra.mxu0 0.0
    %1428 = vmatpush.xpose.msra.mxu0 0.0
    %1429 = vmatpush.xpose.msra.mxu0 0.0
    %1430 = vmatpush.xpose.msra.mxu0 0.0
    %1431 = vmatpush.xpose.msra.mxu0 0.0
    %1432 = vmatpush.xpose.msra.mxu0 0.0
    %1433 = vmatpush.xpose.msra.mxu0 0.0
    %1434 = vmatpush.xpose.msra.mxu0 0.0
    %1435 = vmatpush.xpose.msra.mxu0 0.0
    %v1436 = vand.u32 %v1419, 4294901760
    %1437 = vmatpush.xpose.msra.mxu0 %v1436
    %v1438 = vand.u32 %v1417, 4294901760
    %v1439 = vsub.f32 %v1417, %v1438
    %v1440 = vand.u32 %v1439, 4294901760
    %v1441 = vsub.f32 %v1439, %v1440
    %v1442 = vand.u32 %v1441, 4294901760
    %1443 = vmatmul.f32.gmra.mxu0 %v1442
    %v1444 = vpop.f32.mrf.mxu0
    %v1445 = vadd.f32 0.0, %v1444
    %1446 = vdwg.mxu0
    %1447 = vmatpush.xpose.msra.mxu0 0.0
    %1448 = vmatpush.xpose.msra.mxu0 0.0
    %1449 = vmatpush.xpose.msra.mxu0 0.0
    %1450 = vmatpush.xpose.msra.mxu0 0.0
    %1451 = vmatpush.xpose.msra.mxu0 0.0
    %1452 = vmatpush.xpose.msra.mxu0 0.0
    %1453 = vmatpush.xpose.msra.mxu0 0.0
    %1454 = vmatpush.xpose.msra.mxu0 0.0
    %1455 = vmatpush.xpose.msra.mxu0 0.0
    %1456 = vmatpush.xpose.msra.mxu0 0.0
    %1457 = vmatpush.xpose.msra.mxu0 0.0
    %1458 = vmatpush.xpose.msra.mxu0 0.0
    %1459 = vmatpush.xpose.msra.mxu0 0.0
    %1460 = vmatpush.xpose.msra.mxu0 0.0
    %1461 = vmatpush.xpose.msra.mxu0 0.0
    %v1462 = vand.u32 %v1419, 4294901760
    %v1463 = vsub.f32 %v1419, %v1462
    %v1464 = vand.u32 %v1463, 4294901760
    %v1465 = vsub.f32 %v1463, %v1464
    %v1466 = vand.u32 %v1465, 4294901760
    %1467 = vmatpush.xpose.msra.mxu0 %v1466
    %v1468 = vand.u32 %v1417, 4294901760
    %1469 = vmatmul.f32.gmra.mxu0 %v1468
    %v1470 = vpop.f32.mrf.mxu0
    %v1471 = vadd.f32 %v1445, %v1470
    %1472 = vdwg.mxu0
    %1473 = vmatpush.xpose.msra.mxu0 0.0
    %1474 = vmatpush.xpose.msra.mxu0 0.0
    %1475 = vmatpush.xpose.msra.mxu0 0.0
    %1476 = vmatpush.xpose.msra.mxu0 0.0
    %1477 = vmatpush.xpose.msra.mxu0 0.0
    %1478 = vmatpush.xpose.msra.mxu0 0.0
    %1479 = vmatpush.xpose.msra.mxu0 0.0
    %1480 = vmatpush.xpose.msra.mxu0 0.0
    %1481 = vmatpush.xpose.msra.mxu0 0.0
    %1482 = vmatpush.xpose.msra.mxu0 0.0
    %1483 = vmatpush.xpose.msra.mxu0 0.0
    %1484 = vmatpush.xpose.msra.mxu0 0.0
    %1485 = vmatpush.xpose.msra.mxu0 0.0
    %1486 = vmatpush.xpose.msra.mxu0 0.0
    %1487 = vmatpush.xpose.msra.mxu0 0.0
    %v1488 = vand.u32 %v1419, 4294901760
    %v1489 = vsub.f32 %v1419, %v1488
    %1490 = vmatpush.xpose.msra.mxu0 %v1489
    %v1491 = vand.u32 %v1417, 4294901760
    %v1492 = vsub.f32 %v1417, %v1491
    %1493 = vmatmul.f32.gmra.mxu0 %v1492
    %v1494 = vpop.f32.mrf.mxu0
    %v1495 = vadd.f32 %v1471, %v1494
    %1496 = vdwg.mxu0
    %1497 = vmatpush.xpose.msra.mxu0 0.0
    %1498 = vmatpush.xpose.msra.mxu0 0.0
    %1499 = vmatpush.xpose.msra.mxu0 0.0
    %1500 = vmatpush.xpose.msra.mxu0 0.0
    %1501 = vmatpush.xpose.msra.mxu0 0.0
    %1502 = vmatpush.xpose.msra.mxu0 0.0
    %1503 = vmatpush.xpose.msra.mxu0 0.0
    %1504 = vmatpush.xpose.msra.mxu0 0.0
    %1505 = vmatpush.xpose.msra.mxu0 0.0
    %1506 = vmatpush.xpose.msra.mxu0 0.0
    %1507 = vmatpush.xpose.msra.mxu0 0.0
    %1508 = vmatpush.xpose.msra.mxu0 0.0
    %1509 = vmatpush.xpose.msra.mxu0 0.0
    %1510 = vmatpush.xpose.msra.mxu0 0.0
    %1511 = vmatpush.xpose.msra.mxu0 0.0
    %v1512 = vand.u32 %v1419, 4294901760
    %1513 = vmatpush.xpose.msra.mxu0 %v1512
    %v1514 = vand.u32 %v1417, 4294901760
    %v1515 = vsub.f32 %v1417, %v1514
    %v1516 = vand.u32 %v1515, 4294901760
    %1517 = vmatmul.f32.gmra.mxu0 %v1516
    %v1518 = vpop.f32.mrf.mxu0
    %v1519 = vadd.f32 %v1495, %v1518
    %1520 = vdwg.mxu0
    %1521 = vmatpush.xpose.msra.mxu0 0.0
    %1522 = vmatpush.xpose.msra.mxu0 0.0
    %1523 = vmatpush.xpose.msra.mxu0 0.0
    %1524 = vmatpush.xpose.msra.mxu0 0.0
    %1525 = vmatpush.xpose.msra.mxu0 0.0
    %1526 = vmatpush.xpose.msra.mxu0 0.0
    %1527 = vmatpush.xpose.msra.mxu0 0.0
    %1528 = vmatpush.xpose.msra.mxu0 0.0
    %1529 = vmatpush.xpose.msra.mxu0 0.0
    %1530 = vmatpush.xpose.msra.mxu0 0.0
    %1531 = vmatpush.xpose.msra.mxu0 0.0
    %1532 = vmatpush.xpose.msra.mxu0 0.0
    %1533 = vmatpush.xpose.msra.mxu0 0.0
    %1534 = vmatpush.xpose.msra.mxu0 0.0
    %1535 = vmatpush.xpose.msra.mxu0 0.0
    %v1536 = vand.u32 %v1419, 4294901760
    %v1537 = vsub.f32 %v1419, %v1536
    %v1538 = vand.u32 %v1537, 4294901760
    %1539 = vmatpush.xpose.msra.mxu0 %v1538
    %v1540 = vand.u32 %v1417, 4294901760
    %1541 = vmatmul.f32.gmra.mxu0 %v1540
    %v1542 = vpop.f32.mrf.mxu0
    %v1543 = vadd.f32 %v1519, %v1542
    %1544 = vdwg.mxu0
    %1545 = vmatpush.xpose.msra.mxu0 0.0
    %1546 = vmatpush.xpose.msra.mxu0 0.0
    %1547 = vmatpush.xpose.msra.mxu0 0.0
    %1548 = vmatpush.xpose.msra.mxu0 0.0
    %1549 = vmatpush.xpose.msra.mxu0 0.0
    %1550 = vmatpush.xpose.msra.mxu0 0.0
    %1551 = vmatpush.xpose.msra.mxu0 0.0
    %1552 = vmatpush.xpose.msra.mxu0 0.0
    %1553 = vmatpush.xpose.msra.mxu0 0.0
    %1554 = vmatpush.xpose.msra.mxu0 0.0
    %1555 = vmatpush.xpose.msra.mxu0 0.0
    %1556 = vmatpush.xpose.msra.mxu0 0.0
    %1557 = vmatpush.xpose.msra.mxu0 0.0
    %1558 = vmatpush.xpose.msra.mxu0 0.0
    %1559 = vmatpush.xpose.msra.mxu0 0.0
    %v1560 = vand.u32 %v1419, 4294901760
    %1561 = vmatpush.xpose.msra.mxu0 %v1560
    %v1562 = vand.u32 %v1417, 4294901760
    %1563 = vmatmul.f32.gmra.mxu0 %v1562
    %v1564 = vpop.f32.mrf.mxu0
    %v1565 = vadd.f32 %v1543, %v1564
    %1566 = vdwg.mxu0
    %v1567 = vmul.f32 %v501, 0.35355338
    %v1568 = vmul.f32 %v653, 0.35355338
    %v1569 = vmul.f32 %v805, 0.35355338
    %v1570 = vmul.f32 %v957, 0.35355338
    %v1571 = vmul.f32 %v1109, 0.35355338
    %v1572 = vmul.f32 %v1261, 0.35355338
    %v1573 = vmul.f32 %v1413, 0.35355338
    %v1574 = vmul.f32 %v1565, 0.35355338
    %v1575 = vsel %vm352, %v1567, -inf
    %1576 = vmax.xlane.f32.xlu0 %v1575
    %v1577 = vpop.xlane.xlu0 %1576
    %v1578 = vsel %vm352, %v1568, -inf
    %1579 = vmax.xlane.f32.xlu0 %v1578
    %v1580 = vpop.xlane.xlu0 %1579
    %v1581 = vsel %vm352, %v1569, -inf
    %1582 = vmax.xlane.f32.xlu0 %v1581
    %v1583 = vpop.xlane.xlu0 %1582
    %v1584 = vsel %vm352, %v1570, -inf
    %1585 = vmax.xlane.f32.xlu0 %v1584
    %v1586 = vpop.xlane.xlu0 %1585
    %v1587 = vsel %vm352, %v1571, -inf
    %1588 = vmax.xlane.f32.xlu0 %v1587
    %v1589 = vpop.xlane.xlu0 %1588
    %v1590 = vsel %vm352, %v1572, -inf
    %1591 = vmax.xlane.f32.xlu0 %v1590
    %v1592 = vpop.xlane.xlu0 %1591
    %v1593 = vsel %vm352, %v1573, -inf
    %1594 = vmax.xlane.f32.xlu0 %v1593
    %v1595 = vpop.xlane.xlu0 %1594
    %v1596 = vsel %vm352, %v1574, -inf
    %1597 = vmax.xlane.f32.xlu0 %v1596
    %v1598 = vpop.xlane.xlu0 %1597
    %v1599 = vsub.f32 %v1567, %v1577
    %v1600 = vsub.f32 %v1568, %v1580
    %v1601 = vsub.f32 %v1569, %v1583
    %v1602 = vsub.f32 %v1570, %v1586
    %v1603 = vsub.f32 %v1571, %v1589
    %v1604 = vsub.f32 %v1572, %v1592
    %v1605 = vsub.f32 %v1573, %v1595
    %v1606 = vsub.f32 %v1574, %v1598
    %v1607 = vmul.f32 %v1599, 1.442695
    %v1608 = vpow.pop %v1607
    %v1609 = vmul.f32 %v1600, 1.442695
    %v1610 = vpow.pop %v1609
    %v1611 = vmul.f32 %v1601, 1.442695
    %v1612 = vpow.pop %v1611
    %v1613 = vmul.f32 %v1602, 1.442695
    %v1614 = vpow.pop %v1613
    %v1615 = vmul.f32 %v1603, 1.442695
    %v1616 = vpow.pop %v1615
    %v1617 = vmul.f32 %v1604, 1.442695
    %v1618 = vpow.pop %v1617
    %v1619 = vmul.f32 %v1605, 1.442695
    %v1620 = vpow.pop %v1619
    %v1621 = vmul.f32 %v1606, 1.442695
    %v1622 = vpow.pop %v1621
    %v1623 = vsel %vm352, %v1608, 0.0
    %1624 = vadd.xlane.f32.xlu0 %v1623
    %v1625 = vpop.xlane.xlu0 %1624
    %v1626 = vsel %vm352, %v1610, 0.0
    %1627 = vadd.xlane.f32.xlu0 %v1626
    %v1628 = vpop.xlane.xlu0 %1627
    %v1629 = vsel %vm352, %v1612, 0.0
    %1630 = vadd.xlane.f32.xlu0 %v1629
    %v1631 = vpop.xlane.xlu0 %1630
    %v1632 = vsel %vm352, %v1614, 0.0
    %1633 = vadd.xlane.f32.xlu0 %v1632
    %v1634 = vpop.xlane.xlu0 %1633
    %v1635 = vsel %vm352, %v1616, 0.0
    %1636 = vadd.xlane.f32.xlu0 %v1635
    %v1637 = vpop.xlane.xlu0 %1636
    %v1638 = vsel %vm352, %v1618, 0.0
    %1639 = vadd.xlane.f32.xlu0 %v1638
    %v1640 = vpop.xlane.xlu0 %1639
    %v1641 = vsel %vm352, %v1620, 0.0
    %1642 = vadd.xlane.f32.xlu0 %v1641
    %v1643 = vpop.xlane.xlu0 %1642
    %v1644 = vsel %vm352, %v1622, 0.0
    %1645 = vadd.xlane.f32.xlu0 %v1644
    %v1646 = vpop.xlane.xlu0 %1645
    %v1647 = vrcp.pop %v1625
    %v1648 = vmul.f32 %v1625, %v1647
    %v1649 = vsub.f32 1.0, %v1648
    %v1650 = vmul.f32 %v1647, %v1649
    %v1651 = vadd.f32 %v1647, %v1650
    %vm1652 = vweird.f32 %v1625
    %vm1653 = vweird.f32 %v1647
    %vm1654 = vmor %vm1652, %vm1653
    %v1655 = vsel %vm1654, %v1647, %v1651
    %v1656 = vand.u32 2147483647, %v1625
    %vm1657 = vcmp.eq.f32.partialorder %v1656, 8.507059e+37
    %v1658 = vand.u32 %v1625, 2147483648
    %v1659 = vor.u32 1.1754944e-38, %v1658
    %v1660 = vsel %vm1657, %v1659, %v1655
    %v1661 = vmul.f32 %v1608, %v1660
    %v1662 = vrcp.pop %v1628
    %v1663 = vmul.f32 %v1628, %v1662
    %v1664 = vsub.f32 1.0, %v1663
    %v1665 = vmul.f32 %v1662, %v1664
    %v1666 = vadd.f32 %v1662, %v1665
    %vm1667 = vweird.f32 %v1628
    %vm1668 = vweird.f32 %v1662
    %vm1669 = vmor %vm1667, %vm1668
    %v1670 = vsel %vm1669, %v1662, %v1666
    %v1671 = vand.u32 2147483647, %v1628
    %vm1672 = vcmp.eq.f32.partialorder %v1671, 8.507059e+37
    %v1673 = vand.u32 %v1628, 2147483648
    %v1674 = vor.u32 1.1754944e-38, %v1673
    %v1675 = vsel %vm1672, %v1674, %v1670
    %v1676 = vmul.f32 %v1610, %v1675
    %v1677 = vrcp.pop %v1631
    %v1678 = vmul.f32 %v1631, %v1677
    %v1679 = vsub.f32 1.0, %v1678
    %v1680 = vmul.f32 %v1677, %v1679
    %v1681 = vadd.f32 %v1677, %v1680
    %vm1682 = vweird.f32 %v1631
    %vm1683 = vweird.f32 %v1677
    %vm1684 = vmor %vm1682, %vm1683
    %v1685 = vsel %vm1684, %v1677, %v1681
    %v1686 = vand.u32 2147483647, %v1631
    %vm1687 = vcmp.eq.f32.partialorder %v1686, 8.507059e+37
    %v1688 = vand.u32 %v1631, 2147483648
    %v1689 = vor.u32 1.1754944e-38, %v1688
    %v1690 = vsel %vm1687, %v1689, %v1685
    %v1691 = vmul.f32 %v1612, %v1690
    %v1692 = vrcp.pop %v1634
    %v1693 = vmul.f32 %v1634, %v1692
    %v1694 = vsub.f32 1.0, %v1693
    %v1695 = vmul.f32 %v1692, %v1694
    %v1696 = vadd.f32 %v1692, %v1695
    %vm1697 = vweird.f32 %v1634
    %vm1698 = vweird.f32 %v1692
    %vm1699 = vmor %vm1697, %vm1698
    %v1700 = vsel %vm1699, %v1692, %v1696
    %v1701 = vand.u32 2147483647, %v1634
    %vm1702 = vcmp.eq.f32.partialorder %v1701, 8.507059e+37
    %v1703 = vand.u32 %v1634, 2147483648
    %v1704 = vor.u32 1.1754944e-38, %v1703
    %v1705 = vsel %vm1702, %v1704, %v1700
    %v1706 = vmul.f32 %v1614, %v1705
    %v1707 = vrcp.pop %v1637
    %v1708 = vmul.f32 %v1637, %v1707
    %v1709 = vsub.f32 1.0, %v1708
    %v1710 = vmul.f32 %v1707, %v1709
    %v1711 = vadd.f32 %v1707, %v1710
    %vm1712 = vweird.f32 %v1637
    %vm1713 = vweird.f32 %v1707
    %vm1714 = vmor %vm1712, %vm1713
    %v1715 = vsel %vm1714, %v1707, %v1711
    %v1716 = vand.u32 2147483647, %v1637
    %vm1717 = vcmp.eq.f32.partialorder %v1716, 8.507059e+37
    %v1718 = vand.u32 %v1637, 2147483648
    %v1719 = vor.u32 1.1754944e-38, %v1718
    %v1720 = vsel %vm1717, %v1719, %v1715
    %v1721 = vmul.f32 %v1616, %v1720
    %v1722 = vrcp.pop %v1640
    %v1723 = vmul.f32 %v1640, %v1722
    %v1724 = vsub.f32 1.0, %v1723
    %v1725 = vmul.f32 %v1722, %v1724
    %v1726 = vadd.f32 %v1722, %v1725
    %vm1727 = vweird.f32 %v1640
    %vm1728 = vweird.f32 %v1722
    %vm1729 = vmor %vm1727, %vm1728
    %v1730 = vsel %vm1729, %v1722, %v1726
    %v1731 = vand.u32 2147483647, %v1640
    %vm1732 = vcmp.eq.f32.partialorder %v1731, 8.507059e+37
    %v1733 = vand.u32 %v1640, 2147483648
    %v1734 = vor.u32 1.1754944e-38, %v1733
    %v1735 = vsel %vm1732, %v1734, %v1730
    %v1736 = vmul.f32 %v1618, %v1735
    %v1737 = vrcp.pop %v1643
    %v1738 = vmul.f32 %v1643, %v1737
    %v1739 = vsub.f32 1.0, %v1738
    %v1740 = vmul.f32 %v1737, %v1739
    %v1741 = vadd.f32 %v1737, %v1740
    %vm1742 = vweird.f32 %v1643
    %vm1743 = vweird.f32 %v1737
    %vm1744 = vmor %vm1742, %vm1743
    %v1745 = vsel %vm1744, %v1737, %v1741
    %v1746 = vand.u32 2147483647, %v1643
    %vm1747 = vcmp.eq.f32.partialorder %v1746, 8.507059e+37
    %v1748 = vand.u32 %v1643, 2147483648
    %v1749 = vor.u32 1.1754944e-38, %v1748
    %v1750 = vsel %vm1747, %v1749, %v1745
    %v1751 = vmul.f32 %v1620, %v1750
    %v1752 = vrcp.pop %v1646
    %v1753 = vmul.f32 %v1646, %v1752
    %v1754 = vsub.f32 1.0, %v1753
    %v1755 = vmul.f32 %v1752, %v1754
    %v1756 = vadd.f32 %v1752, %v1755
    %vm1757 = vweird.f32 %v1646
    %vm1758 = vweird.f32 %v1752
    %vm1759 = vmor %vm1757, %vm1758
    %v1760 = vsel %vm1759, %v1752, %v1756
    %v1761 = vand.u32 2147483647, %v1646
    %vm1762 = vcmp.eq.f32.partialorder %v1761, 8.507059e+37
    %v1763 = vand.u32 %v1646, 2147483648
    %v1764 = vor.u32 1.1754944e-38, %v1763
    %v1765 = vsel %vm1762, %v1764, %v1760
    %v1766 = vmul.f32 %v1622, %v1765
    %1767 = vrot.lane.b32.xlu0 %v330, 64
    %v1768 = vpop.permute.xlu0 %1767
    %v1771 = vsel %vm352, %v1661, 0
    %1773 = vmatpush.msra.mxu0 0.0
    %1774 = vmatpush.msra.mxu0 0.0
    %1775 = vmatpush.msra.mxu0 0.0
    %1776 = vmatpush.msra.mxu0 0.0
    %1777 = vmatpush.msra.mxu0 0.0
    %1778 = vmatpush.msra.mxu0 0.0
    %1779 = vmatpush.msra.mxu0 0.0
    %1780 = vmatpush.msra.mxu0 0.0
    %1781 = vmatpush.msra.mxu0 0.0
    %1782 = vmatpush.msra.mxu0 0.0
    %1783 = vmatpush.msra.mxu0 0.0
    %1784 = vmatpush.msra.mxu0 0.0
    %1785 = vmatpush.msra.mxu0 0.0
    %1786 = vmatpush.msra.mxu0 0.0
    %1787 = vmatpush.msra.mxu0 0.0
    %v1788 = vand.u32 %v1768, 4294901760
    %1789 = vmatpush.msra.mxu0 %v1788
    %v1790 = vand.u32 %v1771, 4294901760
    %v1791 = vsub.f32 %v1771, %v1790
    %v1792 = vand.u32 %v1791, 4294901760
    %v1793 = vsub.f32 %v1791, %v1792
    %v1794 = vand.u32 %v1793, 4294901760
    %1795 = vmatmul.f32.gmra.mxu0 %v1794
    %v1796 = vpop.f32.mrf.mxu0
    %v1797 = vadd.f32 0.0, %v1796
    %1798 = vdwg.mxu0
    %1799 = vmatpush.msra.mxu0 0.0
    %1800 = vmatpush.msra.mxu0 0.0
    %1801 = vmatpush.msra.mxu0 0.0
    %1802 = vmatpush.msra.mxu0 0.0
    %1803 = vmatpush.msra.mxu0 0.0
    %1804 = vmatpush.msra.mxu0 0.0
    %1805 = vmatpush.msra.mxu0 0.0
    %1806 = vmatpush.msra.mxu0 0.0
    %1807 = vmatpush.msra.mxu0 0.0
    %1808 = vmatpush.msra.mxu0 0.0
    %1809 = vmatpush.msra.mxu0 0.0
    %1810 = vmatpush.msra.mxu0 0.0
    %1811 = vmatpush.msra.mxu0 0.0
    %1812 = vmatpush.msra.mxu0 0.0
    %1813 = vmatpush.msra.mxu0 0.0
    %v1814 = vand.u32 %v1768, 4294901760
    %v1815 = vsub.f32 %v1768, %v1814
    %v1816 = vand.u32 %v1815, 4294901760
    %v1817 = vsub.f32 %v1815, %v1816
    %v1818 = vand.u32 %v1817, 4294901760
    %1819 = vmatpush.msra.mxu0 %v1818
    %v1820 = vand.u32 %v1771, 4294901760
    %1821 = vmatmul.f32.gmra.mxu0 %v1820
    %v1822 = vpop.f32.mrf.mxu0
    %v1823 = vadd.f32 %v1797, %v1822
    %1824 = vdwg.mxu0
    %1825 = vmatpush.msra.mxu0 0.0
    %1826 = vmatpush.msra.mxu0 0.0
    %1827 = vmatpush.msra.mxu0 0.0
    %1828 = vmatpush.msra.mxu0 0.0
    %1829 = vmatpush.msra.mxu0 0.0
    %1830 = vmatpush.msra.mxu0 0.0
    %1831 = vmatpush.msra.mxu0 0.0
    %1832 = vmatpush.msra.mxu0 0.0
    %1833 = vmatpush.msra.mxu0 0.0
    %1834 = vmatpush.msra.mxu0 0.0
    %1835 = vmatpush.msra.mxu0 0.0
    %1836 = vmatpush.msra.mxu0 0.0
    %1837 = vmatpush.msra.mxu0 0.0
    %1838 = vmatpush.msra.mxu0 0.0
    %1839 = vmatpush.msra.mxu0 0.0
    %v1840 = vand.u32 %v1768, 4294901760
    %v1841 = vsub.f32 %v1768, %v1840
    %1842 = vmatpush.msra.mxu0 %v1841
    %v1843 = vand.u32 %v1771, 4294901760
    %v1844 = vsub.f32 %v1771, %v1843
    %1845 = vmatmul.f32.gmra.mxu0 %v1844
    %v1846 = vpop.f32.mrf.mxu0
    %v1847 = vadd.f32 %v1823, %v1846
    %1848 = vdwg.mxu0
    %1849 = vmatpush.msra.mxu0 0.0
    %1850 = vmatpush.msra.mxu0 0.0
    %1851 = vmatpush.msra.mxu0 0.0
    %1852 = vmatpush.msra.mxu0 0.0
    %1853 = vmatpush.msra.mxu0 0.0
    %1854 = vmatpush.msra.mxu0 0.0
    %1855 = vmatpush.msra.mxu0 0.0
    %1856 = vmatpush.msra.mxu0 0.0
    %1857 = vmatpush.msra.mxu0 0.0
    %1858 = vmatpush.msra.mxu0 0.0
    %1859 = vmatpush.msra.mxu0 0.0
    %1860 = vmatpush.msra.mxu0 0.0
    %1861 = vmatpush.msra.mxu0 0.0
    %1862 = vmatpush.msra.mxu0 0.0
    %1863 = vmatpush.msra.mxu0 0.0
    %v1864 = vand.u32 %v1768, 4294901760
    %1865 = vmatpush.msra.mxu0 %v1864
    %v1866 = vand.u32 %v1771, 4294901760
    %v1867 = vsub.f32 %v1771, %v1866
    %v1868 = vand.u32 %v1867, 4294901760
    %1869 = vmatmul.f32.gmra.mxu0 %v1868
    %v1870 = vpop.f32.mrf.mxu0
    %v1871 = vadd.f32 %v1847, %v1870
    %1872 = vdwg.mxu0
    %1873 = vmatpush.msra.mxu0 0.0
    %1874 = vmatpush.msra.mxu0 0.0
    %1875 = vmatpush.msra.mxu0 0.0
    %1876 = vmatpush.msra.mxu0 0.0
    %1877 = vmatpush.msra.mxu0 0.0
    %1878 = vmatpush.msra.mxu0 0.0
    %1879 = vmatpush.msra.mxu0 0.0
    %1880 = vmatpush.msra.mxu0 0.0
    %1881 = vmatpush.msra.mxu0 0.0
    %1882 = vmatpush.msra.mxu0 0.0
    %1883 = vmatpush.msra.mxu0 0.0
    %1884 = vmatpush.msra.mxu0 0.0
    %1885 = vmatpush.msra.mxu0 0.0
    %1886 = vmatpush.msra.mxu0 0.0
    %1887 = vmatpush.msra.mxu0 0.0
    %v1888 = vand.u32 %v1768, 4294901760
    %v1889 = vsub.f32 %v1768, %v1888
    %v1890 = vand.u32 %v1889, 4294901760
    %1891 = vmatpush.msra.mxu0 %v1890
    %v1892 = vand.u32 %v1771, 4294901760
    %1893 = vmatmul.f32.gmra.mxu0 %v1892
    %v1894 = vpop.f32.mrf.mxu0
    %v1895 = vadd.f32 %v1871, %v1894
    %1896 = vdwg.mxu0
    %1897 = vmatpush.msra.mxu0 0.0
    %1898 = vmatpush.msra.mxu0 0.0
    %1899 = vmatpush.msra.mxu0 0.0
    %1900 = vmatpush.msra.mxu0 0.0
    %1901 = vmatpush.msra.mxu0 0.0
    %1902 = vmatpush.msra.mxu0 0.0
    %1903 = vmatpush.msra.mxu0 0.0
    %1904 = vmatpush.msra.mxu0 0.0
    %1905 = vmatpush.msra.mxu0 0.0
    %1906 = vmatpush.msra.mxu0 0.0
    %1907 = vmatpush.msra.mxu0 0.0
    %1908 = vmatpush.msra.mxu0 0.0
    %1909 = vmatpush.msra.mxu0 0.0
    %1910 = vmatpush.msra.mxu0 0.0
    %1911 = vmatpush.msra.mxu0 0.0
    %v1912 = vand.u32 %v1768, 4294901760
    %1913 = vmatpush.msra.mxu0 %v1912
    %v1914 = vand.u32 %v1771, 4294901760
    %1915 = vmatmul.f32.gmra.mxu0 %v1914
    %v1916 = vpop.f32.mrf.mxu0
    %v1917 = vadd.f32 %v1895, %v1916
    %1918 = vdwg.mxu0
    %1919 = vrot.lane.b32.xlu0 %v334, 64
    %v1920 = vpop.permute.xlu0 %1919
    %v1923 = vsel %vm352, %v1676, 0
    %1925 = vmatpush.msra.mxu0 0.0
    %1926 = vmatpush.msra.mxu0 0.0
    %1927 = vmatpush.msra.mxu0 0.0
    %1928 = vmatpush.msra.mxu0 0.0
    %1929 = vmatpush.msra.mxu0 0.0
    %1930 = vmatpush.msra.mxu0 0.0
    %1931 = vmatpush.msra.mxu0 0.0
    %1932 = vmatpush.msra.mxu0 0.0
    %1933 = vmatpush.msra.mxu0 0.0
    %1934 = vmatpush.msra.mxu0 0.0
    %1935 = vmatpush.msra.mxu0 0.0
    %1936 = vmatpush.msra.mxu0 0.0
    %1937 = vmatpush.msra.mxu0 0.0
    %1938 = vmatpush.msra.mxu0 0.0
    %1939 = vmatpush.msra.mxu0 0.0
    %v1940 = vand.u32 %v1920, 4294901760
    %1941 = vmatpush.msra.mxu0 %v1940
    %v1942 = vand.u32 %v1923, 4294901760
    %v1943 = vsub.f32 %v1923, %v1942
    %v1944 = vand.u32 %v1943, 4294901760
    %v1945 = vsub.f32 %v1943, %v1944
    %v1946 = vand.u32 %v1945, 4294901760
    %1947 = vmatmul.f32.gmra.mxu0 %v1946
    %v1948 = vpop.f32.mrf.mxu0
    %v1949 = vadd.f32 0.0, %v1948
    %1950 = vdwg.mxu0
    %1951 = vmatpush.msra.mxu0 0.0
    %1952 = vmatpush.msra.mxu0 0.0
    %1953 = vmatpush.msra.mxu0 0.0
    %1954 = vmatpush.msra.mxu0 0.0
    %1955 = vmatpush.msra.mxu0 0.0
    %1956 = vmatpush.msra.mxu0 0.0
    %1957 = vmatpush.msra.mxu0 0.0
    %1958 = vmatpush.msra.mxu0 0.0
    %1959 = vmatpush.msra.mxu0 0.0
    %1960 = vmatpush.msra.mxu0 0.0
    %1961 = vmatpush.msra.mxu0 0.0
    %1962 = vmatpush.msra.mxu0 0.0
    %1963 = vmatpush.msra.mxu0 0.0
    %1964 = vmatpush.msra.mxu0 0.0
    %1965 = vmatpush.msra.mxu0 0.0
    %v1966 = vand.u32 %v1920, 4294901760
    %v1967 = vsub.f32 %v1920, %v1966
    %v1968 = vand.u32 %v1967, 4294901760
    %v1969 = vsub.f32 %v1967, %v1968
    %v1970 = vand.u32 %v1969, 4294901760
    %1971 = vmatpush.msra.mxu0 %v1970
    %v1972 = vand.u32 %v1923, 4294901760
    %1973 = vmatmul.f32.gmra.mxu0 %v1972
    %v1974 = vpop.f32.mrf.mxu0
    %v1975 = vadd.f32 %v1949, %v1974
    %1976 = vdwg.mxu0
    %1977 = vmatpush.msra.mxu0 0.0
    %1978 = vmatpush.msra.mxu0 0.0
    %1979 = vmatpush.msra.mxu0 0.0
    %1980 = vmatpush.msra.mxu0 0.0
    %1981 = vmatpush.msra.mxu0 0.0
    %1982 = vmatpush.msra.mxu0 0.0
    %1983 = vmatpush.msra.mxu0 0.0
    %1984 = vmatpush.msra.mxu0 0.0
    %1985 = vmatpush.msra.mxu0 0.0
    %1986 = vmatpush.msra.mxu0 0.0
    %1987 = vmatpush.msra.mxu0 0.0
    %1988 = vmatpush.msra.mxu0 0.0
    %1989 = vmatpush.msra.mxu0 0.0
    %1990 = vmatpush.msra.mxu0 0.0
    %1991 = vmatpush.msra.mxu0 0.0
    %v1992 = vand.u32 %v1920, 4294901760
    %v1993 = vsub.f32 %v1920, %v1992
    %1994 = vmatpush.msra.mxu0 %v1993
    %v1995 = vand.u32 %v1923, 4294901760
    %v1996 = vsub.f32 %v1923, %v1995
    %1997 = vmatmul.f32.gmra.mxu0 %v1996
    %v1998 = vpop.f32.mrf.mxu0
    %v1999 = vadd.f32 %v1975, %v1998
    %2000 = vdwg.mxu0
    %2001 = vmatpush.msra.mxu0 0.0
    %2002 = vmatpush.msra.mxu0 0.0
    %2003 = vmatpush.msra.mxu0 0.0
    %2004 = vmatpush.msra.mxu0 0.0
    %2005 = vmatpush.msra.mxu0 0.0
    %2006 = vmatpush.msra.mxu0 0.0
    %2007 = vmatpush.msra.mxu0 0.0
    %2008 = vmatpush.msra.mxu0 0.0
    %2009 = vmatpush.msra.mxu0 0.0
    %2010 = vmatpush.msra.mxu0 0.0
    %2011 = vmatpush.msra.mxu0 0.0
    %2012 = vmatpush.msra.mxu0 0.0
    %2013 = vmatpush.msra.mxu0 0.0
    %2014 = vmatpush.msra.mxu0 0.0
    %2015 = vmatpush.msra.mxu0 0.0
    %v2016 = vand.u32 %v1920, 4294901760
    %2017 = vmatpush.msra.mxu0 %v2016
    %v2018 = vand.u32 %v1923, 4294901760
    %v2019 = vsub.f32 %v1923, %v2018
    %v2020 = vand.u32 %v2019, 4294901760
    %2021 = vmatmul.f32.gmra.mxu0 %v2020
    %v2022 = vpop.f32.mrf.mxu0
    %v2023 = vadd.f32 %v1999, %v2022
    %2024 = vdwg.mxu0
    %2025 = vmatpush.msra.mxu0 0.0
    %2026 = vmatpush.msra.mxu0 0.0
    %2027 = vmatpush.msra.mxu0 0.0
    %2028 = vmatpush.msra.mxu0 0.0
    %2029 = vmatpush.msra.mxu0 0.0
    %2030 = vmatpush.msra.mxu0 0.0
    %2031 = vmatpush.msra.mxu0 0.0
    %2032 = vmatpush.msra.mxu0 0.0
    %2033 = vmatpush.msra.mxu0 0.0
    %2034 = vmatpush.msra.mxu0 0.0
    %2035 = vmatpush.msra.mxu0 0.0
    %2036 = vmatpush.msra.mxu0 0.0
    %2037 = vmatpush.msra.mxu0 0.0
    %2038 = vmatpush.msra.mxu0 0.0
    %2039 = vmatpush.msra.mxu0 0.0
    %v2040 = vand.u32 %v1920, 4294901760
    %v2041 = vsub.f32 %v1920, %v2040
    %v2042 = vand.u32 %v2041, 4294901760
    %2043 = vmatpush.msra.mxu0 %v2042
    %v2044 = vand.u32 %v1923, 4294901760
    %2045 = vmatmul.f32.gmra.mxu0 %v2044
    %v2046 = vpop.f32.mrf.mxu0
    %v2047 = vadd.f32 %v2023, %v2046
    %2048 = vdwg.mxu0
    %2049 = vmatpush.msra.mxu0 0.0
    %2050 = vmatpush.msra.mxu0 0.0
    %2051 = vmatpush.msra.mxu0 0.0
    %2052 = vmatpush.msra.mxu0 0.0
    %2053 = vmatpush.msra.mxu0 0.0
    %2054 = vmatpush.msra.mxu0 0.0
    %2055 = vmatpush.msra.mxu0 0.0
    %2056 = vmatpush.msra.mxu0 0.0
    %2057 = vmatpush.msra.mxu0 0.0
    %2058 = vmatpush.msra.mxu0 0.0
    %2059 = vmatpush.msra.mxu0 0.0
    %2060 = vmatpush.msra.mxu0 0.0
    %2061 = vmatpush.msra.mxu0 0.0
    %2062 = vmatpush.msra.mxu0 0.0
    %2063 = vmatpush.msra.mxu0 0.0
    %v2064 = vand.u32 %v1920, 4294901760
    %2065 = vmatpush.msra.mxu0 %v2064
    %v2066 = vand.u32 %v1923, 4294901760
    %2067 = vmatmul.f32.gmra.mxu0 %v2066
    %v2068 = vpop.f32.mrf.mxu0
    %v2069 = vadd.f32 %v2047, %v2068
    %2070 = vdwg.mxu0
    %2071 = vrot.lane.b32.xlu0 %v339, 64
    %v2072 = vpop.permute.xlu0 %2071
    %v2075 = vsel %vm352, %v1691, 0
    %2077 = vmatpush.msra.mxu0 0.0
    %2078 = vmatpush.msra.mxu0 0.0
    %2079 = vmatpush.msra.mxu0 0.0
    %2080 = vmatpush.msra.mxu0 0.0
    %2081 = vmatpush.msra.mxu0 0.0
    %2082 = vmatpush.msra.mxu0 0.0
    %2083 = vmatpush.msra.mxu0 0.0
    %2084 = vmatpush.msra.mxu0 0.0
    %2085 = vmatpush.msra.mxu0 0.0
    %2086 = vmatpush.msra.mxu0 0.0
    %2087 = vmatpush.msra.mxu0 0.0
    %2088 = vmatpush.msra.mxu0 0.0
    %2089 = vmatpush.msra.mxu0 0.0
    %2090 = vmatpush.msra.mxu0 0.0
    %2091 = vmatpush.msra.mxu0 0.0
    %v2092 = vand.u32 %v2072, 4294901760
    %2093 = vmatpush.msra.mxu0 %v2092
    %v2094 = vand.u32 %v2075, 4294901760
    %v2095 = vsub.f32 %v2075, %v2094
    %v2096 = vand.u32 %v2095, 4294901760
    %v2097 = vsub.f32 %v2095, %v2096
    %v2098 = vand.u32 %v2097, 4294901760
    %2099 = vmatmul.f32.gmra.mxu0 %v2098
    %v2100 = vpop.f32.mrf.mxu0
    %v2101 = vadd.f32 0.0, %v2100
    %2102 = vdwg.mxu0
    %2103 = vmatpush.msra.mxu0 0.0
    %2104 = vmatpush.msra.mxu0 0.0
    %2105 = vmatpush.msra.mxu0 0.0
    %2106 = vmatpush.msra.mxu0 0.0
    %2107 = vmatpush.msra.mxu0 0.0
    %2108 = vmatpush.msra.mxu0 0.0
    %2109 = vmatpush.msra.mxu0 0.0
    %2110 = vmatpush.msra.mxu0 0.0
    %2111 = vmatpush.msra.mxu0 0.0
    %2112 = vmatpush.msra.mxu0 0.0
    %2113 = vmatpush.msra.mxu0 0.0
    %2114 = vmatpush.msra.mxu0 0.0
    %2115 = vmatpush.msra.mxu0 0.0
    %2116 = vmatpush.msra.mxu0 0.0
    %2117 = vmatpush.msra.mxu0 0.0
    %v2118 = vand.u32 %v2072, 4294901760
    %v2119 = vsub.f32 %v2072, %v2118
    %v2120 = vand.u32 %v2119, 4294901760
    %v2121 = vsub.f32 %v2119, %v2120
    %v2122 = vand.u32 %v2121, 4294901760
    %2123 = vmatpush.msra.mxu0 %v2122
    %v2124 = vand.u32 %v2075, 4294901760
    %2125 = vmatmul.f32.gmra.mxu0 %v2124
    %v2126 = vpop.f32.mrf.mxu0
    %v2127 = vadd.f32 %v2101, %v2126
    %2128 = vdwg.mxu0
    %2129 = vmatpush.msra.mxu0 0.0
    %2130 = vmatpush.msra.mxu0 0.0
    %2131 = vmatpush.msra.mxu0 0.0
    %2132 = vmatpush.msra.mxu0 0.0
    %2133 = vmatpush.msra.mxu0 0.0
    %2134 = vmatpush.msra.mxu0 0.0
    %2135 = vmatpush.msra.mxu0 0.0
    %2136 = vmatpush.msra.mxu0 0.0
    %2137 = vmatpush.msra.mxu0 0.0
    %2138 = vmatpush.msra.mxu0 0.0
    %2139 = vmatpush.msra.mxu0 0.0
    %2140 = vmatpush.msra.mxu0 0.0
    %2141 = vmatpush.msra.mxu0 0.0
    %2142 = vmatpush.msra.mxu0 0.0
    %2143 = vmatpush.msra.mxu0 0.0
    %v2144 = vand.u32 %v2072, 4294901760
    %v2145 = vsub.f32 %v2072, %v2144
    %2146 = vmatpush.msra.mxu0 %v2145
    %v2147 = vand.u32 %v2075, 4294901760
    %v2148 = vsub.f32 %v2075, %v2147
    %2149 = vmatmul.f32.gmra.mxu0 %v2148
    %v2150 = vpop.f32.mrf.mxu0
    %v2151 = vadd.f32 %v2127, %v2150
    %2152 = vdwg.mxu0
    %2153 = vmatpush.msra.mxu0 0.0
    %2154 = vmatpush.msra.mxu0 0.0
    %2155 = vmatpush.msra.mxu0 0.0
    %2156 = vmatpush.msra.mxu0 0.0
    %2157 = vmatpush.msra.mxu0 0.0
    %2158 = vmatpush.msra.mxu0 0.0
    %2159 = vmatpush.msra.mxu0 0.0
    %2160 = vmatpush.msra.mxu0 0.0
    %2161 = vmatpush.msra.mxu0 0.0
    %2162 = vmatpush.msra.mxu0 0.0
    %2163 = vmatpush.msra.mxu0 0.0
    %2164 = vmatpush.msra.mxu0 0.0
    %2165 = vmatpush.msra.mxu0 0.0
    %2166 = vmatpush.msra.mxu0 0.0
    %2167 = vmatpush.msra.mxu0 0.0
    %v2168 = vand.u32 %v2072, 4294901760
    %2169 = vmatpush.msra.mxu0 %v2168
    %v2170 = vand.u32 %v2075, 4294901760
    %v2171 = vsub.f32 %v2075, %v2170
    %v2172 = vand.u32 %v2171, 4294901760
    %2173 = vmatmul.f32.gmra.mxu0 %v2172
    %v2174 = vpop.f32.mrf.mxu0
    %v2175 = vadd.f32 %v2151, %v2174
    %2176 = vdwg.mxu0
    %2177 = vmatpush.msra.mxu0 0.0
    %2178 = vmatpush.msra.mxu0 0.0
    %2179 = vmatpush.msra.mxu0 0.0
    %2180 = vmatpush.msra.mxu0 0.0
    %2181 = vmatpush.msra.mxu0 0.0
    %2182 = vmatpush.msra.mxu0 0.0
    %2183 = vmatpush.msra.mxu0 0.0
    %2184 = vmatpush.msra.mxu0 0.0
    %2185 = vmatpush.msra.mxu0 0.0
    %2186 = vmatpush.msra.mxu0 0.0
    %2187 = vmatpush.msra.mxu0 0.0
    %2188 = vmatpush.msra.mxu0 0.0
    %2189 = vmatpush.msra.mxu0 0.0
    %2190 = vmatpush.msra.mxu0 0.0
    %2191 = vmatpush.msra.mxu0 0.0
    %v2192 = vand.u32 %v2072, 4294901760
    %v2193 = vsub.f32 %v2072, %v2192
    %v2194 = vand.u32 %v2193, 4294901760
    %2195 = vmatpush.msra.mxu0 %v2194
    %v2196 = vand.u32 %v2075, 4294901760
    %2197 = vmatmul.f32.gmra.mxu0 %v2196
    %v2198 = vpop.f32.mrf.mxu0
    %v2199 = vadd.f32 %v2175, %v2198
    %2200 = vdwg.mxu0
    %2201 = vmatpush.msra.mxu0 0.0
    %2202 = vmatpush.msra.mxu0 0.0
    %2203 = vmatpush.msra.mxu0 0.0
    %2204 = vmatpush.msra.mxu0 0.0
    %2205 = vmatpush.msra.mxu0 0.0
    %2206 = vmatpush.msra.mxu0 0.0
    %2207 = vmatpush.msra.mxu0 0.0
    %2208 = vmatpush.msra.mxu0 0.0
    %2209 = vmatpush.msra.mxu0 0.0
    %2210 = vmatpush.msra.mxu0 0.0
    %2211 = vmatpush.msra.mxu0 0.0
    %2212 = vmatpush.msra.mxu0 0.0
    %2213 = vmatpush.msra.mxu0 0.0
    %2214 = vmatpush.msra.mxu0 0.0
    %2215 = vmatpush.msra.mxu0 0.0
    %v2216 = vand.u32 %v2072, 4294901760
    %2217 = vmatpush.msra.mxu0 %v2216
    %v2218 = vand.u32 %v2075, 4294901760
    %2219 = vmatmul.f32.gmra.mxu0 %v2218
    %v2220 = vpop.f32.mrf.mxu0
    %v2221 = vadd.f32 %v2199, %v2220
    %2222 = vdwg.mxu0
    %2223 = vrot.lane.b32.xlu0 %v341, 64
    %v2224 = vpop.permute.xlu0 %2223
    %v2227 = vsel %vm352, %v1706, 0
    %2229 = vmatpush.msra.mxu0 0.0
    %2230 = vmatpush.msra.mxu0 0.0
    %2231 = vmatpush.msra.mxu0 0.0
    %2232 = vmatpush.msra.mxu0 0.0
    %2233 = vmatpush.msra.mxu0 0.0
    %2234 = vmatpush.msra.mxu0 0.0
    %2235 = vmatpush.msra.mxu0 0.0
    %2236 = vmatpush.msra.mxu0 0.0
    %2237 = vmatpush.msra.mxu0 0.0
    %2238 = vmatpush.msra.mxu0 0.0
    %2239 = vmatpush.msra.mxu0 0.0
    %2240 = vmatpush.msra.mxu0 0.0
    %2241 = vmatpush.msra.mxu0 0.0
    %2242 = vmatpush.msra.mxu0 0.0
    %2243 = vmatpush.msra.mxu0 0.0
    %v2244 = vand.u32 %v2224, 4294901760
    %2245 = vmatpush.msra.mxu0 %v2244
    %v2246 = vand.u32 %v2227, 4294901760
    %v2247 = vsub.f32 %v2227, %v2246
    %v2248 = vand.u32 %v2247, 4294901760
    %v2249 = vsub.f32 %v2247, %v2248
    %v2250 = vand.u32 %v2249, 4294901760
    %2251 = vmatmul.f32.gmra.mxu0 %v2250
    %v2252 = vpop.f32.mrf.mxu0
    %v2253 = vadd.f32 0.0, %v2252
    %2254 = vdwg.mxu0
    %2255 = vmatpush.msra.mxu0 0.0
    %2256 = vmatpush.msra.mxu0 0.0
    %2257 = vmatpush.msra.mxu0 0.0
    %2258 = vmatpush.msra.mxu0 0.0
    %2259 = vmatpush.msra.mxu0 0.0
    %2260 = vmatpush.msra.mxu0 0.0
    %2261 = vmatpush.msra.mxu0 0.0
    %2262 = vmatpush.msra.mxu0 0.0
    %2263 = vmatpush.msra.mxu0 0.0
    %2264 = vmatpush.msra.mxu0 0.0
    %2265 = vmatpush.msra.mxu0 0.0
    %2266 = vmatpush.msra.mxu0 0.0
    %2267 = vmatpush.msra.mxu0 0.0
    %2268 = vmatpush.msra.mxu0 0.0
    %2269 = vmatpush.msra.mxu0 0.0
    %v2270 = vand.u32 %v2224, 4294901760
    %v2271 = vsub.f32 %v2224, %v2270
    %v2272 = vand.u32 %v2271, 4294901760
    %v2273 = vsub.f32 %v2271, %v2272
    %v2274 = vand.u32 %v2273, 4294901760
    %2275 = vmatpush.msra.mxu0 %v2274
    %v2276 = vand.u32 %v2227, 4294901760
    %2277 = vmatmul.f32.gmra.mxu0 %v2276
    %v2278 = vpop.f32.mrf.mxu0
    %v2279 = vadd.f32 %v2253, %v2278
    %2280 = vdwg.mxu0
    %2281 = vmatpush.msra.mxu0 0.0
    %2282 = vmatpush.msra.mxu0 0.0
    %2283 = vmatpush.msra.mxu0 0.0
    %2284 = vmatpush.msra.mxu0 0.0
    %2285 = vmatpush.msra.mxu0 0.0
    %2286 = vmatpush.msra.mxu0 0.0
    %2287 = vmatpush.msra.mxu0 0.0
    %2288 = vmatpush.msra.mxu0 0.0
    %2289 = vmatpush.msra.mxu0 0.0
    %2290 = vmatpush.msra.mxu0 0.0
    %2291 = vmatpush.msra.mxu0 0.0
    %2292 = vmatpush.msra.mxu0 0.0
    %2293 = vmatpush.msra.mxu0 0.0
    %2294 = vmatpush.msra.mxu0 0.0
    %2295 = vmatpush.msra.mxu0 0.0
    %v2296 = vand.u32 %v2224, 4294901760
    %v2297 = vsub.f32 %v2224, %v2296
    %2298 = vmatpush.msra.mxu0 %v2297
    %v2299 = vand.u32 %v2227, 4294901760
    %v2300 = vsub.f32 %v2227, %v2299
    %2301 = vmatmul.f32.gmra.mxu0 %v2300
    %v2302 = vpop.f32.mrf.mxu0
    %v2303 = vadd.f32 %v2279, %v2302
    %2304 = vdwg.mxu0
    %2305 = vmatpush.msra.mxu0 0.0
    %2306 = vmatpush.msra.mxu0 0.0
    %2307 = vmatpush.msra.mxu0 0.0
    %2308 = vmatpush.msra.mxu0 0.0
    %2309 = vmatpush.msra.mxu0 0.0
    %2310 = vmatpush.msra.mxu0 0.0
    %2311 = vmatpush.msra.mxu0 0.0
    %2312 = vmatpush.msra.mxu0 0.0
    %2313 = vmatpush.msra.mxu0 0.0
    %2314 = vmatpush.msra.mxu0 0.0
    %2315 = vmatpush.msra.mxu0 0.0
    %2316 = vmatpush.msra.mxu0 0.0
    %2317 = vmatpush.msra.mxu0 0.0
    %2318 = vmatpush.msra.mxu0 0.0
    %2319 = vmatpush.msra.mxu0 0.0
    %v2320 = vand.u32 %v2224, 4294901760
    %2321 = vmatpush.msra.mxu0 %v2320
    %v2322 = vand.u32 %v2227, 4294901760
    %v2323 = vsub.f32 %v2227, %v2322
    %v2324 = vand.u32 %v2323, 4294901760
    %2325 = vmatmul.f32.gmra.mxu0 %v2324
    %v2326 = vpop.f32.mrf.mxu0
    %v2327 = vadd.f32 %v2303, %v2326
    %2328 = vdwg.mxu0
    %2329 = vmatpush.msra.mxu0 0.0
    %2330 = vmatpush.msra.mxu0 0.0
    %2331 = vmatpush.msra.mxu0 0.0
    %2332 = vmatpush.msra.mxu0 0.0
    %2333 = vmatpush.msra.mxu0 0.0
    %2334 = vmatpush.msra.mxu0 0.0
    %2335 = vmatpush.msra.mxu0 0.0
    %2336 = vmatpush.msra.mxu0 0.0
    %2337 = vmatpush.msra.mxu0 0.0
    %2338 = vmatpush.msra.mxu0 0.0
    %2339 = vmatpush.msra.mxu0 0.0
    %2340 = vmatpush.msra.mxu0 0.0
    %2341 = vmatpush.msra.mxu0 0.0
    %2342 = vmatpush.msra.mxu0 0.0
    %2343 = vmatpush.msra.mxu0 0.0
    %v2344 = vand.u32 %v2224, 4294901760
    %v2345 = vsub.f32 %v2224, %v2344
    %v2346 = vand.u32 %v2345, 4294901760
    %2347 = vmatpush.msra.mxu0 %v2346
    %v2348 = vand.u32 %v2227, 4294901760
    %2349 = vmatmul.f32.gmra.mxu0 %v2348
    %v2350 = vpop.f32.mrf.mxu0
    %v2351 = vadd.f32 %v2327, %v2350
    %2352 = vdwg.mxu0
    %2353 = vmatpush.msra.mxu0 0.0
    %2354 = vmatpush.msra.mxu0 0.0
    %2355 = vmatpush.msra.mxu0 0.0
    %2356 = vmatpush.msra.mxu0 0.0
    %2357 = vmatpush.msra.mxu0 0.0
    %2358 = vmatpush.msra.mxu0 0.0
    %2359 = vmatpush.msra.mxu0 0.0
    %2360 = vmatpush.msra.mxu0 0.0
    %2361 = vmatpush.msra.mxu0 0.0
    %2362 = vmatpush.msra.mxu0 0.0
    %2363 = vmatpush.msra.mxu0 0.0
    %2364 = vmatpush.msra.mxu0 0.0
    %2365 = vmatpush.msra.mxu0 0.0
    %2366 = vmatpush.msra.mxu0 0.0
    %2367 = vmatpush.msra.mxu0 0.0
    %v2368 = vand.u32 %v2224, 4294901760
    %2369 = vmatpush.msra.mxu0 %v2368
    %v2370 = vand.u32 %v2227, 4294901760
    %2371 = vmatmul.f32.gmra.mxu0 %v2370
    %v2372 = vpop.f32.mrf.mxu0
    %v2373 = vadd.f32 %v2351, %v2372
    %2374 = vdwg.mxu0
    %2375 = vrot.lane.b32.xlu0 %v343, 64
    %v2376 = vpop.permute.xlu0 %2375
    %v2379 = vsel %vm352, %v1721, 0
    %2381 = vmatpush.msra.mxu0 0.0
    %2382 = vmatpush.msra.mxu0 0.0
    %2383 = vmatpush.msra.mxu0 0.0
    %2384 = vmatpush.msra.mxu0 0.0
    %2385 = vmatpush.msra.mxu0 0.0
    %2386 = vmatpush.msra.mxu0 0.0
    %2387 = vmatpush.msra.mxu0 0.0
    %2388 = vmatpush.msra.mxu0 0.0
    %2389 = vmatpush.msra.mxu0 0.0
    %2390 = vmatpush.msra.mxu0 0.0
    %2391 = vmatpush.msra.mxu0 0.0
    %2392 = vmatpush.msra.mxu0 0.0
    %2393 = vmatpush.msra.mxu0 0.0
    %2394 = vmatpush.msra.mxu0 0.0
    %2395 = vmatpush.msra.mxu0 0.0
    %v2396 = vand.u32 %v2376, 4294901760
    %2397 = vmatpush.msra.mxu0 %v2396
    %v2398 = vand.u32 %v2379, 4294901760
    %v2399 = vsub.f32 %v2379, %v2398
    %v2400 = vand.u32 %v2399, 4294901760
    %v2401 = vsub.f32 %v2399, %v2400
    %v2402 = vand.u32 %v2401, 4294901760
    %2403 = vmatmul.f32.gmra.mxu0 %v2402
    %v2404 = vpop.f32.mrf.mxu0
    %v2405 = vadd.f32 0.0, %v2404
    %2406 = vdwg.mxu0
    %2407 = vmatpush.msra.mxu0 0.0
    %2408 = vmatpush.msra.mxu0 0.0
    %2409 = vmatpush.msra.mxu0 0.0
    %2410 = vmatpush.msra.mxu0 0.0
    %2411 = vmatpush.msra.mxu0 0.0
    %2412 = vmatpush.msra.mxu0 0.0
    %2413 = vmatpush.msra.mxu0 0.0
    %2414 = vmatpush.msra.mxu0 0.0
    %2415 = vmatpush.msra.mxu0 0.0
    %2416 = vmatpush.msra.mxu0 0.0
    %2417 = vmatpush.msra.mxu0 0.0
    %2418 = vmatpush.msra.mxu0 0.0
    %2419 = vmatpush.msra.mxu0 0.0
    %2420 = vmatpush.msra.mxu0 0.0
    %2421 = vmatpush.msra.mxu0 0.0
    %v2422 = vand.u32 %v2376, 4294901760
    %v2423 = vsub.f32 %v2376, %v2422
    %v2424 = vand.u32 %v2423, 4294901760
    %v2425 = vsub.f32 %v2423, %v2424
    %v2426 = vand.u32 %v2425, 4294901760
    %2427 = vmatpush.msra.mxu0 %v2426
    %v2428 = vand.u32 %v2379, 4294901760
    %2429 = vmatmul.f32.gmra.mxu0 %v2428
    %v2430 = vpop.f32.mrf.mxu0
    %v2431 = vadd.f32 %v2405, %v2430
    %2432 = vdwg.mxu0
    %2433 = vmatpush.msra.mxu0 0.0
    %2434 = vmatpush.msra.mxu0 0.0
    %2435 = vmatpush.msra.mxu0 0.0
    %2436 = vmatpush.msra.mxu0 0.0
    %2437 = vmatpush.msra.mxu0 0.0
    %2438 = vmatpush.msra.mxu0 0.0
    %2439 = vmatpush.msra.mxu0 0.0
    %2440 = vmatpush.msra.mxu0 0.0
    %2441 = vmatpush.msra.mxu0 0.0
    %2442 = vmatpush.msra.mxu0 0.0
    %2443 = vmatpush.msra.mxu0 0.0
    %2444 = vmatpush.msra.mxu0 0.0
    %2445 = vmatpush.msra.mxu0 0.0
    %2446 = vmatpush.msra.mxu0 0.0
    %2447 = vmatpush.msra.mxu0 0.0
    %v2448 = vand.u32 %v2376, 4294901760
    %v2449 = vsub.f32 %v2376, %v2448
    %2450 = vmatpush.msra.mxu0 %v2449
    %v2451 = vand.u32 %v2379, 4294901760
    %v2452 = vsub.f32 %v2379, %v2451
    %2453 = vmatmul.f32.gmra.mxu0 %v2452
    %v2454 = vpop.f32.mrf.mxu0
    %v2455 = vadd.f32 %v2431, %v2454
    %2456 = vdwg.mxu0
    %2457 = vmatpush.msra.mxu0 0.0
    %2458 = vmatpush.msra.mxu0 0.0
    %2459 = vmatpush.msra.mxu0 0.0
    %2460 = vmatpush.msra.mxu0 0.0
    %2461 = vmatpush.msra.mxu0 0.0
    %2462 = vmatpush.msra.mxu0 0.0
    %2463 = vmatpush.msra.mxu0 0.0
    %2464 = vmatpush.msra.mxu0 0.0
    %2465 = vmatpush.msra.mxu0 0.0
    %2466 = vmatpush.msra.mxu0 0.0
    %2467 = vmatpush.msra.mxu0 0.0
    %2468 = vmatpush.msra.mxu0 0.0
    %2469 = vmatpush.msra.mxu0 0.0
    %2470 = vmatpush.msra.mxu0 0.0
    %2471 = vmatpush.msra.mxu0 0.0
    %v2472 = vand.u32 %v2376, 4294901760
    %2473 = vmatpush.msra.mxu0 %v2472
    %v2474 = vand.u32 %v2379, 4294901760
    %v2475 = vsub.f32 %v2379, %v2474
    %v2476 = vand.u32 %v2475, 4294901760
    %2477 = vmatmul.f32.gmra.mxu0 %v2476
    %v2478 = vpop.f32.mrf.mxu0
    %v2479 = vadd.f32 %v2455, %v2478
    %2480 = vdwg.mxu0
    %2481 = vmatpush.msra.mxu0 0.0
    %2482 = vmatpush.msra.mxu0 0.0
    %2483 = vmatpush.msra.mxu0 0.0
    %2484 = vmatpush.msra.mxu0 0.0
    %2485 = vmatpush.msra.mxu0 0.0
    %2486 = vmatpush.msra.mxu0 0.0
    %2487 = vmatpush.msra.mxu0 0.0
    %2488 = vmatpush.msra.mxu0 0.0
    %2489 = vmatpush.msra.mxu0 0.0
    %2490 = vmatpush.msra.mxu0 0.0
    %2491 = vmatpush.msra.mxu0 0.0
    %2492 = vmatpush.msra.mxu0 0.0
    %2493 = vmatpush.msra.mxu0 0.0
    %2494 = vmatpush.msra.mxu0 0.0
    %2495 = vmatpush.msra.mxu0 0.0
    %v2496 = vand.u32 %v2376, 4294901760
    %v2497 = vsub.f32 %v2376, %v2496
    %v2498 = vand.u32 %v2497, 4294901760
    %2499 = vmatpush.msra.mxu0 %v2498
    %v2500 = vand.u32 %v2379, 4294901760
    %2501 = vmatmul.f32.gmra.mxu0 %v2500
    %v2502 = vpop.f32.mrf.mxu0
    %v2503 = vadd.f32 %v2479, %v2502
    %2504 = vdwg.mxu0
    %2505 = vmatpush.msra.mxu0 0.0
    %2506 = vmatpush.msra.mxu0 0.0
    %2507 = vmatpush.msra.mxu0 0.0
    %2508 = vmatpush.msra.mxu0 0.0
    %2509 = vmatpush.msra.mxu0 0.0
    %2510 = vmatpush.msra.mxu0 0.0
    %2511 = vmatpush.msra.mxu0 0.0
    %2512 = vmatpush.msra.mxu0 0.0
    %2513 = vmatpush.msra.mxu0 0.0
    %2514 = vmatpush.msra.mxu0 0.0
    %2515 = vmatpush.msra.mxu0 0.0
    %2516 = vmatpush.msra.mxu0 0.0
    %2517 = vmatpush.msra.mxu0 0.0
    %2518 = vmatpush.msra.mxu0 0.0
    %2519 = vmatpush.msra.mxu0 0.0
    %v2520 = vand.u32 %v2376, 4294901760
    %2521 = vmatpush.msra.mxu0 %v2520
    %v2522 = vand.u32 %v2379, 4294901760
    %2523 = vmatmul.f32.gmra.mxu0 %v2522
    %v2524 = vpop.f32.mrf.mxu0
    %v2525 = vadd.f32 %v2503, %v2524
    %2526 = vdwg.mxu0
    %2527 = vrot.lane.b32.xlu0 %v345, 64
    %v2528 = vpop.permute.xlu0 %2527
    %v2531 = vsel %vm352, %v1736, 0
    %2533 = vmatpush.msra.mxu0 0.0
    %2534 = vmatpush.msra.mxu0 0.0
    %2535 = vmatpush.msra.mxu0 0.0
    %2536 = vmatpush.msra.mxu0 0.0
    %2537 = vmatpush.msra.mxu0 0.0
    %2538 = vmatpush.msra.mxu0 0.0
    %2539 = vmatpush.msra.mxu0 0.0
    %2540 = vmatpush.msra.mxu0 0.0
    %2541 = vmatpush.msra.mxu0 0.0
    %2542 = vmatpush.msra.mxu0 0.0
    %2543 = vmatpush.msra.mxu0 0.0
    %2544 = vmatpush.msra.mxu0 0.0
    %2545 = vmatpush.msra.mxu0 0.0
    %2546 = vmatpush.msra.mxu0 0.0
    %2547 = vmatpush.msra.mxu0 0.0
    %v2548 = vand.u32 %v2528, 4294901760
    %2549 = vmatpush.msra.mxu0 %v2548
    %v2550 = vand.u32 %v2531, 4294901760
    %v2551 = vsub.f32 %v2531, %v2550
    %v2552 = vand.u32 %v2551, 4294901760
    %v2553 = vsub.f32 %v2551, %v2552
    %v2554 = vand.u32 %v2553, 4294901760
    %2555 = vmatmul.f32.gmra.mxu0 %v2554
    %v2556 = vpop.f32.mrf.mxu0
    %v2557 = vadd.f32 0.0, %v2556
    %2558 = vdwg.mxu0
    %2559 = vmatpush.msra.mxu0 0.0
    %2560 = vmatpush.msra.mxu0 0.0
    %2561 = vmatpush.msra.mxu0 0.0
    %2562 = vmatpush.msra.mxu0 0.0
    %2563 = vmatpush.msra.mxu0 0.0
    %2564 = vmatpush.msra.mxu0 0.0
    %2565 = vmatpush.msra.mxu0 0.0
    %2566 = vmatpush.msra.mxu0 0.0
    %2567 = vmatpush.msra.mxu0 0.0
    %2568 = vmatpush.msra.mxu0 0.0
    %2569 = vmatpush.msra.mxu0 0.0
    %2570 = vmatpush.msra.mxu0 0.0
    %2571 = vmatpush.msra.mxu0 0.0
    %2572 = vmatpush.msra.mxu0 0.0
    %2573 = vmatpush.msra.mxu0 0.0
    %v2574 = vand.u32 %v2528, 4294901760
    %v2575 = vsub.f32 %v2528, %v2574
    %v2576 = vand.u32 %v2575, 4294901760
    %v2577 = vsub.f32 %v2575, %v2576
    %v2578 = vand.u32 %v2577, 4294901760
    %2579 = vmatpush.msra.mxu0 %v2578
    %v2580 = vand.u32 %v2531, 4294901760
    %2581 = vmatmul.f32.gmra.mxu0 %v2580
    %v2582 = vpop.f32.mrf.mxu0
    %v2583 = vadd.f32 %v2557, %v2582
    %2584 = vdwg.mxu0
    %2585 = vmatpush.msra.mxu0 0.0
    %2586 = vmatpush.msra.mxu0 0.0
    %2587 = vmatpush.msra.mxu0 0.0
    %2588 = vmatpush.msra.mxu0 0.0
    %2589 = vmatpush.msra.mxu0 0.0
    %2590 = vmatpush.msra.mxu0 0.0
    %2591 = vmatpush.msra.mxu0 0.0
    %2592 = vmatpush.msra.mxu0 0.0
    %2593 = vmatpush.msra.mxu0 0.0
    %2594 = vmatpush.msra.mxu0 0.0
    %2595 = vmatpush.msra.mxu0 0.0
    %2596 = vmatpush.msra.mxu0 0.0
    %2597 = vmatpush.msra.mxu0 0.0
    %2598 = vmatpush.msra.mxu0 0.0
    %2599 = vmatpush.msra.mxu0 0.0
    %v2600 = vand.u32 %v2528, 4294901760
    %v2601 = vsub.f32 %v2528, %v2600
    %2602 = vmatpush.msra.mxu0 %v2601
    %v2603 = vand.u32 %v2531, 4294901760
    %v2604 = vsub.f32 %v2531, %v2603
    %2605 = vmatmul.f32.gmra.mxu0 %v2604
    %v2606 = vpop.f32.mrf.mxu0
    %v2607 = vadd.f32 %v2583, %v2606
    %2608 = vdwg.mxu0
    %2609 = vmatpush.msra.mxu0 0.0
    %2610 = vmatpush.msra.mxu0 0.0
    %2611 = vmatpush.msra.mxu0 0.0
    %2612 = vmatpush.msra.mxu0 0.0
    %2613 = vmatpush.msra.mxu0 0.0
    %2614 = vmatpush.msra.mxu0 0.0
    %2615 = vmatpush.msra.mxu0 0.0
    %2616 = vmatpush.msra.mxu0 0.0
    %2617 = vmatpush.msra.mxu0 0.0
    %2618 = vmatpush.msra.mxu0 0.0
    %2619 = vmatpush.msra.mxu0 0.0
    %2620 = vmatpush.msra.mxu0 0.0
    %2621 = vmatpush.msra.mxu0 0.0
    %2622 = vmatpush.msra.mxu0 0.0
    %2623 = vmatpush.msra.mxu0 0.0
    %v2624 = vand.u32 %v2528, 4294901760
    %2625 = vmatpush.msra.mxu0 %v2624
    %v2626 = vand.u32 %v2531, 4294901760
    %v2627 = vsub.f32 %v2531, %v2626
    %v2628 = vand.u32 %v2627, 4294901760
    %2629 = vmatmul.f32.gmra.mxu0 %v2628
    %v2630 = vpop.f32.mrf.mxu0
    %v2631 = vadd.f32 %v2607, %v2630
    %2632 = vdwg.mxu0
    %2633 = vmatpush.msra.mxu0 0.0
    %2634 = vmatpush.msra.mxu0 0.0
    %2635 = vmatpush.msra.mxu0 0.0
    %2636 = vmatpush.msra.mxu0 0.0
    %2637 = vmatpush.msra.mxu0 0.0
    %2638 = vmatpush.msra.mxu0 0.0
    %2639 = vmatpush.msra.mxu0 0.0
    %2640 = vmatpush.msra.mxu0 0.0
    %2641 = vmatpush.msra.mxu0 0.0
    %2642 = vmatpush.msra.mxu0 0.0
    %2643 = vmatpush.msra.mxu0 0.0
    %2644 = vmatpush.msra.mxu0 0.0
    %2645 = vmatpush.msra.mxu0 0.0
    %2646 = vmatpush.msra.mxu0 0.0
    %2647 = vmatpush.msra.mxu0 0.0
    %v2648 = vand.u32 %v2528, 4294901760
    %v2649 = vsub.f32 %v2528, %v2648
    %v2650 = vand.u32 %v2649, 4294901760
    %2651 = vmatpush.msra.mxu0 %v2650
    %v2652 = vand.u32 %v2531, 4294901760
    %2653 = vmatmul.f32.gmra.mxu0 %v2652
    %v2654 = vpop.f32.mrf.mxu0
    %v2655 = vadd.f32 %v2631, %v2654
    %2656 = vdwg.mxu0
    %2657 = vmatpush.msra.mxu0 0.0
    %2658 = vmatpush.msra.mxu0 0.0
    %2659 = vmatpush.msra.mxu0 0.0
    %2660 = vmatpush.msra.mxu0 0.0
    %2661 = vmatpush.msra.mxu0 0.0
    %2662 = vmatpush.msra.mxu0 0.0
    %2663 = vmatpush.msra.mxu0 0.0
    %2664 = vmatpush.msra.mxu0 0.0
    %2665 = vmatpush.msra.mxu0 0.0
    %2666 = vmatpush.msra.mxu0 0.0
    %2667 = vmatpush.msra.mxu0 0.0
    %2668 = vmatpush.msra.mxu0 0.0
    %2669 = vmatpush.msra.mxu0 0.0
    %2670 = vmatpush.msra.mxu0 0.0
    %2671 = vmatpush.msra.mxu0 0.0
    %v2672 = vand.u32 %v2528, 4294901760
    %2673 = vmatpush.msra.mxu0 %v2672
    %v2674 = vand.u32 %v2531, 4294901760
    %2675 = vmatmul.f32.gmra.mxu0 %v2674
    %v2676 = vpop.f32.mrf.mxu0
    %v2677 = vadd.f32 %v2655, %v2676
    %2678 = vdwg.mxu0
    %2679 = vrot.lane.b32.xlu0 %v347, 64
    %v2680 = vpop.permute.xlu0 %2679
    %v2683 = vsel %vm352, %v1751, 0
    %2685 = vmatpush.msra.mxu0 0.0
    %2686 = vmatpush.msra.mxu0 0.0
    %2687 = vmatpush.msra.mxu0 0.0
    %2688 = vmatpush.msra.mxu0 0.0
    %2689 = vmatpush.msra.mxu0 0.0
    %2690 = vmatpush.msra.mxu0 0.0
    %2691 = vmatpush.msra.mxu0 0.0
    %2692 = vmatpush.msra.mxu0 0.0
    %2693 = vmatpush.msra.mxu0 0.0
    %2694 = vmatpush.msra.mxu0 0.0
    %2695 = vmatpush.msra.mxu0 0.0
    %2696 = vmatpush.msra.mxu0 0.0
    %2697 = vmatpush.msra.mxu0 0.0
    %2698 = vmatpush.msra.mxu0 0.0
    %2699 = vmatpush.msra.mxu0 0.0
    %v2700 = vand.u32 %v2680, 4294901760
    %2701 = vmatpush.msra.mxu0 %v2700
    %v2702 = vand.u32 %v2683, 4294901760
    %v2703 = vsub.f32 %v2683, %v2702
    %v2704 = vand.u32 %v2703, 4294901760
    %v2705 = vsub.f32 %v2703, %v2704
    %v2706 = vand.u32 %v2705, 4294901760
    %2707 = vmatmul.f32.gmra.mxu0 %v2706
    %v2708 = vpop.f32.mrf.mxu0
    %v2709 = vadd.f32 0.0, %v2708
    %2710 = vdwg.mxu0
    %2711 = vmatpush.msra.mxu0 0.0
    %2712 = vmatpush.msra.mxu0 0.0
    %2713 = vmatpush.msra.mxu0 0.0
    %2714 = vmatpush.msra.mxu0 0.0
    %2715 = vmatpush.msra.mxu0 0.0
    %2716 = vmatpush.msra.mxu0 0.0
    %2717 = vmatpush.msra.mxu0 0.0
    %2718 = vmatpush.msra.mxu0 0.0
    %2719 = vmatpush.msra.mxu0 0.0
    %2720 = vmatpush.msra.mxu0 0.0
    %2721 = vmatpush.msra.mxu0 0.0
    %2722 = vmatpush.msra.mxu0 0.0
    %2723 = vmatpush.msra.mxu0 0.0
    %2724 = vmatpush.msra.mxu0 0.0
    %2725 = vmatpush.msra.mxu0 0.0
    %v2726 = vand.u32 %v2680, 4294901760
    %v2727 = vsub.f32 %v2680, %v2726
    %v2728 = vand.u32 %v2727, 4294901760
    %v2729 = vsub.f32 %v2727, %v2728
    %v2730 = vand.u32 %v2729, 4294901760
    %2731 = vmatpush.msra.mxu0 %v2730
    %v2732 = vand.u32 %v2683, 4294901760
    %2733 = vmatmul.f32.gmra.mxu0 %v2732
    %v2734 = vpop.f32.mrf.mxu0
    %v2735 = vadd.f32 %v2709, %v2734
    %2736 = vdwg.mxu0
    %2737 = vmatpush.msra.mxu0 0.0
    %2738 = vmatpush.msra.mxu0 0.0
    %2739 = vmatpush.msra.mxu0 0.0
    %2740 = vmatpush.msra.mxu0 0.0
    %2741 = vmatpush.msra.mxu0 0.0
    %2742 = vmatpush.msra.mxu0 0.0
    %2743 = vmatpush.msra.mxu0 0.0
    %2744 = vmatpush.msra.mxu0 0.0
    %2745 = vmatpush.msra.mxu0 0.0
    %2746 = vmatpush.msra.mxu0 0.0
    %2747 = vmatpush.msra.mxu0 0.0
    %2748 = vmatpush.msra.mxu0 0.0
    %2749 = vmatpush.msra.mxu0 0.0
    %2750 = vmatpush.msra.mxu0 0.0
    %2751 = vmatpush.msra.mxu0 0.0
    %v2752 = vand.u32 %v2680, 4294901760
    %v2753 = vsub.f32 %v2680, %v2752
    %2754 = vmatpush.msra.mxu0 %v2753
    %v2755 = vand.u32 %v2683, 4294901760
    %v2756 = vsub.f32 %v2683, %v2755
    %2757 = vmatmul.f32.gmra.mxu0 %v2756
    %v2758 = vpop.f32.mrf.mxu0
    %v2759 = vadd.f32 %v2735, %v2758
    %2760 = vdwg.mxu0
    %2761 = vmatpush.msra.mxu0 0.0
    %2762 = vmatpush.msra.mxu0 0.0
    %2763 = vmatpush.msra.mxu0 0.0
    %2764 = vmatpush.msra.mxu0 0.0
    %2765 = vmatpush.msra.mxu0 0.0
    %2766 = vmatpush.msra.mxu0 0.0
    %2767 = vmatpush.msra.mxu0 0.0
    %2768 = vmatpush.msra.mxu0 0.0
    %2769 = vmatpush.msra.mxu0 0.0
    %2770 = vmatpush.msra.mxu0 0.0
    %2771 = vmatpush.msra.mxu0 0.0
    %2772 = vmatpush.msra.mxu0 0.0
    %2773 = vmatpush.msra.mxu0 0.0
    %2774 = vmatpush.msra.mxu0 0.0
    %2775 = vmatpush.msra.mxu0 0.0
    %v2776 = vand.u32 %v2680, 4294901760
    %2777 = vmatpush.msra.mxu0 %v2776
    %v2778 = vand.u32 %v2683, 4294901760
    %v2779 = vsub.f32 %v2683, %v2778
    %v2780 = vand.u32 %v2779, 4294901760
    %2781 = vmatmul.f32.gmra.mxu0 %v2780
    %v2782 = vpop.f32.mrf.mxu0
    %v2783 = vadd.f32 %v2759, %v2782
    %2784 = vdwg.mxu0
    %2785 = vmatpush.msra.mxu0 0.0
    %2786 = vmatpush.msra.mxu0 0.0
    %2787 = vmatpush.msra.mxu0 0.0
    %2788 = vmatpush.msra.mxu0 0.0
    %2789 = vmatpush.msra.mxu0 0.0
    %2790 = vmatpush.msra.mxu0 0.0
    %2791 = vmatpush.msra.mxu0 0.0
    %2792 = vmatpush.msra.mxu0 0.0
    %2793 = vmatpush.msra.mxu0 0.0
    %2794 = vmatpush.msra.mxu0 0.0
    %2795 = vmatpush.msra.mxu0 0.0
    %2796 = vmatpush.msra.mxu0 0.0
    %2797 = vmatpush.msra.mxu0 0.0
    %2798 = vmatpush.msra.mxu0 0.0
    %2799 = vmatpush.msra.mxu0 0.0
    %v2800 = vand.u32 %v2680, 4294901760
    %v2801 = vsub.f32 %v2680, %v2800
    %v2802 = vand.u32 %v2801, 4294901760
    %2803 = vmatpush.msra.mxu0 %v2802
    %v2804 = vand.u32 %v2683, 4294901760
    %2805 = vmatmul.f32.gmra.mxu0 %v2804
    %v2806 = vpop.f32.mrf.mxu0
    %v2807 = vadd.f32 %v2783, %v2806
    %2808 = vdwg.mxu0
    %2809 = vmatpush.msra.mxu0 0.0
    %2810 = vmatpush.msra.mxu0 0.0
    %2811 = vmatpush.msra.mxu0 0.0
    %2812 = vmatpush.msra.mxu0 0.0
    %2813 = vmatpush.msra.mxu0 0.0
    %2814 = vmatpush.msra.mxu0 0.0
    %2815 = vmatpush.msra.mxu0 0.0
    %2816 = vmatpush.msra.mxu0 0.0
    %2817 = vmatpush.msra.mxu0 0.0
    %2818 = vmatpush.msra.mxu0 0.0
    %2819 = vmatpush.msra.mxu0 0.0
    %2820 = vmatpush.msra.mxu0 0.0
    %2821 = vmatpush.msra.mxu0 0.0
    %2822 = vmatpush.msra.mxu0 0.0
    %2823 = vmatpush.msra.mxu0 0.0
    %v2824 = vand.u32 %v2680, 4294901760
    %2825 = vmatpush.msra.mxu0 %v2824
    %v2826 = vand.u32 %v2683, 4294901760
    %2827 = vmatmul.f32.gmra.mxu0 %v2826
    %v2828 = vpop.f32.mrf.mxu0
    %v2829 = vadd.f32 %v2807, %v2828
    %2830 = vdwg.mxu0
    %2831 = vrot.lane.b32.xlu0 %v349, 64
    %v2832 = vpop.permute.xlu0 %2831
    %v2835 = vsel %vm352, %v1766, 0
    %2837 = vmatpush.msra.mxu0 0.0
    %2838 = vmatpush.msra.mxu0 0.0
    %2839 = vmatpush.msra.mxu0 0.0
    %2840 = vmatpush.msra.mxu0 0.0
    %2841 = vmatpush.msra.mxu0 0.0
    %2842 = vmatpush.msra.mxu0 0.0
    %2843 = vmatpush.msra.mxu0 0.0
    %2844 = vmatpush.msra.mxu0 0.0
    %2845 = vmatpush.msra.mxu0 0.0
    %2846 = vmatpush.msra.mxu0 0.0
    %2847 = vmatpush.msra.mxu0 0.0
    %2848 = vmatpush.msra.mxu0 0.0
    %2849 = vmatpush.msra.mxu0 0.0
    %2850 = vmatpush.msra.mxu0 0.0
    %2851 = vmatpush.msra.mxu0 0.0
    %v2852 = vand.u32 %v2832, 4294901760
    %2853 = vmatpush.msra.mxu0 %v2852
    %v2854 = vand.u32 %v2835, 4294901760
    %v2855 = vsub.f32 %v2835, %v2854
    %v2856 = vand.u32 %v2855, 4294901760
    %v2857 = vsub.f32 %v2855, %v2856
    %v2858 = vand.u32 %v2857, 4294901760
    %2859 = vmatmul.f32.gmra.mxu0 %v2858
    %v2860 = vpop.f32.mrf.mxu0
    %v2861 = vadd.f32 0.0, %v2860
    %2862 = vdwg.mxu0
    %2863 = vmatpush.msra.mxu0 0.0
    %2864 = vmatpush.msra.mxu0 0.0
    %2865 = vmatpush.msra.mxu0 0.0
    %2866 = vmatpush.msra.mxu0 0.0
    %2867 = vmatpush.msra.mxu0 0.0
    %2868 = vmatpush.msra.mxu0 0.0
    %2869 = vmatpush.msra.mxu0 0.0
    %2870 = vmatpush.msra.mxu0 0.0
    %2871 = vmatpush.msra.mxu0 0.0
    %2872 = vmatpush.msra.mxu0 0.0
    %2873 = vmatpush.msra.mxu0 0.0
    %2874 = vmatpush.msra.mxu0 0.0
    %2875 = vmatpush.msra.mxu0 0.0
    %2876 = vmatpush.msra.mxu0 0.0
    %2877 = vmatpush.msra.mxu0 0.0
    %v2878 = vand.u32 %v2832, 4294901760
    %v2879 = vsub.f32 %v2832, %v2878
    %v2880 = vand.u32 %v2879, 4294901760
    %v2881 = vsub.f32 %v2879, %v2880
    %v2882 = vand.u32 %v2881, 4294901760
    %2883 = vmatpush.msra.mxu0 %v2882
    %v2884 = vand.u32 %v2835, 4294901760
    %2885 = vmatmul.f32.gmra.mxu0 %v2884
    %v2886 = vpop.f32.mrf.mxu0
    %v2887 = vadd.f32 %v2861, %v2886
    %2888 = vdwg.mxu0
    %2889 = vmatpush.msra.mxu0 0.0
    %2890 = vmatpush.msra.mxu0 0.0
    %2891 = vmatpush.msra.mxu0 0.0
    %2892 = vmatpush.msra.mxu0 0.0
    %2893 = vmatpush.msra.mxu0 0.0
    %2894 = vmatpush.msra.mxu0 0.0
    %2895 = vmatpush.msra.mxu0 0.0
    %2896 = vmatpush.msra.mxu0 0.0
    %2897 = vmatpush.msra.mxu0 0.0
    %2898 = vmatpush.msra.mxu0 0.0
    %2899 = vmatpush.msra.mxu0 0.0
    %2900 = vmatpush.msra.mxu0 0.0
    %2901 = vmatpush.msra.mxu0 0.0
    %2902 = vmatpush.msra.mxu0 0.0
    %2903 = vmatpush.msra.mxu0 0.0
    %v2904 = vand.u32 %v2832, 4294901760
    %v2905 = vsub.f32 %v2832, %v2904
    %2906 = vmatpush.msra.mxu0 %v2905
    %v2907 = vand.u32 %v2835, 4294901760
    %v2908 = vsub.f32 %v2835, %v2907
    %2909 = vmatmul.f32.gmra.mxu0 %v2908
    %v2910 = vpop.f32.mrf.mxu0
    %v2911 = vadd.f32 %v2887, %v2910
    %2912 = vdwg.mxu0
    %2913 = vmatpush.msra.mxu0 0.0
    %2914 = vmatpush.msra.mxu0 0.0
    %2915 = vmatpush.msra.mxu0 0.0
    %2916 = vmatpush.msra.mxu0 0.0
    %2917 = vmatpush.msra.mxu0 0.0
    %2918 = vmatpush.msra.mxu0 0.0
    %2919 = vmatpush.msra.mxu0 0.0
    %2920 = vmatpush.msra.mxu0 0.0
    %2921 = vmatpush.msra.mxu0 0.0
    %2922 = vmatpush.msra.mxu0 0.0
    %2923 = vmatpush.msra.mxu0 0.0
    %2924 = vmatpush.msra.mxu0 0.0
    %2925 = vmatpush.msra.mxu0 0.0
    %2926 = vmatpush.msra.mxu0 0.0
    %2927 = vmatpush.msra.mxu0 0.0
    %v2928 = vand.u32 %v2832, 4294901760
    %2929 = vmatpush.msra.mxu0 %v2928
    %v2930 = vand.u32 %v2835, 4294901760
    %v2931 = vsub.f32 %v2835, %v2930
    %v2932 = vand.u32 %v2931, 4294901760
    %2933 = vmatmul.f32.gmra.mxu0 %v2932
    %v2934 = vpop.f32.mrf.mxu0
    %v2935 = vadd.f32 %v2911, %v2934
    %2936 = vdwg.mxu0
    %2937 = vmatpush.msra.mxu0 0.0
    %2938 = vmatpush.msra.mxu0 0.0
    %2939 = vmatpush.msra.mxu0 0.0
    %2940 = vmatpush.msra.mxu0 0.0
    %2941 = vmatpush.msra.mxu0 0.0
    %2942 = vmatpush.msra.mxu0 0.0
    %2943 = vmatpush.msra.mxu0 0.0
    %2944 = vmatpush.msra.mxu0 0.0
    %2945 = vmatpush.msra.mxu0 0.0
    %2946 = vmatpush.msra.mxu0 0.0
    %2947 = vmatpush.msra.mxu0 0.0
    %2948 = vmatpush.msra.mxu0 0.0
    %2949 = vmatpush.msra.mxu0 0.0
    %2950 = vmatpush.msra.mxu0 0.0
    %2951 = vmatpush.msra.mxu0 0.0
    %v2952 = vand.u32 %v2832, 4294901760
    %v2953 = vsub.f32 %v2832, %v2952
    %v2954 = vand.u32 %v2953, 4294901760
    %2955 = vmatpush.msra.mxu0 %v2954
    %v2956 = vand.u32 %v2835, 4294901760
    %2957 = vmatmul.f32.gmra.mxu0 %v2956
    %v2958 = vpop.f32.mrf.mxu0
    %v2959 = vadd.f32 %v2935, %v2958
    %2960 = vdwg.mxu0
    %2961 = vmatpush.msra.mxu0 0.0
    %2962 = vmatpush.msra.mxu0 0.0
    %2963 = vmatpush.msra.mxu0 0.0
    %2964 = vmatpush.msra.mxu0 0.0
    %2965 = vmatpush.msra.mxu0 0.0
    %2966 = vmatpush.msra.mxu0 0.0
    %2967 = vmatpush.msra.mxu0 0.0
    %2968 = vmatpush.msra.mxu0 0.0
    %2969 = vmatpush.msra.mxu0 0.0
    %2970 = vmatpush.msra.mxu0 0.0
    %2971 = vmatpush.msra.mxu0 0.0
    %2972 = vmatpush.msra.mxu0 0.0
    %2973 = vmatpush.msra.mxu0 0.0
    %2974 = vmatpush.msra.mxu0 0.0
    %2975 = vmatpush.msra.mxu0 0.0
    %v2976 = vand.u32 %v2832, 4294901760
    %2977 = vmatpush.msra.mxu0 %v2976
    %v2978 = vand.u32 %v2835, 4294901760
    %2979 = vmatmul.f32.gmra.mxu0 %v2978
    %v2980 = vpop.f32.mrf.mxu0
    %v2981 = vadd.f32 %v2959, %v2980
    %2982 = vdwg.mxu0
    %2985 = vrot.lane.b32.xlu0 %v2221, 8
    %v2986 = vpop.permute.xlu0 %2985
    %2987 = vrot.lane.b32.xlu0 %v2373, 8
    %v2988 = vpop.permute.xlu0 %2987
    %2993 = vrot.lane.b32.xlu0 %v2525, 16
    %v2994 = vpop.permute.xlu0 %2993
    %2995 = vrot.lane.b32.xlu0 %v2677, 16
    %v2996 = vpop.permute.xlu0 %2995
    %3001 = vrot.lane.b32.xlu0 %v2829, 24
    %v3002 = vpop.permute.xlu0 %3001
    %3003 = vrot.lane.b32.xlu0 %v2981, 24
    %v3004 = vpop.permute.xlu0 %3003
    %v3007 = vsel %vm352, %v1917, %v2986
    %v3008 = vsel %vm352, %v2069, %v2988
    %vm3009 = vcmask 130048
    %v3010 = vsel %vm3009, %v3007, %v2994
    %v3011 = vsel %vm3009, %v3008, %v2996
    %vm3012 = vcmask 195584
    %v3013 = vsel %vm3012, %v3010, %v3002
    %v3014 = vsel %vm3012, %v3011, %v3004
    %3019 = vrot.lane.b32.xlu0 %v20, 32
    %v3020 = vpop.permute.xlu0 %3019
    %3021 = vrot.lane.b32.xlu0 %v22, 32
    %v3022 = vpop.permute.xlu0 %3021
    %3023 = vrot.lane.b32.xlu0 %v24, 32
    %v3024 = vpop.permute.xlu0 %3023
    %3025 = vrot.lane.b32.xlu0 %v26, 32
    %v3026 = vpop.permute.xlu0 %3025
    %v3032 = vsel %vm55, %v3013, 0
    %v3035 = vsel %vm55, %v3014, 0
    %3037 = vmatpush.msra.mxu0 0.0
    %3038 = vmatpush.msra.mxu0 0.0
    %3039 = vmatpush.msra.mxu0 0.0
    %3040 = vmatpush.msra.mxu0 0.0
    %3041 = vmatpush.msra.mxu0 0.0
    %3042 = vmatpush.msra.mxu0 0.0
    %3043 = vmatpush.msra.mxu0 0.0
    %3044 = vmatpush.msra.mxu0 0.0
    %3045 = vmatpush.msra.mxu0 0.0
    %3046 = vmatpush.msra.mxu0 0.0
    %3047 = vmatpush.msra.mxu0 0.0
    %3048 = vmatpush.msra.mxu0 0.0
    %v3049 = vand.u32 %v3026, 4294901760
    %3050 = vmatpush.msra.mxu0 %v3049
    %v3051 = vand.u32 %v3024, 4294901760
    %3052 = vmatpush.msra.mxu0 %v3051
    %v3053 = vand.u32 %v3022, 4294901760
    %3054 = vmatpush.msra.mxu0 %v3053
    %v3055 = vand.u32 %v3020, 4294901760
    %3056 = vmatpush.msra.mxu0 %v3055
    %v3057 = vand.u32 %v3032, 4294901760
    %v3058 = vsub.f32 %v3032, %v3057
    %v3059 = vand.u32 %v3058, 4294901760
    %v3060 = vsub.f32 %v3058, %v3059
    %v3061 = vand.u32 %v3060, 4294901760
    %3062 = vmatmul.f32.gmra.mxu0 %v3061
    %v3063 = vpop.f32.mrf.mxu0
    %v3064 = vadd.f32 0.0, %v3063
    %v3065 = vand.u32 %v3035, 4294901760
    %v3066 = vsub.f32 %v3035, %v3065
    %v3067 = vand.u32 %v3066, 4294901760
    %v3068 = vsub.f32 %v3066, %v3067
    %v3069 = vand.u32 %v3068, 4294901760
    %3070 = vmatmul.f32.gmra.mxu0 %v3069
    %v3071 = vpop.f32.mrf.mxu0
    %v3072 = vadd.f32 0.0, %v3071
    %3073 = vdwg.mxu0
    %3074 = vmatpush.msra.mxu0 0.0
    %3075 = vmatpush.msra.mxu0 0.0
    %3076 = vmatpush.msra.mxu0 0.0
    %3077 = vmatpush.msra.mxu0 0.0
    %3078 = vmatpush.msra.mxu0 0.0
    %3079 = vmatpush.msra.mxu0 0.0
    %3080 = vmatpush.msra.mxu0 0.0
    %3081 = vmatpush.msra.mxu0 0.0
    %3082 = vmatpush.msra.mxu0 0.0
    %3083 = vmatpush.msra.mxu0 0.0
    %3084 = vmatpush.msra.mxu0 0.0
    %3085 = vmatpush.msra.mxu0 0.0
    %v3086 = vand.u32 %v3026, 4294901760
    %v3087 = vsub.f32 %v3026, %v3086
    %v3088 = vand.u32 %v3087, 4294901760
    %v3089 = vsub.f32 %v3087, %v3088
    %v3090 = vand.u32 %v3089, 4294901760
    %3091 = vmatpush.msra.mxu0 %v3090
    %v3092 = vand.u32 %v3024, 4294901760
    %v3093 = vsub.f32 %v3024, %v3092
    %v3094 = vand.u32 %v3093, 4294901760
    %v3095 = vsub.f32 %v3093, %v3094
    %v3096 = vand.u32 %v3095, 4294901760
    %3097 = vmatpush.msra.mxu0 %v3096
    %v3098 = vand.u32 %v3022, 4294901760
    %v3099 = vsub.f32 %v3022, %v3098
    %v3100 = vand.u32 %v3099, 4294901760
    %v3101 = vsub.f32 %v3099, %v3100
    %v3102 = vand.u32 %v3101, 4294901760
    %3103 = vmatpush.msra.mxu0 %v3102
    %v3104 = vand.u32 %v3020, 4294901760
    %v3105 = vsub.f32 %v3020, %v3104
    %v3106 = vand.u32 %v3105, 4294901760
    %v3107 = vsub.f32 %v3105, %v3106
    %v3108 = vand.u32 %v3107, 4294901760
    %3109 = vmatpush.msra.mxu0 %v3108
    %v3110 = vand.u32 %v3032, 4294901760
    %3111 = vmatmul.f32.gmra.mxu0 %v3110
    %v3112 = vpop.f32.mrf.mxu0
    %v3113 = vadd.f32 %v3064, %v3112
    %v3114 = vand.u32 %v3035, 4294901760
    %3115 = vmatmul.f32.gmra.mxu0 %v3114
    %v3116 = vpop.f32.mrf.mxu0
    %v3117 = vadd.f32 %v3072, %v3116
    %3118 = vdwg.mxu0
    %3119 = vmatpush.msra.mxu0 0.0
    %3120 = vmatpush.msra.mxu0 0.0
    %3121 = vmatpush.msra.mxu0 0.0
    %3122 = vmatpush.msra.mxu0 0.0
    %3123 = vmatpush.msra.mxu0 0.0
    %3124 = vmatpush.msra.mxu0 0.0
    %3125 = vmatpush.msra.mxu0 0.0
    %3126 = vmatpush.msra.mxu0 0.0
    %3127 = vmatpush.msra.mxu0 0.0
    %3128 = vmatpush.msra.mxu0 0.0
    %3129 = vmatpush.msra.mxu0 0.0
    %3130 = vmatpush.msra.mxu0 0.0
    %v3131 = vand.u32 %v3026, 4294901760
    %v3132 = vsub.f32 %v3026, %v3131
    %3133 = vmatpush.msra.mxu0 %v3132
    %v3134 = vand.u32 %v3024, 4294901760
    %v3135 = vsub.f32 %v3024, %v3134
    %3136 = vmatpush.msra.mxu0 %v3135
    %v3137 = vand.u32 %v3022, 4294901760
    %v3138 = vsub.f32 %v3022, %v3137
    %3139 = vmatpush.msra.mxu0 %v3138
    %v3140 = vand.u32 %v3020, 4294901760
    %v3141 = vsub.f32 %v3020, %v3140
    %3142 = vmatpush.msra.mxu0 %v3141
    %v3143 = vand.u32 %v3032, 4294901760
    %v3144 = vsub.f32 %v3032, %v3143
    %3145 = vmatmul.f32.gmra.mxu0 %v3144
    %v3146 = vpop.f32.mrf.mxu0
    %v3147 = vadd.f32 %v3113, %v3146
    %v3148 = vand.u32 %v3035, 4294901760
    %v3149 = vsub.f32 %v3035, %v3148
    %3150 = vmatmul.f32.gmra.mxu0 %v3149
    %v3151 = vpop.f32.mrf.mxu0
    %v3152 = vadd.f32 %v3117, %v3151
    %3153 = vdwg.mxu0
    %3154 = vmatpush.msra.mxu0 0.0
    %3155 = vmatpush.msra.mxu0 0.0
    %3156 = vmatpush.msra.mxu0 0.0
    %3157 = vmatpush.msra.mxu0 0.0
    %3158 = vmatpush.msra.mxu0 0.0
    %3159 = vmatpush.msra.mxu0 0.0
    %3160 = vmatpush.msra.mxu0 0.0
    %3161 = vmatpush.msra.mxu0 0.0
    %3162 = vmatpush.msra.mxu0 0.0
    %3163 = vmatpush.msra.mxu0 0.0
    %3164 = vmatpush.msra.mxu0 0.0
    %3165 = vmatpush.msra.mxu0 0.0
    %v3166 = vand.u32 %v3026, 4294901760
    %3167 = vmatpush.msra.mxu0 %v3166
    %v3168 = vand.u32 %v3024, 4294901760
    %3169 = vmatpush.msra.mxu0 %v3168
    %v3170 = vand.u32 %v3022, 4294901760
    %3171 = vmatpush.msra.mxu0 %v3170
    %v3172 = vand.u32 %v3020, 4294901760
    %3173 = vmatpush.msra.mxu0 %v3172
    %v3174 = vand.u32 %v3032, 4294901760
    %v3175 = vsub.f32 %v3032, %v3174
    %v3176 = vand.u32 %v3175, 4294901760
    %3177 = vmatmul.f32.gmra.mxu0 %v3176
    %v3178 = vpop.f32.mrf.mxu0
    %v3179 = vadd.f32 %v3147, %v3178
    %v3180 = vand.u32 %v3035, 4294901760
    %v3181 = vsub.f32 %v3035, %v3180
    %v3182 = vand.u32 %v3181, 4294901760
    %3183 = vmatmul.f32.gmra.mxu0 %v3182
    %v3184 = vpop.f32.mrf.mxu0
    %v3185 = vadd.f32 %v3152, %v3184
    %3186 = vdwg.mxu0
    %3187 = vmatpush.msra.mxu0 0.0
    %3188 = vmatpush.msra.mxu0 0.0
    %3189 = vmatpush.msra.mxu0 0.0
    %3190 = vmatpush.msra.mxu0 0.0
    %3191 = vmatpush.msra.mxu0 0.0
    %3192 = vmatpush.msra.mxu0 0.0
    %3193 = vmatpush.msra.mxu0 0.0
    %3194 = vmatpush.msra.mxu0 0.0
    %3195 = vmatpush.msra.mxu0 0.0
    %3196 = vmatpush.msra.mxu0 0.0
    %3197 = vmatpush.msra.mxu0 0.0
    %3198 = vmatpush.msra.mxu0 0.0
    %v3199 = vand.u32 %v3026, 4294901760
    %v3200 = vsub.f32 %v3026, %v3199
    %v3201 = vand.u32 %v3200, 4294901760
    %3202 = vmatpush.msra.mxu0 %v3201
    %v3203 = vand.u32 %v3024, 4294901760
    %v3204 = vsub.f32 %v3024, %v3203
    %v3205 = vand.u32 %v3204, 4294901760
    %3206 = vmatpush.msra.mxu0 %v3205
    %v3207 = vand.u32 %v3022, 4294901760
    %v3208 = vsub.f32 %v3022, %v3207
    %v3209 = vand.u32 %v3208, 4294901760
    %3210 = vmatpush.msra.mxu0 %v3209
    %v3211 = vand.u32 %v3020, 4294901760
    %v3212 = vsub.f32 %v3020, %v3211
    %v3213 = vand.u32 %v3212, 4294901760
    %3214 = vmatpush.msra.mxu0 %v3213
    %v3215 = vand.u32 %v3032, 4294901760
    %3216 = vmatmul.f32.gmra.mxu0 %v3215
    %v3217 = vpop.f32.mrf.mxu0
    %v3218 = vadd.f32 %v3179, %v3217
    %v3219 = vand.u32 %v3035, 4294901760
    %3220 = vmatmul.f32.gmra.mxu0 %v3219
    %v3221 = vpop.f32.mrf.mxu0
    %v3222 = vadd.f32 %v3185, %v3221
    %3223 = vdwg.mxu0
    %3224 = vmatpush.msra.mxu0 0.0
    %3225 = vmatpush.msra.mxu0 0.0
    %3226 = vmatpush.msra.mxu0 0.0
    %3227 = vmatpush.msra.mxu0 0.0
    %3228 = vmatpush.msra.mxu0 0.0
    %3229 = vmatpush.msra.mxu0 0.0
    %3230 = vmatpush.msra.mxu0 0.0
    %3231 = vmatpush.msra.mxu0 0.0
    %3232 = vmatpush.msra.mxu0 0.0
    %3233 = vmatpush.msra.mxu0 0.0
    %3234 = vmatpush.msra.mxu0 0.0
    %3235 = vmatpush.msra.mxu0 0.0
    %v3236 = vand.u32 %v3026, 4294901760
    %3237 = vmatpush.msra.mxu0 %v3236
    %v3238 = vand.u32 %v3024, 4294901760
    %3239 = vmatpush.msra.mxu0 %v3238
    %v3240 = vand.u32 %v3022, 4294901760
    %3241 = vmatpush.msra.mxu0 %v3240
    %v3242 = vand.u32 %v3020, 4294901760
    %3243 = vmatpush.msra.mxu0 %v3242
    %v3244 = vand.u32 %v3032, 4294901760
    %3245 = vmatmul.f32.gmra.mxu0 %v3244
    %v3246 = vpop.f32.mrf.mxu0
    %v3247 = vadd.f32 %v3218, %v3246
    %v3248 = vand.u32 %v3035, 4294901760
    %3249 = vmatmul.f32.gmra.mxu0 %v3248
    %v3250 = vpop.f32.mrf.mxu0
    %v3251 = vadd.f32 %v3222, %v3250
    %3252 = vdwg.mxu0
    %v3253 = vadd.f32 %v18, %v3247
    %v3254 = vadd.f32 %v19, %v3251
    %v3255 = vperm.slane %v52, 3
    %v3256 = vadd.f32 %v3253, %v3255
    %v3257 = vadd.f32 %v3254, %v3255
    %v3258 = vsel %vm55, %v3256, 0.0
    %3259 = vadd.xlane.f32.xlu0 %v3258
    %v3260 = vpop.xlane.xlu0 %3259
    %v3261 = vsel %vm55, %v3257, 0.0
    %3262 = vadd.xlane.f32.xlu0 %v3261
    %v3263 = vpop.xlane.xlu0 %3262
    %v3264 = vmul.f32 %v3260, %v68
    %v3265 = vmul.f32 %v3263, %v68
    %v3266 = vsub.f32 %v3256, %v3264
    %v3267 = vsub.f32 %v3257, %v3265
    %v3268 = vmul.f32 %v3266, %v3266
    %v3269 = vmul.f32 %v3267, %v3267
    %v3270 = vsel %vm55, %v3268, 0.0
    %3271 = vadd.xlane.f32.xlu0 %v3270
    %v3272 = vpop.xlane.xlu0 %3271
    %v3273 = vsel %vm55, %v3269, 0.0
    %3274 = vadd.xlane.f32.xlu0 %v3273
    %v3275 = vpop.xlane.xlu0 %3274
    %v3276 = vmul.f32 %v3272, %v68
    %v3277 = vmul.f32 %v3275, %v68
    %v3278 = vadd.f32 %v3276, 1e-05
    %v3279 = vadd.f32 %v3277, 1e-05
    %v3280 = vrsqrt.pop %v3278
    %v3281 = vmul.f32 %v3280, %v3278
    %v3282 = vmul.f32 %v3281, %v3280
    %v3283 = vmul.f32 0.5, %v3282
    %v3284 = vsub.f32 1.5, %v3283
    %v3285 = vmul.f32 %v3280, %v3284
    %vm3286 = vweird.f32 %v3278
    %vm3287 = vweird.f32 %v3280
    %vm3288 = vmor %vm3286, %vm3287
    %v3289 = vsel %vm3288, %v3280, %v3285
    %v3290 = vrsqrt.pop %v3279
    %v3291 = vmul.f32 %v3290, %v3279
    %v3292 = vmul.f32 %v3291, %v3290
    %v3293 = vmul.f32 0.5, %v3292
    %v3294 = vsub.f32 1.5, %v3293
    %v3295 = vmul.f32 %v3290, %v3294
    %vm3296 = vweird.f32 %v3279
    %vm3297 = vweird.f32 %v3290
    %vm3298 = vmor %vm3296, %vm3297
    %v3299 = vsel %vm3298, %v3290, %v3295
    %v3300 = vmul.f32 %v3266, %v3289
    %v3301 = vmul.f32 %v3267, %v3299
    %v3302 = vperm.slane %v52, 4
    %v3303 = vmul.f32 %v3300, %v3302
    %v3304 = vmul.f32 %v3301, %v3302
    %v3305 = vperm.slane %v52, 5
    %v3306 = vadd.f32 %v3303, %v3305
    %v3307 = vadd.f32 %v3304, %v3305
    %v3308 = vperm.slane %v52, 6
    %v3310 = vsel %vm55, %v3306, 0
    %v3313 = vsel %vm55, %v3307, 0
    %3315 = vmatpush.msra.mxu0 0.0
    %3316 = vmatpush.msra.mxu0 0.0
    %3317 = vmatpush.msra.mxu0 0.0
    %3318 = vmatpush.msra.mxu0 0.0
    %3319 = vmatpush.msra.mxu0 0.0
    %3320 = vmatpush.msra.mxu0 0.0
    %3321 = vmatpush.msra.mxu0 0.0
    %3322 = vmatpush.msra.mxu0 0.0
    %3323 = vmatpush.msra.mxu0 0.0
    %3324 = vmatpush.msra.mxu0 0.0
    %3325 = vmatpush.msra.mxu0 0.0
    %3326 = vmatpush.msra.mxu0 0.0
    %v3327 = vand.u32 %v27, 4294901760
    %3328 = vmatpush.msra.mxu0 %v3327
    %v3329 = vand.u32 %v25, 4294901760
    %3330 = vmatpush.msra.mxu0 %v3329
    %v3331 = vand.u32 %v23, 4294901760
    %3332 = vmatpush.msra.mxu0 %v3331
    %v3333 = vand.u32 %v21, 4294901760
    %3334 = vmatpush.msra.mxu0 %v3333
    %v3335 = vand.u32 %v3310, 4294901760
    %v3336 = vsub.f32 %v3310, %v3335
    %v3337 = vand.u32 %v3336, 4294901760
    %v3338 = vsub.f32 %v3336, %v3337
    %v3339 = vand.u32 %v3338, 4294901760
    %3340 = vmatmul.f32.gmra.mxu0 %v3339
    %v3341 = vpop.f32.mrf.mxu0
    %v3342 = vadd.f32 %v3308, %v3341
    %v3343 = vand.u32 %v3313, 4294901760
    %v3344 = vsub.f32 %v3313, %v3343
    %v3345 = vand.u32 %v3344, 4294901760
    %v3346 = vsub.f32 %v3344, %v3345
    %v3347 = vand.u32 %v3346, 4294901760
    %3348 = vmatmul.f32.gmra.mxu0 %v3347
    %v3349 = vpop.f32.mrf.mxu0
    %v3350 = vadd.f32 %v3308, %v3349
    %3351 = vdwg.mxu0
    %3352 = vmatpush.msra.mxu0 0.0
    %3353 = vmatpush.msra.mxu0 0.0
    %3354 = vmatpush.msra.mxu0 0.0
    %3355 = vmatpush.msra.mxu0 0.0
    %3356 = vmatpush.msra.mxu0 0.0
    %3357 = vmatpush.msra.mxu0 0.0
    %3358 = vmatpush.msra.mxu0 0.0
    %3359 = vmatpush.msra.mxu0 0.0
    %3360 = vmatpush.msra.mxu0 0.0
    %3361 = vmatpush.msra.mxu0 0.0
    %3362 = vmatpush.msra.mxu0 0.0
    %3363 = vmatpush.msra.mxu0 0.0
    %v3364 = vand.u32 %v27, 4294901760
    %v3365 = vsub.f32 %v27, %v3364
    %v3366 = vand.u32 %v3365, 4294901760
    %v3367 = vsub.f32 %v3365, %v3366
    %v3368 = vand.u32 %v3367, 4294901760
    %3369 = vmatpush.msra.mxu0 %v3368
    %v3370 = vand.u32 %v25, 4294901760
    %v3371 = vsub.f32 %v25, %v3370
    %v3372 = vand.u32 %v3371, 4294901760
    %v3373 = vsub.f32 %v3371, %v3372
    %v3374 = vand.u32 %v3373, 4294901760
    %3375 = vmatpush.msra.mxu0 %v3374
    %v3376 = vand.u32 %v23, 4294901760
    %v3377 = vsub.f32 %v23, %v3376
    %v3378 = vand.u32 %v3377, 4294901760
    %v3379 = vsub.f32 %v3377, %v3378
    %v3380 = vand.u32 %v3379, 4294901760
    %3381 = vmatpush.msra.mxu0 %v3380
    %v3382 = vand.u32 %v21, 4294901760
    %v3383 = vsub.f32 %v21, %v3382
    %v3384 = vand.u32 %v3383, 4294901760
    %v3385 = vsub.f32 %v3383, %v3384
    %v3386 = vand.u32 %v3385, 4294901760
    %3387 = vmatpush.msra.mxu0 %v3386
    %v3388 = vand.u32 %v3310, 4294901760
    %3389 = vmatmul.f32.gmra.mxu0 %v3388
    %v3390 = vpop.f32.mrf.mxu0
    %v3391 = vadd.f32 %v3342, %v3390
    %v3392 = vand.u32 %v3313, 4294901760
    %3393 = vmatmul.f32.gmra.mxu0 %v3392
    %v3394 = vpop.f32.mrf.mxu0
    %v3395 = vadd.f32 %v3350, %v3394
    %3396 = vdwg.mxu0
    %3397 = vmatpush.msra.mxu0 0.0
    %3398 = vmatpush.msra.mxu0 0.0
    %3399 = vmatpush.msra.mxu0 0.0
    %3400 = vmatpush.msra.mxu0 0.0
    %3401 = vmatpush.msra.mxu0 0.0
    %3402 = vmatpush.msra.mxu0 0.0
    %3403 = vmatpush.msra.mxu0 0.0
    %3404 = vmatpush.msra.mxu0 0.0
    %3405 = vmatpush.msra.mxu0 0.0
    %3406 = vmatpush.msra.mxu0 0.0
    %3407 = vmatpush.msra.mxu0 0.0
    %3408 = vmatpush.msra.mxu0 0.0
    %v3409 = vand.u32 %v27, 4294901760
    %v3410 = vsub.f32 %v27, %v3409
    %3411 = vmatpush.msra.mxu0 %v3410
    %v3412 = vand.u32 %v25, 4294901760
    %v3413 = vsub.f32 %v25, %v3412
    %3414 = vmatpush.msra.mxu0 %v3413
    %v3415 = vand.u32 %v23, 4294901760
    %v3416 = vsub.f32 %v23, %v3415
    %3417 = vmatpush.msra.mxu0 %v3416
    %v3418 = vand.u32 %v21, 4294901760
    %v3419 = vsub.f32 %v21, %v3418
    %3420 = vmatpush.msra.mxu0 %v3419
    %v3421 = vand.u32 %v3310, 4294901760
    %v3422 = vsub.f32 %v3310, %v3421
    %3423 = vmatmul.f32.gmra.mxu0 %v3422
    %v3424 = vpop.f32.mrf.mxu0
    %v3425 = vadd.f32 %v3391, %v3424
    %v3426 = vand.u32 %v3313, 4294901760
    %v3427 = vsub.f32 %v3313, %v3426
    %3428 = vmatmul.f32.gmra.mxu0 %v3427
    %v3429 = vpop.f32.mrf.mxu0
    %v3430 = vadd.f32 %v3395, %v3429
    %3431 = vdwg.mxu0
    %3432 = vmatpush.msra.mxu0 0.0
    %3433 = vmatpush.msra.mxu0 0.0
    %3434 = vmatpush.msra.mxu0 0.0
    %3435 = vmatpush.msra.mxu0 0.0
    %3436 = vmatpush.msra.mxu0 0.0
    %3437 = vmatpush.msra.mxu0 0.0
    %3438 = vmatpush.msra.mxu0 0.0
    %3439 = vmatpush.msra.mxu0 0.0
    %3440 = vmatpush.msra.mxu0 0.0
    %3441 = vmatpush.msra.mxu0 0.0
    %3442 = vmatpush.msra.mxu0 0.0
    %3443 = vmatpush.msra.mxu0 0.0
    %v3444 = vand.u32 %v27, 4294901760
    %3445 = vmatpush.msra.mxu0 %v3444
    %v3446 = vand.u32 %v25, 4294901760
    %3447 = vmatpush.msra.mxu0 %v3446
    %v3448 = vand.u32 %v23, 4294901760
    %3449 = vmatpush.msra.mxu0 %v3448
    %v3450 = vand.u32 %v21, 4294901760
    %3451 = vmatpush.msra.mxu0 %v3450
    %v3452 = vand.u32 %v3310, 4294901760
    %v3453 = vsub.f32 %v3310, %v3452
    %v3454 = vand.u32 %v3453, 4294901760
    %3455 = vmatmul.f32.gmra.mxu0 %v3454
    %v3456 = vpop.f32.mrf.mxu0
    %v3457 = vadd.f32 %v3425, %v3456
    %v3458 = vand.u32 %v3313, 4294901760
    %v3459 = vsub.f32 %v3313, %v3458
    %v3460 = vand.u32 %v3459, 4294901760
    %3461 = vmatmul.f32.gmra.mxu0 %v3460
    %v3462 = vpop.f32.mrf.mxu0
    %v3463 = vadd.f32 %v3430, %v3462
    %3464 = vdwg.mxu0
    %3465 = vmatpush.msra.mxu0 0.0
    %3466 = vmatpush.msra.mxu0 0.0
    %3467 = vmatpush.msra.mxu0 0.0
    %3468 = vmatpush.msra.mxu0 0.0
    %3469 = vmatpush.msra.mxu0 0.0
    %3470 = vmatpush.msra.mxu0 0.0
    %3471 = vmatpush.msra.mxu0 0.0
    %3472 = vmatpush.msra.mxu0 0.0
    %3473 = vmatpush.msra.mxu0 0.0
    %3474 = vmatpush.msra.mxu0 0.0
    %3475 = vmatpush.msra.mxu0 0.0
    %3476 = vmatpush.msra.mxu0 0.0
    %v3477 = vand.u32 %v27, 4294901760
    %v3478 = vsub.f32 %v27, %v3477
    %v3479 = vand.u32 %v3478, 4294901760
    %3480 = vmatpush.msra.mxu0 %v3479
    %v3481 = vand.u32 %v25, 4294901760
    %v3482 = vsub.f32 %v25, %v3481
    %v3483 = vand.u32 %v3482, 4294901760
    %3484 = vmatpush.msra.mxu0 %v3483
    %v3485 = vand.u32 %v23, 4294901760
    %v3486 = vsub.f32 %v23, %v3485
    %v3487 = vand.u32 %v3486, 4294901760
    %3488 = vmatpush.msra.mxu0 %v3487
    %v3489 = vand.u32 %v21, 4294901760
    %v3490 = vsub.f32 %v21, %v3489
    %v3491 = vand.u32 %v3490, 4294901760
    %3492 = vmatpush.msra.mxu0 %v3491
    %v3493 = vand.u32 %v3310, 4294901760
    %3494 = vmatmul.f32.gmra.mxu0 %v3493
    %v3495 = vpop.f32.mrf.mxu0
    %v3496 = vadd.f32 %v3457, %v3495
    %v3497 = vand.u32 %v3313, 4294901760
    %3498 = vmatmul.f32.gmra.mxu0 %v3497
    %v3499 = vpop.f32.mrf.mxu0
    %v3500 = vadd.f32 %v3463, %v3499
    %3501 = vdwg.mxu0
    %3502 = vmatpush.msra.mxu0 0.0
    %3503 = vmatpush.msra.mxu0 0.0
    %3504 = vmatpush.msra.mxu0 0.0
    %3505 = vmatpush.msra.mxu0 0.0
    %3506 = vmatpush.msra.mxu0 0.0
    %3507 = vmatpush.msra.mxu0 0.0
    %3508 = vmatpush.msra.mxu0 0.0
    %3509 = vmatpush.msra.mxu0 0.0
    %3510 = vmatpush.msra.mxu0 0.0
    %3511 = vmatpush.msra.mxu0 0.0
    %3512 = vmatpush.msra.mxu0 0.0
    %3513 = vmatpush.msra.mxu0 0.0
    %v3514 = vand.u32 %v27, 4294901760
    %3515 = vmatpush.msra.mxu0 %v3514
    %v3516 = vand.u32 %v25, 4294901760
    %3517 = vmatpush.msra.mxu0 %v3516
    %v3518 = vand.u32 %v23, 4294901760
    %3519 = vmatpush.msra.mxu0 %v3518
    %v3520 = vand.u32 %v21, 4294901760
    %3521 = vmatpush.msra.mxu0 %v3520
    %v3522 = vand.u32 %v3310, 4294901760
    %3523 = vmatmul.f32.gmra.mxu0 %v3522
    %v3524 = vpop.f32.mrf.mxu0
    %v3525 = vadd.f32 %v3496, %v3524
    %v3526 = vand.u32 %v3313, 4294901760
    %3527 = vmatmul.f32.gmra.mxu0 %v3526
    %v3528 = vpop.f32.mrf.mxu0
    %v3529 = vadd.f32 %v3500, %v3528
    %3530 = vdwg.mxu0
    %v3531 = vmul.f32 %v3525, 0.5
    %v3532 = vmul.f32 %v3529, 0.5
    %v3533 = vmul.f32 %v3525, 0.70710677
    %v3534 = vmul.f32 %v3529, 0.70710677
    %v3535 = vmul.f32 %v3533, %v3533
    %v3536 = vmin.f32 16.0, %v3535
    %v3537 = vmul.f32 %v3536, 2.1237322e-06
    %v3538 = vadd.f32 %v3537, 0.00028619796
    %v3539 = vmul.f32 %v3536, %v3538
    %v3540 = vadd.f32 %v3539, 0.0036580483
    %v3541 = vmul.f32 %v3536, %v3540
    %v3542 = vadd.f32 %v3541, 0.05243302
    %v3543 = vmul.f32 %v3536, %v3542
    %v3544 = vadd.f32 %v3543, 0.18741608
    %v3545 = vmul.f32 %v3536, %v3544
    %v3546 = vadd.f32 %v3545, 1.1283791
    %v3547 = vmul.f32 %v3533, %v3546
    %v3548 = vmul.f32 %v3536, 3.8918573e-05
    %v3549 = vadd.f32 %v3548, 0.001143296
    %v3550 = vmul.f32 %v3536, %v3549
    %v3551 = vadd.f32 %v3550, 0.014752088
    %v3552 = vmul.f32 %v3536, %v3551
    %v3553 = vadd.f32 %v3552, 0.112945676
    %v3554 = vmul.f32 %v3536, %v3553
    %v3555 = vadd.f32 %v3554, 0.4994258
    %v3556 = vmul.f32 %v3536, %v3555
    %v3557 = vadd.f32 %v3556, 1.0
    %v3558 = vrcp.pop %v3557
    %v3559 = vmul.f32 %v3557, %v3558
    %v3560 = vsub.f32 1.0, %v3559
    %v3561 = vmul.f32 %v3558, %v3560
    %v3562 = vadd.f32 %v3558, %v3561
    %vm3563 = vweird.f32 %v3557
    %vm3564 = vweird.f32 %v3558
    %vm3565 = vmor %vm3563, %vm3564
    %v3566 = vsel %vm3565, %v3558, %v3562
    %v3567 = vand.u32 2147483647, %v3557
    %vm3568 = vcmp.eq.f32.partialorder %v3567, 8.507059e+37
    %v3569 = vand.u32 %v3557, 2147483648
    %v3570 = vor.u32 1.1754944e-38, %v3569
    %v3571 = vsel %vm3568, %v3570, %v3566
    %v3572 = vmul.f32 %v3547, %v3571
    %v3573 = vmin.f32 %v3572, 1.0
    %v3574 = vmax.f32 %v3573, -1.0
    %v3575 = vmul.f32 %v3534, %v3534
    %v3576 = vmin.f32 16.0, %v3575
    %v3577 = vmul.f32 %v3576, 2.1237322e-06
    %v3578 = vadd.f32 %v3577, 0.00028619796
    %v3579 = vmul.f32 %v3576, %v3578
    %v3580 = vadd.f32 %v3579, 0.0036580483
    %v3581 = vmul.f32 %v3576, %v3580
    %v3582 = vadd.f32 %v3581, 0.05243302
    %v3583 = vmul.f32 %v3576, %v3582
    %v3584 = vadd.f32 %v3583, 0.18741608
    %v3585 = vmul.f32 %v3576, %v3584
    %v3586 = vadd.f32 %v3585, 1.1283791
    %v3587 = vmul.f32 %v3534, %v3586
    %v3588 = vmul.f32 %v3576, 3.8918573e-05
    %v3589 = vadd.f32 %v3588, 0.001143296
    %v3590 = vmul.f32 %v3576, %v3589
    %v3591 = vadd.f32 %v3590, 0.014752088
    %v3592 = vmul.f32 %v3576, %v3591
    %v3593 = vadd.f32 %v3592, 0.112945676
    %v3594 = vmul.f32 %v3576, %v3593
    %v3595 = vadd.f32 %v3594, 0.4994258
    %v3596 = vmul.f32 %v3576, %v3595
    %v3597 = vadd.f32 %v3596, 1.0
    %v3598 = vrcp.pop %v3597
    %v3599 = vmul.f32 %v3597, %v3598
    %v3600 = vsub.f32 1.0, %v3599
    %v3601 = vmul.f32 %v3598, %v3600
    %v3602 = vadd.f32 %v3598, %v3601
    %vm3603 = vweird.f32 %v3597
    %vm3604 = vweird.f32 %v3598
    %vm3605 = vmor %vm3603, %vm3604
    %v3606 = vsel %vm3605, %v3598, %v3602
    %v3607 = vand.u32 2147483647, %v3597
    %vm3608 = vcmp.eq.f32.partialorder %v3607, 8.507059e+37
    %v3609 = vand.u32 %v3597, 2147483648
    %v3610 = vor.u32 1.1754944e-38, %v3609
    %v3611 = vsel %vm3608, %v3610, %v3606
    %v3612 = vmul.f32 %v3587, %v3611
    %v3613 = vmin.f32 %v3612, 1.0
    %v3614 = vmax.f32 %v3613, -1.0
    %v3615 = vadd.f32 %v3574, 1.0
    %v3616 = vadd.f32 %v3614, 1.0
    %v3617 = vmul.f32 %v3531, %v3615
    %v3618 = vmul.f32 %v3532, %v3616
    %vm3619 = vcmask 523264
    %v3621 = vsel %vm3619, %v3617, 0
    %v3624 = vsel %vm3619, %v3618, 0
    %3626 = vmatpush.msra.mxu0 0.0
    %3627 = vmatpush.msra.mxu0 0.0
    %3628 = vmatpush.msra.mxu0 0.0
    %3629 = vmatpush.msra.mxu0 0.0
    %3630 = vmatpush.msra.mxu0 0.0
    %3631 = vmatpush.msra.mxu0 0.0
    %3632 = vmatpush.msra.mxu0 0.0
    %3633 = vmatpush.msra.mxu0 0.0
    %v3634 = vand.u32 %v43, 4294901760
    %3635 = vmatpush.msra.mxu0 %v3634
    %v3636 = vand.u32 %v42, 4294901760
    %3637 = vmatpush.msra.mxu0 %v3636
    %v3638 = vand.u32 %v41, 4294901760
    %3639 = vmatpush.msra.mxu0 %v3638
    %v3640 = vand.u32 %v40, 4294901760
    %3641 = vmatpush.msra.mxu0 %v3640
    %v3642 = vand.u32 %v39, 4294901760
    %3643 = vmatpush.msra.mxu0 %v3642
    %v3644 = vand.u32 %v38, 4294901760
    %3645 = vmatpush.msra.mxu0 %v3644
    %v3646 = vand.u32 %v37, 4294901760
    %3647 = vmatpush.msra.mxu0 %v3646
    %v3648 = vand.u32 %v36, 4294901760
    %3649 = vmatpush.msra.mxu0 %v3648
    %v3650 = vand.u32 %v3621, 4294901760
    %v3651 = vsub.f32 %v3621, %v3650
    %v3652 = vand.u32 %v3651, 4294901760
    %v3653 = vsub.f32 %v3651, %v3652
    %v3654 = vand.u32 %v3653, 4294901760
    %3655 = vmatmul.f32.gmra.mxu0 %v3654
    %v3656 = vpop.f32.mrf.mxu0
    %v3657 = vadd.f32 0.0, %v3656
    %v3658 = vand.u32 %v3624, 4294901760
    %v3659 = vsub.f32 %v3624, %v3658
    %v3660 = vand.u32 %v3659, 4294901760
    %v3661 = vsub.f32 %v3659, %v3660
    %v3662 = vand.u32 %v3661, 4294901760
    %3663 = vmatmul.f32.gmra.mxu0 %v3662
    %v3664 = vpop.f32.mrf.mxu0
    %v3665 = vadd.f32 0.0, %v3664
    %3666 = vdwg.mxu0
    %3667 = vmatpush.msra.mxu0 0.0
    %3668 = vmatpush.msra.mxu0 0.0
    %3669 = vmatpush.msra.mxu0 0.0
    %3670 = vmatpush.msra.mxu0 0.0
    %3671 = vmatpush.msra.mxu0 0.0
    %3672 = vmatpush.msra.mxu0 0.0
    %3673 = vmatpush.msra.mxu0 0.0
    %3674 = vmatpush.msra.mxu0 0.0
    %v3675 = vand.u32 %v43, 4294901760
    %v3676 = vsub.f32 %v43, %v3675
    %v3677 = vand.u32 %v3676, 4294901760
    %v3678 = vsub.f32 %v3676, %v3677
    %v3679 = vand.u32 %v3678, 4294901760
    %3680 = vmatpush.msra.mxu0 %v3679
    %v3681 = vand.u32 %v42, 4294901760
    %v3682 = vsub.f32 %v42, %v3681
    %v3683 = vand.u32 %v3682, 4294901760
    %v3684 = vsub.f32 %v3682, %v3683
    %v3685 = vand.u32 %v3684, 4294901760
    %3686 = vmatpush.msra.mxu0 %v3685
    %v3687 = vand.u32 %v41, 4294901760
    %v3688 = vsub.f32 %v41, %v3687
    %v3689 = vand.u32 %v3688, 4294901760
    %v3690 = vsub.f32 %v3688, %v3689
    %v3691 = vand.u32 %v3690, 4294901760
    %3692 = vmatpush.msra.mxu0 %v3691
    %v3693 = vand.u32 %v40, 4294901760
    %v3694 = vsub.f32 %v40, %v3693
    %v3695 = vand.u32 %v3694, 4294901760
    %v3696 = vsub.f32 %v3694, %v3695
    %v3697 = vand.u32 %v3696, 4294901760
    %3698 = vmatpush.msra.mxu0 %v3697
    %v3699 = vand.u32 %v39, 4294901760
    %v3700 = vsub.f32 %v39, %v3699
    %v3701 = vand.u32 %v3700, 4294901760
    %v3702 = vsub.f32 %v3700, %v3701
    %v3703 = vand.u32 %v3702, 4294901760
    %3704 = vmatpush.msra.mxu0 %v3703
    %v3705 = vand.u32 %v38, 4294901760
    %v3706 = vsub.f32 %v38, %v3705
    %v3707 = vand.u32 %v3706, 4294901760
    %v3708 = vsub.f32 %v3706, %v3707
    %v3709 = vand.u32 %v3708, 4294901760
    %3710 = vmatpush.msra.mxu0 %v3709
    %v3711 = vand.u32 %v37, 4294901760
    %v3712 = vsub.f32 %v37, %v3711
    %v3713 = vand.u32 %v3712, 4294901760
    %v3714 = vsub.f32 %v3712, %v3713
    %v3715 = vand.u32 %v3714, 4294901760
    %3716 = vmatpush.msra.mxu0 %v3715
    %v3717 = vand.u32 %v36, 4294901760
    %v3718 = vsub.f32 %v36, %v3717
    %v3719 = vand.u32 %v3718, 4294901760
    %v3720 = vsub.f32 %v3718, %v3719
    %v3721 = vand.u32 %v3720, 4294901760
    %3722 = vmatpush.msra.mxu0 %v3721
    %v3723 = vand.u32 %v3621, 4294901760
    %3724 = vmatmul.f32.gmra.mxu0 %v3723
    %v3725 = vpop.f32.mrf.mxu0
    %v3726 = vadd.f32 %v3657, %v3725
    %v3727 = vand.u32 %v3624, 4294901760
    %3728 = vmatmul.f32.gmra.mxu0 %v3727
    %v3729 = vpop.f32.mrf.mxu0
    %v3730 = vadd.f32 %v3665, %v3729
    %3731 = vdwg.mxu0
    %3732 = vmatpush.msra.mxu0 0.0
    %3733 = vmatpush.msra.mxu0 0.0
    %3734 = vmatpush.msra.mxu0 0.0
    %3735 = vmatpush.msra.mxu0 0.0
    %3736 = vmatpush.msra.mxu0 0.0
    %3737 = vmatpush.msra.mxu0 0.0
    %3738 = vmatpush.msra.mxu0 0.0
    %3739 = vmatpush.msra.mxu0 0.0
    %v3740 = vand.u32 %v43, 4294901760
    %v3741 = vsub.f32 %v43, %v3740
    %3742 = vmatpush.msra.mxu0 %v3741
    %v3743 = vand.u32 %v42, 4294901760
    %v3744 = vsub.f32 %v42, %v3743
    %3745 = vmatpush.msra.mxu0 %v3744
    %v3746 = vand.u32 %v41, 4294901760
    %v3747 = vsub.f32 %v41, %v3746
    %3748 = vmatpush.msra.mxu0 %v3747
    %v3749 = vand.u32 %v40, 4294901760
    %v3750 = vsub.f32 %v40, %v3749
    %3751 = vmatpush.msra.mxu0 %v3750
    %v3752 = vand.u32 %v39, 4294901760
    %v3753 = vsub.f32 %v39, %v3752
    %3754 = vmatpush.msra.mxu0 %v3753
    %v3755 = vand.u32 %v38, 4294901760
    %v3756 = vsub.f32 %v38, %v3755
    %3757 = vmatpush.msra.mxu0 %v3756
    %v3758 = vand.u32 %v37, 4294901760
    %v3759 = vsub.f32 %v37, %v3758
    %3760 = vmatpush.msra.mxu0 %v3759
    %v3761 = vand.u32 %v36, 4294901760
    %v3762 = vsub.f32 %v36, %v3761
    %3763 = vmatpush.msra.mxu0 %v3762
    %v3764 = vand.u32 %v3621, 4294901760
    %v3765 = vsub.f32 %v3621, %v3764
    %3766 = vmatmul.f32.gmra.mxu0 %v3765
    %v3767 = vpop.f32.mrf.mxu0
    %v3768 = vadd.f32 %v3726, %v3767
    %v3769 = vand.u32 %v3624, 4294901760
    %v3770 = vsub.f32 %v3624, %v3769
    %3771 = vmatmul.f32.gmra.mxu0 %v3770
    %v3772 = vpop.f32.mrf.mxu0
    %v3773 = vadd.f32 %v3730, %v3772
    %3774 = vdwg.mxu0
    %3775 = vmatpush.msra.mxu0 0.0
    %3776 = vmatpush.msra.mxu0 0.0
    %3777 = vmatpush.msra.mxu0 0.0
    %3778 = vmatpush.msra.mxu0 0.0
    %3779 = vmatpush.msra.mxu0 0.0
    %3780 = vmatpush.msra.mxu0 0.0
    %3781 = vmatpush.msra.mxu0 0.0
    %3782 = vmatpush.msra.mxu0 0.0
    %v3783 = vand.u32 %v43, 4294901760
    %3784 = vmatpush.msra.mxu0 %v3783
    %v3785 = vand.u32 %v42, 4294901760
    %3786 = vmatpush.msra.mxu0 %v3785
    %v3787 = vand.u32 %v41, 4294901760
    %3788 = vmatpush.msra.mxu0 %v3787
    %v3789 = vand.u32 %v40, 4294901760
    %3790 = vmatpush.msra.mxu0 %v3789
    %v3791 = vand.u32 %v39, 4294901760
    %3792 = vmatpush.msra.mxu0 %v3791
    %v3793 = vand.u32 %v38, 4294901760
    %3794 = vmatpush.msra.mxu0 %v3793
    %v3795 = vand.u32 %v37, 4294901760
    %3796 = vmatpush.msra.mxu0 %v3795
    %v3797 = vand.u32 %v36, 4294901760
    %3798 = vmatpush.msra.mxu0 %v3797
    %v3799 = vand.u32 %v3621, 4294901760
    %v3800 = vsub.f32 %v3621, %v3799
    %v3801 = vand.u32 %v3800, 4294901760
    %3802 = vmatmul.f32.gmra.mxu0 %v3801
    %v3803 = vpop.f32.mrf.mxu0
    %v3804 = vadd.f32 %v3768, %v3803
    %v3805 = vand.u32 %v3624, 4294901760
    %v3806 = vsub.f32 %v3624, %v3805
    %v3807 = vand.u32 %v3806, 4294901760
    %3808 = vmatmul.f32.gmra.mxu0 %v3807
    %v3809 = vpop.f32.mrf.mxu0
    %v3810 = vadd.f32 %v3773, %v3809
    %3811 = vdwg.mxu0
    %3812 = vmatpush.msra.mxu0 0.0
    %3813 = vmatpush.msra.mxu0 0.0
    %3814 = vmatpush.msra.mxu0 0.0
    %3815 = vmatpush.msra.mxu0 0.0
    %3816 = vmatpush.msra.mxu0 0.0
    %3817 = vmatpush.msra.mxu0 0.0
    %3818 = vmatpush.msra.mxu0 0.0
    %3819 = vmatpush.msra.mxu0 0.0
    %v3820 = vand.u32 %v43, 4294901760
    %v3821 = vsub.f32 %v43, %v3820
    %v3822 = vand.u32 %v3821, 4294901760
    %3823 = vmatpush.msra.mxu0 %v3822
    %v3824 = vand.u32 %v42, 4294901760
    %v3825 = vsub.f32 %v42, %v3824
    %v3826 = vand.u32 %v3825, 4294901760
    %3827 = vmatpush.msra.mxu0 %v3826
    %v3828 = vand.u32 %v41, 4294901760
    %v3829 = vsub.f32 %v41, %v3828
    %v3830 = vand.u32 %v3829, 4294901760
    %3831 = vmatpush.msra.mxu0 %v3830
    %v3832 = vand.u32 %v40, 4294901760
    %v3833 = vsub.f32 %v40, %v3832
    %v3834 = vand.u32 %v3833, 4294901760
    %3835 = vmatpush.msra.mxu0 %v3834
    %v3836 = vand.u32 %v39, 4294901760
    %v3837 = vsub.f32 %v39, %v3836
    %v3838 = vand.u32 %v3837, 4294901760
    %3839 = vmatpush.msra.mxu0 %v3838
    %v3840 = vand.u32 %v38, 4294901760
    %v3841 = vsub.f32 %v38, %v3840
    %v3842 = vand.u32 %v3841, 4294901760
    %3843 = vmatpush.msra.mxu0 %v3842
    %v3844 = vand.u32 %v37, 4294901760
    %v3845 = vsub.f32 %v37, %v3844
    %v3846 = vand.u32 %v3845, 4294901760
    %3847 = vmatpush.msra.mxu0 %v3846
    %v3848 = vand.u32 %v36, 4294901760
    %v3849 = vsub.f32 %v36, %v3848
    %v3850 = vand.u32 %v3849, 4294901760
    %3851 = vmatpush.msra.mxu0 %v3850
    %v3852 = vand.u32 %v3621, 4294901760
    %3853 = vmatmul.f32.gmra.mxu0 %v3852
    %v3854 = vpop.f32.mrf.mxu0
    %v3855 = vadd.f32 %v3804, %v3854
    %v3856 = vand.u32 %v3624, 4294901760
    %3857 = vmatmul.f32.gmra.mxu0 %v3856
    %v3858 = vpop.f32.mrf.mxu0
    %v3859 = vadd.f32 %v3810, %v3858
    %3860 = vdwg.mxu0
    %3861 = vmatpush.msra.mxu0 0.0
    %3862 = vmatpush.msra.mxu0 0.0
    %3863 = vmatpush.msra.mxu0 0.0
    %3864 = vmatpush.msra.mxu0 0.0
    %3865 = vmatpush.msra.mxu0 0.0
    %3866 = vmatpush.msra.mxu0 0.0
    %3867 = vmatpush.msra.mxu0 0.0
    %3868 = vmatpush.msra.mxu0 0.0
    %v3869 = vand.u32 %v43, 4294901760
    %3870 = vmatpush.msra.mxu0 %v3869
    %v3871 = vand.u32 %v42, 4294901760
    %3872 = vmatpush.msra.mxu0 %v3871
    %v3873 = vand.u32 %v41, 4294901760
    %3874 = vmatpush.msra.mxu0 %v3873
    %v3875 = vand.u32 %v40, 4294901760
    %3876 = vmatpush.msra.mxu0 %v3875
    %v3877 = vand.u32 %v39, 4294901760
    %3878 = vmatpush.msra.mxu0 %v3877
    %v3879 = vand.u32 %v38, 4294901760
    %3880 = vmatpush.msra.mxu0 %v3879
    %v3881 = vand.u32 %v37, 4294901760
    %3882 = vmatpush.msra.mxu0 %v3881
    %v3883 = vand.u32 %v36, 4294901760
    %3884 = vmatpush.msra.mxu0 %v3883
    %v3885 = vand.u32 %v3621, 4294901760
    %3886 = vmatmul.f32.gmra.mxu0 %v3885
    %v3887 = vpop.f32.mrf.mxu0
    %v3888 = vadd.f32 %v3855, %v3887
    %v3889 = vand.u32 %v3624, 4294901760
    %3890 = vmatmul.f32.gmra.mxu0 %v3889
    %v3891 = vpop.f32.mrf.mxu0
    %v3892 = vadd.f32 %v3859, %v3891
    %3893 = vdwg.mxu0
    %v3894 = vadd.f32 %v3256, %v3888
    %v3895 = vadd.f32 %v3257, %v3892
    %v3896 = vperm.slane %v52, 7
    %v3897 = vadd.f32 %v3894, %v3896
    %v3898 = vadd.f32 %v3895, %v3896
    %v3899 = vsel %vm55, %v3897, 0.0
    %3900 = vadd.xlane.f32.xlu0 %v3899
    %v3901 = vpop.xlane.xlu0 %3900
    %v3902 = vsel %vm55, %v3898, 0.0
    %3903 = vadd.xlane.f32.xlu0 %v3902
    %v3904 = vpop.xlane.xlu0 %3903
    %v3905 = vmul.f32 %v3901, %v68
    %v3906 = vmul.f32 %v3904, %v68
    %v3907 = vsub.f32 %v3897, %v3905
    %v3908 = vsub.f32 %v3898, %v3906
    %v3909 = vmul.f32 %v3907, %v3907
    %v3910 = vmul.f32 %v3908, %v3908
    %v3911 = vsel %vm55, %v3909, 0.0
    %3912 = vadd.xlane.f32.xlu0 %v3911
    %v3913 = vpop.xlane.xlu0 %3912
    %v3914 = vsel %vm55, %v3910, 0.0
    %3915 = vadd.xlane.f32.xlu0 %v3914
    %v3916 = vpop.xlane.xlu0 %3915
    %v3917 = vmul.f32 %v3913, %v68
    %v3918 = vmul.f32 %v3916, %v68
    %v3919 = vadd.f32 %v3917, 1e-05
    %v3920 = vadd.f32 %v3918, 1e-05
    %v3921 = vrsqrt.pop %v3919
    %v3922 = vmul.f32 %v3921, %v3919
    %v3923 = vmul.f32 %v3922, %v3921
    %v3924 = vmul.f32 0.5, %v3923
    %v3925 = vsub.f32 1.5, %v3924
    %v3926 = vmul.f32 %v3921, %v3925
    %vm3927 = vweird.f32 %v3919
    %vm3928 = vweird.f32 %v3921
    %vm3929 = vmor %vm3927, %vm3928
    %v3930 = vsel %vm3929, %v3921, %v3926
    %v3931 = vrsqrt.pop %v3920
    %v3932 = vmul.f32 %v3931, %v3920
    %v3933 = vmul.f32 %v3932, %v3931
    %v3934 = vmul.f32 0.5, %v3933
    %v3935 = vsub.f32 1.5, %v3934
    %v3936 = vmul.f32 %v3931, %v3935
    %vm3937 = vweird.f32 %v3920
    %vm3938 = vweird.f32 %v3931
    %vm3939 = vmor %vm3937, %vm3938
    %v3940 = vsel %vm3939, %v3931, %v3936
    %v3941 = vmul.f32 %v3907, %v3930
    %v3942 = vmul.f32 %v3908, %v3940
    %v3943 = vperm.slane %v53, 0
    %v3944 = vmul.f32 %v3941, %v3943
    %v3945 = vmul.f32 %v3942, %v3943
    %v3946 = vperm.slane %v53, 1
    %v3947 = vadd.f32 %v3944, %v3946
    %v3948 = vadd.f32 %v3945, %v3946
    %v3949 = vperm.slane %v53, 2
    %v3951 = vsel %vm55, %v3947, 0
    %v3954 = vsel %vm55, %v3948, 0
    %3956 = vmatpush.msra.mxu0 0.0
    %3957 = vmatpush.msra.mxu0 0.0
    %3958 = vmatpush.msra.mxu0 0.0
    %3959 = vmatpush.msra.mxu0 0.0
    %3960 = vmatpush.msra.mxu0 0.0
    %3961 = vmatpush.msra.mxu0 0.0
    %3962 = vmatpush.msra.mxu0 0.0
    %3963 = vmatpush.msra.mxu0 0.0
    %3964 = vmatpush.msra.mxu0 0.0
    %3965 = vmatpush.msra.mxu0 0.0
    %3966 = vmatpush.msra.mxu0 0.0
    %3967 = vmatpush.msra.mxu0 0.0
    %v3968 = vand.u32 %v34, 4294901760
    %3969 = vmatpush.msra.mxu0 %v3968
    %v3970 = vand.u32 %v32, 4294901760
    %3971 = vmatpush.msra.mxu0 %v3970
    %v3972 = vand.u32 %v30, 4294901760
    %3973 = vmatpush.msra.mxu0 %v3972
    %v3974 = vand.u32 %v28, 4294901760
    %3975 = vmatpush.msra.mxu0 %v3974
    %v3976 = vand.u32 %v3951, 4294901760
    %v3977 = vsub.f32 %v3951, %v3976
    %v3978 = vand.u32 %v3977, 4294901760
    %v3979 = vsub.f32 %v3977, %v3978
    %v3980 = vand.u32 %v3979, 4294901760
    %3981 = vmatmul.f32.gmra.mxu0 %v3980
    %v3982 = vpop.f32.mrf.mxu0
    %v3983 = vadd.f32 %v3949, %v3982
    %v3984 = vand.u32 %v3954, 4294901760
    %v3985 = vsub.f32 %v3954, %v3984
    %v3986 = vand.u32 %v3985, 4294901760
    %v3987 = vsub.f32 %v3985, %v3986
    %v3988 = vand.u32 %v3987, 4294901760
    %3989 = vmatmul.f32.gmra.mxu0 %v3988
    %v3990 = vpop.f32.mrf.mxu0
    %v3991 = vadd.f32 %v3949, %v3990
    %3992 = vdwg.mxu0
    %3993 = vmatpush.msra.mxu0 0.0
    %3994 = vmatpush.msra.mxu0 0.0
    %3995 = vmatpush.msra.mxu0 0.0
    %3996 = vmatpush.msra.mxu0 0.0
    %3997 = vmatpush.msra.mxu0 0.0
    %3998 = vmatpush.msra.mxu0 0.0
    %3999 = vmatpush.msra.mxu0 0.0
    %4000 = vmatpush.msra.mxu0 0.0
    %4001 = vmatpush.msra.mxu0 0.0
    %4002 = vmatpush.msra.mxu0 0.0
    %4003 = vmatpush.msra.mxu0 0.0
    %4004 = vmatpush.msra.mxu0 0.0
    %v4005 = vand.u32 %v34, 4294901760
    %v4006 = vsub.f32 %v34, %v4005
    %v4007 = vand.u32 %v4006, 4294901760
    %v4008 = vsub.f32 %v4006, %v4007
    %v4009 = vand.u32 %v4008, 4294901760
    %4010 = vmatpush.msra.mxu0 %v4009
    %v4011 = vand.u32 %v32, 4294901760
    %v4012 = vsub.f32 %v32, %v4011
    %v4013 = vand.u32 %v4012, 4294901760
    %v4014 = vsub.f32 %v4012, %v4013
    %v4015 = vand.u32 %v4014, 4294901760
    %4016 = vmatpush.msra.mxu0 %v4015
    %v4017 = vand.u32 %v30, 4294901760
    %v4018 = vsub.f32 %v30, %v4017
    %v4019 = vand.u32 %v4018, 4294901760
    %v4020 = vsub.f32 %v4018, %v4019
    %v4021 = vand.u32 %v4020, 4294901760
    %4022 = vmatpush.msra.mxu0 %v4021
    %v4023 = vand.u32 %v28, 4294901760
    %v4024 = vsub.f32 %v28, %v4023
    %v4025 = vand.u32 %v4024, 4294901760
    %v4026 = vsub.f32 %v4024, %v4025
    %v4027 = vand.u32 %v4026, 4294901760
    %4028 = vmatpush.msra.mxu0 %v4027
    %v4029 = vand.u32 %v3951, 4294901760
    %4030 = vmatmul.f32.gmra.mxu0 %v4029
    %v4031 = vpop.f32.mrf.mxu0
    %v4032 = vadd.f32 %v3983, %v4031
    %v4033 = vand.u32 %v3954, 4294901760
    %4034 = vmatmul.f32.gmra.mxu0 %v4033
    %v4035 = vpop.f32.mrf.mxu0
    %v4036 = vadd.f32 %v3991, %v4035
    %4037 = vdwg.mxu0
    %4038 = vmatpush.msra.mxu0 0.0
    %4039 = vmatpush.msra.mxu0 0.0
    %4040 = vmatpush.msra.mxu0 0.0
    %4041 = vmatpush.msra.mxu0 0.0
    %4042 = vmatpush.msra.mxu0 0.0
    %4043 = vmatpush.msra.mxu0 0.0
    %4044 = vmatpush.msra.mxu0 0.0
    %4045 = vmatpush.msra.mxu0 0.0
    %4046 = vmatpush.msra.mxu0 0.0
    %4047 = vmatpush.msra.mxu0 0.0
    %4048 = vmatpush.msra.mxu0 0.0
    %4049 = vmatpush.msra.mxu0 0.0
    %v4050 = vand.u32 %v34, 4294901760
    %v4051 = vsub.f32 %v34, %v4050
    %4052 = vmatpush.msra.mxu0 %v4051
    %v4053 = vand.u32 %v32, 4294901760
    %v4054 = vsub.f32 %v32, %v4053
    %4055 = vmatpush.msra.mxu0 %v4054
    %v4056 = vand.u32 %v30, 4294901760
    %v4057 = vsub.f32 %v30, %v4056
    %4058 = vmatpush.msra.mxu0 %v4057
    %v4059 = vand.u32 %v28, 4294901760
    %v4060 = vsub.f32 %v28, %v4059
    %4061 = vmatpush.msra.mxu0 %v4060
    %v4062 = vand.u32 %v3951, 4294901760
    %v4063 = vsub.f32 %v3951, %v4062
    %4064 = vmatmul.f32.gmra.mxu0 %v4063
    %v4065 = vpop.f32.mrf.mxu0
    %v4066 = vadd.f32 %v4032, %v4065
    %v4067 = vand.u32 %v3954, 4294901760
    %v4068 = vsub.f32 %v3954, %v4067
    %4069 = vmatmul.f32.gmra.mxu0 %v4068
    %v4070 = vpop.f32.mrf.mxu0
    %v4071 = vadd.f32 %v4036, %v4070
    %4072 = vdwg.mxu0
    %4073 = vmatpush.msra.mxu0 0.0
    %4074 = vmatpush.msra.mxu0 0.0
    %4075 = vmatpush.msra.mxu0 0.0
    %4076 = vmatpush.msra.mxu0 0.0
    %4077 = vmatpush.msra.mxu0 0.0
    %4078 = vmatpush.msra.mxu0 0.0
    %4079 = vmatpush.msra.mxu0 0.0
    %4080 = vmatpush.msra.mxu0 0.0
    %4081 = vmatpush.msra.mxu0 0.0
    %4082 = vmatpush.msra.mxu0 0.0
    %4083 = vmatpush.msra.mxu0 0.0
    %4084 = vmatpush.msra.mxu0 0.0
    %v4085 = vand.u32 %v34, 4294901760
    %4086 = vmatpush.msra.mxu0 %v4085
    %v4087 = vand.u32 %v32, 4294901760
    %4088 = vmatpush.msra.mxu0 %v4087
    %v4089 = vand.u32 %v30, 4294901760
    %4090 = vmatpush.msra.mxu0 %v4089
    %v4091 = vand.u32 %v28, 4294901760
    %4092 = vmatpush.msra.mxu0 %v4091
    %v4093 = vand.u32 %v3951, 4294901760
    %v4094 = vsub.f32 %v3951, %v4093
    %v4095 = vand.u32 %v4094, 4294901760
    %4096 = vmatmul.f32.gmra.mxu0 %v4095
    %v4097 = vpop.f32.mrf.mxu0
    %v4098 = vadd.f32 %v4066, %v4097
    %v4099 = vand.u32 %v3954, 4294901760
    %v4100 = vsub.f32 %v3954, %v4099
    %v4101 = vand.u32 %v4100, 4294901760
    %4102 = vmatmul.f32.gmra.mxu0 %v4101
    %v4103 = vpop.f32.mrf.mxu0
    %v4104 = vadd.f32 %v4071, %v4103
    %4105 = vdwg.mxu0
    %4106 = vmatpush.msra.mxu0 0.0
    %4107 = vmatpush.msra.mxu0 0.0
    %4108 = vmatpush.msra.mxu0 0.0
    %4109 = vmatpush.msra.mxu0 0.0
    %4110 = vmatpush.msra.mxu0 0.0
    %4111 = vmatpush.msra.mxu0 0.0
    %4112 = vmatpush.msra.mxu0 0.0
    %4113 = vmatpush.msra.mxu0 0.0
    %4114 = vmatpush.msra.mxu0 0.0
    %4115 = vmatpush.msra.mxu0 0.0
    %4116 = vmatpush.msra.mxu0 0.0
    %4117 = vmatpush.msra.mxu0 0.0
    %v4118 = vand.u32 %v34, 4294901760
    %v4119 = vsub.f32 %v34, %v4118
    %v4120 = vand.u32 %v4119, 4294901760
    %4121 = vmatpush.msra.mxu0 %v4120
    %v4122 = vand.u32 %v32, 4294901760
    %v4123 = vsub.f32 %v32, %v4122
    %v4124 = vand.u32 %v4123, 4294901760
    %4125 = vmatpush.msra.mxu0 %v4124
    %v4126 = vand.u32 %v30, 4294901760
    %v4127 = vsub.f32 %v30, %v4126
    %v4128 = vand.u32 %v4127, 4294901760
    %4129 = vmatpush.msra.mxu0 %v4128
    %v4130 = vand.u32 %v28, 4294901760
    %v4131 = vsub.f32 %v28, %v4130
    %v4132 = vand.u32 %v4131, 4294901760
    %4133 = vmatpush.msra.mxu0 %v4132
    %v4134 = vand.u32 %v3951, 4294901760
    %4135 = vmatmul.f32.gmra.mxu0 %v4134
    %v4136 = vpop.f32.mrf.mxu0
    %v4137 = vadd.f32 %v4098, %v4136
    %v4138 = vand.u32 %v3954, 4294901760
    %4139 = vmatmul.f32.gmra.mxu0 %v4138
    %v4140 = vpop.f32.mrf.mxu0
    %v4141 = vadd.f32 %v4104, %v4140
    %4142 = vdwg.mxu0
    %4143 = vmatpush.msra.mxu0 0.0
    %4144 = vmatpush.msra.mxu0 0.0
    %4145 = vmatpush.msra.mxu0 0.0
    %4146 = vmatpush.msra.mxu0 0.0
    %4147 = vmatpush.msra.mxu0 0.0
    %4148 = vmatpush.msra.mxu0 0.0
    %4149 = vmatpush.msra.mxu0 0.0
    %4150 = vmatpush.msra.mxu0 0.0
    %4151 = vmatpush.msra.mxu0 0.0
    %4152 = vmatpush.msra.mxu0 0.0
    %4153 = vmatpush.msra.mxu0 0.0
    %4154 = vmatpush.msra.mxu0 0.0
    %v4155 = vand.u32 %v34, 4294901760
    %4156 = vmatpush.msra.mxu0 %v4155
    %v4157 = vand.u32 %v32, 4294901760
    %4158 = vmatpush.msra.mxu0 %v4157
    %v4159 = vand.u32 %v30, 4294901760
    %4160 = vmatpush.msra.mxu0 %v4159
    %v4161 = vand.u32 %v28, 4294901760
    %4162 = vmatpush.msra.mxu0 %v4161
    %v4163 = vand.u32 %v3951, 4294901760
    %4164 = vmatmul.f32.gmra.mxu0 %v4163
    %v4165 = vpop.f32.mrf.mxu0
    %v4166 = vadd.f32 %v4137, %v4165
    %v4167 = vand.u32 %v3954, 4294901760
    %4168 = vmatmul.f32.gmra.mxu0 %v4167
    %v4169 = vpop.f32.mrf.mxu0
    %v4170 = vadd.f32 %v4141, %v4169
    %4171 = vdwg.mxu0
    %4174 = vrot.lane.b32.xlu0 %v4166, 120
    %v4175 = vpop.permute.xlu0 %4174
    %4176 = vrot.lane.b32.xlu0 %v4170, 120
    %v4177 = vpop.permute.xlu0 %4176
    %4178 = vrot.lane.b32.xlu0 %v4166, 112
    %v4179 = vpop.permute.xlu0 %4178
    %4180 = vrot.lane.b32.xlu0 %v4170, 112
    %v4181 = vpop.permute.xlu0 %4180
    %4182 = vrot.lane.b32.xlu0 %v4166, 104
    %v4183 = vpop.permute.xlu0 %4182
    %4184 = vrot.lane.b32.xlu0 %v4170, 104
    %v4185 = vpop.permute.xlu0 %4184
    %4186 = vrot.lane.b32.xlu0 %v4166, 96
    %v4187 = vpop.permute.xlu0 %4186
    %v4188 = vsel %vm352, %v4166, 0
    %v4190 = vsel %vm352, %v4187, 0
    %4192 = vmatpush.xpose.msra.mxu0 0.0
    %4193 = vmatpush.xpose.msra.mxu0 0.0
    %4194 = vmatpush.xpose.msra.mxu0 0.0
    %4195 = vmatpush.xpose.msra.mxu0 0.0
    %4196 = vmatpush.xpose.msra.mxu0 0.0
    %4197 = vmatpush.xpose.msra.mxu0 0.0
    %4198 = vmatpush.xpose.msra.mxu0 0.0
    %4199 = vmatpush.xpose.msra.mxu0 0.0
    %4200 = vmatpush.xpose.msra.mxu0 0.0
    %4201 = vmatpush.xpose.msra.mxu0 0.0
    %4202 = vmatpush.xpose.msra.mxu0 0.0
    %4203 = vmatpush.xpose.msra.mxu0 0.0
    %4204 = vmatpush.xpose.msra.mxu0 0.0
    %4205 = vmatpush.xpose.msra.mxu0 0.0
    %4206 = vmatpush.xpose.msra.mxu0 0.0
    %v4207 = vand.u32 %v4190, 4294901760
    %4208 = vmatpush.xpose.msra.mxu0 %v4207
    %v4209 = vand.u32 %v4188, 4294901760
    %v4210 = vsub.f32 %v4188, %v4209
    %v4211 = vand.u32 %v4210, 4294901760
    %v4212 = vsub.f32 %v4210, %v4211
    %v4213 = vand.u32 %v4212, 4294901760
    %4214 = vmatmul.f32.gmra.mxu0 %v4213
    %v4215 = vpop.f32.mrf.mxu0
    %v4216 = vadd.f32 0.0, %v4215
    %4217 = vdwg.mxu0
    %4218 = vmatpush.xpose.msra.mxu0 0.0
    %4219 = vmatpush.xpose.msra.mxu0 0.0
    %4220 = vmatpush.xpose.msra.mxu0 0.0
    %4221 = vmatpush.xpose.msra.mxu0 0.0
    %4222 = vmatpush.xpose.msra.mxu0 0.0
    %4223 = vmatpush.xpose.msra.mxu0 0.0
    %4224 = vmatpush.xpose.msra.mxu0 0.0
    %4225 = vmatpush.xpose.msra.mxu0 0.0
    %4226 = vmatpush.xpose.msra.mxu0 0.0
    %4227 = vmatpush.xpose.msra.mxu0 0.0
    %4228 = vmatpush.xpose.msra.mxu0 0.0
    %4229 = vmatpush.xpose.msra.mxu0 0.0
    %4230 = vmatpush.xpose.msra.mxu0 0.0
    %4231 = vmatpush.xpose.msra.mxu0 0.0
    %4232 = vmatpush.xpose.msra.mxu0 0.0
    %v4233 = vand.u32 %v4190, 4294901760
    %v4234 = vsub.f32 %v4190, %v4233
    %v4235 = vand.u32 %v4234, 4294901760
    %v4236 = vsub.f32 %v4234, %v4235
    %v4237 = vand.u32 %v4236, 4294901760
    %4238 = vmatpush.xpose.msra.mxu0 %v4237
    %v4239 = vand.u32 %v4188, 4294901760
    %4240 = vmatmul.f32.gmra.mxu0 %v4239
    %v4241 = vpop.f32.mrf.mxu0
    %v4242 = vadd.f32 %v4216, %v4241
    %4243 = vdwg.mxu0
    %4244 = vmatpush.xpose.msra.mxu0 0.0
    %4245 = vmatpush.xpose.msra.mxu0 0.0
    %4246 = vmatpush.xpose.msra.mxu0 0.0
    %4247 = vmatpush.xpose.msra.mxu0 0.0
    %4248 = vmatpush.xpose.msra.mxu0 0.0
    %4249 = vmatpush.xpose.msra.mxu0 0.0
    %4250 = vmatpush.xpose.msra.mxu0 0.0
    %4251 = vmatpush.xpose.msra.mxu0 0.0
    %4252 = vmatpush.xpose.msra.mxu0 0.0
    %4253 = vmatpush.xpose.msra.mxu0 0.0
    %4254 = vmatpush.xpose.msra.mxu0 0.0
    %4255 = vmatpush.xpose.msra.mxu0 0.0
    %4256 = vmatpush.xpose.msra.mxu0 0.0
    %4257 = vmatpush.xpose.msra.mxu0 0.0
    %4258 = vmatpush.xpose.msra.mxu0 0.0
    %v4259 = vand.u32 %v4190, 4294901760
    %v4260 = vsub.f32 %v4190, %v4259
    %4261 = vmatpush.xpose.msra.mxu0 %v4260
    %v4262 = vand.u32 %v4188, 4294901760
    %v4263 = vsub.f32 %v4188, %v4262
    %4264 = vmatmul.f32.gmra.mxu0 %v4263
    %v4265 = vpop.f32.mrf.mxu0
    %v4266 = vadd.f32 %v4242, %v4265
    %4267 = vdwg.mxu0
    %4268 = vmatpush.xpose.msra.mxu0 0.0
    %4269 = vmatpush.xpose.msra.mxu0 0.0
    %4270 = vmatpush.xpose.msra.mxu0 0.0
    %4271 = vmatpush.xpose.msra.mxu0 0.0
    %4272 = vmatpush.xpose.msra.mxu0 0.0
    %4273 = vmatpush.xpose.msra.mxu0 0.0
    %4274 = vmatpush.xpose.msra.mxu0 0.0
    %4275 = vmatpush.xpose.msra.mxu0 0.0
    %4276 = vmatpush.xpose.msra.mxu0 0.0
    %4277 = vmatpush.xpose.msra.mxu0 0.0
    %4278 = vmatpush.xpose.msra.mxu0 0.0
    %4279 = vmatpush.xpose.msra.mxu0 0.0
    %4280 = vmatpush.xpose.msra.mxu0 0.0
    %4281 = vmatpush.xpose.msra.mxu0 0.0
    %4282 = vmatpush.xpose.msra.mxu0 0.0
    %v4283 = vand.u32 %v4190, 4294901760
    %4284 = vmatpush.xpose.msra.mxu0 %v4283
    %v4285 = vand.u32 %v4188, 4294901760
    %v4286 = vsub.f32 %v4188, %v4285
    %v4287 = vand.u32 %v4286, 4294901760
    %4288 = vmatmul.f32.gmra.mxu0 %v4287
    %v4289 = vpop.f32.mrf.mxu0
    %v4290 = vadd.f32 %v4266, %v4289
    %4291 = vdwg.mxu0
    %4292 = vmatpush.xpose.msra.mxu0 0.0
    %4293 = vmatpush.xpose.msra.mxu0 0.0
    %4294 = vmatpush.xpose.msra.mxu0 0.0
    %4295 = vmatpush.xpose.msra.mxu0 0.0
    %4296 = vmatpush.xpose.msra.mxu0 0.0
    %4297 = vmatpush.xpose.msra.mxu0 0.0
    %4298 = vmatpush.xpose.msra.mxu0 0.0
    %4299 = vmatpush.xpose.msra.mxu0 0.0
    %4300 = vmatpush.xpose.msra.mxu0 0.0
    %4301 = vmatpush.xpose.msra.mxu0 0.0
    %4302 = vmatpush.xpose.msra.mxu0 0.0
    %4303 = vmatpush.xpose.msra.mxu0 0.0
    %4304 = vmatpush.xpose.msra.mxu0 0.0
    %4305 = vmatpush.xpose.msra.mxu0 0.0
    %4306 = vmatpush.xpose.msra.mxu0 0.0
    %v4307 = vand.u32 %v4190, 4294901760
    %v4308 = vsub.f32 %v4190, %v4307
    %v4309 = vand.u32 %v4308, 4294901760
    %4310 = vmatpush.xpose.msra.mxu0 %v4309
    %v4311 = vand.u32 %v4188, 4294901760
    %4312 = vmatmul.f32.gmra.mxu0 %v4311
    %v4313 = vpop.f32.mrf.mxu0
    %v4314 = vadd.f32 %v4290, %v4313
    %4315 = vdwg.mxu0
    %4316 = vmatpush.xpose.msra.mxu0 0.0
    %4317 = vmatpush.xpose.msra.mxu0 0.0
    %4318 = vmatpush.xpose.msra.mxu0 0.0
    %4319 = vmatpush.xpose.msra.mxu0 0.0
    %4320 = vmatpush.xpose.msra.mxu0 0.0
    %4321 = vmatpush.xpose.msra.mxu0 0.0
    %4322 = vmatpush.xpose.msra.mxu0 0.0
    %4323 = vmatpush.xpose.msra.mxu0 0.0
    %4324 = vmatpush.xpose.msra.mxu0 0.0
    %4325 = vmatpush.xpose.msra.mxu0 0.0
    %4326 = vmatpush.xpose.msra.mxu0 0.0
    %4327 = vmatpush.xpose.msra.mxu0 0.0
    %4328 = vmatpush.xpose.msra.mxu0 0.0
    %4329 = vmatpush.xpose.msra.mxu0 0.0
    %4330 = vmatpush.xpose.msra.mxu0 0.0
    %v4331 = vand.u32 %v4190, 4294901760
    %4332 = vmatpush.xpose.msra.mxu0 %v4331
    %v4333 = vand.u32 %v4188, 4294901760
    %4334 = vmatmul.f32.gmra.mxu0 %v4333
    %v4335 = vpop.f32.mrf.mxu0
    %v4336 = vadd.f32 %v4314, %v4335
    %4337 = vdwg.mxu0
    %4338 = vrot.lane.b32.xlu0 %v4170, 96
    %v4339 = vpop.permute.xlu0 %4338
    %v4340 = vsel %vm352, %v4170, 0
    %v4342 = vsel %vm352, %v4339, 0
    %4344 = vmatpush.xpose.msra.mxu0 0.0
    %4345 = vmatpush.xpose.msra.mxu0 0.0
    %4346 = vmatpush.xpose.msra.mxu0 0.0
    %4347 = vmatpush.xpose.msra.mxu0 0.0
    %4348 = vmatpush.xpose.msra.mxu0 0.0
    %4349 = vmatpush.xpose.msra.mxu0 0.0
    %4350 = vmatpush.xpose.msra.mxu0 0.0
    %4351 = vmatpush.xpose.msra.mxu0 0.0
    %4352 = vmatpush.xpose.msra.mxu0 0.0
    %4353 = vmatpush.xpose.msra.mxu0 0.0
    %4354 = vmatpush.xpose.msra.mxu0 0.0
    %4355 = vmatpush.xpose.msra.mxu0 0.0
    %4356 = vmatpush.xpose.msra.mxu0 0.0
    %4357 = vmatpush.xpose.msra.mxu0 0.0
    %4358 = vmatpush.xpose.msra.mxu0 0.0
    %v4359 = vand.u32 %v4342, 4294901760
    %4360 = vmatpush.xpose.msra.mxu0 %v4359
    %v4361 = vand.u32 %v4340, 4294901760
    %v4362 = vsub.f32 %v4340, %v4361
    %v4363 = vand.u32 %v4362, 4294901760
    %v4364 = vsub.f32 %v4362, %v4363
    %v4365 = vand.u32 %v4364, 4294901760
    %4366 = vmatmul.f32.gmra.mxu0 %v4365
    %v4367 = vpop.f32.mrf.mxu0
    %v4368 = vadd.f32 0.0, %v4367
    %4369 = vdwg.mxu0
    %4370 = vmatpush.xpose.msra.mxu0 0.0
    %4371 = vmatpush.xpose.msra.mxu0 0.0
    %4372 = vmatpush.xpose.msra.mxu0 0.0
    %4373 = vmatpush.xpose.msra.mxu0 0.0
    %4374 = vmatpush.xpose.msra.mxu0 0.0
    %4375 = vmatpush.xpose.msra.mxu0 0.0
    %4376 = vmatpush.xpose.msra.mxu0 0.0
    %4377 = vmatpush.xpose.msra.mxu0 0.0
    %4378 = vmatpush.xpose.msra.mxu0 0.0
    %4379 = vmatpush.xpose.msra.mxu0 0.0
    %4380 = vmatpush.xpose.msra.mxu0 0.0
    %4381 = vmatpush.xpose.msra.mxu0 0.0
    %4382 = vmatpush.xpose.msra.mxu0 0.0
    %4383 = vmatpush.xpose.msra.mxu0 0.0
    %4384 = vmatpush.xpose.msra.mxu0 0.0
    %v4385 = vand.u32 %v4342, 4294901760
    %v4386 = vsub.f32 %v4342, %v4385
    %v4387 = vand.u32 %v4386, 4294901760
    %v4388 = vsub.f32 %v4386, %v4387
    %v4389 = vand.u32 %v4388, 4294901760
    %4390 = vmatpush.xpose.msra.mxu0 %v4389
    %v4391 = vand.u32 %v4340, 4294901760
    %4392 = vmatmul.f32.gmra.mxu0 %v4391
    %v4393 = vpop.f32.mrf.mxu0
    %v4394 = vadd.f32 %v4368, %v4393
    %4395 = vdwg.mxu0
    %4396 = vmatpush.xpose.msra.mxu0 0.0
    %4397 = vmatpush.xpose.msra.mxu0 0.0
    %4398 = vmatpush.xpose.msra.mxu0 0.0
    %4399 = vmatpush.xpose.msra.mxu0 0.0
    %4400 = vmatpush.xpose.msra.mxu0 0.0
    %4401 = vmatpush.xpose.msra.mxu0 0.0
    %4402 = vmatpush.xpose.msra.mxu0 0.0
    %4403 = vmatpush.xpose.msra.mxu0 0.0
    %4404 = vmatpush.xpose.msra.mxu0 0.0
    %4405 = vmatpush.xpose.msra.mxu0 0.0
    %4406 = vmatpush.xpose.msra.mxu0 0.0
    %4407 = vmatpush.xpose.msra.mxu0 0.0
    %4408 = vmatpush.xpose.msra.mxu0 0.0
    %4409 = vmatpush.xpose.msra.mxu0 0.0
    %4410 = vmatpush.xpose.msra.mxu0 0.0
    %v4411 = vand.u32 %v4342, 4294901760
    %v4412 = vsub.f32 %v4342, %v4411
    %4413 = vmatpush.xpose.msra.mxu0 %v4412
    %v4414 = vand.u32 %v4340, 4294901760
    %v4415 = vsub.f32 %v4340, %v4414
    %4416 = vmatmul.f32.gmra.mxu0 %v4415
    %v4417 = vpop.f32.mrf.mxu0
    %v4418 = vadd.f32 %v4394, %v4417
    %4419 = vdwg.mxu0
    %4420 = vmatpush.xpose.msra.mxu0 0.0
    %4421 = vmatpush.xpose.msra.mxu0 0.0
    %4422 = vmatpush.xpose.msra.mxu0 0.0
    %4423 = vmatpush.xpose.msra.mxu0 0.0
    %4424 = vmatpush.xpose.msra.mxu0 0.0
    %4425 = vmatpush.xpose.msra.mxu0 0.0
    %4426 = vmatpush.xpose.msra.mxu0 0.0
    %4427 = vmatpush.xpose.msra.mxu0 0.0
    %4428 = vmatpush.xpose.msra.mxu0 0.0
    %4429 = vmatpush.xpose.msra.mxu0 0.0
    %4430 = vmatpush.xpose.msra.mxu0 0.0
    %4431 = vmatpush.xpose.msra.mxu0 0.0
    %4432 = vmatpush.xpose.msra.mxu0 0.0
    %4433 = vmatpush.xpose.msra.mxu0 0.0
    %4434 = vmatpush.xpose.msra.mxu0 0.0
    %v4435 = vand.u32 %v4342, 4294901760
    %4436 = vmatpush.xpose.msra.mxu0 %v4435
    %v4437 = vand.u32 %v4340, 4294901760
    %v4438 = vsub.f32 %v4340, %v4437
    %v4439 = vand.u32 %v4438, 4294901760
    %4440 = vmatmul.f32.gmra.mxu0 %v4439
    %v4441 = vpop.f32.mrf.mxu0
    %v4442 = vadd.f32 %v4418, %v4441
    %4443 = vdwg.mxu0
    %4444 = vmatpush.xpose.msra.mxu0 0.0
    %4445 = vmatpush.xpose.msra.mxu0 0.0
    %4446 = vmatpush.xpose.msra.mxu0 0.0
    %4447 = vmatpush.xpose.msra.mxu0 0.0
    %4448 = vmatpush.xpose.msra.mxu0 0.0
    %4449 = vmatpush.xpose.msra.mxu0 0.0
    %4450 = vmatpush.xpose.msra.mxu0 0.0
    %4451 = vmatpush.xpose.msra.mxu0 0.0
    %4452 = vmatpush.xpose.msra.mxu0 0.0
    %4453 = vmatpush.xpose.msra.mxu0 0.0
    %4454 = vmatpush.xpose.msra.mxu0 0.0
    %4455 = vmatpush.xpose.msra.mxu0 0.0
    %4456 = vmatpush.xpose.msra.mxu0 0.0
    %4457 = vmatpush.xpose.msra.mxu0 0.0
    %4458 = vmatpush.xpose.msra.mxu0 0.0
    %v4459 = vand.u32 %v4342, 4294901760
    %v4460 = vsub.f32 %v4342, %v4459
    %v4461 = vand.u32 %v4460, 4294901760
    %4462 = vmatpush.xpose.msra.mxu0 %v4461
    %v4463 = vand.u32 %v4340, 4294901760
    %4464 = vmatmul.f32.gmra.mxu0 %v4463
    %v4465 = vpop.f32.mrf.mxu0
    %v4466 = vadd.f32 %v4442, %v4465
    %4467 = vdwg.mxu0
    %4468 = vmatpush.xpose.msra.mxu0 0.0
    %4469 = vmatpush.xpose.msra.mxu0 0.0
    %4470 = vmatpush.xpose.msra.mxu0 0.0
    %4471 = vmatpush.xpose.msra.mxu0 0.0
    %4472 = vmatpush.xpose.msra.mxu0 0.0
    %4473 = vmatpush.xpose.msra.mxu0 0.0
    %4474 = vmatpush.xpose.msra.mxu0 0.0
    %4475 = vmatpush.xpose.msra.mxu0 0.0
    %4476 = vmatpush.xpose.msra.mxu0 0.0
    %4477 = vmatpush.xpose.msra.mxu0 0.0
    %4478 = vmatpush.xpose.msra.mxu0 0.0
    %4479 = vmatpush.xpose.msra.mxu0 0.0
    %4480 = vmatpush.xpose.msra.mxu0 0.0
    %4481 = vmatpush.xpose.msra.mxu0 0.0
    %4482 = vmatpush.xpose.msra.mxu0 0.0
    %v4483 = vand.u32 %v4342, 4294901760
    %4484 = vmatpush.xpose.msra.mxu0 %v4483
    %v4485 = vand.u32 %v4340, 4294901760
    %4486 = vmatmul.f32.gmra.mxu0 %v4485
    %v4487 = vpop.f32.mrf.mxu0
    %v4488 = vadd.f32 %v4466, %v4487
    %4489 = vdwg.mxu0
    %4490 = vrot.lane.b32.xlu0 %v4175, 96
    %v4491 = vpop.permute.xlu0 %4490
    %v4492 = vsel %vm352, %v4175, 0
    %v4494 = vsel %vm352, %v4491, 0
    %4496 = vmatpush.xpose.msra.mxu0 0.0
    %4497 = vmatpush.xpose.msra.mxu0 0.0
    %4498 = vmatpush.xpose.msra.mxu0 0.0
    %4499 = vmatpush.xpose.msra.mxu0 0.0
    %4500 = vmatpush.xpose.msra.mxu0 0.0
    %4501 = vmatpush.xpose.msra.mxu0 0.0
    %4502 = vmatpush.xpose.msra.mxu0 0.0
    %4503 = vmatpush.xpose.msra.mxu0 0.0
    %4504 = vmatpush.xpose.msra.mxu0 0.0
    %4505 = vmatpush.xpose.msra.mxu0 0.0
    %4506 = vmatpush.xpose.msra.mxu0 0.0
    %4507 = vmatpush.xpose.msra.mxu0 0.0
    %4508 = vmatpush.xpose.msra.mxu0 0.0
    %4509 = vmatpush.xpose.msra.mxu0 0.0
    %4510 = vmatpush.xpose.msra.mxu0 0.0
    %v4511 = vand.u32 %v4494, 4294901760
    %4512 = vmatpush.xpose.msra.mxu0 %v4511
    %v4513 = vand.u32 %v4492, 4294901760
    %v4514 = vsub.f32 %v4492, %v4513
    %v4515 = vand.u32 %v4514, 4294901760
    %v4516 = vsub.f32 %v4514, %v4515
    %v4517 = vand.u32 %v4516, 4294901760
    %4518 = vmatmul.f32.gmra.mxu0 %v4517
    %v4519 = vpop.f32.mrf.mxu0
    %v4520 = vadd.f32 0.0, %v4519
    %4521 = vdwg.mxu0
    %4522 = vmatpush.xpose.msra.mxu0 0.0
    %4523 = vmatpush.xpose.msra.mxu0 0.0
    %4524 = vmatpush.xpose.msra.mxu0 0.0
    %4525 = vmatpush.xpose.msra.mxu0 0.0
    %4526 = vmatpush.xpose.msra.mxu0 0.0
    %4527 = vmatpush.xpose.msra.mxu0 0.0
    %4528 = vmatpush.xpose.msra.mxu0 0.0
    %4529 = vmatpush.xpose.msra.mxu0 0.0
    %4530 = vmatpush.xpose.msra.mxu0 0.0
    %4531 = vmatpush.xpose.msra.mxu0 0.0
    %4532 = vmatpush.xpose.msra.mxu0 0.0
    %4533 = vmatpush.xpose.msra.mxu0 0.0
    %4534 = vmatpush.xpose.msra.mxu0 0.0
    %4535 = vmatpush.xpose.msra.mxu0 0.0
    %4536 = vmatpush.xpose.msra.mxu0 0.0
    %v4537 = vand.u32 %v4494, 4294901760
    %v4538 = vsub.f32 %v4494, %v4537
    %v4539 = vand.u32 %v4538, 4294901760
    %v4540 = vsub.f32 %v4538, %v4539
    %v4541 = vand.u32 %v4540, 4294901760
    %4542 = vmatpush.xpose.msra.mxu0 %v4541
    %v4543 = vand.u32 %v4492, 4294901760
    %4544 = vmatmul.f32.gmra.mxu0 %v4543
    %v4545 = vpop.f32.mrf.mxu0
    %v4546 = vadd.f32 %v4520, %v4545
    %4547 = vdwg.mxu0
    %4548 = vmatpush.xpose.msra.mxu0 0.0
    %4549 = vmatpush.xpose.msra.mxu0 0.0
    %4550 = vmatpush.xpose.msra.mxu0 0.0
    %4551 = vmatpush.xpose.msra.mxu0 0.0
    %4552 = vmatpush.xpose.msra.mxu0 0.0
    %4553 = vmatpush.xpose.msra.mxu0 0.0
    %4554 = vmatpush.xpose.msra.mxu0 0.0
    %4555 = vmatpush.xpose.msra.mxu0 0.0
    %4556 = vmatpush.xpose.msra.mxu0 0.0
    %4557 = vmatpush.xpose.msra.mxu0 0.0
    %4558 = vmatpush.xpose.msra.mxu0 0.0
    %4559 = vmatpush.xpose.msra.mxu0 0.0
    %4560 = vmatpush.xpose.msra.mxu0 0.0
    %4561 = vmatpush.xpose.msra.mxu0 0.0
    %4562 = vmatpush.xpose.msra.mxu0 0.0
    %v4563 = vand.u32 %v4494, 4294901760
    %v4564 = vsub.f32 %v4494, %v4563
    %4565 = vmatpush.xpose.msra.mxu0 %v4564
    %v4566 = vand.u32 %v4492, 4294901760
    %v4567 = vsub.f32 %v4492, %v4566
    %4568 = vmatmul.f32.gmra.mxu0 %v4567
    %v4569 = vpop.f32.mrf.mxu0
    %v4570 = vadd.f32 %v4546, %v4569
    %4571 = vdwg.mxu0
    %4572 = vmatpush.xpose.msra.mxu0 0.0
    %4573 = vmatpush.xpose.msra.mxu0 0.0
    %4574 = vmatpush.xpose.msra.mxu0 0.0
    %4575 = vmatpush.xpose.msra.mxu0 0.0
    %4576 = vmatpush.xpose.msra.mxu0 0.0
    %4577 = vmatpush.xpose.msra.mxu0 0.0
    %4578 = vmatpush.xpose.msra.mxu0 0.0
    %4579 = vmatpush.xpose.msra.mxu0 0.0
    %4580 = vmatpush.xpose.msra.mxu0 0.0
    %4581 = vmatpush.xpose.msra.mxu0 0.0
    %4582 = vmatpush.xpose.msra.mxu0 0.0
    %4583 = vmatpush.xpose.msra.mxu0 0.0
    %4584 = vmatpush.xpose.msra.mxu0 0.0
    %4585 = vmatpush.xpose.msra.mxu0 0.0
    %4586 = vmatpush.xpose.msra.mxu0 0.0
    %v4587 = vand.u32 %v4494, 4294901760
    %4588 = vmatpush.xpose.msra.mxu0 %v4587
    %v4589 = vand.u32 %v4492, 4294901760
    %v4590 = vsub.f32 %v4492, %v4589
    %v4591 = vand.u32 %v4590, 4294901760
    %4592 = vmatmul.f32.gmra.mxu0 %v4591
    %v4593 = vpop.f32.mrf.mxu0
    %v4594 = vadd.f32 %v4570, %v4593
    %4595 = vdwg.mxu0
    %4596 = vmatpush.xpose.msra.mxu0 0.0
    %4597 = vmatpush.xpose.msra.mxu0 0.0
    %4598 = vmatpush.xpose.msra.mxu0 0.0
    %4599 = vmatpush.xpose.msra.mxu0 0.0
    %4600 = vmatpush.xpose.msra.mxu0 0.0
    %4601 = vmatpush.xpose.msra.mxu0 0.0
    %4602 = vmatpush.xpose.msra.mxu0 0.0
    %4603 = vmatpush.xpose.msra.mxu0 0.0
    %4604 = vmatpush.xpose.msra.mxu0 0.0
    %4605 = vmatpush.xpose.msra.mxu0 0.0
    %4606 = vmatpush.xpose.msra.mxu0 0.0
    %4607 = vmatpush.xpose.msra.mxu0 0.0
    %4608 = vmatpush.xpose.msra.mxu0 0.0
    %4609 = vmatpush.xpose.msra.mxu0 0.0
    %4610 = vmatpush.xpose.msra.mxu0 0.0
    %v4611 = vand.u32 %v4494, 4294901760
    %v4612 = vsub.f32 %v4494, %v4611
    %v4613 = vand.u32 %v4612, 4294901760
    %4614 = vmatpush.xpose.msra.mxu0 %v4613
    %v4615 = vand.u32 %v4492, 4294901760
    %4616 = vmatmul.f32.gmra.mxu0 %v4615
    %v4617 = vpop.f32.mrf.mxu0
    %v4618 = vadd.f32 %v4594, %v4617
    %4619 = vdwg.mxu0
    %4620 = vmatpush.xpose.msra.mxu0 0.0
    %4621 = vmatpush.xpose.msra.mxu0 0.0
    %4622 = vmatpush.xpose.msra.mxu0 0.0
    %4623 = vmatpush.xpose.msra.mxu0 0.0
    %4624 = vmatpush.xpose.msra.mxu0 0.0
    %4625 = vmatpush.xpose.msra.mxu0 0.0
    %4626 = vmatpush.xpose.msra.mxu0 0.0
    %4627 = vmatpush.xpose.msra.mxu0 0.0
    %4628 = vmatpush.xpose.msra.mxu0 0.0
    %4629 = vmatpush.xpose.msra.mxu0 0.0
    %4630 = vmatpush.xpose.msra.mxu0 0.0
    %4631 = vmatpush.xpose.msra.mxu0 0.0
    %4632 = vmatpush.xpose.msra.mxu0 0.0
    %4633 = vmatpush.xpose.msra.mxu0 0.0
    %4634 = vmatpush.xpose.msra.mxu0 0.0
    %v4635 = vand.u32 %v4494, 4294901760
    %4636 = vmatpush.xpose.msra.mxu0 %v4635
    %v4637 = vand.u32 %v4492, 4294901760
    %4638 = vmatmul.f32.gmra.mxu0 %v4637
    %v4639 = vpop.f32.mrf.mxu0
    %v4640 = vadd.f32 %v4618, %v4639
    %4641 = vdwg.mxu0
    %4642 = vrot.lane.b32.xlu0 %v4177, 96
    %v4643 = vpop.permute.xlu0 %4642
    %v4644 = vsel %vm352, %v4177, 0
    %v4646 = vsel %vm352, %v4643, 0
    %4648 = vmatpush.xpose.msra.mxu0 0.0
    %4649 = vmatpush.xpose.msra.mxu0 0.0
    %4650 = vmatpush.xpose.msra.mxu0 0.0
    %4651 = vmatpush.xpose.msra.mxu0 0.0
    %4652 = vmatpush.xpose.msra.mxu0 0.0
    %4653 = vmatpush.xpose.msra.mxu0 0.0
    %4654 = vmatpush.xpose.msra.mxu0 0.0
    %4655 = vmatpush.xpose.msra.mxu0 0.0
    %4656 = vmatpush.xpose.msra.mxu0 0.0
    %4657 = vmatpush.xpose.msra.mxu0 0.0
    %4658 = vmatpush.xpose.msra.mxu0 0.0
    %4659 = vmatpush.xpose.msra.mxu0 0.0
    %4660 = vmatpush.xpose.msra.mxu0 0.0
    %4661 = vmatpush.xpose.msra.mxu0 0.0
    %4662 = vmatpush.xpose.msra.mxu0 0.0
    %v4663 = vand.u32 %v4646, 4294901760
    %4664 = vmatpush.xpose.msra.mxu0 %v4663
    %v4665 = vand.u32 %v4644, 4294901760
    %v4666 = vsub.f32 %v4644, %v4665
    %v4667 = vand.u32 %v4666, 4294901760
    %v4668 = vsub.f32 %v4666, %v4667
    %v4669 = vand.u32 %v4668, 4294901760
    %4670 = vmatmul.f32.gmra.mxu0 %v4669
    %v4671 = vpop.f32.mrf.mxu0
    %v4672 = vadd.f32 0.0, %v4671
    %4673 = vdwg.mxu0
    %4674 = vmatpush.xpose.msra.mxu0 0.0
    %4675 = vmatpush.xpose.msra.mxu0 0.0
    %4676 = vmatpush.xpose.msra.mxu0 0.0
    %4677 = vmatpush.xpose.msra.mxu0 0.0
    %4678 = vmatpush.xpose.msra.mxu0 0.0
    %4679 = vmatpush.xpose.msra.mxu0 0.0
    %4680 = vmatpush.xpose.msra.mxu0 0.0
    %4681 = vmatpush.xpose.msra.mxu0 0.0
    %4682 = vmatpush.xpose.msra.mxu0 0.0
    %4683 = vmatpush.xpose.msra.mxu0 0.0
    %4684 = vmatpush.xpose.msra.mxu0 0.0
    %4685 = vmatpush.xpose.msra.mxu0 0.0
    %4686 = vmatpush.xpose.msra.mxu0 0.0
    %4687 = vmatpush.xpose.msra.mxu0 0.0
    %4688 = vmatpush.xpose.msra.mxu0 0.0
    %v4689 = vand.u32 %v4646, 4294901760
    %v4690 = vsub.f32 %v4646, %v4689
    %v4691 = vand.u32 %v4690, 4294901760
    %v4692 = vsub.f32 %v4690, %v4691
    %v4693 = vand.u32 %v4692, 4294901760
    %4694 = vmatpush.xpose.msra.mxu0 %v4693
    %v4695 = vand.u32 %v4644, 4294901760
    %4696 = vmatmul.f32.gmra.mxu0 %v4695
    %v4697 = vpop.f32.mrf.mxu0
    %v4698 = vadd.f32 %v4672, %v4697
    %4699 = vdwg.mxu0
    %4700 = vmatpush.xpose.msra.mxu0 0.0
    %4701 = vmatpush.xpose.msra.mxu0 0.0
    %4702 = vmatpush.xpose.msra.mxu0 0.0
    %4703 = vmatpush.xpose.msra.mxu0 0.0
    %4704 = vmatpush.xpose.msra.mxu0 0.0
    %4705 = vmatpush.xpose.msra.mxu0 0.0
    %4706 = vmatpush.xpose.msra.mxu0 0.0
    %4707 = vmatpush.xpose.msra.mxu0 0.0
    %4708 = vmatpush.xpose.msra.mxu0 0.0
    %4709 = vmatpush.xpose.msra.mxu0 0.0
    %4710 = vmatpush.xpose.msra.mxu0 0.0
    %4711 = vmatpush.xpose.msra.mxu0 0.0
    %4712 = vmatpush.xpose.msra.mxu0 0.0
    %4713 = vmatpush.xpose.msra.mxu0 0.0
    %4714 = vmatpush.xpose.msra.mxu0 0.0
    %v4715 = vand.u32 %v4646, 4294901760
    %v4716 = vsub.f32 %v4646, %v4715
    %4717 = vmatpush.xpose.msra.mxu0 %v4716
    %v4718 = vand.u32 %v4644, 4294901760
    %v4719 = vsub.f32 %v4644, %v4718
    %4720 = vmatmul.f32.gmra.mxu0 %v4719
    %v4721 = vpop.f32.mrf.mxu0
    %v4722 = vadd.f32 %v4698, %v4721
    %4723 = vdwg.mxu0
    %4724 = vmatpush.xpose.msra.mxu0 0.0
    %4725 = vmatpush.xpose.msra.mxu0 0.0
    %4726 = vmatpush.xpose.msra.mxu0 0.0
    %4727 = vmatpush.xpose.msra.mxu0 0.0
    %4728 = vmatpush.xpose.msra.mxu0 0.0
    %4729 = vmatpush.xpose.msra.mxu0 0.0
    %4730 = vmatpush.xpose.msra.mxu0 0.0
    %4731 = vmatpush.xpose.msra.mxu0 0.0
    %4732 = vmatpush.xpose.msra.mxu0 0.0
    %4733 = vmatpush.xpose.msra.mxu0 0.0
    %4734 = vmatpush.xpose.msra.mxu0 0.0
    %4735 = vmatpush.xpose.msra.mxu0 0.0
    %4736 = vmatpush.xpose.msra.mxu0 0.0
    %4737 = vmatpush.xpose.msra.mxu0 0.0
    %4738 = vmatpush.xpose.msra.mxu0 0.0
    %v4739 = vand.u32 %v4646, 4294901760
    %4740 = vmatpush.xpose.msra.mxu0 %v4739
    %v4741 = vand.u32 %v4644, 4294901760
    %v4742 = vsub.f32 %v4644, %v4741
    %v4743 = vand.u32 %v4742, 4294901760
    %4744 = vmatmul.f32.gmra.mxu0 %v4743
    %v4745 = vpop.f32.mrf.mxu0
    %v4746 = vadd.f32 %v4722, %v4745
    %4747 = vdwg.mxu0
    %4748 = vmatpush.xpose.msra.mxu0 0.0
    %4749 = vmatpush.xpose.msra.mxu0 0.0
    %4750 = vmatpush.xpose.msra.mxu0 0.0
    %4751 = vmatpush.xpose.msra.mxu0 0.0
    %4752 = vmatpush.xpose.msra.mxu0 0.0
    %4753 = vmatpush.xpose.msra.mxu0 0.0
    %4754 = vmatpush.xpose.msra.mxu0 0.0
    %4755 = vmatpush.xpose.msra.mxu0 0.0
    %4756 = vmatpush.xpose.msra.mxu0 0.0
    %4757 = vmatpush.xpose.msra.mxu0 0.0
    %4758 = vmatpush.xpose.msra.mxu0 0.0
    %4759 = vmatpush.xpose.msra.mxu0 0.0
    %4760 = vmatpush.xpose.msra.mxu0 0.0
    %4761 = vmatpush.xpose.msra.mxu0 0.0
    %4762 = vmatpush.xpose.msra.mxu0 0.0
    %v4763 = vand.u32 %v4646, 4294901760
    %v4764 = vsub.f32 %v4646, %v4763
    %v4765 = vand.u32 %v4764, 4294901760
    %4766 = vmatpush.xpose.msra.mxu0 %v4765
    %v4767 = vand.u32 %v4644, 4294901760
    %4768 = vmatmul.f32.gmra.mxu0 %v4767
    %v4769 = vpop.f32.mrf.mxu0
    %v4770 = vadd.f32 %v4746, %v4769
    %4771 = vdwg.mxu0
    %4772 = vmatpush.xpose.msra.mxu0 0.0
    %4773 = vmatpush.xpose.msra.mxu0 0.0
    %4774 = vmatpush.xpose.msra.mxu0 0.0
    %4775 = vmatpush.xpose.msra.mxu0 0.0
    %4776 = vmatpush.xpose.msra.mxu0 0.0
    %4777 = vmatpush.xpose.msra.mxu0 0.0
    %4778 = vmatpush.xpose.msra.mxu0 0.0
    %4779 = vmatpush.xpose.msra.mxu0 0.0
    %4780 = vmatpush.xpose.msra.mxu0 0.0
    %4781 = vmatpush.xpose.msra.mxu0 0.0
    %4782 = vmatpush.xpose.msra.mxu0 0.0
    %4783 = vmatpush.xpose.msra.mxu0 0.0
    %4784 = vmatpush.xpose.msra.mxu0 0.0
    %4785 = vmatpush.xpose.msra.mxu0 0.0
    %4786 = vmatpush.xpose.msra.mxu0 0.0
    %v4787 = vand.u32 %v4646, 4294901760
    %4788 = vmatpush.xpose.msra.mxu0 %v4787
    %v4789 = vand.u32 %v4644, 4294901760
    %4790 = vmatmul.f32.gmra.mxu0 %v4789
    %v4791 = vpop.f32.mrf.mxu0
    %v4792 = vadd.f32 %v4770, %v4791
    %4793 = vdwg.mxu0
    %4794 = vrot.lane.b32.xlu0 %v4179, 96
    %v4795 = vpop.permute.xlu0 %4794
    %v4796 = vsel %vm352, %v4179, 0
    %v4798 = vsel %vm352, %v4795, 0
    %4800 = vmatpush.xpose.msra.mxu0 0.0
    %4801 = vmatpush.xpose.msra.mxu0 0.0
    %4802 = vmatpush.xpose.msra.mxu0 0.0
    %4803 = vmatpush.xpose.msra.mxu0 0.0
    %4804 = vmatpush.xpose.msra.mxu0 0.0
    %4805 = vmatpush.xpose.msra.mxu0 0.0
    %4806 = vmatpush.xpose.msra.mxu0 0.0
    %4807 = vmatpush.xpose.msra.mxu0 0.0
    %4808 = vmatpush.xpose.msra.mxu0 0.0
    %4809 = vmatpush.xpose.msra.mxu0 0.0
    %4810 = vmatpush.xpose.msra.mxu0 0.0
    %4811 = vmatpush.xpose.msra.mxu0 0.0
    %4812 = vmatpush.xpose.msra.mxu0 0.0
    %4813 = vmatpush.xpose.msra.mxu0 0.0
    %4814 = vmatpush.xpose.msra.mxu0 0.0
    %v4815 = vand.u32 %v4798, 4294901760
    %4816 = vmatpush.xpose.msra.mxu0 %v4815
    %v4817 = vand.u32 %v4796, 4294901760
    %v4818 = vsub.f32 %v4796, %v4817
    %v4819 = vand.u32 %v4818, 4294901760
    %v4820 = vsub.f32 %v4818, %v4819
    %v4821 = vand.u32 %v4820, 4294901760
    %4822 = vmatmul.f32.gmra.mxu0 %v4821
    %v4823 = vpop.f32.mrf.mxu0
    %v4824 = vadd.f32 0.0, %v4823
    %4825 = vdwg.mxu0
    %4826 = vmatpush.xpose.msra.mxu0 0.0
    %4827 = vmatpush.xpose.msra.mxu0 0.0
    %4828 = vmatpush.xpose.msra.mxu0 0.0
    %4829 = vmatpush.xpose.msra.mxu0 0.0
    %4830 = vmatpush.xpose.msra.mxu0 0.0
    %4831 = vmatpush.xpose.msra.mxu0 0.0
    %4832 = vmatpush.xpose.msra.mxu0 0.0
    %4833 = vmatpush.xpose.msra.mxu0 0.0
    %4834 = vmatpush.xpose.msra.mxu0 0.0
    %4835 = vmatpush.xpose.msra.mxu0 0.0
    %4836 = vmatpush.xpose.msra.mxu0 0.0
    %4837 = vmatpush.xpose.msra.mxu0 0.0
    %4838 = vmatpush.xpose.msra.mxu0 0.0
    %4839 = vmatpush.xpose.msra.mxu0 0.0
    %4840 = vmatpush.xpose.msra.mxu0 0.0
    %v4841 = vand.u32 %v4798, 4294901760
    %v4842 = vsub.f32 %v4798, %v4841
    %v4843 = vand.u32 %v4842, 4294901760
    %v4844 = vsub.f32 %v4842, %v4843
    %v4845 = vand.u32 %v4844, 4294901760
    %4846 = vmatpush.xpose.msra.mxu0 %v4845
    %v4847 = vand.u32 %v4796, 4294901760
    %4848 = vmatmul.f32.gmra.mxu0 %v4847
    %v4849 = vpop.f32.mrf.mxu0
    %v4850 = vadd.f32 %v4824, %v4849
    %4851 = vdwg.mxu0
    %4852 = vmatpush.xpose.msra.mxu0 0.0
    %4853 = vmatpush.xpose.msra.mxu0 0.0
    %4854 = vmatpush.xpose.msra.mxu0 0.0
    %4855 = vmatpush.xpose.msra.mxu0 0.0
    %4856 = vmatpush.xpose.msra.mxu0 0.0
    %4857 = vmatpush.xpose.msra.mxu0 0.0
    %4858 = vmatpush.xpose.msra.mxu0 0.0
    %4859 = vmatpush.xpose.msra.mxu0 0.0
    %4860 = vmatpush.xpose.msra.mxu0 0.0
    %4861 = vmatpush.xpose.msra.mxu0 0.0
    %4862 = vmatpush.xpose.msra.mxu0 0.0
    %4863 = vmatpush.xpose.msra.mxu0 0.0
    %4864 = vmatpush.xpose.msra.mxu0 0.0
    %4865 = vmatpush.xpose.msra.mxu0 0.0
    %4866 = vmatpush.xpose.msra.mxu0 0.0
    %v4867 = vand.u32 %v4798, 4294901760
    %v4868 = vsub.f32 %v4798, %v4867
    %4869 = vmatpush.xpose.msra.mxu0 %v4868
    %v4870 = vand.u32 %v4796, 4294901760
    %v4871 = vsub.f32 %v4796, %v4870
    %4872 = vmatmul.f32.gmra.mxu0 %v4871
    %v4873 = vpop.f32.mrf.mxu0
    %v4874 = vadd.f32 %v4850, %v4873
    %4875 = vdwg.mxu0
    %4876 = vmatpush.xpose.msra.mxu0 0.0
    %4877 = vmatpush.xpose.msra.mxu0 0.0
    %4878 = vmatpush.xpose.msra.mxu0 0.0
    %4879 = vmatpush.xpose.msra.mxu0 0.0
    %4880 = vmatpush.xpose.msra.mxu0 0.0
    %4881 = vmatpush.xpose.msra.mxu0 0.0
    %4882 = vmatpush.xpose.msra.mxu0 0.0
    %4883 = vmatpush.xpose.msra.mxu0 0.0
    %4884 = vmatpush.xpose.msra.mxu0 0.0
    %4885 = vmatpush.xpose.msra.mxu0 0.0
    %4886 = vmatpush.xpose.msra.mxu0 0.0
    %4887 = vmatpush.xpose.msra.mxu0 0.0
    %4888 = vmatpush.xpose.msra.mxu0 0.0
    %4889 = vmatpush.xpose.msra.mxu0 0.0
    %4890 = vmatpush.xpose.msra.mxu0 0.0
    %v4891 = vand.u32 %v4798, 4294901760
    %4892 = vmatpush.xpose.msra.mxu0 %v4891
    %v4893 = vand.u32 %v4796, 4294901760
    %v4894 = vsub.f32 %v4796, %v4893
    %v4895 = vand.u32 %v4894, 4294901760
    %4896 = vmatmul.f32.gmra.mxu0 %v4895
    %v4897 = vpop.f32.mrf.mxu0
    %v4898 = vadd.f32 %v4874, %v4897
    %4899 = vdwg.mxu0
    %4900 = vmatpush.xpose.msra.mxu0 0.0
    %4901 = vmatpush.xpose.msra.mxu0 0.0
    %4902 = vmatpush.xpose.msra.mxu0 0.0
    %4903 = vmatpush.xpose.msra.mxu0 0.0
    %4904 = vmatpush.xpose.msra.mxu0 0.0
    %4905 = vmatpush.xpose.msra.mxu0 0.0
    %4906 = vmatpush.xpose.msra.mxu0 0.0
    %4907 = vmatpush.xpose.msra.mxu0 0.0
    %4908 = vmatpush.xpose.msra.mxu0 0.0
    %4909 = vmatpush.xpose.msra.mxu0 0.0
    %4910 = vmatpush.xpose.msra.mxu0 0.0
    %4911 = vmatpush.xpose.msra.mxu0 0.0
    %4912 = vmatpush.xpose.msra.mxu0 0.0
    %4913 = vmatpush.xpose.msra.mxu0 0.0
    %4914 = vmatpush.xpose.msra.mxu0 0.0
    %v4915 = vand.u32 %v4798, 4294901760
    %v4916 = vsub.f32 %v4798, %v4915
    %v4917 = vand.u32 %v4916, 4294901760
    %4918 = vmatpush.xpose.msra.mxu0 %v4917
    %v4919 = vand.u32 %v4796, 4294901760
    %4920 = vmatmul.f32.gmra.mxu0 %v4919
    %v4921 = vpop.f32.mrf.mxu0
    %v4922 = vadd.f32 %v4898, %v4921
    %4923 = vdwg.mxu0
    %4924 = vmatpush.xpose.msra.mxu0 0.0
    %4925 = vmatpush.xpose.msra.mxu0 0.0
    %4926 = vmatpush.xpose.msra.mxu0 0.0
    %4927 = vmatpush.xpose.msra.mxu0 0.0
    %4928 = vmatpush.xpose.msra.mxu0 0.0
    %4929 = vmatpush.xpose.msra.mxu0 0.0
    %4930 = vmatpush.xpose.msra.mxu0 0.0
    %4931 = vmatpush.xpose.msra.mxu0 0.0
    %4932 = vmatpush.xpose.msra.mxu0 0.0
    %4933 = vmatpush.xpose.msra.mxu0 0.0
    %4934 = vmatpush.xpose.msra.mxu0 0.0
    %4935 = vmatpush.xpose.msra.mxu0 0.0
    %4936 = vmatpush.xpose.msra.mxu0 0.0
    %4937 = vmatpush.xpose.msra.mxu0 0.0
    %4938 = vmatpush.xpose.msra.mxu0 0.0
    %v4939 = vand.u32 %v4798, 4294901760
    %4940 = vmatpush.xpose.msra.mxu0 %v4939
    %v4941 = vand.u32 %v4796, 4294901760
    %4942 = vmatmul.f32.gmra.mxu0 %v4941
    %v4943 = vpop.f32.mrf.mxu0
    %v4944 = vadd.f32 %v4922, %v4943
    %4945 = vdwg.mxu0
    %4946 = vrot.lane.b32.xlu0 %v4181, 96
    %v4947 = vpop.permute.xlu0 %4946
    %v4948 = vsel %vm352, %v4181, 0
    %v4950 = vsel %vm352, %v4947, 0
    %4952 = vmatpush.xpose.msra.mxu0 0.0
    %4953 = vmatpush.xpose.msra.mxu0 0.0
    %4954 = vmatpush.xpose.msra.mxu0 0.0
    %4955 = vmatpush.xpose.msra.mxu0 0.0
    %4956 = vmatpush.xpose.msra.mxu0 0.0
    %4957 = vmatpush.xpose.msra.mxu0 0.0
    %4958 = vmatpush.xpose.msra.mxu0 0.0
    %4959 = vmatpush.xpose.msra.mxu0 0.0
    %4960 = vmatpush.xpose.msra.mxu0 0.0
    %4961 = vmatpush.xpose.msra.mxu0 0.0
    %4962 = vmatpush.xpose.msra.mxu0 0.0
    %4963 = vmatpush.xpose.msra.mxu0 0.0
    %4964 = vmatpush.xpose.msra.mxu0 0.0
    %4965 = vmatpush.xpose.msra.mxu0 0.0
    %4966 = vmatpush.xpose.msra.mxu0 0.0
    %v4967 = vand.u32 %v4950, 4294901760
    %4968 = vmatpush.xpose.msra.mxu0 %v4967
    %v4969 = vand.u32 %v4948, 4294901760
    %v4970 = vsub.f32 %v4948, %v4969
    %v4971 = vand.u32 %v4970, 4294901760
    %v4972 = vsub.f32 %v4970, %v4971
    %v4973 = vand.u32 %v4972, 4294901760
    %4974 = vmatmul.f32.gmra.mxu0 %v4973
    %v4975 = vpop.f32.mrf.mxu0
    %v4976 = vadd.f32 0.0, %v4975
    %4977 = vdwg.mxu0
    %4978 = vmatpush.xpose.msra.mxu0 0.0
    %4979 = vmatpush.xpose.msra.mxu0 0.0
    %4980 = vmatpush.xpose.msra.mxu0 0.0
    %4981 = vmatpush.xpose.msra.mxu0 0.0
    %4982 = vmatpush.xpose.msra.mxu0 0.0
    %4983 = vmatpush.xpose.msra.mxu0 0.0
    %4984 = vmatpush.xpose.msra.mxu0 0.0
    %4985 = vmatpush.xpose.msra.mxu0 0.0
    %4986 = vmatpush.xpose.msra.mxu0 0.0
    %4987 = vmatpush.xpose.msra.mxu0 0.0
    %4988 = vmatpush.xpose.msra.mxu0 0.0
    %4989 = vmatpush.xpose.msra.mxu0 0.0
    %4990 = vmatpush.xpose.msra.mxu0 0.0
    %4991 = vmatpush.xpose.msra.mxu0 0.0
    %4992 = vmatpush.xpose.msra.mxu0 0.0
    %v4993 = vand.u32 %v4950, 4294901760
    %v4994 = vsub.f32 %v4950, %v4993
    %v4995 = vand.u32 %v4994, 4294901760
    %v4996 = vsub.f32 %v4994, %v4995
    %v4997 = vand.u32 %v4996, 4294901760
    %4998 = vmatpush.xpose.msra.mxu0 %v4997
    %v4999 = vand.u32 %v4948, 4294901760
    %5000 = vmatmul.f32.gmra.mxu0 %v4999
    %v5001 = vpop.f32.mrf.mxu0
    %v5002 = vadd.f32 %v4976, %v5001
    %5003 = vdwg.mxu0
    %5004 = vmatpush.xpose.msra.mxu0 0.0
    %5005 = vmatpush.xpose.msra.mxu0 0.0
    %5006 = vmatpush.xpose.msra.mxu0 0.0
    %5007 = vmatpush.xpose.msra.mxu0 0.0
    %5008 = vmatpush.xpose.msra.mxu0 0.0
    %5009 = vmatpush.xpose.msra.mxu0 0.0
    %5010 = vmatpush.xpose.msra.mxu0 0.0
    %5011 = vmatpush.xpose.msra.mxu0 0.0
    %5012 = vmatpush.xpose.msra.mxu0 0.0
    %5013 = vmatpush.xpose.msra.mxu0 0.0
    %5014 = vmatpush.xpose.msra.mxu0 0.0
    %5015 = vmatpush.xpose.msra.mxu0 0.0
    %5016 = vmatpush.xpose.msra.mxu0 0.0
    %5017 = vmatpush.xpose.msra.mxu0 0.0
    %5018 = vmatpush.xpose.msra.mxu0 0.0
    %v5019 = vand.u32 %v4950, 4294901760
    %v5020 = vsub.f32 %v4950, %v5019
    %5021 = vmatpush.xpose.msra.mxu0 %v5020
    %v5022 = vand.u32 %v4948, 4294901760
    %v5023 = vsub.f32 %v4948, %v5022
    %5024 = vmatmul.f32.gmra.mxu0 %v5023
    %v5025 = vpop.f32.mrf.mxu0
    %v5026 = vadd.f32 %v5002, %v5025
    %5027 = vdwg.mxu0
    %5028 = vmatpush.xpose.msra.mxu0 0.0
    %5029 = vmatpush.xpose.msra.mxu0 0.0
    %5030 = vmatpush.xpose.msra.mxu0 0.0
    %5031 = vmatpush.xpose.msra.mxu0 0.0
    %5032 = vmatpush.xpose.msra.mxu0 0.0
    %5033 = vmatpush.xpose.msra.mxu0 0.0
    %5034 = vmatpush.xpose.msra.mxu0 0.0
    %5035 = vmatpush.xpose.msra.mxu0 0.0
    %5036 = vmatpush.xpose.msra.mxu0 0.0
    %5037 = vmatpush.xpose.msra.mxu0 0.0
    %5038 = vmatpush.xpose.msra.mxu0 0.0
    %5039 = vmatpush.xpose.msra.mxu0 0.0
    %5040 = vmatpush.xpose.msra.mxu0 0.0
    %5041 = vmatpush.xpose.msra.mxu0 0.0
    %5042 = vmatpush.xpose.msra.mxu0 0.0
    %v5043 = vand.u32 %v4950, 4294901760
    %5044 = vmatpush.xpose.msra.mxu0 %v5043
    %v5045 = vand.u32 %v4948, 4294901760
    %v5046 = vsub.f32 %v4948, %v5045
    %v5047 = vand.u32 %v5046, 4294901760
    %5048 = vmatmul.f32.gmra.mxu0 %v5047
    %v5049 = vpop.f32.mrf.mxu0
    %v5050 = vadd.f32 %v5026, %v5049
    %5051 = vdwg.mxu0
    %5052 = vmatpush.xpose.msra.mxu0 0.0
    %5053 = vmatpush.xpose.msra.mxu0 0.0
    %5054 = vmatpush.xpose.msra.mxu0 0.0
    %5055 = vmatpush.xpose.msra.mxu0 0.0
    %5056 = vmatpush.xpose.msra.mxu0 0.0
    %5057 = vmatpush.xpose.msra.mxu0 0.0
    %5058 = vmatpush.xpose.msra.mxu0 0.0
    %5059 = vmatpush.xpose.msra.mxu0 0.0
    %5060 = vmatpush.xpose.msra.mxu0 0.0
    %5061 = vmatpush.xpose.msra.mxu0 0.0
    %5062 = vmatpush.xpose.msra.mxu0 0.0
    %5063 = vmatpush.xpose.msra.mxu0 0.0
    %5064 = vmatpush.xpose.msra.mxu0 0.0
    %5065 = vmatpush.xpose.msra.mxu0 0.0
    %5066 = vmatpush.xpose.msra.mxu0 0.0
    %v5067 = vand.u32 %v4950, 4294901760
    %v5068 = vsub.f32 %v4950, %v5067
    %v5069 = vand.u32 %v5068, 4294901760
    %5070 = vmatpush.xpose.msra.mxu0 %v5069
    %v5071 = vand.u32 %v4948, 4294901760
    %5072 = vmatmul.f32.gmra.mxu0 %v5071
    %v5073 = vpop.f32.mrf.mxu0
    %v5074 = vadd.f32 %v5050, %v5073
    %5075 = vdwg.mxu0
    %5076 = vmatpush.xpose.msra.mxu0 0.0
    %5077 = vmatpush.xpose.msra.mxu0 0.0
    %5078 = vmatpush.xpose.msra.mxu0 0.0
    %5079 = vmatpush.xpose.msra.mxu0 0.0
    %5080 = vmatpush.xpose.msra.mxu0 0.0
    %5081 = vmatpush.xpose.msra.mxu0 0.0
    %5082 = vmatpush.xpose.msra.mxu0 0.0
    %5083 = vmatpush.xpose.msra.mxu0 0.0
    %5084 = vmatpush.xpose.msra.mxu0 0.0
    %5085 = vmatpush.xpose.msra.mxu0 0.0
    %5086 = vmatpush.xpose.msra.mxu0 0.0
    %5087 = vmatpush.xpose.msra.mxu0 0.0
    %5088 = vmatpush.xpose.msra.mxu0 0.0
    %5089 = vmatpush.xpose.msra.mxu0 0.0
    %5090 = vmatpush.xpose.msra.mxu0 0.0
    %v5091 = vand.u32 %v4950, 4294901760
    %5092 = vmatpush.xpose.msra.mxu0 %v5091
    %v5093 = vand.u32 %v4948, 4294901760
    %5094 = vmatmul.f32.gmra.mxu0 %v5093
    %v5095 = vpop.f32.mrf.mxu0
    %v5096 = vadd.f32 %v5074, %v5095
    %5097 = vdwg.mxu0
    %5098 = vrot.lane.b32.xlu0 %v4183, 96
    %v5099 = vpop.permute.xlu0 %5098
    %v5100 = vsel %vm352, %v4183, 0
    %v5102 = vsel %vm352, %v5099, 0
    %5104 = vmatpush.xpose.msra.mxu0 0.0
    %5105 = vmatpush.xpose.msra.mxu0 0.0
    %5106 = vmatpush.xpose.msra.mxu0 0.0
    %5107 = vmatpush.xpose.msra.mxu0 0.0
    %5108 = vmatpush.xpose.msra.mxu0 0.0
    %5109 = vmatpush.xpose.msra.mxu0 0.0
    %5110 = vmatpush.xpose.msra.mxu0 0.0
    %5111 = vmatpush.xpose.msra.mxu0 0.0
    %5112 = vmatpush.xpose.msra.mxu0 0.0
    %5113 = vmatpush.xpose.msra.mxu0 0.0
    %5114 = vmatpush.xpose.msra.mxu0 0.0
    %5115 = vmatpush.xpose.msra.mxu0 0.0
    %5116 = vmatpush.xpose.msra.mxu0 0.0
    %5117 = vmatpush.xpose.msra.mxu0 0.0
    %5118 = vmatpush.xpose.msra.mxu0 0.0
    %v5119 = vand.u32 %v5102, 4294901760
    %5120 = vmatpush.xpose.msra.mxu0 %v5119
    %v5121 = vand.u32 %v5100, 4294901760
    %v5122 = vsub.f32 %v5100, %v5121
    %v5123 = vand.u32 %v5122, 4294901760
    %v5124 = vsub.f32 %v5122, %v5123
    %v5125 = vand.u32 %v5124, 4294901760
    %5126 = vmatmul.f32.gmra.mxu0 %v5125
    %v5127 = vpop.f32.mrf.mxu0
    %v5128 = vadd.f32 0.0, %v5127
    %5129 = vdwg.mxu0
    %5130 = vmatpush.xpose.msra.mxu0 0.0
    %5131 = vmatpush.xpose.msra.mxu0 0.0
    %5132 = vmatpush.xpose.msra.mxu0 0.0
    %5133 = vmatpush.xpose.msra.mxu0 0.0
    %5134 = vmatpush.xpose.msra.mxu0 0.0
    %5135 = vmatpush.xpose.msra.mxu0 0.0
    %5136 = vmatpush.xpose.msra.mxu0 0.0
    %5137 = vmatpush.xpose.msra.mxu0 0.0
    %5138 = vmatpush.xpose.msra.mxu0 0.0
    %5139 = vmatpush.xpose.msra.mxu0 0.0
    %5140 = vmatpush.xpose.msra.mxu0 0.0
    %5141 = vmatpush.xpose.msra.mxu0 0.0
    %5142 = vmatpush.xpose.msra.mxu0 0.0
    %5143 = vmatpush.xpose.msra.mxu0 0.0
    %5144 = vmatpush.xpose.msra.mxu0 0.0
    %v5145 = vand.u32 %v5102, 4294901760
    %v5146 = vsub.f32 %v5102, %v5145
    %v5147 = vand.u32 %v5146, 4294901760
    %v5148 = vsub.f32 %v5146, %v5147
    %v5149 = vand.u32 %v5148, 4294901760
    %5150 = vmatpush.xpose.msra.mxu0 %v5149
    %v5151 = vand.u32 %v5100, 4294901760
    %5152 = vmatmul.f32.gmra.mxu0 %v5151
    %v5153 = vpop.f32.mrf.mxu0
    %v5154 = vadd.f32 %v5128, %v5153
    %5155 = vdwg.mxu0
    %5156 = vmatpush.xpose.msra.mxu0 0.0
    %5157 = vmatpush.xpose.msra.mxu0 0.0
    %5158 = vmatpush.xpose.msra.mxu0 0.0
    %5159 = vmatpush.xpose.msra.mxu0 0.0
    %5160 = vmatpush.xpose.msra.mxu0 0.0
    %5161 = vmatpush.xpose.msra.mxu0 0.0
    %5162 = vmatpush.xpose.msra.mxu0 0.0
    %5163 = vmatpush.xpose.msra.mxu0 0.0
    %5164 = vmatpush.xpose.msra.mxu0 0.0
    %5165 = vmatpush.xpose.msra.mxu0 0.0
    %5166 = vmatpush.xpose.msra.mxu0 0.0
    %5167 = vmatpush.xpose.msra.mxu0 0.0
    %5168 = vmatpush.xpose.msra.mxu0 0.0
    %5169 = vmatpush.xpose.msra.mxu0 0.0
    %5170 = vmatpush.xpose.msra.mxu0 0.0
    %v5171 = vand.u32 %v5102, 4294901760
    %v5172 = vsub.f32 %v5102, %v5171
    %5173 = vmatpush.xpose.msra.mxu0 %v5172
    %v5174 = vand.u32 %v5100, 4294901760
    %v5175 = vsub.f32 %v5100, %v5174
    %5176 = vmatmul.f32.gmra.mxu0 %v5175
    %v5177 = vpop.f32.mrf.mxu0
    %v5178 = vadd.f32 %v5154, %v5177
    %5179 = vdwg.mxu0
    %5180 = vmatpush.xpose.msra.mxu0 0.0
    %5181 = vmatpush.xpose.msra.mxu0 0.0
    %5182 = vmatpush.xpose.msra.mxu0 0.0
    %5183 = vmatpush.xpose.msra.mxu0 0.0
    %5184 = vmatpush.xpose.msra.mxu0 0.0
    %5185 = vmatpush.xpose.msra.mxu0 0.0
    %5186 = vmatpush.xpose.msra.mxu0 0.0
    %5187 = vmatpush.xpose.msra.mxu0 0.0
    %5188 = vmatpush.xpose.msra.mxu0 0.0
    %5189 = vmatpush.xpose.msra.mxu0 0.0
    %5190 = vmatpush.xpose.msra.mxu0 0.0
    %5191 = vmatpush.xpose.msra.mxu0 0.0
    %5192 = vmatpush.xpose.msra.mxu0 0.0
    %5193 = vmatpush.xpose.msra.mxu0 0.0
    %5194 = vmatpush.xpose.msra.mxu0 0.0
    %v5195 = vand.u32 %v5102, 4294901760
    %5196 = vmatpush.xpose.msra.mxu0 %v5195
    %v5197 = vand.u32 %v5100, 4294901760
    %v5198 = vsub.f32 %v5100, %v5197
    %v5199 = vand.u32 %v5198, 4294901760
    %5200 = vmatmul.f32.gmra.mxu0 %v5199
    %v5201 = vpop.f32.mrf.mxu0
    %v5202 = vadd.f32 %v5178, %v5201
    %5203 = vdwg.mxu0
    %5204 = vmatpush.xpose.msra.mxu0 0.0
    %5205 = vmatpush.xpose.msra.mxu0 0.0
    %5206 = vmatpush.xpose.msra.mxu0 0.0
    %5207 = vmatpush.xpose.msra.mxu0 0.0
    %5208 = vmatpush.xpose.msra.mxu0 0.0
    %5209 = vmatpush.xpose.msra.mxu0 0.0
    %5210 = vmatpush.xpose.msra.mxu0 0.0
    %5211 = vmatpush.xpose.msra.mxu0 0.0
    %5212 = vmatpush.xpose.msra.mxu0 0.0
    %5213 = vmatpush.xpose.msra.mxu0 0.0
    %5214 = vmatpush.xpose.msra.mxu0 0.0
    %5215 = vmatpush.xpose.msra.mxu0 0.0
    %5216 = vmatpush.xpose.msra.mxu0 0.0
    %5217 = vmatpush.xpose.msra.mxu0 0.0
    %5218 = vmatpush.xpose.msra.mxu0 0.0
    %v5219 = vand.u32 %v5102, 4294901760
    %v5220 = vsub.f32 %v5102, %v5219
    %v5221 = vand.u32 %v5220, 4294901760
    %5222 = vmatpush.xpose.msra.mxu0 %v5221
    %v5223 = vand.u32 %v5100, 4294901760
    %5224 = vmatmul.f32.gmra.mxu0 %v5223
    %v5225 = vpop.f32.mrf.mxu0
    %v5226 = vadd.f32 %v5202, %v5225
    %5227 = vdwg.mxu0
    %5228 = vmatpush.xpose.msra.mxu0 0.0
    %5229 = vmatpush.xpose.msra.mxu0 0.0
    %5230 = vmatpush.xpose.msra.mxu0 0.0
    %5231 = vmatpush.xpose.msra.mxu0 0.0
    %5232 = vmatpush.xpose.msra.mxu0 0.0
    %5233 = vmatpush.xpose.msra.mxu0 0.0
    %5234 = vmatpush.xpose.msra.mxu0 0.0
    %5235 = vmatpush.xpose.msra.mxu0 0.0
    %5236 = vmatpush.xpose.msra.mxu0 0.0
    %5237 = vmatpush.xpose.msra.mxu0 0.0
    %5238 = vmatpush.xpose.msra.mxu0 0.0
    %5239 = vmatpush.xpose.msra.mxu0 0.0
    %5240 = vmatpush.xpose.msra.mxu0 0.0
    %5241 = vmatpush.xpose.msra.mxu0 0.0
    %5242 = vmatpush.xpose.msra.mxu0 0.0
    %v5243 = vand.u32 %v5102, 4294901760
    %5244 = vmatpush.xpose.msra.mxu0 %v5243
    %v5245 = vand.u32 %v5100, 4294901760
    %5246 = vmatmul.f32.gmra.mxu0 %v5245
    %v5247 = vpop.f32.mrf.mxu0
    %v5248 = vadd.f32 %v5226, %v5247
    %5249 = vdwg.mxu0
    %5250 = vrot.lane.b32.xlu0 %v4185, 96
    %v5251 = vpop.permute.xlu0 %5250
    %v5252 = vsel %vm352, %v4185, 0
    %v5254 = vsel %vm352, %v5251, 0
    %5256 = vmatpush.xpose.msra.mxu0 0.0
    %5257 = vmatpush.xpose.msra.mxu0 0.0
    %5258 = vmatpush.xpose.msra.mxu0 0.0
    %5259 = vmatpush.xpose.msra.mxu0 0.0
    %5260 = vmatpush.xpose.msra.mxu0 0.0
    %5261 = vmatpush.xpose.msra.mxu0 0.0
    %5262 = vmatpush.xpose.msra.mxu0 0.0
    %5263 = vmatpush.xpose.msra.mxu0 0.0
    %5264 = vmatpush.xpose.msra.mxu0 0.0
    %5265 = vmatpush.xpose.msra.mxu0 0.0
    %5266 = vmatpush.xpose.msra.mxu0 0.0
    %5267 = vmatpush.xpose.msra.mxu0 0.0
    %5268 = vmatpush.xpose.msra.mxu0 0.0
    %5269 = vmatpush.xpose.msra.mxu0 0.0
    %5270 = vmatpush.xpose.msra.mxu0 0.0
    %v5271 = vand.u32 %v5254, 4294901760
    %5272 = vmatpush.xpose.msra.mxu0 %v5271
    %v5273 = vand.u32 %v5252, 4294901760
    %v5274 = vsub.f32 %v5252, %v5273
    %v5275 = vand.u32 %v5274, 4294901760
    %v5276 = vsub.f32 %v5274, %v5275
    %v5277 = vand.u32 %v5276, 4294901760
    %5278 = vmatmul.f32.gmra.mxu0 %v5277
    %v5279 = vpop.f32.mrf.mxu0
    %v5280 = vadd.f32 0.0, %v5279
    %5281 = vdwg.mxu0
    %5282 = vmatpush.xpose.msra.mxu0 0.0
    %5283 = vmatpush.xpose.msra.mxu0 0.0
    %5284 = vmatpush.xpose.msra.mxu0 0.0
    %5285 = vmatpush.xpose.msra.mxu0 0.0
    %5286 = vmatpush.xpose.msra.mxu0 0.0
    %5287 = vmatpush.xpose.msra.mxu0 0.0
    %5288 = vmatpush.xpose.msra.mxu0 0.0
    %5289 = vmatpush.xpose.msra.mxu0 0.0
    %5290 = vmatpush.xpose.msra.mxu0 0.0
    %5291 = vmatpush.xpose.msra.mxu0 0.0
    %5292 = vmatpush.xpose.msra.mxu0 0.0
    %5293 = vmatpush.xpose.msra.mxu0 0.0
    %5294 = vmatpush.xpose.msra.mxu0 0.0
    %5295 = vmatpush.xpose.msra.mxu0 0.0
    %5296 = vmatpush.xpose.msra.mxu0 0.0
    %v5297 = vand.u32 %v5254, 4294901760
    %v5298 = vsub.f32 %v5254, %v5297
    %v5299 = vand.u32 %v5298, 4294901760
    %v5300 = vsub.f32 %v5298, %v5299
    %v5301 = vand.u32 %v5300, 4294901760
    %5302 = vmatpush.xpose.msra.mxu0 %v5301
    %v5303 = vand.u32 %v5252, 4294901760
    %5304 = vmatmul.f32.gmra.mxu0 %v5303
    %v5305 = vpop.f32.mrf.mxu0
    %v5306 = vadd.f32 %v5280, %v5305
    %5307 = vdwg.mxu0
    %5308 = vmatpush.xpose.msra.mxu0 0.0
    %5309 = vmatpush.xpose.msra.mxu0 0.0
    %5310 = vmatpush.xpose.msra.mxu0 0.0
    %5311 = vmatpush.xpose.msra.mxu0 0.0
    %5312 = vmatpush.xpose.msra.mxu0 0.0
    %5313 = vmatpush.xpose.msra.mxu0 0.0
    %5314 = vmatpush.xpose.msra.mxu0 0.0
    %5315 = vmatpush.xpose.msra.mxu0 0.0
    %5316 = vmatpush.xpose.msra.mxu0 0.0
    %5317 = vmatpush.xpose.msra.mxu0 0.0
    %5318 = vmatpush.xpose.msra.mxu0 0.0
    %5319 = vmatpush.xpose.msra.mxu0 0.0
    %5320 = vmatpush.xpose.msra.mxu0 0.0
    %5321 = vmatpush.xpose.msra.mxu0 0.0
    %5322 = vmatpush.xpose.msra.mxu0 0.0
    %v5323 = vand.u32 %v5254, 4294901760
    %v5324 = vsub.f32 %v5254, %v5323
    %5325 = vmatpush.xpose.msra.mxu0 %v5324
    %v5326 = vand.u32 %v5252, 4294901760
    %v5327 = vsub.f32 %v5252, %v5326
    %5328 = vmatmul.f32.gmra.mxu0 %v5327
    %v5329 = vpop.f32.mrf.mxu0
    %v5330 = vadd.f32 %v5306, %v5329
    %5331 = vdwg.mxu0
    %5332 = vmatpush.xpose.msra.mxu0 0.0
    %5333 = vmatpush.xpose.msra.mxu0 0.0
    %5334 = vmatpush.xpose.msra.mxu0 0.0
    %5335 = vmatpush.xpose.msra.mxu0 0.0
    %5336 = vmatpush.xpose.msra.mxu0 0.0
    %5337 = vmatpush.xpose.msra.mxu0 0.0
    %5338 = vmatpush.xpose.msra.mxu0 0.0
    %5339 = vmatpush.xpose.msra.mxu0 0.0
    %5340 = vmatpush.xpose.msra.mxu0 0.0
    %5341 = vmatpush.xpose.msra.mxu0 0.0
    %5342 = vmatpush.xpose.msra.mxu0 0.0
    %5343 = vmatpush.xpose.msra.mxu0 0.0
    %5344 = vmatpush.xpose.msra.mxu0 0.0
    %5345 = vmatpush.xpose.msra.mxu0 0.0
    %5346 = vmatpush.xpose.msra.mxu0 0.0
    %v5347 = vand.u32 %v5254, 4294901760
    %5348 = vmatpush.xpose.msra.mxu0 %v5347
    %v5349 = vand.u32 %v5252, 4294901760
    %v5350 = vsub.f32 %v5252, %v5349
    %v5351 = vand.u32 %v5350, 4294901760
    %5352 = vmatmul.f32.gmra.mxu0 %v5351
    %v5353 = vpop.f32.mrf.mxu0
    %v5354 = vadd.f32 %v5330, %v5353
    %5355 = vdwg.mxu0
    %5356 = vmatpush.xpose.msra.mxu0 0.0
    %5357 = vmatpush.xpose.msra.mxu0 0.0
    %5358 = vmatpush.xpose.msra.mxu0 0.0
    %5359 = vmatpush.xpose.msra.mxu0 0.0
    %5360 = vmatpush.xpose.msra.mxu0 0.0
    %5361 = vmatpush.xpose.msra.mxu0 0.0
    %5362 = vmatpush.xpose.msra.mxu0 0.0
    %5363 = vmatpush.xpose.msra.mxu0 0.0
    %5364 = vmatpush.xpose.msra.mxu0 0.0
    %5365 = vmatpush.xpose.msra.mxu0 0.0
    %5366 = vmatpush.xpose.msra.mxu0 0.0
    %5367 = vmatpush.xpose.msra.mxu0 0.0
    %5368 = vmatpush.xpose.msra.mxu0 0.0
    %5369 = vmatpush.xpose.msra.mxu0 0.0
    %5370 = vmatpush.xpose.msra.mxu0 0.0
    %v5371 = vand.u32 %v5254, 4294901760
    %v5372 = vsub.f32 %v5254, %v5371
    %v5373 = vand.u32 %v5372, 4294901760
    %5374 = vmatpush.xpose.msra.mxu0 %v5373
    %v5375 = vand.u32 %v5252, 4294901760
    %5376 = vmatmul.f32.gmra.mxu0 %v5375
    %v5377 = vpop.f32.mrf.mxu0
    %v5378 = vadd.f32 %v5354, %v5377
    %5379 = vdwg.mxu0
    %5380 = vmatpush.xpose.msra.mxu0 0.0
    %5381 = vmatpush.xpose.msra.mxu0 0.0
    %5382 = vmatpush.xpose.msra.mxu0 0.0
    %5383 = vmatpush.xpose.msra.mxu0 0.0
    %5384 = vmatpush.xpose.msra.mxu0 0.0
    %5385 = vmatpush.xpose.msra.mxu0 0.0
    %5386 = vmatpush.xpose.msra.mxu0 0.0
    %5387 = vmatpush.xpose.msra.mxu0 0.0
    %5388 = vmatpush.xpose.msra.mxu0 0.0
    %5389 = vmatpush.xpose.msra.mxu0 0.0
    %5390 = vmatpush.xpose.msra.mxu0 0.0
    %5391 = vmatpush.xpose.msra.mxu0 0.0
    %5392 = vmatpush.xpose.msra.mxu0 0.0
    %5393 = vmatpush.xpose.msra.mxu0 0.0
    %5394 = vmatpush.xpose.msra.mxu0 0.0
    %v5395 = vand.u32 %v5254, 4294901760
    %5396 = vmatpush.xpose.msra.mxu0 %v5395
    %v5397 = vand.u32 %v5252, 4294901760
    %5398 = vmatmul.f32.gmra.mxu0 %v5397
    %v5399 = vpop.f32.mrf.mxu0
    %v5400 = vadd.f32 %v5378, %v5399
    %5401 = vdwg.mxu0
    %v5402 = vmul.f32 %v4336, 0.35355338
    %v5403 = vmul.f32 %v4488, 0.35355338
    %v5404 = vmul.f32 %v4640, 0.35355338
    %v5405 = vmul.f32 %v4792, 0.35355338
    %v5406 = vmul.f32 %v4944, 0.35355338
    %v5407 = vmul.f32 %v5096, 0.35355338
    %v5408 = vmul.f32 %v5248, 0.35355338
    %v5409 = vmul.f32 %v5400, 0.35355338
    %v5410 = vsel %vm352, %v5402, -inf
    %5411 = vmax.xlane.f32.xlu0 %v5410
    %v5412 = vpop.xlane.xlu0 %5411
    %v5413 = vsel %vm352, %v5403, -inf
    %5414 = vmax.xlane.f32.xlu0 %v5413
    %v5415 = vpop.xlane.xlu0 %5414
    %v5416 = vsel %vm352, %v5404, -inf
    %5417 = vmax.xlane.f32.xlu0 %v5416
    %v5418 = vpop.xlane.xlu0 %5417
    %v5419 = vsel %vm352, %v5405, -inf
    %5420 = vmax.xlane.f32.xlu0 %v5419
    %v5421 = vpop.xlane.xlu0 %5420
    %v5422 = vsel %vm352, %v5406, -inf
    %5423 = vmax.xlane.f32.xlu0 %v5422
    %v5424 = vpop.xlane.xlu0 %5423
    %v5425 = vsel %vm352, %v5407, -inf
    %5426 = vmax.xlane.f32.xlu0 %v5425
    %v5427 = vpop.xlane.xlu0 %5426
    %v5428 = vsel %vm352, %v5408, -inf
    %5429 = vmax.xlane.f32.xlu0 %v5428
    %v5430 = vpop.xlane.xlu0 %5429
    %v5431 = vsel %vm352, %v5409, -inf
    %5432 = vmax.xlane.f32.xlu0 %v5431
    %v5433 = vpop.xlane.xlu0 %5432
    %v5434 = vsub.f32 %v5402, %v5412
    %v5435 = vsub.f32 %v5403, %v5415
    %v5436 = vsub.f32 %v5404, %v5418
    %v5437 = vsub.f32 %v5405, %v5421
    %v5438 = vsub.f32 %v5406, %v5424
    %v5439 = vsub.f32 %v5407, %v5427
    %v5440 = vsub.f32 %v5408, %v5430
    %v5441 = vsub.f32 %v5409, %v5433
    %v5442 = vmul.f32 %v5434, 1.442695
    %v5443 = vpow.pop %v5442
    %v5444 = vmul.f32 %v5435, 1.442695
    %v5445 = vpow.pop %v5444
    %v5446 = vmul.f32 %v5436, 1.442695
    %v5447 = vpow.pop %v5446
    %v5448 = vmul.f32 %v5437, 1.442695
    %v5449 = vpow.pop %v5448
    %v5450 = vmul.f32 %v5438, 1.442695
    %v5451 = vpow.pop %v5450
    %v5452 = vmul.f32 %v5439, 1.442695
    %v5453 = vpow.pop %v5452
    %v5454 = vmul.f32 %v5440, 1.442695
    %v5455 = vpow.pop %v5454
    %v5456 = vmul.f32 %v5441, 1.442695
    %v5457 = vpow.pop %v5456
    %v5458 = vsel %vm352, %v5443, 0.0
    %5459 = vadd.xlane.f32.xlu0 %v5458
    %v5460 = vpop.xlane.xlu0 %5459
    %v5461 = vsel %vm352, %v5445, 0.0
    %5462 = vadd.xlane.f32.xlu0 %v5461
    %v5463 = vpop.xlane.xlu0 %5462
    %v5464 = vsel %vm352, %v5447, 0.0
    %5465 = vadd.xlane.f32.xlu0 %v5464
    %v5466 = vpop.xlane.xlu0 %5465
    %v5467 = vsel %vm352, %v5449, 0.0
    %5468 = vadd.xlane.f32.xlu0 %v5467
    %v5469 = vpop.xlane.xlu0 %5468
    %v5470 = vsel %vm352, %v5451, 0.0
    %5471 = vadd.xlane.f32.xlu0 %v5470
    %v5472 = vpop.xlane.xlu0 %5471
    %v5473 = vsel %vm352, %v5453, 0.0
    %5474 = vadd.xlane.f32.xlu0 %v5473
    %v5475 = vpop.xlane.xlu0 %5474
    %v5476 = vsel %vm352, %v5455, 0.0
    %5477 = vadd.xlane.f32.xlu0 %v5476
    %v5478 = vpop.xlane.xlu0 %5477
    %v5479 = vsel %vm352, %v5457, 0.0
    %5480 = vadd.xlane.f32.xlu0 %v5479
    %v5481 = vpop.xlane.xlu0 %5480
    %v5482 = vrcp.pop %v5460
    %v5483 = vmul.f32 %v5460, %v5482
    %v5484 = vsub.f32 1.0, %v5483
    %v5485 = vmul.f32 %v5482, %v5484
    %v5486 = vadd.f32 %v5482, %v5485
    %vm5487 = vweird.f32 %v5460
    %vm5488 = vweird.f32 %v5482
    %vm5489 = vmor %vm5487, %vm5488
    %v5490 = vsel %vm5489, %v5482, %v5486
    %v5491 = vand.u32 2147483647, %v5460
    %vm5492 = vcmp.eq.f32.partialorder %v5491, 8.507059e+37
    %v5493 = vand.u32 %v5460, 2147483648
    %v5494 = vor.u32 1.1754944e-38, %v5493
    %v5495 = vsel %vm5492, %v5494, %v5490
    %v5496 = vmul.f32 %v5443, %v5495
    %v5497 = vrcp.pop %v5463
    %v5498 = vmul.f32 %v5463, %v5497
    %v5499 = vsub.f32 1.0, %v5498
    %v5500 = vmul.f32 %v5497, %v5499
    %v5501 = vadd.f32 %v5497, %v5500
    %vm5502 = vweird.f32 %v5463
    %vm5503 = vweird.f32 %v5497
    %vm5504 = vmor %vm5502, %vm5503
    %v5505 = vsel %vm5504, %v5497, %v5501
    %v5506 = vand.u32 2147483647, %v5463
    %vm5507 = vcmp.eq.f32.partialorder %v5506, 8.507059e+37
    %v5508 = vand.u32 %v5463, 2147483648
    %v5509 = vor.u32 1.1754944e-38, %v5508
    %v5510 = vsel %vm5507, %v5509, %v5505
    %v5511 = vmul.f32 %v5445, %v5510
    %v5512 = vrcp.pop %v5466
    %v5513 = vmul.f32 %v5466, %v5512
    %v5514 = vsub.f32 1.0, %v5513
    %v5515 = vmul.f32 %v5512, %v5514
    %v5516 = vadd.f32 %v5512, %v5515
    %vm5517 = vweird.f32 %v5466
    %vm5518 = vweird.f32 %v5512
    %vm5519 = vmor %vm5517, %vm5518
    %v5520 = vsel %vm5519, %v5512, %v5516
    %v5521 = vand.u32 2147483647, %v5466
    %vm5522 = vcmp.eq.f32.partialorder %v5521, 8.507059e+37
    %v5523 = vand.u32 %v5466, 2147483648
    %v5524 = vor.u32 1.1754944e-38, %v5523
    %v5525 = vsel %vm5522, %v5524, %v5520
    %v5526 = vmul.f32 %v5447, %v5525
    %v5527 = vrcp.pop %v5469
    %v5528 = vmul.f32 %v5469, %v5527
    %v5529 = vsub.f32 1.0, %v5528
    %v5530 = vmul.f32 %v5527, %v5529
    %v5531 = vadd.f32 %v5527, %v5530
    %vm5532 = vweird.f32 %v5469
    %vm5533 = vweird.f32 %v5527
    %vm5534 = vmor %vm5532, %vm5533
    %v5535 = vsel %vm5534, %v5527, %v5531
    %v5536 = vand.u32 2147483647, %v5469
    %vm5537 = vcmp.eq.f32.partialorder %v5536, 8.507059e+37
    %v5538 = vand.u32 %v5469, 2147483648
    %v5539 = vor.u32 1.1754944e-38, %v5538
    %v5540 = vsel %vm5537, %v5539, %v5535
    %v5541 = vmul.f32 %v5449, %v5540
    %v5542 = vrcp.pop %v5472
    %v5543 = vmul.f32 %v5472, %v5542
    %v5544 = vsub.f32 1.0, %v5543
    %v5545 = vmul.f32 %v5542, %v5544
    %v5546 = vadd.f32 %v5542, %v5545
    %vm5547 = vweird.f32 %v5472
    %vm5548 = vweird.f32 %v5542
    %vm5549 = vmor %vm5547, %vm5548
    %v5550 = vsel %vm5549, %v5542, %v5546
    %v5551 = vand.u32 2147483647, %v5472
    %vm5552 = vcmp.eq.f32.partialorder %v5551, 8.507059e+37
    %v5553 = vand.u32 %v5472, 2147483648
    %v5554 = vor.u32 1.1754944e-38, %v5553
    %v5555 = vsel %vm5552, %v5554, %v5550
    %v5556 = vmul.f32 %v5451, %v5555
    %v5557 = vrcp.pop %v5475
    %v5558 = vmul.f32 %v5475, %v5557
    %v5559 = vsub.f32 1.0, %v5558
    %v5560 = vmul.f32 %v5557, %v5559
    %v5561 = vadd.f32 %v5557, %v5560
    %vm5562 = vweird.f32 %v5475
    %vm5563 = vweird.f32 %v5557
    %vm5564 = vmor %vm5562, %vm5563
    %v5565 = vsel %vm5564, %v5557, %v5561
    %v5566 = vand.u32 2147483647, %v5475
    %vm5567 = vcmp.eq.f32.partialorder %v5566, 8.507059e+37
    %v5568 = vand.u32 %v5475, 2147483648
    %v5569 = vor.u32 1.1754944e-38, %v5568
    %v5570 = vsel %vm5567, %v5569, %v5565
    %v5571 = vmul.f32 %v5453, %v5570
    %v5572 = vrcp.pop %v5478
    %v5573 = vmul.f32 %v5478, %v5572
    %v5574 = vsub.f32 1.0, %v5573
    %v5575 = vmul.f32 %v5572, %v5574
    %v5576 = vadd.f32 %v5572, %v5575
    %vm5577 = vweird.f32 %v5478
    %vm5578 = vweird.f32 %v5572
    %vm5579 = vmor %vm5577, %vm5578
    %v5580 = vsel %vm5579, %v5572, %v5576
    %v5581 = vand.u32 2147483647, %v5478
    %vm5582 = vcmp.eq.f32.partialorder %v5581, 8.507059e+37
    %v5583 = vand.u32 %v5478, 2147483648
    %v5584 = vor.u32 1.1754944e-38, %v5583
    %v5585 = vsel %vm5582, %v5584, %v5580
    %v5586 = vmul.f32 %v5455, %v5585
    %v5587 = vrcp.pop %v5481
    %v5588 = vmul.f32 %v5481, %v5587
    %v5589 = vsub.f32 1.0, %v5588
    %v5590 = vmul.f32 %v5587, %v5589
    %v5591 = vadd.f32 %v5587, %v5590
    %vm5592 = vweird.f32 %v5481
    %vm5593 = vweird.f32 %v5587
    %vm5594 = vmor %vm5592, %vm5593
    %v5595 = vsel %vm5594, %v5587, %v5591
    %v5596 = vand.u32 2147483647, %v5481
    %vm5597 = vcmp.eq.f32.partialorder %v5596, 8.507059e+37
    %v5598 = vand.u32 %v5481, 2147483648
    %v5599 = vor.u32 1.1754944e-38, %v5598
    %v5600 = vsel %vm5597, %v5599, %v5595
    %v5601 = vmul.f32 %v5457, %v5600
    %5602 = vrot.lane.b32.xlu0 %v4166, 64
    %v5603 = vpop.permute.xlu0 %5602
    %v5606 = vsel %vm352, %v5496, 0
    %5608 = vmatpush.msra.mxu0 0.0
    %5609 = vmatpush.msra.mxu0 0.0
    %5610 = vmatpush.msra.mxu0 0.0
    %5611 = vmatpush.msra.mxu0 0.0
    %5612 = vmatpush.msra.mxu0 0.0
    %5613 = vmatpush.msra.mxu0 0.0
    %5614 = vmatpush.msra.mxu0 0.0
    %5615 = vmatpush.msra.mxu0 0.0
    %5616 = vmatpush.msra.mxu0 0.0
    %5617 = vmatpush.msra.mxu0 0.0
    %5618 = vmatpush.msra.mxu0 0.0
    %5619 = vmatpush.msra.mxu0 0.0
    %5620 = vmatpush.msra.mxu0 0.0
    %5621 = vmatpush.msra.mxu0 0.0
    %5622 = vmatpush.msra.mxu0 0.0
    %v5623 = vand.u32 %v5603, 4294901760
    %5624 = vmatpush.msra.mxu0 %v5623
    %v5625 = vand.u32 %v5606, 4294901760
    %v5626 = vsub.f32 %v5606, %v5625
    %v5627 = vand.u32 %v5626, 4294901760
    %v5628 = vsub.f32 %v5626, %v5627
    %v5629 = vand.u32 %v5628, 4294901760
    %5630 = vmatmul.f32.gmra.mxu0 %v5629
    %v5631 = vpop.f32.mrf.mxu0
    %v5632 = vadd.f32 0.0, %v5631
    %5633 = vdwg.mxu0
    %5634 = vmatpush.msra.mxu0 0.0
    %5635 = vmatpush.msra.mxu0 0.0
    %5636 = vmatpush.msra.mxu0 0.0
    %5637 = vmatpush.msra.mxu0 0.0
    %5638 = vmatpush.msra.mxu0 0.0
    %5639 = vmatpush.msra.mxu0 0.0
    %5640 = vmatpush.msra.mxu0 0.0
    %5641 = vmatpush.msra.mxu0 0.0
    %5642 = vmatpush.msra.mxu0 0.0
    %5643 = vmatpush.msra.mxu0 0.0
    %5644 = vmatpush.msra.mxu0 0.0
    %5645 = vmatpush.msra.mxu0 0.0
    %5646 = vmatpush.msra.mxu0 0.0
    %5647 = vmatpush.msra.mxu0 0.0
    %5648 = vmatpush.msra.mxu0 0.0
    %v5649 = vand.u32 %v5603, 4294901760
    %v5650 = vsub.f32 %v5603, %v5649
    %v5651 = vand.u32 %v5650, 4294901760
    %v5652 = vsub.f32 %v5650, %v5651
    %v5653 = vand.u32 %v5652, 4294901760
    %5654 = vmatpush.msra.mxu0 %v5653
    %v5655 = vand.u32 %v5606, 4294901760
    %5656 = vmatmul.f32.gmra.mxu0 %v5655
    %v5657 = vpop.f32.mrf.mxu0
    %v5658 = vadd.f32 %v5632, %v5657
    %5659 = vdwg.mxu0
    %5660 = vmatpush.msra.mxu0 0.0
    %5661 = vmatpush.msra.mxu0 0.0
    %5662 = vmatpush.msra.mxu0 0.0
    %5663 = vmatpush.msra.mxu0 0.0
    %5664 = vmatpush.msra.mxu0 0.0
    %5665 = vmatpush.msra.mxu0 0.0
    %5666 = vmatpush.msra.mxu0 0.0
    %5667 = vmatpush.msra.mxu0 0.0
    %5668 = vmatpush.msra.mxu0 0.0
    %5669 = vmatpush.msra.mxu0 0.0
    %5670 = vmatpush.msra.mxu0 0.0
    %5671 = vmatpush.msra.mxu0 0.0
    %5672 = vmatpush.msra.mxu0 0.0
    %5673 = vmatpush.msra.mxu0 0.0
    %5674 = vmatpush.msra.mxu0 0.0
    %v5675 = vand.u32 %v5603, 4294901760
    %v5676 = vsub.f32 %v5603, %v5675
    %5677 = vmatpush.msra.mxu0 %v5676
    %v5678 = vand.u32 %v5606, 4294901760
    %v5679 = vsub.f32 %v5606, %v5678
    %5680 = vmatmul.f32.gmra.mxu0 %v5679
    %v5681 = vpop.f32.mrf.mxu0
    %v5682 = vadd.f32 %v5658, %v5681
    %5683 = vdwg.mxu0
    %5684 = vmatpush.msra.mxu0 0.0
    %5685 = vmatpush.msra.mxu0 0.0
    %5686 = vmatpush.msra.mxu0 0.0
    %5687 = vmatpush.msra.mxu0 0.0
    %5688 = vmatpush.msra.mxu0 0.0
    %5689 = vmatpush.msra.mxu0 0.0
    %5690 = vmatpush.msra.mxu0 0.0
    %5691 = vmatpush.msra.mxu0 0.0
    %5692 = vmatpush.msra.mxu0 0.0
    %5693 = vmatpush.msra.mxu0 0.0
    %5694 = vmatpush.msra.mxu0 0.0
    %5695 = vmatpush.msra.mxu0 0.0
    %5696 = vmatpush.msra.mxu0 0.0
    %5697 = vmatpush.msra.mxu0 0.0
    %5698 = vmatpush.msra.mxu0 0.0
    %v5699 = vand.u32 %v5603, 4294901760
    %5700 = vmatpush.msra.mxu0 %v5699
    %v5701 = vand.u32 %v5606, 4294901760
    %v5702 = vsub.f32 %v5606, %v5701
    %v5703 = vand.u32 %v5702, 4294901760
    %5704 = vmatmul.f32.gmra.mxu0 %v5703
    %v5705 = vpop.f32.mrf.mxu0
    %v5706 = vadd.f32 %v5682, %v5705
    %5707 = vdwg.mxu0
    %5708 = vmatpush.msra.mxu0 0.0
    %5709 = vmatpush.msra.mxu0 0.0
    %5710 = vmatpush.msra.mxu0 0.0
    %5711 = vmatpush.msra.mxu0 0.0
    %5712 = vmatpush.msra.mxu0 0.0
    %5713 = vmatpush.msra.mxu0 0.0
    %5714 = vmatpush.msra.mxu0 0.0
    %5715 = vmatpush.msra.mxu0 0.0
    %5716 = vmatpush.msra.mxu0 0.0
    %5717 = vmatpush.msra.mxu0 0.0
    %5718 = vmatpush.msra.mxu0 0.0
    %5719 = vmatpush.msra.mxu0 0.0
    %5720 = vmatpush.msra.mxu0 0.0
    %5721 = vmatpush.msra.mxu0 0.0
    %5722 = vmatpush.msra.mxu0 0.0
    %v5723 = vand.u32 %v5603, 4294901760
    %v5724 = vsub.f32 %v5603, %v5723
    %v5725 = vand.u32 %v5724, 4294901760
    %5726 = vmatpush.msra.mxu0 %v5725
    %v5727 = vand.u32 %v5606, 4294901760
    %5728 = vmatmul.f32.gmra.mxu0 %v5727
    %v5729 = vpop.f32.mrf.mxu0
    %v5730 = vadd.f32 %v5706, %v5729
    %5731 = vdwg.mxu0
    %5732 = vmatpush.msra.mxu0 0.0
    %5733 = vmatpush.msra.mxu0 0.0
    %5734 = vmatpush.msra.mxu0 0.0
    %5735 = vmatpush.msra.mxu0 0.0
    %5736 = vmatpush.msra.mxu0 0.0
    %5737 = vmatpush.msra.mxu0 0.0
    %5738 = vmatpush.msra.mxu0 0.0
    %5739 = vmatpush.msra.mxu0 0.0
    %5740 = vmatpush.msra.mxu0 0.0
    %5741 = vmatpush.msra.mxu0 0.0
    %5742 = vmatpush.msra.mxu0 0.0
    %5743 = vmatpush.msra.mxu0 0.0
    %5744 = vmatpush.msra.mxu0 0.0
    %5745 = vmatpush.msra.mxu0 0.0
    %5746 = vmatpush.msra.mxu0 0.0
    %v5747 = vand.u32 %v5603, 4294901760
    %5748 = vmatpush.msra.mxu0 %v5747
    %v5749 = vand.u32 %v5606, 4294901760
    %5750 = vmatmul.f32.gmra.mxu0 %v5749
    %v5751 = vpop.f32.mrf.mxu0
    %v5752 = vadd.f32 %v5730, %v5751
    %5753 = vdwg.mxu0
    %5754 = vrot.lane.b32.xlu0 %v4170, 64
    %v5755 = vpop.permute.xlu0 %5754
    %v5758 = vsel %vm352, %v5511, 0
    %5760 = vmatpush.msra.mxu0 0.0
    %5761 = vmatpush.msra.mxu0 0.0
    %5762 = vmatpush.msra.mxu0 0.0
    %5763 = vmatpush.msra.mxu0 0.0
    %5764 = vmatpush.msra.mxu0 0.0
    %5765 = vmatpush.msra.mxu0 0.0
    %5766 = vmatpush.msra.mxu0 0.0
    %5767 = vmatpush.msra.mxu0 0.0
    %5768 = vmatpush.msra.mxu0 0.0
    %5769 = vmatpush.msra.mxu0 0.0
    %5770 = vmatpush.msra.mxu0 0.0
    %5771 = vmatpush.msra.mxu0 0.0
    %5772 = vmatpush.msra.mxu0 0.0
    %5773 = vmatpush.msra.mxu0 0.0
    %5774 = vmatpush.msra.mxu0 0.0
    %v5775 = vand.u32 %v5755, 4294901760
    %5776 = vmatpush.msra.mxu0 %v5775
    %v5777 = vand.u32 %v5758, 4294901760
    %v5778 = vsub.f32 %v5758, %v5777
    %v5779 = vand.u32 %v5778, 4294901760
    %v5780 = vsub.f32 %v5778, %v5779
    %v5781 = vand.u32 %v5780, 4294901760
    %5782 = vmatmul.f32.gmra.mxu0 %v5781
    %v5783 = vpop.f32.mrf.mxu0
    %v5784 = vadd.f32 0.0, %v5783
    %5785 = vdwg.mxu0
    %5786 = vmatpush.msra.mxu0 0.0
    %5787 = vmatpush.msra.mxu0 0.0
    %5788 = vmatpush.msra.mxu0 0.0
    %5789 = vmatpush.msra.mxu0 0.0
    %5790 = vmatpush.msra.mxu0 0.0
    %5791 = vmatpush.msra.mxu0 0.0
    %5792 = vmatpush.msra.mxu0 0.0
    %5793 = vmatpush.msra.mxu0 0.0
    %5794 = vmatpush.msra.mxu0 0.0
    %5795 = vmatpush.msra.mxu0 0.0
    %5796 = vmatpush.msra.mxu0 0.0
    %5797 = vmatpush.msra.mxu0 0.0
    %5798 = vmatpush.msra.mxu0 0.0
    %5799 = vmatpush.msra.mxu0 0.0
    %5800 = vmatpush.msra.mxu0 0.0
    %v5801 = vand.u32 %v5755, 4294901760
    %v5802 = vsub.f32 %v5755, %v5801
    %v5803 = vand.u32 %v5802, 4294901760
    %v5804 = vsub.f32 %v5802, %v5803
    %v5805 = vand.u32 %v5804, 4294901760
    %5806 = vmatpush.msra.mxu0 %v5805
    %v5807 = vand.u32 %v5758, 4294901760
    %5808 = vmatmul.f32.gmra.mxu0 %v5807
    %v5809 = vpop.f32.mrf.mxu0
    %v5810 = vadd.f32 %v5784, %v5809
    %5811 = vdwg.mxu0
    %5812 = vmatpush.msra.mxu0 0.0
    %5813 = vmatpush.msra.mxu0 0.0
    %5814 = vmatpush.msra.mxu0 0.0
    %5815 = vmatpush.msra.mxu0 0.0
    %5816 = vmatpush.msra.mxu0 0.0
    %5817 = vmatpush.msra.mxu0 0.0
    %5818 = vmatpush.msra.mxu0 0.0
    %5819 = vmatpush.msra.mxu0 0.0
    %5820 = vmatpush.msra.mxu0 0.0
    %5821 = vmatpush.msra.mxu0 0.0
    %5822 = vmatpush.msra.mxu0 0.0
    %5823 = vmatpush.msra.mxu0 0.0
    %5824 = vmatpush.msra.mxu0 0.0
    %5825 = vmatpush.msra.mxu0 0.0
    %5826 = vmatpush.msra.mxu0 0.0
    %v5827 = vand.u32 %v5755, 4294901760
    %v5828 = vsub.f32 %v5755, %v5827
    %5829 = vmatpush.msra.mxu0 %v5828
    %v5830 = vand.u32 %v5758, 4294901760
    %v5831 = vsub.f32 %v5758, %v5830
    %5832 = vmatmul.f32.gmra.mxu0 %v5831
    %v5833 = vpop.f32.mrf.mxu0
    %v5834 = vadd.f32 %v5810, %v5833
    %5835 = vdwg.mxu0
    %5836 = vmatpush.msra.mxu0 0.0
    %5837 = vmatpush.msra.mxu0 0.0
    %5838 = vmatpush.msra.mxu0 0.0
    %5839 = vmatpush.msra.mxu0 0.0
    %5840 = vmatpush.msra.mxu0 0.0
    %5841 = vmatpush.msra.mxu0 0.0
    %5842 = vmatpush.msra.mxu0 0.0
    %5843 = vmatpush.msra.mxu0 0.0
    %5844 = vmatpush.msra.mxu0 0.0
    %5845 = vmatpush.msra.mxu0 0.0
    %5846 = vmatpush.msra.mxu0 0.0
    %5847 = vmatpush.msra.mxu0 0.0
    %5848 = vmatpush.msra.mxu0 0.0
    %5849 = vmatpush.msra.mxu0 0.0
    %5850 = vmatpush.msra.mxu0 0.0
    %v5851 = vand.u32 %v5755, 4294901760
    %5852 = vmatpush.msra.mxu0 %v5851
    %v5853 = vand.u32 %v5758, 4294901760
    %v5854 = vsub.f32 %v5758, %v5853
    %v5855 = vand.u32 %v5854, 4294901760
    %5856 = vmatmul.f32.gmra.mxu0 %v5855
    %v5857 = vpop.f32.mrf.mxu0
    %v5858 = vadd.f32 %v5834, %v5857
    %5859 = vdwg.mxu0
    %5860 = vmatpush.msra.mxu0 0.0
    %5861 = vmatpush.msra.mxu0 0.0
    %5862 = vmatpush.msra.mxu0 0.0
    %5863 = vmatpush.msra.mxu0 0.0
    %5864 = vmatpush.msra.mxu0 0.0
    %5865 = vmatpush.msra.mxu0 0.0
    %5866 = vmatpush.msra.mxu0 0.0
    %5867 = vmatpush.msra.mxu0 0.0
    %5868 = vmatpush.msra.mxu0 0.0
    %5869 = vmatpush.msra.mxu0 0.0
    %5870 = vmatpush.msra.mxu0 0.0
    %5871 = vmatpush.msra.mxu0 0.0
    %5872 = vmatpush.msra.mxu0 0.0
    %5873 = vmatpush.msra.mxu0 0.0
    %5874 = vmatpush.msra.mxu0 0.0
    %v5875 = vand.u32 %v5755, 4294901760
    %v5876 = vsub.f32 %v5755, %v5875
    %v5877 = vand.u32 %v5876, 4294901760
    %5878 = vmatpush.msra.mxu0 %v5877
    %v5879 = vand.u32 %v5758, 4294901760
    %5880 = vmatmul.f32.gmra.mxu0 %v5879
    %v5881 = vpop.f32.mrf.mxu0
    %v5882 = vadd.f32 %v5858, %v5881
    %5883 = vdwg.mxu0
    %5884 = vmatpush.msra.mxu0 0.0
    %5885 = vmatpush.msra.mxu0 0.0
    %5886 = vmatpush.msra.mxu0 0.0
    %5887 = vmatpush.msra.mxu0 0.0
    %5888 = vmatpush.msra.mxu0 0.0
    %5889 = vmatpush.msra.mxu0 0.0
    %5890 = vmatpush.msra.mxu0 0.0
    %5891 = vmatpush.msra.mxu0 0.0
    %5892 = vmatpush.msra.mxu0 0.0
    %5893 = vmatpush.msra.mxu0 0.0
    %5894 = vmatpush.msra.mxu0 0.0
    %5895 = vmatpush.msra.mxu0 0.0
    %5896 = vmatpush.msra.mxu0 0.0
    %5897 = vmatpush.msra.mxu0 0.0
    %5898 = vmatpush.msra.mxu0 0.0
    %v5899 = vand.u32 %v5755, 4294901760
    %5900 = vmatpush.msra.mxu0 %v5899
    %v5901 = vand.u32 %v5758, 4294901760
    %5902 = vmatmul.f32.gmra.mxu0 %v5901
    %v5903 = vpop.f32.mrf.mxu0
    %v5904 = vadd.f32 %v5882, %v5903
    %5905 = vdwg.mxu0
    %5906 = vrot.lane.b32.xlu0 %v4175, 64
    %v5907 = vpop.permute.xlu0 %5906
    %v5910 = vsel %vm352, %v5526, 0
    %5912 = vmatpush.msra.mxu0 0.0
    %5913 = vmatpush.msra.mxu0 0.0
    %5914 = vmatpush.msra.mxu0 0.0
    %5915 = vmatpush.msra.mxu0 0.0
    %5916 = vmatpush.msra.mxu0 0.0
    %5917 = vmatpush.msra.mxu0 0.0
    %5918 = vmatpush.msra.mxu0 0.0
    %5919 = vmatpush.msra.mxu0 0.0
    %5920 = vmatpush.msra.mxu0 0.0
    %5921 = vmatpush.msra.mxu0 0.0
    %5922 = vmatpush.msra.mxu0 0.0
    %5923 = vmatpush.msra.mxu0 0.0
    %5924 = vmatpush.msra.mxu0 0.0
    %5925 = vmatpush.msra.mxu0 0.0
    %5926 = vmatpush.msra.mxu0 0.0
    %v5927 = vand.u32 %v5907, 4294901760
    %5928 = vmatpush.msra.mxu0 %v5927
    %v5929 = vand.u32 %v5910, 4294901760
    %v5930 = vsub.f32 %v5910, %v5929
    %v5931 = vand.u32 %v5930, 4294901760
    %v5932 = vsub.f32 %v5930, %v5931
    %v5933 = vand.u32 %v5932, 4294901760
    %5934 = vmatmul.f32.gmra.mxu0 %v5933
    %v5935 = vpop.f32.mrf.mxu0
    %v5936 = vadd.f32 0.0, %v5935
    %5937 = vdwg.mxu0
    %5938 = vmatpush.msra.mxu0 0.0
    %5939 = vmatpush.msra.mxu0 0.0
    %5940 = vmatpush.msra.mxu0 0.0
    %5941 = vmatpush.msra.mxu0 0.0
    %5942 = vmatpush.msra.mxu0 0.0
    %5943 = vmatpush.msra.mxu0 0.0
    %5944 = vmatpush.msra.mxu0 0.0
    %5945 = vmatpush.msra.mxu0 0.0
    %5946 = vmatpush.msra.mxu0 0.0
    %5947 = vmatpush.msra.mxu0 0.0
    %5948 = vmatpush.msra.mxu0 0.0
    %5949 = vmatpush.msra.mxu0 0.0
    %5950 = vmatpush.msra.mxu0 0.0
    %5951 = vmatpush.msra.mxu0 0.0
    %5952 = vmatpush.msra.mxu0 0.0
    %v5953 = vand.u32 %v5907, 4294901760
    %v5954 = vsub.f32 %v5907, %v5953
    %v5955 = vand.u32 %v5954, 4294901760
    %v5956 = vsub.f32 %v5954, %v5955
    %v5957 = vand.u32 %v5956, 4294901760
    %5958 = vmatpush.msra.mxu0 %v5957
    %v5959 = vand.u32 %v5910, 4294901760
    %5960 = vmatmul.f32.gmra.mxu0 %v5959
    %v5961 = vpop.f32.mrf.mxu0
    %v5962 = vadd.f32 %v5936, %v5961
    %5963 = vdwg.mxu0
    %5964 = vmatpush.msra.mxu0 0.0
    %5965 = vmatpush.msra.mxu0 0.0
    %5966 = vmatpush.msra.mxu0 0.0
    %5967 = vmatpush.msra.mxu0 0.0
    %5968 = vmatpush.msra.mxu0 0.0
    %5969 = vmatpush.msra.mxu0 0.0
    %5970 = vmatpush.msra.mxu0 0.0
    %5971 = vmatpush.msra.mxu0 0.0
    %5972 = vmatpush.msra.mxu0 0.0
    %5973 = vmatpush.msra.mxu0 0.0
    %5974 = vmatpush.msra.mxu0 0.0
    %5975 = vmatpush.msra.mxu0 0.0
    %5976 = vmatpush.msra.mxu0 0.0
    %5977 = vmatpush.msra.mxu0 0.0
    %5978 = vmatpush.msra.mxu0 0.0
    %v5979 = vand.u32 %v5907, 4294901760
    %v5980 = vsub.f32 %v5907, %v5979
    %5981 = vmatpush.msra.mxu0 %v5980
    %v5982 = vand.u32 %v5910, 4294901760
    %v5983 = vsub.f32 %v5910, %v5982
    %5984 = vmatmul.f32.gmra.mxu0 %v5983
    %v5985 = vpop.f32.mrf.mxu0
    %v5986 = vadd.f32 %v5962, %v5985
    %5987 = vdwg.mxu0
    %5988 = vmatpush.msra.mxu0 0.0
    %5989 = vmatpush.msra.mxu0 0.0
    %5990 = vmatpush.msra.mxu0 0.0
    %5991 = vmatpush.msra.mxu0 0.0
    %5992 = vmatpush.msra.mxu0 0.0
    %5993 = vmatpush.msra.mxu0 0.0
    %5994 = vmatpush.msra.mxu0 0.0
    %5995 = vmatpush.msra.mxu0 0.0
    %5996 = vmatpush.msra.mxu0 0.0
    %5997 = vmatpush.msra.mxu0 0.0
    %5998 = vmatpush.msra.mxu0 0.0
    %5999 = vmatpush.msra.mxu0 0.0
    %6000 = vmatpush.msra.mxu0 0.0
    %6001 = vmatpush.msra.mxu0 0.0
    %6002 = vmatpush.msra.mxu0 0.0
    %v6003 = vand.u32 %v5907, 4294901760
    %6004 = vmatpush.msra.mxu0 %v6003
    %v6005 = vand.u32 %v5910, 4294901760
    %v6006 = vsub.f32 %v5910, %v6005
    %v6007 = vand.u32 %v6006, 4294901760
    %6008 = vmatmul.f32.gmra.mxu0 %v6007
    %v6009 = vpop.f32.mrf.mxu0
    %v6010 = vadd.f32 %v5986, %v6009
    %6011 = vdwg.mxu0
    %6012 = vmatpush.msra.mxu0 0.0
    %6013 = vmatpush.msra.mxu0 0.0
    %6014 = vmatpush.msra.mxu0 0.0
    %6015 = vmatpush.msra.mxu0 0.0
    %6016 = vmatpush.msra.mxu0 0.0
    %6017 = vmatpush.msra.mxu0 0.0
    %6018 = vmatpush.msra.mxu0 0.0
    %6019 = vmatpush.msra.mxu0 0.0
    %6020 = vmatpush.msra.mxu0 0.0
    %6021 = vmatpush.msra.mxu0 0.0
    %6022 = vmatpush.msra.mxu0 0.0
    %6023 = vmatpush.msra.mxu0 0.0
    %6024 = vmatpush.msra.mxu0 0.0
    %6025 = vmatpush.msra.mxu0 0.0
    %6026 = vmatpush.msra.mxu0 0.0
    %v6027 = vand.u32 %v5907, 4294901760
    %v6028 = vsub.f32 %v5907, %v6027
    %v6029 = vand.u32 %v6028, 4294901760
    %6030 = vmatpush.msra.mxu0 %v6029
    %v6031 = vand.u32 %v5910, 4294901760
    %6032 = vmatmul.f32.gmra.mxu0 %v6031
    %v6033 = vpop.f32.mrf.mxu0
    %v6034 = vadd.f32 %v6010, %v6033
    %6035 = vdwg.mxu0
    %6036 = vmatpush.msra.mxu0 0.0
    %6037 = vmatpush.msra.mxu0 0.0
    %6038 = vmatpush.msra.mxu0 0.0
    %6039 = vmatpush.msra.mxu0 0.0
    %6040 = vmatpush.msra.mxu0 0.0
    %6041 = vmatpush.msra.mxu0 0.0
    %6042 = vmatpush.msra.mxu0 0.0
    %6043 = vmatpush.msra.mxu0 0.0
    %6044 = vmatpush.msra.mxu0 0.0
    %6045 = vmatpush.msra.mxu0 0.0
    %6046 = vmatpush.msra.mxu0 0.0
    %6047 = vmatpush.msra.mxu0 0.0
    %6048 = vmatpush.msra.mxu0 0.0
    %6049 = vmatpush.msra.mxu0 0.0
    %6050 = vmatpush.msra.mxu0 0.0
    %v6051 = vand.u32 %v5907, 4294901760
    %6052 = vmatpush.msra.mxu0 %v6051
    %v6053 = vand.u32 %v5910, 4294901760
    %6054 = vmatmul.f32.gmra.mxu0 %v6053
    %v6055 = vpop.f32.mrf.mxu0
    %v6056 = vadd.f32 %v6034, %v6055
    %6057 = vdwg.mxu0
    %6058 = vrot.lane.b32.xlu0 %v4177, 64
    %v6059 = vpop.permute.xlu0 %6058
    %v6062 = vsel %vm352, %v5541, 0
    %6064 = vmatpush.msra.mxu0 0.0
    %6065 = vmatpush.msra.mxu0 0.0
    %6066 = vmatpush.msra.mxu0 0.0
    %6067 = vmatpush.msra.mxu0 0.0
    %6068 = vmatpush.msra.mxu0 0.0
    %6069 = vmatpush.msra.mxu0 0.0
    %6070 = vmatpush.msra.mxu0 0.0
    %6071 = vmatpush.msra.mxu0 0.0
    %6072 = vmatpush.msra.mxu0 0.0
    %6073 = vmatpush.msra.mxu0 0.0
    %6074 = vmatpush.msra.mxu0 0.0
    %6075 = vmatpush.msra.mxu0 0.0
    %6076 = vmatpush.msra.mxu0 0.0
    %6077 = vmatpush.msra.mxu0 0.0
    %6078 = vmatpush.msra.mxu0 0.0
    %v6079 = vand.u32 %v6059, 4294901760
    %6080 = vmatpush.msra.mxu0 %v6079
    %v6081 = vand.u32 %v6062, 4294901760
    %v6082 = vsub.f32 %v6062, %v6081
    %v6083 = vand.u32 %v6082, 4294901760
    %v6084 = vsub.f32 %v6082, %v6083
    %v6085 = vand.u32 %v6084, 4294901760
    %6086 = vmatmul.f32.gmra.mxu0 %v6085
    %v6087 = vpop.f32.mrf.mxu0
    %v6088 = vadd.f32 0.0, %v6087
    %6089 = vdwg.mxu0
    %6090 = vmatpush.msra.mxu0 0.0
    %6091 = vmatpush.msra.mxu0 0.0
    %6092 = vmatpush.msra.mxu0 0.0
    %6093 = vmatpush.msra.mxu0 0.0
    %6094 = vmatpush.msra.mxu0 0.0
    %6095 = vmatpush.msra.mxu0 0.0
    %6096 = vmatpush.msra.mxu0 0.0
    %6097 = vmatpush.msra.mxu0 0.0
    %6098 = vmatpush.msra.mxu0 0.0
    %6099 = vmatpush.msra.mxu0 0.0
    %6100 = vmatpush.msra.mxu0 0.0
    %6101 = vmatpush.msra.mxu0 0.0
    %6102 = vmatpush.msra.mxu0 0.0
    %6103 = vmatpush.msra.mxu0 0.0
    %6104 = vmatpush.msra.mxu0 0.0
    %v6105 = vand.u32 %v6059, 4294901760
    %v6106 = vsub.f32 %v6059, %v6105
    %v6107 = vand.u32 %v6106, 4294901760
    %v6108 = vsub.f32 %v6106, %v6107
    %v6109 = vand.u32 %v6108, 4294901760
    %6110 = vmatpush.msra.mxu0 %v6109
    %v6111 = vand.u32 %v6062, 4294901760
    %6112 = vmatmul.f32.gmra.mxu0 %v6111
    %v6113 = vpop.f32.mrf.mxu0
    %v6114 = vadd.f32 %v6088, %v6113
    %6115 = vdwg.mxu0
    %6116 = vmatpush.msra.mxu0 0.0
    %6117 = vmatpush.msra.mxu0 0.0
    %6118 = vmatpush.msra.mxu0 0.0
    %6119 = vmatpush.msra.mxu0 0.0
    %6120 = vmatpush.msra.mxu0 0.0
    %6121 = vmatpush.msra.mxu0 0.0
    %6122 = vmatpush.msra.mxu0 0.0
    %6123 = vmatpush.msra.mxu0 0.0
    %6124 = vmatpush.msra.mxu0 0.0
    %6125 = vmatpush.msra.mxu0 0.0
    %6126 = vmatpush.msra.mxu0 0.0
    %6127 = vmatpush.msra.mxu0 0.0
    %6128 = vmatpush.msra.mxu0 0.0
    %6129 = vmatpush.msra.mxu0 0.0
    %6130 = vmatpush.msra.mxu0 0.0
    %v6131 = vand.u32 %v6059, 4294901760
    %v6132 = vsub.f32 %v6059, %v6131
    %6133 = vmatpush.msra.mxu0 %v6132
    %v6134 = vand.u32 %v6062, 4294901760
    %v6135 = vsub.f32 %v6062, %v6134
    %6136 = vmatmul.f32.gmra.mxu0 %v6135
    %v6137 = vpop.f32.mrf.mxu0
    %v6138 = vadd.f32 %v6114, %v6137
    %6139 = vdwg.mxu0
    %6140 = vmatpush.msra.mxu0 0.0
    %6141 = vmatpush.msra.mxu0 0.0
    %6142 = vmatpush.msra.mxu0 0.0
    %6143 = vmatpush.msra.mxu0 0.0
    %6144 = vmatpush.msra.mxu0 0.0
    %6145 = vmatpush.msra.mxu0 0.0
    %6146 = vmatpush.msra.mxu0 0.0
    %6147 = vmatpush.msra.mxu0 0.0
    %6148 = vmatpush.msra.mxu0 0.0
    %6149 = vmatpush.msra.mxu0 0.0
    %6150 = vmatpush.msra.mxu0 0.0
    %6151 = vmatpush.msra.mxu0 0.0
    %6152 = vmatpush.msra.mxu0 0.0
    %6153 = vmatpush.msra.mxu0 0.0
    %6154 = vmatpush.msra.mxu0 0.0
    %v6155 = vand.u32 %v6059, 4294901760
    %6156 = vmatpush.msra.mxu0 %v6155
    %v6157 = vand.u32 %v6062, 4294901760
    %v6158 = vsub.f32 %v6062, %v6157
    %v6159 = vand.u32 %v6158, 4294901760
    %6160 = vmatmul.f32.gmra.mxu0 %v6159
    %v6161 = vpop.f32.mrf.mxu0
    %v6162 = vadd.f32 %v6138, %v6161
    %6163 = vdwg.mxu0
    %6164 = vmatpush.msra.mxu0 0.0
    %6165 = vmatpush.msra.mxu0 0.0
    %6166 = vmatpush.msra.mxu0 0.0
    %6167 = vmatpush.msra.mxu0 0.0
    %6168 = vmatpush.msra.mxu0 0.0
    %6169 = vmatpush.msra.mxu0 0.0
    %6170 = vmatpush.msra.mxu0 0.0
    %6171 = vmatpush.msra.mxu0 0.0
    %6172 = vmatpush.msra.mxu0 0.0
    %6173 = vmatpush.msra.mxu0 0.0
    %6174 = vmatpush.msra.mxu0 0.0
    %6175 = vmatpush.msra.mxu0 0.0
    %6176 = vmatpush.msra.mxu0 0.0
    %6177 = vmatpush.msra.mxu0 0.0
    %6178 = vmatpush.msra.mxu0 0.0
    %v6179 = vand.u32 %v6059, 4294901760
    %v6180 = vsub.f32 %v6059, %v6179
    %v6181 = vand.u32 %v6180, 4294901760
    %6182 = vmatpush.msra.mxu0 %v6181
    %v6183 = vand.u32 %v6062, 4294901760
    %6184 = vmatmul.f32.gmra.mxu0 %v6183
    %v6185 = vpop.f32.mrf.mxu0
    %v6186 = vadd.f32 %v6162, %v6185
    %6187 = vdwg.mxu0
    %6188 = vmatpush.msra.mxu0 0.0
    %6189 = vmatpush.msra.mxu0 0.0
    %6190 = vmatpush.msra.mxu0 0.0
    %6191 = vmatpush.msra.mxu0 0.0
    %6192 = vmatpush.msra.mxu0 0.0
    %6193 = vmatpush.msra.mxu0 0.0
    %6194 = vmatpush.msra.mxu0 0.0
    %6195 = vmatpush.msra.mxu0 0.0
    %6196 = vmatpush.msra.mxu0 0.0
    %6197 = vmatpush.msra.mxu0 0.0
    %6198 = vmatpush.msra.mxu0 0.0
    %6199 = vmatpush.msra.mxu0 0.0
    %6200 = vmatpush.msra.mxu0 0.0
    %6201 = vmatpush.msra.mxu0 0.0
    %6202 = vmatpush.msra.mxu0 0.0
    %v6203 = vand.u32 %v6059, 4294901760
    %6204 = vmatpush.msra.mxu0 %v6203
    %v6205 = vand.u32 %v6062, 4294901760
    %6206 = vmatmul.f32.gmra.mxu0 %v6205
    %v6207 = vpop.f32.mrf.mxu0
    %v6208 = vadd.f32 %v6186, %v6207
    %6209 = vdwg.mxu0
    %6210 = vrot.lane.b32.xlu0 %v4179, 64
    %v6211 = vpop.permute.xlu0 %6210
    %v6214 = vsel %vm352, %v5556, 0
    %6216 = vmatpush.msra.mxu0 0.0
    %6217 = vmatpush.msra.mxu0 0.0
    %6218 = vmatpush.msra.mxu0 0.0
    %6219 = vmatpush.msra.mxu0 0.0
    %6220 = vmatpush.msra.mxu0 0.0
    %6221 = vmatpush.msra.mxu0 0.0
    %6222 = vmatpush.msra.mxu0 0.0
    %6223 = vmatpush.msra.mxu0 0.0
    %6224 = vmatpush.msra.mxu0 0.0
    %6225 = vmatpush.msra.mxu0 0.0
    %6226 = vmatpush.msra.mxu0 0.0
    %6227 = vmatpush.msra.mxu0 0.0
    %6228 = vmatpush.msra.mxu0 0.0
    %6229 = vmatpush.msra.mxu0 0.0
    %6230 = vmatpush.msra.mxu0 0.0
    %v6231 = vand.u32 %v6211, 4294901760
    %6232 = vmatpush.msra.mxu0 %v6231
    %v6233 = vand.u32 %v6214, 4294901760
    %v6234 = vsub.f32 %v6214, %v6233
    %v6235 = vand.u32 %v6234, 4294901760
    %v6236 = vsub.f32 %v6234, %v6235
    %v6237 = vand.u32 %v6236, 4294901760
    %6238 = vmatmul.f32.gmra.mxu0 %v6237
    %v6239 = vpop.f32.mrf.mxu0
    %v6240 = vadd.f32 0.0, %v6239
    %6241 = vdwg.mxu0
    %6242 = vmatpush.msra.mxu0 0.0
    %6243 = vmatpush.msra.mxu0 0.0
    %6244 = vmatpush.msra.mxu0 0.0
    %6245 = vmatpush.msra.mxu0 0.0
    %6246 = vmatpush.msra.mxu0 0.0
    %6247 = vmatpush.msra.mxu0 0.0
    %6248 = vmatpush.msra.mxu0 0.0
    %6249 = vmatpush.msra.mxu0 0.0
    %6250 = vmatpush.msra.mxu0 0.0
    %6251 = vmatpush.msra.mxu0 0.0
    %6252 = vmatpush.msra.mxu0 0.0
    %6253 = vmatpush.msra.mxu0 0.0
    %6254 = vmatpush.msra.mxu0 0.0
    %6255 = vmatpush.msra.mxu0 0.0
    %6256 = vmatpush.msra.mxu0 0.0
    %v6257 = vand.u32 %v6211, 4294901760
    %v6258 = vsub.f32 %v6211, %v6257
    %v6259 = vand.u32 %v6258, 4294901760
    %v6260 = vsub.f32 %v6258, %v6259
    %v6261 = vand.u32 %v6260, 4294901760
    %6262 = vmatpush.msra.mxu0 %v6261
    %v6263 = vand.u32 %v6214, 4294901760
    %6264 = vmatmul.f32.gmra.mxu0 %v6263
    %v6265 = vpop.f32.mrf.mxu0
    %v6266 = vadd.f32 %v6240, %v6265
    %6267 = vdwg.mxu0
    %6268 = vmatpush.msra.mxu0 0.0
    %6269 = vmatpush.msra.mxu0 0.0
    %6270 = vmatpush.msra.mxu0 0.0
    %6271 = vmatpush.msra.mxu0 0.0
    %6272 = vmatpush.msra.mxu0 0.0
    %6273 = vmatpush.msra.mxu0 0.0
    %6274 = vmatpush.msra.mxu0 0.0
    %6275 = vmatpush.msra.mxu0 0.0
    %6276 = vmatpush.msra.mxu0 0.0
    %6277 = vmatpush.msra.mxu0 0.0
    %6278 = vmatpush.msra.mxu0 0.0
    %6279 = vmatpush.msra.mxu0 0.0
    %6280 = vmatpush.msra.mxu0 0.0
    %6281 = vmatpush.msra.mxu0 0.0
    %6282 = vmatpush.msra.mxu0 0.0
    %v6283 = vand.u32 %v6211, 4294901760
    %v6284 = vsub.f32 %v6211, %v6283
    %6285 = vmatpush.msra.mxu0 %v6284
    %v6286 = vand.u32 %v6214, 4294901760
    %v6287 = vsub.f32 %v6214, %v6286
    %6288 = vmatmul.f32.gmra.mxu0 %v6287
    %v6289 = vpop.f32.mrf.mxu0
    %v6290 = vadd.f32 %v6266, %v6289
    %6291 = vdwg.mxu0
    %6292 = vmatpush.msra.mxu0 0.0
    %6293 = vmatpush.msra.mxu0 0.0
    %6294 = vmatpush.msra.mxu0 0.0
    %6295 = vmatpush.msra.mxu0 0.0
    %6296 = vmatpush.msra.mxu0 0.0
    %6297 = vmatpush.msra.mxu0 0.0
    %6298 = vmatpush.msra.mxu0 0.0
    %6299 = vmatpush.msra.mxu0 0.0
    %6300 = vmatpush.msra.mxu0 0.0
    %6301 = vmatpush.msra.mxu0 0.0
    %6302 = vmatpush.msra.mxu0 0.0
    %6303 = vmatpush.msra.mxu0 0.0
    %6304 = vmatpush.msra.mxu0 0.0
    %6305 = vmatpush.msra.mxu0 0.0
    %6306 = vmatpush.msra.mxu0 0.0
    %v6307 = vand.u32 %v6211, 4294901760
    %6308 = vmatpush.msra.mxu0 %v6307
    %v6309 = vand.u32 %v6214, 4294901760
    %v6310 = vsub.f32 %v6214, %v6309
    %v6311 = vand.u32 %v6310, 4294901760
    %6312 = vmatmul.f32.gmra.mxu0 %v6311
    %v6313 = vpop.f32.mrf.mxu0
    %v6314 = vadd.f32 %v6290, %v6313
    %6315 = vdwg.mxu0
    %6316 = vmatpush.msra.mxu0 0.0
    %6317 = vmatpush.msra.mxu0 0.0
    %6318 = vmatpush.msra.mxu0 0.0
    %6319 = vmatpush.msra.mxu0 0.0
    %6320 = vmatpush.msra.mxu0 0.0
    %6321 = vmatpush.msra.mxu0 0.0
    %6322 = vmatpush.msra.mxu0 0.0
    %6323 = vmatpush.msra.mxu0 0.0
    %6324 = vmatpush.msra.mxu0 0.0
    %6325 = vmatpush.msra.mxu0 0.0
    %6326 = vmatpush.msra.mxu0 0.0
    %6327 = vmatpush.msra.mxu0 0.0
    %6328 = vmatpush.msra.mxu0 0.0
    %6329 = vmatpush.msra.mxu0 0.0
    %6330 = vmatpush.msra.mxu0 0.0
    %v6331 = vand.u32 %v6211, 4294901760
    %v6332 = vsub.f32 %v6211, %v6331
    %v6333 = vand.u32 %v6332, 4294901760
    %6334 = vmatpush.msra.mxu0 %v6333
    %v6335 = vand.u32 %v6214, 4294901760
    %6336 = vmatmul.f32.gmra.mxu0 %v6335
    %v6337 = vpop.f32.mrf.mxu0
    %v6338 = vadd.f32 %v6314, %v6337
    %6339 = vdwg.mxu0
    %6340 = vmatpush.msra.mxu0 0.0
    %6341 = vmatpush.msra.mxu0 0.0
    %6342 = vmatpush.msra.mxu0 0.0
    %6343 = vmatpush.msra.mxu0 0.0
    %6344 = vmatpush.msra.mxu0 0.0
    %6345 = vmatpush.msra.mxu0 0.0
    %6346 = vmatpush.msra.mxu0 0.0
    %6347 = vmatpush.msra.mxu0 0.0
    %6348 = vmatpush.msra.mxu0 0.0
    %6349 = vmatpush.msra.mxu0 0.0
    %6350 = vmatpush.msra.mxu0 0.0
    %6351 = vmatpush.msra.mxu0 0.0
    %6352 = vmatpush.msra.mxu0 0.0
    %6353 = vmatpush.msra.mxu0 0.0
    %6354 = vmatpush.msra.mxu0 0.0
    %v6355 = vand.u32 %v6211, 4294901760
    %6356 = vmatpush.msra.mxu0 %v6355
    %v6357 = vand.u32 %v6214, 4294901760
    %6358 = vmatmul.f32.gmra.mxu0 %v6357
    %v6359 = vpop.f32.mrf.mxu0
    %v6360 = vadd.f32 %v6338, %v6359
    %6361 = vdwg.mxu0
    %6362 = vrot.lane.b32.xlu0 %v4181, 64
    %v6363 = vpop.permute.xlu0 %6362
    %v6366 = vsel %vm352, %v5571, 0
    %6368 = vmatpush.msra.mxu0 0.0
    %6369 = vmatpush.msra.mxu0 0.0
    %6370 = vmatpush.msra.mxu0 0.0
    %6371 = vmatpush.msra.mxu0 0.0
    %6372 = vmatpush.msra.mxu0 0.0
    %6373 = vmatpush.msra.mxu0 0.0
    %6374 = vmatpush.msra.mxu0 0.0
    %6375 = vmatpush.msra.mxu0 0.0
    %6376 = vmatpush.msra.mxu0 0.0
    %6377 = vmatpush.msra.mxu0 0.0
    %6378 = vmatpush.msra.mxu0 0.0
    %6379 = vmatpush.msra.mxu0 0.0
    %6380 = vmatpush.msra.mxu0 0.0
    %6381 = vmatpush.msra.mxu0 0.0
    %6382 = vmatpush.msra.mxu0 0.0
    %v6383 = vand.u32 %v6363, 4294901760
    %6384 = vmatpush.msra.mxu0 %v6383
    %v6385 = vand.u32 %v6366, 4294901760
    %v6386 = vsub.f32 %v6366, %v6385
    %v6387 = vand.u32 %v6386, 4294901760
    %v6388 = vsub.f32 %v6386, %v6387
    %v6389 = vand.u32 %v6388, 4294901760
    %6390 = vmatmul.f32.gmra.mxu0 %v6389
    %v6391 = vpop.f32.mrf.mxu0
    %v6392 = vadd.f32 0.0, %v6391
    %6393 = vdwg.mxu0
    %6394 = vmatpush.msra.mxu0 0.0
    %6395 = vmatpush.msra.mxu0 0.0
    %6396 = vmatpush.msra.mxu0 0.0
    %6397 = vmatpush.msra.mxu0 0.0
    %6398 = vmatpush.msra.mxu0 0.0
    %6399 = vmatpush.msra.mxu0 0.0
    %6400 = vmatpush.msra.mxu0 0.0
    %6401 = vmatpush.msra.mxu0 0.0
    %6402 = vmatpush.msra.mxu0 0.0
    %6403 = vmatpush.msra.mxu0 0.0
    %6404 = vmatpush.msra.mxu0 0.0
    %6405 = vmatpush.msra.mxu0 0.0
    %6406 = vmatpush.msra.mxu0 0.0
    %6407 = vmatpush.msra.mxu0 0.0
    %6408 = vmatpush.msra.mxu0 0.0
    %v6409 = vand.u32 %v6363, 4294901760
    %v6410 = vsub.f32 %v6363, %v6409
    %v6411 = vand.u32 %v6410, 4294901760
    %v6412 = vsub.f32 %v6410, %v6411
    %v6413 = vand.u32 %v6412, 4294901760
    %6414 = vmatpush.msra.mxu0 %v6413
    %v6415 = vand.u32 %v6366, 4294901760
    %6416 = vmatmul.f32.gmra.mxu0 %v6415
    %v6417 = vpop.f32.mrf.mxu0
    %v6418 = vadd.f32 %v6392, %v6417
    %6419 = vdwg.mxu0
    %6420 = vmatpush.msra.mxu0 0.0
    %6421 = vmatpush.msra.mxu0 0.0
    %6422 = vmatpush.msra.mxu0 0.0
    %6423 = vmatpush.msra.mxu0 0.0
    %6424 = vmatpush.msra.mxu0 0.0
    %6425 = vmatpush.msra.mxu0 0.0
    %6426 = vmatpush.msra.mxu0 0.0
    %6427 = vmatpush.msra.mxu0 0.0
    %6428 = vmatpush.msra.mxu0 0.0
    %6429 = vmatpush.msra.mxu0 0.0
    %6430 = vmatpush.msra.mxu0 0.0
    %6431 = vmatpush.msra.mxu0 0.0
    %6432 = vmatpush.msra.mxu0 0.0
    %6433 = vmatpush.msra.mxu0 0.0
    %6434 = vmatpush.msra.mxu0 0.0
    %v6435 = vand.u32 %v6363, 4294901760
    %v6436 = vsub.f32 %v6363, %v6435
    %6437 = vmatpush.msra.mxu0 %v6436
    %v6438 = vand.u32 %v6366, 4294901760
    %v6439 = vsub.f32 %v6366, %v6438
    %6440 = vmatmul.f32.gmra.mxu0 %v6439
    %v6441 = vpop.f32.mrf.mxu0
    %v6442 = vadd.f32 %v6418, %v6441
    %6443 = vdwg.mxu0
    %6444 = vmatpush.msra.mxu0 0.0
    %6445 = vmatpush.msra.mxu0 0.0
    %6446 = vmatpush.msra.mxu0 0.0
    %6447 = vmatpush.msra.mxu0 0.0
    %6448 = vmatpush.msra.mxu0 0.0
    %6449 = vmatpush.msra.mxu0 0.0
    %6450 = vmatpush.msra.mxu0 0.0
    %6451 = vmatpush.msra.mxu0 0.0
    %6452 = vmatpush.msra.mxu0 0.0
    %6453 = vmatpush.msra.mxu0 0.0
    %6454 = vmatpush.msra.mxu0 0.0
    %6455 = vmatpush.msra.mxu0 0.0
    %6456 = vmatpush.msra.mxu0 0.0
    %6457 = vmatpush.msra.mxu0 0.0
    %6458 = vmatpush.msra.mxu0 0.0
    %v6459 = vand.u32 %v6363, 4294901760
    %6460 = vmatpush.msra.mxu0 %v6459
    %v6461 = vand.u32 %v6366, 4294901760
    %v6462 = vsub.f32 %v6366, %v6461
    %v6463 = vand.u32 %v6462, 4294901760
    %6464 = vmatmul.f32.gmra.mxu0 %v6463
    %v6465 = vpop.f32.mrf.mxu0
    %v6466 = vadd.f32 %v6442, %v6465
    %6467 = vdwg.mxu0
    %6468 = vmatpush.msra.mxu0 0.0
    %6469 = vmatpush.msra.mxu0 0.0
    %6470 = vmatpush.msra.mxu0 0.0
    %6471 = vmatpush.msra.mxu0 0.0
    %6472 = vmatpush.msra.mxu0 0.0
    %6473 = vmatpush.msra.mxu0 0.0
    %6474 = vmatpush.msra.mxu0 0.0
    %6475 = vmatpush.msra.mxu0 0.0
    %6476 = vmatpush.msra.mxu0 0.0
    %6477 = vmatpush.msra.mxu0 0.0
    %6478 = vmatpush.msra.mxu0 0.0
    %6479 = vmatpush.msra.mxu0 0.0
    %6480 = vmatpush.msra.mxu0 0.0
    %6481 = vmatpush.msra.mxu0 0.0
    %6482 = vmatpush.msra.mxu0 0.0
    %v6483 = vand.u32 %v6363, 4294901760
    %v6484 = vsub.f32 %v6363, %v6483
    %v6485 = vand.u32 %v6484, 4294901760
    %6486 = vmatpush.msra.mxu0 %v6485
    %v6487 = vand.u32 %v6366, 4294901760
    %6488 = vmatmul.f32.gmra.mxu0 %v6487
    %v6489 = vpop.f32.mrf.mxu0
    %v6490 = vadd.f32 %v6466, %v6489
    %6491 = vdwg.mxu0
    %6492 = vmatpush.msra.mxu0 0.0
    %6493 = vmatpush.msra.mxu0 0.0
    %6494 = vmatpush.msra.mxu0 0.0
    %6495 = vmatpush.msra.mxu0 0.0
    %6496 = vmatpush.msra.mxu0 0.0
    %6497 = vmatpush.msra.mxu0 0.0
    %6498 = vmatpush.msra.mxu0 0.0
    %6499 = vmatpush.msra.mxu0 0.0
    %6500 = vmatpush.msra.mxu0 0.0
    %6501 = vmatpush.msra.mxu0 0.0
    %6502 = vmatpush.msra.mxu0 0.0
    %6503 = vmatpush.msra.mxu0 0.0
    %6504 = vmatpush.msra.mxu0 0.0
    %6505 = vmatpush.msra.mxu0 0.0
    %6506 = vmatpush.msra.mxu0 0.0
    %v6507 = vand.u32 %v6363, 4294901760
    %6508 = vmatpush.msra.mxu0 %v6507
    %v6509 = vand.u32 %v6366, 4294901760
    %6510 = vmatmul.f32.gmra.mxu0 %v6509
    %v6511 = vpop.f32.mrf.mxu0
    %v6512 = vadd.f32 %v6490, %v6511
    %6513 = vdwg.mxu0
    %6514 = vrot.lane.b32.xlu0 %v4183, 64
    %v6515 = vpop.permute.xlu0 %6514
    %v6518 = vsel %vm352, %v5586, 0
    %6520 = vmatpush.msra.mxu0 0.0
    %6521 = vmatpush.msra.mxu0 0.0
    %6522 = vmatpush.msra.mxu0 0.0
    %6523 = vmatpush.msra.mxu0 0.0
    %6524 = vmatpush.msra.mxu0 0.0
    %6525 = vmatpush.msra.mxu0 0.0
    %6526 = vmatpush.msra.mxu0 0.0
    %6527 = vmatpush.msra.mxu0 0.0
    %6528 = vmatpush.msra.mxu0 0.0
    %6529 = vmatpush.msra.mxu0 0.0
    %6530 = vmatpush.msra.mxu0 0.0
    %6531 = vmatpush.msra.mxu0 0.0
    %6532 = vmatpush.msra.mxu0 0.0
    %6533 = vmatpush.msra.mxu0 0.0
    %6534 = vmatpush.msra.mxu0 0.0
    %v6535 = vand.u32 %v6515, 4294901760
    %6536 = vmatpush.msra.mxu0 %v6535
    %v6537 = vand.u32 %v6518, 4294901760
    %v6538 = vsub.f32 %v6518, %v6537
    %v6539 = vand.u32 %v6538, 4294901760
    %v6540 = vsub.f32 %v6538, %v6539
    %v6541 = vand.u32 %v6540, 4294901760
    %6542 = vmatmul.f32.gmra.mxu0 %v6541
    %v6543 = vpop.f32.mrf.mxu0
    %v6544 = vadd.f32 0.0, %v6543
    %6545 = vdwg.mxu0
    %6546 = vmatpush.msra.mxu0 0.0
    %6547 = vmatpush.msra.mxu0 0.0
    %6548 = vmatpush.msra.mxu0 0.0
    %6549 = vmatpush.msra.mxu0 0.0
    %6550 = vmatpush.msra.mxu0 0.0
    %6551 = vmatpush.msra.mxu0 0.0
    %6552 = vmatpush.msra.mxu0 0.0
    %6553 = vmatpush.msra.mxu0 0.0
    %6554 = vmatpush.msra.mxu0 0.0
    %6555 = vmatpush.msra.mxu0 0.0
    %6556 = vmatpush.msra.mxu0 0.0
    %6557 = vmatpush.msra.mxu0 0.0
    %6558 = vmatpush.msra.mxu0 0.0
    %6559 = vmatpush.msra.mxu0 0.0
    %6560 = vmatpush.msra.mxu0 0.0
    %v6561 = vand.u32 %v6515, 4294901760
    %v6562 = vsub.f32 %v6515, %v6561
    %v6563 = vand.u32 %v6562, 4294901760
    %v6564 = vsub.f32 %v6562, %v6563
    %v6565 = vand.u32 %v6564, 4294901760
    %6566 = vmatpush.msra.mxu0 %v6565
    %v6567 = vand.u32 %v6518, 4294901760
    %6568 = vmatmul.f32.gmra.mxu0 %v6567
    %v6569 = vpop.f32.mrf.mxu0
    %v6570 = vadd.f32 %v6544, %v6569
    %6571 = vdwg.mxu0
    %6572 = vmatpush.msra.mxu0 0.0
    %6573 = vmatpush.msra.mxu0 0.0
    %6574 = vmatpush.msra.mxu0 0.0
    %6575 = vmatpush.msra.mxu0 0.0
    %6576 = vmatpush.msra.mxu0 0.0
    %6577 = vmatpush.msra.mxu0 0.0
    %6578 = vmatpush.msra.mxu0 0.0
    %6579 = vmatpush.msra.mxu0 0.0
    %6580 = vmatpush.msra.mxu0 0.0
    %6581 = vmatpush.msra.mxu0 0.0
    %6582 = vmatpush.msra.mxu0 0.0
    %6583 = vmatpush.msra.mxu0 0.0
    %6584 = vmatpush.msra.mxu0 0.0
    %6585 = vmatpush.msra.mxu0 0.0
    %6586 = vmatpush.msra.mxu0 0.0
    %v6587 = vand.u32 %v6515, 4294901760
    %v6588 = vsub.f32 %v6515, %v6587
    %6589 = vmatpush.msra.mxu0 %v6588
    %v6590 = vand.u32 %v6518, 4294901760
    %v6591 = vsub.f32 %v6518, %v6590
    %6592 = vmatmul.f32.gmra.mxu0 %v6591
    %v6593 = vpop.f32.mrf.mxu0
    %v6594 = vadd.f32 %v6570, %v6593
    %6595 = vdwg.mxu0
    %6596 = vmatpush.msra.mxu0 0.0
    %6597 = vmatpush.msra.mxu0 0.0
    %6598 = vmatpush.msra.mxu0 0.0
    %6599 = vmatpush.msra.mxu0 0.0
    %6600 = vmatpush.msra.mxu0 0.0
    %6601 = vmatpush.msra.mxu0 0.0
    %6602 = vmatpush.msra.mxu0 0.0
    %6603 = vmatpush.msra.mxu0 0.0
    %6604 = vmatpush.msra.mxu0 0.0
    %6605 = vmatpush.msra.mxu0 0.0
    %6606 = vmatpush.msra.mxu0 0.0
    %6607 = vmatpush.msra.mxu0 0.0
    %6608 = vmatpush.msra.mxu0 0.0
    %6609 = vmatpush.msra.mxu0 0.0
    %6610 = vmatpush.msra.mxu0 0.0
    %v6611 = vand.u32 %v6515, 4294901760
    %6612 = vmatpush.msra.mxu0 %v6611
    %v6613 = vand.u32 %v6518, 4294901760
    %v6614 = vsub.f32 %v6518, %v6613
    %v6615 = vand.u32 %v6614, 4294901760
    %6616 = vmatmul.f32.gmra.mxu0 %v6615
    %v6617 = vpop.f32.mrf.mxu0
    %v6618 = vadd.f32 %v6594, %v6617
    %6619 = vdwg.mxu0
    %6620 = vmatpush.msra.mxu0 0.0
    %6621 = vmatpush.msra.mxu0 0.0
    %6622 = vmatpush.msra.mxu0 0.0
    %6623 = vmatpush.msra.mxu0 0.0
    %6624 = vmatpush.msra.mxu0 0.0
    %6625 = vmatpush.msra.mxu0 0.0
    %6626 = vmatpush.msra.mxu0 0.0
    %6627 = vmatpush.msra.mxu0 0.0
    %6628 = vmatpush.msra.mxu0 0.0
    %6629 = vmatpush.msra.mxu0 0.0
    %6630 = vmatpush.msra.mxu0 0.0
    %6631 = vmatpush.msra.mxu0 0.0
    %6632 = vmatpush.msra.mxu0 0.0
    %6633 = vmatpush.msra.mxu0 0.0
    %6634 = vmatpush.msra.mxu0 0.0
    %v6635 = vand.u32 %v6515, 4294901760
    %v6636 = vsub.f32 %v6515, %v6635
    %v6637 = vand.u32 %v6636, 4294901760
    %6638 = vmatpush.msra.mxu0 %v6637
    %v6639 = vand.u32 %v6518, 4294901760
    %6640 = vmatmul.f32.gmra.mxu0 %v6639
    %v6641 = vpop.f32.mrf.mxu0
    %v6642 = vadd.f32 %v6618, %v6641
    %6643 = vdwg.mxu0
    %6644 = vmatpush.msra.mxu0 0.0
    %6645 = vmatpush.msra.mxu0 0.0
    %6646 = vmatpush.msra.mxu0 0.0
    %6647 = vmatpush.msra.mxu0 0.0
    %6648 = vmatpush.msra.mxu0 0.0
    %6649 = vmatpush.msra.mxu0 0.0
    %6650 = vmatpush.msra.mxu0 0.0
    %6651 = vmatpush.msra.mxu0 0.0
    %6652 = vmatpush.msra.mxu0 0.0
    %6653 = vmatpush.msra.mxu0 0.0
    %6654 = vmatpush.msra.mxu0 0.0
    %6655 = vmatpush.msra.mxu0 0.0
    %6656 = vmatpush.msra.mxu0 0.0
    %6657 = vmatpush.msra.mxu0 0.0
    %6658 = vmatpush.msra.mxu0 0.0
    %v6659 = vand.u32 %v6515, 4294901760
    %6660 = vmatpush.msra.mxu0 %v6659
    %v6661 = vand.u32 %v6518, 4294901760
    %6662 = vmatmul.f32.gmra.mxu0 %v6661
    %v6663 = vpop.f32.mrf.mxu0
    %v6664 = vadd.f32 %v6642, %v6663
    %6665 = vdwg.mxu0
    %6666 = vrot.lane.b32.xlu0 %v4185, 64
    %v6667 = vpop.permute.xlu0 %6666
    %v6670 = vsel %vm352, %v5601, 0
    %6672 = vmatpush.msra.mxu0 0.0
    %6673 = vmatpush.msra.mxu0 0.0
    %6674 = vmatpush.msra.mxu0 0.0
    %6675 = vmatpush.msra.mxu0 0.0
    %6676 = vmatpush.msra.mxu0 0.0
    %6677 = vmatpush.msra.mxu0 0.0
    %6678 = vmatpush.msra.mxu0 0.0
    %6679 = vmatpush.msra.mxu0 0.0
    %6680 = vmatpush.msra.mxu0 0.0
    %6681 = vmatpush.msra.mxu0 0.0
    %6682 = vmatpush.msra.mxu0 0.0
    %6683 = vmatpush.msra.mxu0 0.0
    %6684 = vmatpush.msra.mxu0 0.0
    %6685 = vmatpush.msra.mxu0 0.0
    %6686 = vmatpush.msra.mxu0 0.0
    %v6687 = vand.u32 %v6667, 4294901760
    %6688 = vmatpush.msra.mxu0 %v6687
    %v6689 = vand.u32 %v6670, 4294901760
    %v6690 = vsub.f32 %v6670, %v6689
    %v6691 = vand.u32 %v6690, 4294901760
    %v6692 = vsub.f32 %v6690, %v6691
    %v6693 = vand.u32 %v6692, 4294901760
    %6694 = vmatmul.f32.gmra.mxu0 %v6693
    %v6695 = vpop.f32.mrf.mxu0
    %v6696 = vadd.f32 0.0, %v6695
    %6697 = vdwg.mxu0
    %6698 = vmatpush.msra.mxu0 0.0
    %6699 = vmatpush.msra.mxu0 0.0
    %6700 = vmatpush.msra.mxu0 0.0
    %6701 = vmatpush.msra.mxu0 0.0
    %6702 = vmatpush.msra.mxu0 0.0
    %6703 = vmatpush.msra.mxu0 0.0
    %6704 = vmatpush.msra.mxu0 0.0
    %6705 = vmatpush.msra.mxu0 0.0
    %6706 = vmatpush.msra.mxu0 0.0
    %6707 = vmatpush.msra.mxu0 0.0
    %6708 = vmatpush.msra.mxu0 0.0
    %6709 = vmatpush.msra.mxu0 0.0
    %6710 = vmatpush.msra.mxu0 0.0
    %6711 = vmatpush.msra.mxu0 0.0
    %6712 = vmatpush.msra.mxu0 0.0
    %v6713 = vand.u32 %v6667, 4294901760
    %v6714 = vsub.f32 %v6667, %v6713
    %v6715 = vand.u32 %v6714, 4294901760
    %v6716 = vsub.f32 %v6714, %v6715
    %v6717 = vand.u32 %v6716, 4294901760
    %6718 = vmatpush.msra.mxu0 %v6717
    %v6719 = vand.u32 %v6670, 4294901760
    %6720 = vmatmul.f32.gmra.mxu0 %v6719
    %v6721 = vpop.f32.mrf.mxu0
    %v6722 = vadd.f32 %v6696, %v6721
    %6723 = vdwg.mxu0
    %6724 = vmatpush.msra.mxu0 0.0
    %6725 = vmatpush.msra.mxu0 0.0
    %6726 = vmatpush.msra.mxu0 0.0
    %6727 = vmatpush.msra.mxu0 0.0
    %6728 = vmatpush.msra.mxu0 0.0
    %6729 = vmatpush.msra.mxu0 0.0
    %6730 = vmatpush.msra.mxu0 0.0
    %6731 = vmatpush.msra.mxu0 0.0
    %6732 = vmatpush.msra.mxu0 0.0
    %6733 = vmatpush.msra.mxu0 0.0
    %6734 = vmatpush.msra.mxu0 0.0
    %6735 = vmatpush.msra.mxu0 0.0
    %6736 = vmatpush.msra.mxu0 0.0
    %6737 = vmatpush.msra.mxu0 0.0
    %6738 = vmatpush.msra.mxu0 0.0
    %v6739 = vand.u32 %v6667, 4294901760
    %v6740 = vsub.f32 %v6667, %v6739
    %6741 = vmatpush.msra.mxu0 %v6740
    %v6742 = vand.u32 %v6670, 4294901760
    %v6743 = vsub.f32 %v6670, %v6742
    %6744 = vmatmul.f32.gmra.mxu0 %v6743
    %v6745 = vpop.f32.mrf.mxu0
    %v6746 = vadd.f32 %v6722, %v6745
    %6747 = vdwg.mxu0
    %6748 = vmatpush.msra.mxu0 0.0
    %6749 = vmatpush.msra.mxu0 0.0
    %6750 = vmatpush.msra.mxu0 0.0
    %6751 = vmatpush.msra.mxu0 0.0
    %6752 = vmatpush.msra.mxu0 0.0
    %6753 = vmatpush.msra.mxu0 0.0
    %6754 = vmatpush.msra.mxu0 0.0
    %6755 = vmatpush.msra.mxu0 0.0
    %6756 = vmatpush.msra.mxu0 0.0
    %6757 = vmatpush.msra.mxu0 0.0
    %6758 = vmatpush.msra.mxu0 0.0
    %6759 = vmatpush.msra.mxu0 0.0
    %6760 = vmatpush.msra.mxu0 0.0
    %6761 = vmatpush.msra.mxu0 0.0
    %6762 = vmatpush.msra.mxu0 0.0
    %v6763 = vand.u32 %v6667, 4294901760
    %6764 = vmatpush.msra.mxu0 %v6763
    %v6765 = vand.u32 %v6670, 4294901760
    %v6766 = vsub.f32 %v6670, %v6765
    %v6767 = vand.u32 %v6766, 4294901760
    %6768 = vmatmul.f32.gmra.mxu0 %v6767
    %v6769 = vpop.f32.mrf.mxu0
    %v6770 = vadd.f32 %v6746, %v6769
    %6771 = vdwg.mxu0
    %6772 = vmatpush.msra.mxu0 0.0
    %6773 = vmatpush.msra.mxu0 0.0
    %6774 = vmatpush.msra.mxu0 0.0
    %6775 = vmatpush.msra.mxu0 0.0
    %6776 = vmatpush.msra.mxu0 0.0
    %6777 = vmatpush.msra.mxu0 0.0
    %6778 = vmatpush.msra.mxu0 0.0
    %6779 = vmatpush.msra.mxu0 0.0
    %6780 = vmatpush.msra.mxu0 0.0
    %6781 = vmatpush.msra.mxu0 0.0
    %6782 = vmatpush.msra.mxu0 0.0
    %6783 = vmatpush.msra.mxu0 0.0
    %6784 = vmatpush.msra.mxu0 0.0
    %6785 = vmatpush.msra.mxu0 0.0
    %6786 = vmatpush.msra.mxu0 0.0
    %v6787 = vand.u32 %v6667, 4294901760
    %v6788 = vsub.f32 %v6667, %v6787
    %v6789 = vand.u32 %v6788, 4294901760
    %6790 = vmatpush.msra.mxu0 %v6789
    %v6791 = vand.u32 %v6670, 4294901760
    %6792 = vmatmul.f32.gmra.mxu0 %v6791
    %v6793 = vpop.f32.mrf.mxu0
    %v6794 = vadd.f32 %v6770, %v6793
    %6795 = vdwg.mxu0
    %6796 = vmatpush.msra.mxu0 0.0
    %6797 = vmatpush.msra.mxu0 0.0
    %6798 = vmatpush.msra.mxu0 0.0
    %6799 = vmatpush.msra.mxu0 0.0
    %6800 = vmatpush.msra.mxu0 0.0
    %6801 = vmatpush.msra.mxu0 0.0
    %6802 = vmatpush.msra.mxu0 0.0
    %6803 = vmatpush.msra.mxu0 0.0
    %6804 = vmatpush.msra.mxu0 0.0
    %6805 = vmatpush.msra.mxu0 0.0
    %6806 = vmatpush.msra.mxu0 0.0
    %6807 = vmatpush.msra.mxu0 0.0
    %6808 = vmatpush.msra.mxu0 0.0
    %6809 = vmatpush.msra.mxu0 0.0
    %6810 = vmatpush.msra.mxu0 0.0
    %v6811 = vand.u32 %v6667, 4294901760
    %6812 = vmatpush.msra.mxu0 %v6811
    %v6813 = vand.u32 %v6670, 4294901760
    %6814 = vmatmul.f32.gmra.mxu0 %v6813
    %v6815 = vpop.f32.mrf.mxu0
    %v6816 = vadd.f32 %v6794, %v6815
    %6817 = vdwg.mxu0
    %6820 = vrot.lane.b32.xlu0 %v6056, 8
    %v6821 = vpop.permute.xlu0 %6820
    %6822 = vrot.lane.b32.xlu0 %v6208, 8
    %v6823 = vpop.permute.xlu0 %6822
    %6828 = vrot.lane.b32.xlu0 %v6360, 16
    %v6829 = vpop.permute.xlu0 %6828
    %6830 = vrot.lane.b32.xlu0 %v6512, 16
    %v6831 = vpop.permute.xlu0 %6830
    %6836 = vrot.lane.b32.xlu0 %v6664, 24
    %v6837 = vpop.permute.xlu0 %6836
    %6838 = vrot.lane.b32.xlu0 %v6816, 24
    %v6839 = vpop.permute.xlu0 %6838
    %v6842 = vsel %vm352, %v5752, %v6821
    %v6843 = vsel %vm352, %v5904, %v6823
    %v6844 = vsel %vm3009, %v6842, %v6829
    %v6845 = vsel %vm3009, %v6843, %v6831
    %v6846 = vsel %vm3012, %v6844, %v6837
    %v6847 = vsel %vm3012, %v6845, %v6839
    %6852 = vrot.lane.b32.xlu0 %v28, 32
    %v6853 = vpop.permute.xlu0 %6852
    %6854 = vrot.lane.b32.xlu0 %v30, 32
    %v6855 = vpop.permute.xlu0 %6854
    %6856 = vrot.lane.b32.xlu0 %v32, 32
    %v6857 = vpop.permute.xlu0 %6856
    %6858 = vrot.lane.b32.xlu0 %v34, 32
    %v6859 = vpop.permute.xlu0 %6858
    %v6865 = vsel %vm55, %v6846, 0
    %v6868 = vsel %vm55, %v6847, 0
    %6870 = vmatpush.msra.mxu0 0.0
    %6871 = vmatpush.msra.mxu0 0.0
    %6872 = vmatpush.msra.mxu0 0.0
    %6873 = vmatpush.msra.mxu0 0.0
    %6874 = vmatpush.msra.mxu0 0.0
    %6875 = vmatpush.msra.mxu0 0.0
    %6876 = vmatpush.msra.mxu0 0.0
    %6877 = vmatpush.msra.mxu0 0.0
    %6878 = vmatpush.msra.mxu0 0.0
    %6879 = vmatpush.msra.mxu0 0.0
    %6880 = vmatpush.msra.mxu0 0.0
    %6881 = vmatpush.msra.mxu0 0.0
    %v6882 = vand.u32 %v6859, 4294901760
    %6883 = vmatpush.msra.mxu0 %v6882
    %v6884 = vand.u32 %v6857, 4294901760
    %6885 = vmatpush.msra.mxu0 %v6884
    %v6886 = vand.u32 %v6855, 4294901760
    %6887 = vmatpush.msra.mxu0 %v6886
    %v6888 = vand.u32 %v6853, 4294901760
    %6889 = vmatpush.msra.mxu0 %v6888
    %v6890 = vand.u32 %v6865, 4294901760
    %v6891 = vsub.f32 %v6865, %v6890
    %v6892 = vand.u32 %v6891, 4294901760
    %v6893 = vsub.f32 %v6891, %v6892
    %v6894 = vand.u32 %v6893, 4294901760
    %6895 = vmatmul.f32.gmra.mxu0 %v6894
    %v6896 = vpop.f32.mrf.mxu0
    %v6897 = vadd.f32 0.0, %v6896
    %v6898 = vand.u32 %v6868, 4294901760
    %v6899 = vsub.f32 %v6868, %v6898
    %v6900 = vand.u32 %v6899, 4294901760
    %v6901 = vsub.f32 %v6899, %v6900
    %v6902 = vand.u32 %v6901, 4294901760
    %6903 = vmatmul.f32.gmra.mxu0 %v6902
    %v6904 = vpop.f32.mrf.mxu0
    %v6905 = vadd.f32 0.0, %v6904
    %6906 = vdwg.mxu0
    %6907 = vmatpush.msra.mxu0 0.0
    %6908 = vmatpush.msra.mxu0 0.0
    %6909 = vmatpush.msra.mxu0 0.0
    %6910 = vmatpush.msra.mxu0 0.0
    %6911 = vmatpush.msra.mxu0 0.0
    %6912 = vmatpush.msra.mxu0 0.0
    %6913 = vmatpush.msra.mxu0 0.0
    %6914 = vmatpush.msra.mxu0 0.0
    %6915 = vmatpush.msra.mxu0 0.0
    %6916 = vmatpush.msra.mxu0 0.0
    %6917 = vmatpush.msra.mxu0 0.0
    %6918 = vmatpush.msra.mxu0 0.0
    %v6919 = vand.u32 %v6859, 4294901760
    %v6920 = vsub.f32 %v6859, %v6919
    %v6921 = vand.u32 %v6920, 4294901760
    %v6922 = vsub.f32 %v6920, %v6921
    %v6923 = vand.u32 %v6922, 4294901760
    %6924 = vmatpush.msra.mxu0 %v6923
    %v6925 = vand.u32 %v6857, 4294901760
    %v6926 = vsub.f32 %v6857, %v6925
    %v6927 = vand.u32 %v6926, 4294901760
    %v6928 = vsub.f32 %v6926, %v6927
    %v6929 = vand.u32 %v6928, 4294901760
    %6930 = vmatpush.msra.mxu0 %v6929
    %v6931 = vand.u32 %v6855, 4294901760
    %v6932 = vsub.f32 %v6855, %v6931
    %v6933 = vand.u32 %v6932, 4294901760
    %v6934 = vsub.f32 %v6932, %v6933
    %v6935 = vand.u32 %v6934, 4294901760
    %6936 = vmatpush.msra.mxu0 %v6935
    %v6937 = vand.u32 %v6853, 4294901760
    %v6938 = vsub.f32 %v6853, %v6937
    %v6939 = vand.u32 %v6938, 4294901760
    %v6940 = vsub.f32 %v6938, %v6939
    %v6941 = vand.u32 %v6940, 4294901760
    %6942 = vmatpush.msra.mxu0 %v6941
    %v6943 = vand.u32 %v6865, 4294901760
    %6944 = vmatmul.f32.gmra.mxu0 %v6943
    %v6945 = vpop.f32.mrf.mxu0
    %v6946 = vadd.f32 %v6897, %v6945
    %v6947 = vand.u32 %v6868, 4294901760
    %6948 = vmatmul.f32.gmra.mxu0 %v6947
    %v6949 = vpop.f32.mrf.mxu0
    %v6950 = vadd.f32 %v6905, %v6949
    %6951 = vdwg.mxu0
    %6952 = vmatpush.msra.mxu0 0.0
    %6953 = vmatpush.msra.mxu0 0.0
    %6954 = vmatpush.msra.mxu0 0.0
    %6955 = vmatpush.msra.mxu0 0.0
    %6956 = vmatpush.msra.mxu0 0.0
    %6957 = vmatpush.msra.mxu0 0.0
    %6958 = vmatpush.msra.mxu0 0.0
    %6959 = vmatpush.msra.mxu0 0.0
    %6960 = vmatpush.msra.mxu0 0.0
    %6961 = vmatpush.msra.mxu0 0.0
    %6962 = vmatpush.msra.mxu0 0.0
    %6963 = vmatpush.msra.mxu0 0.0
    %v6964 = vand.u32 %v6859, 4294901760
    %v6965 = vsub.f32 %v6859, %v6964
    %6966 = vmatpush.msra.mxu0 %v6965
    %v6967 = vand.u32 %v6857, 4294901760
    %v6968 = vsub.f32 %v6857, %v6967
    %6969 = vmatpush.msra.mxu0 %v6968
    %v6970 = vand.u32 %v6855, 4294901760
    %v6971 = vsub.f32 %v6855, %v6970
    %6972 = vmatpush.msra.mxu0 %v6971
    %v6973 = vand.u32 %v6853, 4294901760
    %v6974 = vsub.f32 %v6853, %v6973
    %6975 = vmatpush.msra.mxu0 %v6974
    %v6976 = vand.u32 %v6865, 4294901760
    %v6977 = vsub.f32 %v6865, %v6976
    %6978 = vmatmul.f32.gmra.mxu0 %v6977
    %v6979 = vpop.f32.mrf.mxu0
    %v6980 = vadd.f32 %v6946, %v6979
    %v6981 = vand.u32 %v6868, 4294901760
    %v6982 = vsub.f32 %v6868, %v6981
    %6983 = vmatmul.f32.gmra.mxu0 %v6982
    %v6984 = vpop.f32.mrf.mxu0
    %v6985 = vadd.f32 %v6950, %v6984
    %6986 = vdwg.mxu0
    %6987 = vmatpush.msra.mxu0 0.0
    %6988 = vmatpush.msra.mxu0 0.0
    %6989 = vmatpush.msra.mxu0 0.0
    %6990 = vmatpush.msra.mxu0 0.0
    %6991 = vmatpush.msra.mxu0 0.0
    %6992 = vmatpush.msra.mxu0 0.0
    %6993 = vmatpush.msra.mxu0 0.0
    %6994 = vmatpush.msra.mxu0 0.0
    %6995 = vmatpush.msra.mxu0 0.0
    %6996 = vmatpush.msra.mxu0 0.0
    %6997 = vmatpush.msra.mxu0 0.0
    %6998 = vmatpush.msra.mxu0 0.0
    %v6999 = vand.u32 %v6859, 4294901760
    %7000 = vmatpush.msra.mxu0 %v6999
    %v7001 = vand.u32 %v6857, 4294901760
    %7002 = vmatpush.msra.mxu0 %v7001
    %v7003 = vand.u32 %v6855, 4294901760
    %7004 = vmatpush.msra.mxu0 %v7003
    %v7005 = vand.u32 %v6853, 4294901760
    %7006 = vmatpush.msra.mxu0 %v7005
    %v7007 = vand.u32 %v6865, 4294901760
    %v7008 = vsub.f32 %v6865, %v7007
    %v7009 = vand.u32 %v7008, 4294901760
    %7010 = vmatmul.f32.gmra.mxu0 %v7009
    %v7011 = vpop.f32.mrf.mxu0
    %v7012 = vadd.f32 %v6980, %v7011
    %v7013 = vand.u32 %v6868, 4294901760
    %v7014 = vsub.f32 %v6868, %v7013
    %v7015 = vand.u32 %v7014, 4294901760
    %7016 = vmatmul.f32.gmra.mxu0 %v7015
    %v7017 = vpop.f32.mrf.mxu0
    %v7018 = vadd.f32 %v6985, %v7017
    %7019 = vdwg.mxu0
    %7020 = vmatpush.msra.mxu0 0.0
    %7021 = vmatpush.msra.mxu0 0.0
    %7022 = vmatpush.msra.mxu0 0.0
    %7023 = vmatpush.msra.mxu0 0.0
    %7024 = vmatpush.msra.mxu0 0.0
    %7025 = vmatpush.msra.mxu0 0.0
    %7026 = vmatpush.msra.mxu0 0.0
    %7027 = vmatpush.msra.mxu0 0.0
    %7028 = vmatpush.msra.mxu0 0.0
    %7029 = vmatpush.msra.mxu0 0.0
    %7030 = vmatpush.msra.mxu0 0.0
    %7031 = vmatpush.msra.mxu0 0.0
    %v7032 = vand.u32 %v6859, 4294901760
    %v7033 = vsub.f32 %v6859, %v7032
    %v7034 = vand.u32 %v7033, 4294901760
    %7035 = vmatpush.msra.mxu0 %v7034
    %v7036 = vand.u32 %v6857, 4294901760
    %v7037 = vsub.f32 %v6857, %v7036
    %v7038 = vand.u32 %v7037, 4294901760
    %7039 = vmatpush.msra.mxu0 %v7038
    %v7040 = vand.u32 %v6855, 4294901760
    %v7041 = vsub.f32 %v6855, %v7040
    %v7042 = vand.u32 %v7041, 4294901760
    %7043 = vmatpush.msra.mxu0 %v7042
    %v7044 = vand.u32 %v6853, 4294901760
    %v7045 = vsub.f32 %v6853, %v7044
    %v7046 = vand.u32 %v7045, 4294901760
    %7047 = vmatpush.msra.mxu0 %v7046
    %v7048 = vand.u32 %v6865, 4294901760
    %7049 = vmatmul.f32.gmra.mxu0 %v7048
    %v7050 = vpop.f32.mrf.mxu0
    %v7051 = vadd.f32 %v7012, %v7050
    %v7052 = vand.u32 %v6868, 4294901760
    %7053 = vmatmul.f32.gmra.mxu0 %v7052
    %v7054 = vpop.f32.mrf.mxu0
    %v7055 = vadd.f32 %v7018, %v7054
    %7056 = vdwg.mxu0
    %7057 = vmatpush.msra.mxu0 0.0
    %7058 = vmatpush.msra.mxu0 0.0
    %7059 = vmatpush.msra.mxu0 0.0
    %7060 = vmatpush.msra.mxu0 0.0
    %7061 = vmatpush.msra.mxu0 0.0
    %7062 = vmatpush.msra.mxu0 0.0
    %7063 = vmatpush.msra.mxu0 0.0
    %7064 = vmatpush.msra.mxu0 0.0
    %7065 = vmatpush.msra.mxu0 0.0
    %7066 = vmatpush.msra.mxu0 0.0
    %7067 = vmatpush.msra.mxu0 0.0
    %7068 = vmatpush.msra.mxu0 0.0
    %v7069 = vand.u32 %v6859, 4294901760
    %7070 = vmatpush.msra.mxu0 %v7069
    %v7071 = vand.u32 %v6857, 4294901760
    %7072 = vmatpush.msra.mxu0 %v7071
    %v7073 = vand.u32 %v6855, 4294901760
    %7074 = vmatpush.msra.mxu0 %v7073
    %v7075 = vand.u32 %v6853, 4294901760
    %7076 = vmatpush.msra.mxu0 %v7075
    %v7077 = vand.u32 %v6865, 4294901760
    %7078 = vmatmul.f32.gmra.mxu0 %v7077
    %v7079 = vpop.f32.mrf.mxu0
    %v7080 = vadd.f32 %v7051, %v7079
    %v7081 = vand.u32 %v6868, 4294901760
    %7082 = vmatmul.f32.gmra.mxu0 %v7081
    %v7083 = vpop.f32.mrf.mxu0
    %v7084 = vadd.f32 %v7055, %v7083
    %7085 = vdwg.mxu0
    %v7086 = vadd.f32 %v3897, %v7080
    %v7087 = vadd.f32 %v3898, %v7084
    %v7088 = vperm.slane %v53, 3
    %v7089 = vadd.f32 %v7086, %v7088
    %v7090 = vadd.f32 %v7087, %v7088
    %v7091 = vsel %vm55, %v7089, 0.0
    %7092 = vadd.xlane.f32.xlu0 %v7091
    %v7093 = vpop.xlane.xlu0 %7092
    %v7094 = vsel %vm55, %v7090, 0.0
    %7095 = vadd.xlane.f32.xlu0 %v7094
    %v7096 = vpop.xlane.xlu0 %7095
    %v7097 = vmul.f32 %v7093, %v68
    %v7098 = vmul.f32 %v7096, %v68
    %v7099 = vsub.f32 %v7089, %v7097
    %v7100 = vsub.f32 %v7090, %v7098
    %v7101 = vmul.f32 %v7099, %v7099
    %v7102 = vmul.f32 %v7100, %v7100
    %v7103 = vsel %vm55, %v7101, 0.0
    %7104 = vadd.xlane.f32.xlu0 %v7103
    %v7105 = vpop.xlane.xlu0 %7104
    %v7106 = vsel %vm55, %v7102, 0.0
    %7107 = vadd.xlane.f32.xlu0 %v7106
    %v7108 = vpop.xlane.xlu0 %7107
    %v7109 = vmul.f32 %v7105, %v68
    %v7110 = vmul.f32 %v7108, %v68
    %v7111 = vadd.f32 %v7109, 1e-05
    %v7112 = vadd.f32 %v7110, 1e-05
    %v7113 = vrsqrt.pop %v7111
    %v7114 = vmul.f32 %v7113, %v7111
    %v7115 = vmul.f32 %v7114, %v7113
    %v7116 = vmul.f32 0.5, %v7115
    %v7117 = vsub.f32 1.5, %v7116
    %v7118 = vmul.f32 %v7113, %v7117
    %vm7119 = vweird.f32 %v7111
    %vm7120 = vweird.f32 %v7113
    %vm7121 = vmor %vm7119, %vm7120
    %v7122 = vsel %vm7121, %v7113, %v7118
    %v7123 = vrsqrt.pop %v7112
    %v7124 = vmul.f32 %v7123, %v7112
    %v7125 = vmul.f32 %v7124, %v7123
    %v7126 = vmul.f32 0.5, %v7125
    %v7127 = vsub.f32 1.5, %v7126
    %v7128 = vmul.f32 %v7123, %v7127
    %vm7129 = vweird.f32 %v7112
    %vm7130 = vweird.f32 %v7123
    %vm7131 = vmor %vm7129, %vm7130
    %v7132 = vsel %vm7131, %v7123, %v7128
    %v7133 = vmul.f32 %v7099, %v7122
    %v7134 = vmul.f32 %v7100, %v7132
    %v7135 = vperm.slane %v53, 4
    %v7136 = vmul.f32 %v7133, %v7135
    %v7137 = vmul.f32 %v7134, %v7135
    %v7138 = vperm.slane %v53, 5
    %v7139 = vadd.f32 %v7136, %v7138
    %v7140 = vadd.f32 %v7137, %v7138
    %v7141 = vperm.slane %v53, 6
    %v7143 = vsel %vm55, %v7139, 0
    %v7146 = vsel %vm55, %v7140, 0
    %7148 = vmatpush.msra.mxu0 0.0
    %7149 = vmatpush.msra.mxu0 0.0
    %7150 = vmatpush.msra.mxu0 0.0
    %7151 = vmatpush.msra.mxu0 0.0
    %7152 = vmatpush.msra.mxu0 0.0
    %7153 = vmatpush.msra.mxu0 0.0
    %7154 = vmatpush.msra.mxu0 0.0
    %7155 = vmatpush.msra.mxu0 0.0
    %7156 = vmatpush.msra.mxu0 0.0
    %7157 = vmatpush.msra.mxu0 0.0
    %7158 = vmatpush.msra.mxu0 0.0
    %7159 = vmatpush.msra.mxu0 0.0
    %v7160 = vand.u32 %v35, 4294901760
    %7161 = vmatpush.msra.mxu0 %v7160
    %v7162 = vand.u32 %v33, 4294901760
    %7163 = vmatpush.msra.mxu0 %v7162
    %v7164 = vand.u32 %v31, 4294901760
    %7165 = vmatpush.msra.mxu0 %v7164
    %v7166 = vand.u32 %v29, 4294901760
    %7167 = vmatpush.msra.mxu0 %v7166
    %v7168 = vand.u32 %v7143, 4294901760
    %v7169 = vsub.f32 %v7143, %v7168
    %v7170 = vand.u32 %v7169, 4294901760
    %v7171 = vsub.f32 %v7169, %v7170
    %v7172 = vand.u32 %v7171, 4294901760
    %7173 = vmatmul.f32.gmra.mxu0 %v7172
    %v7174 = vpop.f32.mrf.mxu0
    %v7175 = vadd.f32 %v7141, %v7174
    %v7176 = vand.u32 %v7146, 4294901760
    %v7177 = vsub.f32 %v7146, %v7176
    %v7178 = vand.u32 %v7177, 4294901760
    %v7179 = vsub.f32 %v7177, %v7178
    %v7180 = vand.u32 %v7179, 4294901760
    %7181 = vmatmul.f32.gmra.mxu0 %v7180
    %v7182 = vpop.f32.mrf.mxu0
    %v7183 = vadd.f32 %v7141, %v7182
    %7184 = vdwg.mxu0
    %7185 = vmatpush.msra.mxu0 0.0
    %7186 = vmatpush.msra.mxu0 0.0
    %7187 = vmatpush.msra.mxu0 0.0
    %7188 = vmatpush.msra.mxu0 0.0
    %7189 = vmatpush.msra.mxu0 0.0
    %7190 = vmatpush.msra.mxu0 0.0
    %7191 = vmatpush.msra.mxu0 0.0
    %7192 = vmatpush.msra.mxu0 0.0
    %7193 = vmatpush.msra.mxu0 0.0
    %7194 = vmatpush.msra.mxu0 0.0
    %7195 = vmatpush.msra.mxu0 0.0
    %7196 = vmatpush.msra.mxu0 0.0
    %v7197 = vand.u32 %v35, 4294901760
    %v7198 = vsub.f32 %v35, %v7197
    %v7199 = vand.u32 %v7198, 4294901760
    %v7200 = vsub.f32 %v7198, %v7199
    %v7201 = vand.u32 %v7200, 4294901760
    %7202 = vmatpush.msra.mxu0 %v7201
    %v7203 = vand.u32 %v33, 4294901760
    %v7204 = vsub.f32 %v33, %v7203
    %v7205 = vand.u32 %v7204, 4294901760
    %v7206 = vsub.f32 %v7204, %v7205
    %v7207 = vand.u32 %v7206, 4294901760
    %7208 = vmatpush.msra.mxu0 %v7207
    %v7209 = vand.u32 %v31, 4294901760
    %v7210 = vsub.f32 %v31, %v7209
    %v7211 = vand.u32 %v7210, 4294901760
    %v7212 = vsub.f32 %v7210, %v7211
    %v7213 = vand.u32 %v7212, 4294901760
    %7214 = vmatpush.msra.mxu0 %v7213
    %v7215 = vand.u32 %v29, 4294901760
    %v7216 = vsub.f32 %v29, %v7215
    %v7217 = vand.u32 %v7216, 4294901760
    %v7218 = vsub.f32 %v7216, %v7217
    %v7219 = vand.u32 %v7218, 4294901760
    %7220 = vmatpush.msra.mxu0 %v7219
    %v7221 = vand.u32 %v7143, 4294901760
    %7222 = vmatmul.f32.gmra.mxu0 %v7221
    %v7223 = vpop.f32.mrf.mxu0
    %v7224 = vadd.f32 %v7175, %v7223
    %v7225 = vand.u32 %v7146, 4294901760
    %7226 = vmatmul.f32.gmra.mxu0 %v7225
    %v7227 = vpop.f32.mrf.mxu0
    %v7228 = vadd.f32 %v7183, %v7227
    %7229 = vdwg.mxu0
    %7230 = vmatpush.msra.mxu0 0.0
    %7231 = vmatpush.msra.mxu0 0.0
    %7232 = vmatpush.msra.mxu0 0.0
    %7233 = vmatpush.msra.mxu0 0.0
    %7234 = vmatpush.msra.mxu0 0.0
    %7235 = vmatpush.msra.mxu0 0.0
    %7236 = vmatpush.msra.mxu0 0.0
    %7237 = vmatpush.msra.mxu0 0.0
    %7238 = vmatpush.msra.mxu0 0.0
    %7239 = vmatpush.msra.mxu0 0.0
    %7240 = vmatpush.msra.mxu0 0.0
    %7241 = vmatpush.msra.mxu0 0.0
    %v7242 = vand.u32 %v35, 4294901760
    %v7243 = vsub.f32 %v35, %v7242
    %7244 = vmatpush.msra.mxu0 %v7243
    %v7245 = vand.u32 %v33, 4294901760
    %v7246 = vsub.f32 %v33, %v7245
    %7247 = vmatpush.msra.mxu0 %v7246
    %v7248 = vand.u32 %v31, 4294901760
    %v7249 = vsub.f32 %v31, %v7248
    %7250 = vmatpush.msra.mxu0 %v7249
    %v7251 = vand.u32 %v29, 4294901760
    %v7252 = vsub.f32 %v29, %v7251
    %7253 = vmatpush.msra.mxu0 %v7252
    %v7254 = vand.u32 %v7143, 4294901760
    %v7255 = vsub.f32 %v7143, %v7254
    %7256 = vmatmul.f32.gmra.mxu0 %v7255
    %v7257 = vpop.f32.mrf.mxu0
    %v7258 = vadd.f32 %v7224, %v7257
    %v7259 = vand.u32 %v7146, 4294901760
    %v7260 = vsub.f32 %v7146, %v7259
    %7261 = vmatmul.f32.gmra.mxu0 %v7260
    %v7262 = vpop.f32.mrf.mxu0
    %v7263 = vadd.f32 %v7228, %v7262
    %7264 = vdwg.mxu0
    %7265 = vmatpush.msra.mxu0 0.0
    %7266 = vmatpush.msra.mxu0 0.0
    %7267 = vmatpush.msra.mxu0 0.0
    %7268 = vmatpush.msra.mxu0 0.0
    %7269 = vmatpush.msra.mxu0 0.0
    %7270 = vmatpush.msra.mxu0 0.0
    %7271 = vmatpush.msra.mxu0 0.0
    %7272 = vmatpush.msra.mxu0 0.0
    %7273 = vmatpush.msra.mxu0 0.0
    %7274 = vmatpush.msra.mxu0 0.0
    %7275 = vmatpush.msra.mxu0 0.0
    %7276 = vmatpush.msra.mxu0 0.0
    %v7277 = vand.u32 %v35, 4294901760
    %7278 = vmatpush.msra.mxu0 %v7277
    %v7279 = vand.u32 %v33, 4294901760
    %7280 = vmatpush.msra.mxu0 %v7279
    %v7281 = vand.u32 %v31, 4294901760
    %7282 = vmatpush.msra.mxu0 %v7281
    %v7283 = vand.u32 %v29, 4294901760
    %7284 = vmatpush.msra.mxu0 %v7283
    %v7285 = vand.u32 %v7143, 4294901760
    %v7286 = vsub.f32 %v7143, %v7285
    %v7287 = vand.u32 %v7286, 4294901760
    %7288 = vmatmul.f32.gmra.mxu0 %v7287
    %v7289 = vpop.f32.mrf.mxu0
    %v7290 = vadd.f32 %v7258, %v7289
    %v7291 = vand.u32 %v7146, 4294901760
    %v7292 = vsub.f32 %v7146, %v7291
    %v7293 = vand.u32 %v7292, 4294901760
    %7294 = vmatmul.f32.gmra.mxu0 %v7293
    %v7295 = vpop.f32.mrf.mxu0
    %v7296 = vadd.f32 %v7263, %v7295
    %7297 = vdwg.mxu0
    %7298 = vmatpush.msra.mxu0 0.0
    %7299 = vmatpush.msra.mxu0 0.0
    %7300 = vmatpush.msra.mxu0 0.0
    %7301 = vmatpush.msra.mxu0 0.0
    %7302 = vmatpush.msra.mxu0 0.0
    %7303 = vmatpush.msra.mxu0 0.0
    %7304 = vmatpush.msra.mxu0 0.0
    %7305 = vmatpush.msra.mxu0 0.0
    %7306 = vmatpush.msra.mxu0 0.0
    %7307 = vmatpush.msra.mxu0 0.0
    %7308 = vmatpush.msra.mxu0 0.0
    %7309 = vmatpush.msra.mxu0 0.0
    %v7310 = vand.u32 %v35, 4294901760
    %v7311 = vsub.f32 %v35, %v7310
    %v7312 = vand.u32 %v7311, 4294901760
    %7313 = vmatpush.msra.mxu0 %v7312
    %v7314 = vand.u32 %v33, 4294901760
    %v7315 = vsub.f32 %v33, %v7314
    %v7316 = vand.u32 %v7315, 4294901760
    %7317 = vmatpush.msra.mxu0 %v7316
    %v7318 = vand.u32 %v31, 4294901760
    %v7319 = vsub.f32 %v31, %v7318
    %v7320 = vand.u32 %v7319, 4294901760
    %7321 = vmatpush.msra.mxu0 %v7320
    %v7322 = vand.u32 %v29, 4294901760
    %v7323 = vsub.f32 %v29, %v7322
    %v7324 = vand.u32 %v7323, 4294901760
    %7325 = vmatpush.msra.mxu0 %v7324
    %v7326 = vand.u32 %v7143, 4294901760
    %7327 = vmatmul.f32.gmra.mxu0 %v7326
    %v7328 = vpop.f32.mrf.mxu0
    %v7329 = vadd.f32 %v7290, %v7328
    %v7330 = vand.u32 %v7146, 4294901760
    %7331 = vmatmul.f32.gmra.mxu0 %v7330
    %v7332 = vpop.f32.mrf.mxu0
    %v7333 = vadd.f32 %v7296, %v7332
    %7334 = vdwg.mxu0
    %7335 = vmatpush.msra.mxu0 0.0
    %7336 = vmatpush.msra.mxu0 0.0
    %7337 = vmatpush.msra.mxu0 0.0
    %7338 = vmatpush.msra.mxu0 0.0
    %7339 = vmatpush.msra.mxu0 0.0
    %7340 = vmatpush.msra.mxu0 0.0
    %7341 = vmatpush.msra.mxu0 0.0
    %7342 = vmatpush.msra.mxu0 0.0
    %7343 = vmatpush.msra.mxu0 0.0
    %7344 = vmatpush.msra.mxu0 0.0
    %7345 = vmatpush.msra.mxu0 0.0
    %7346 = vmatpush.msra.mxu0 0.0
    %v7347 = vand.u32 %v35, 4294901760
    %7348 = vmatpush.msra.mxu0 %v7347
    %v7349 = vand.u32 %v33, 4294901760
    %7350 = vmatpush.msra.mxu0 %v7349
    %v7351 = vand.u32 %v31, 4294901760
    %7352 = vmatpush.msra.mxu0 %v7351
    %v7353 = vand.u32 %v29, 4294901760
    %7354 = vmatpush.msra.mxu0 %v7353
    %v7355 = vand.u32 %v7143, 4294901760
    %7356 = vmatmul.f32.gmra.mxu0 %v7355
    %v7357 = vpop.f32.mrf.mxu0
    %v7358 = vadd.f32 %v7329, %v7357
    %v7359 = vand.u32 %v7146, 4294901760
    %7360 = vmatmul.f32.gmra.mxu0 %v7359
    %v7361 = vpop.f32.mrf.mxu0
    %v7362 = vadd.f32 %v7333, %v7361
    %7363 = vdwg.mxu0
    %v7364 = vmul.f32 %v7358, 0.5
    %v7365 = vmul.f32 %v7362, 0.5
    %v7366 = vmul.f32 %v7358, 0.70710677
    %v7367 = vmul.f32 %v7362, 0.70710677
    %v7368 = vmul.f32 %v7366, %v7366
    %v7369 = vmin.f32 16.0, %v7368
    %v7370 = vmul.f32 %v7369, 2.1237322e-06
    %v7371 = vadd.f32 %v7370, 0.00028619796
    %v7372 = vmul.f32 %v7369, %v7371
    %v7373 = vadd.f32 %v7372, 0.0036580483
    %v7374 = vmul.f32 %v7369, %v7373
    %v7375 = vadd.f32 %v7374, 0.05243302
    %v7376 = vmul.f32 %v7369, %v7375
    %v7377 = vadd.f32 %v7376, 0.18741608
    %v7378 = vmul.f32 %v7369, %v7377
    %v7379 = vadd.f32 %v7378, 1.1283791
    %v7380 = vmul.f32 %v7366, %v7379
    %v7381 = vmul.f32 %v7369, 3.8918573e-05
    %v7382 = vadd.f32 %v7381, 0.001143296
    %v7383 = vmul.f32 %v7369, %v7382
    %v7384 = vadd.f32 %v7383, 0.014752088
    %v7385 = vmul.f32 %v7369, %v7384
    %v7386 = vadd.f32 %v7385, 0.112945676
    %v7387 = vmul.f32 %v7369, %v7386
    %v7388 = vadd.f32 %v7387, 0.4994258
    %v7389 = vmul.f32 %v7369, %v7388
    %v7390 = vadd.f32 %v7389, 1.0
    %v7391 = vrcp.pop %v7390
    %v7392 = vmul.f32 %v7390, %v7391
    %v7393 = vsub.f32 1.0, %v7392
    %v7394 = vmul.f32 %v7391, %v7393
    %v7395 = vadd.f32 %v7391, %v7394
    %vm7396 = vweird.f32 %v7390
    %vm7397 = vweird.f32 %v7391
    %vm7398 = vmor %vm7396, %vm7397
    %v7399 = vsel %vm7398, %v7391, %v7395
    %v7400 = vand.u32 2147483647, %v7390
    %vm7401 = vcmp.eq.f32.partialorder %v7400, 8.507059e+37
    %v7402 = vand.u32 %v7390, 2147483648
    %v7403 = vor.u32 1.1754944e-38, %v7402
    %v7404 = vsel %vm7401, %v7403, %v7399
    %v7405 = vmul.f32 %v7380, %v7404
    %v7406 = vmin.f32 %v7405, 1.0
    %v7407 = vmax.f32 %v7406, -1.0
    %v7408 = vmul.f32 %v7367, %v7367
    %v7409 = vmin.f32 16.0, %v7408
    %v7410 = vmul.f32 %v7409, 2.1237322e-06
    %v7411 = vadd.f32 %v7410, 0.00028619796
    %v7412 = vmul.f32 %v7409, %v7411
    %v7413 = vadd.f32 %v7412, 0.0036580483
    %v7414 = vmul.f32 %v7409, %v7413
    %v7415 = vadd.f32 %v7414, 0.05243302
    %v7416 = vmul.f32 %v7409, %v7415
    %v7417 = vadd.f32 %v7416, 0.18741608
    %v7418 = vmul.f32 %v7409, %v7417
    %v7419 = vadd.f32 %v7418, 1.1283791
    %v7420 = vmul.f32 %v7367, %v7419
    %v7421 = vmul.f32 %v7409, 3.8918573e-05
    %v7422 = vadd.f32 %v7421, 0.001143296
    %v7423 = vmul.f32 %v7409, %v7422
    %v7424 = vadd.f32 %v7423, 0.014752088
    %v7425 = vmul.f32 %v7409, %v7424
    %v7426 = vadd.f32 %v7425, 0.112945676
    %v7427 = vmul.f32 %v7409, %v7426
    %v7428 = vadd.f32 %v7427, 0.4994258
    %v7429 = vmul.f32 %v7409, %v7428
    %v7430 = vadd.f32 %v7429, 1.0
    %v7431 = vrcp.pop %v7430
    %v7432 = vmul.f32 %v7430, %v7431
    %v7433 = vsub.f32 1.0, %v7432
    %v7434 = vmul.f32 %v7431, %v7433
    %v7435 = vadd.f32 %v7431, %v7434
    %vm7436 = vweird.f32 %v7430
    %vm7437 = vweird.f32 %v7431
    %vm7438 = vmor %vm7436, %vm7437
    %v7439 = vsel %vm7438, %v7431, %v7435
    %v7440 = vand.u32 2147483647, %v7430
    %vm7441 = vcmp.eq.f32.partialorder %v7440, 8.507059e+37
    %v7442 = vand.u32 %v7430, 2147483648
    %v7443 = vor.u32 1.1754944e-38, %v7442
    %v7444 = vsel %vm7441, %v7443, %v7439
    %v7445 = vmul.f32 %v7420, %v7444
    %v7446 = vmin.f32 %v7445, 1.0
    %v7447 = vmax.f32 %v7446, -1.0
    %v7448 = vadd.f32 %v7407, 1.0
    %v7449 = vadd.f32 %v7447, 1.0
    %v7450 = vmul.f32 %v7364, %v7448
    %v7451 = vmul.f32 %v7365, %v7449
    %v7453 = vsel %vm3619, %v7450, 0
    %v7456 = vsel %vm3619, %v7451, 0
    %7458 = vmatpush.msra.mxu0 0.0
    %7459 = vmatpush.msra.mxu0 0.0
    %7460 = vmatpush.msra.mxu0 0.0
    %7461 = vmatpush.msra.mxu0 0.0
    %7462 = vmatpush.msra.mxu0 0.0
    %7463 = vmatpush.msra.mxu0 0.0
    %7464 = vmatpush.msra.mxu0 0.0
    %7465 = vmatpush.msra.mxu0 0.0
    %v7466 = vand.u32 %v51, 4294901760
    %7467 = vmatpush.msra.mxu0 %v7466
    %v7468 = vand.u32 %v50, 4294901760
    %7469 = vmatpush.msra.mxu0 %v7468
    %v7470 = vand.u32 %v49, 4294901760
    %7471 = vmatpush.msra.mxu0 %v7470
    %v7472 = vand.u32 %v48, 4294901760
    %7473 = vmatpush.msra.mxu0 %v7472
    %v7474 = vand.u32 %v47, 4294901760
    %7475 = vmatpush.msra.mxu0 %v7474
    %v7476 = vand.u32 %v46, 4294901760
    %7477 = vmatpush.msra.mxu0 %v7476
    %v7478 = vand.u32 %v45, 4294901760
    %7479 = vmatpush.msra.mxu0 %v7478
    %v7480 = vand.u32 %v44, 4294901760
    %7481 = vmatpush.msra.mxu0 %v7480
    %v7482 = vand.u32 %v7453, 4294901760
    %v7483 = vsub.f32 %v7453, %v7482
    %v7484 = vand.u32 %v7483, 4294901760
    %v7485 = vsub.f32 %v7483, %v7484
    %v7486 = vand.u32 %v7485, 4294901760
    %7487 = vmatmul.f32.gmra.mxu0 %v7486
    %v7488 = vpop.f32.mrf.mxu0
    %v7489 = vadd.f32 0.0, %v7488
    %v7490 = vand.u32 %v7456, 4294901760
    %v7491 = vsub.f32 %v7456, %v7490
    %v7492 = vand.u32 %v7491, 4294901760
    %v7493 = vsub.f32 %v7491, %v7492
    %v7494 = vand.u32 %v7493, 4294901760
    %7495 = vmatmul.f32.gmra.mxu0 %v7494
    %v7496 = vpop.f32.mrf.mxu0
    %v7497 = vadd.f32 0.0, %v7496
    %7498 = vdwg.mxu0
    %7499 = vmatpush.msra.mxu0 0.0
    %7500 = vmatpush.msra.mxu0 0.0
    %7501 = vmatpush.msra.mxu0 0.0
    %7502 = vmatpush.msra.mxu0 0.0
    %7503 = vmatpush.msra.mxu0 0.0
    %7504 = vmatpush.msra.mxu0 0.0
    %7505 = vmatpush.msra.mxu0 0.0
    %7506 = vmatpush.msra.mxu0 0.0
    %v7507 = vand.u32 %v51, 4294901760
    %v7508 = vsub.f32 %v51, %v7507
    %v7509 = vand.u32 %v7508, 4294901760
    %v7510 = vsub.f32 %v7508, %v7509
    %v7511 = vand.u32 %v7510, 4294901760
    %7512 = vmatpush.msra.mxu0 %v7511
    %v7513 = vand.u32 %v50, 4294901760
    %v7514 = vsub.f32 %v50, %v7513
    %v7515 = vand.u32 %v7514, 4294901760
    %v7516 = vsub.f32 %v7514, %v7515
    %v7517 = vand.u32 %v7516, 4294901760
    %7518 = vmatpush.msra.mxu0 %v7517
    %v7519 = vand.u32 %v49, 4294901760
    %v7520 = vsub.f32 %v49, %v7519
    %v7521 = vand.u32 %v7520, 4294901760
    %v7522 = vsub.f32 %v7520, %v7521
    %v7523 = vand.u32 %v7522, 4294901760
    %7524 = vmatpush.msra.mxu0 %v7523
    %v7525 = vand.u32 %v48, 4294901760
    %v7526 = vsub.f32 %v48, %v7525
    %v7527 = vand.u32 %v7526, 4294901760
    %v7528 = vsub.f32 %v7526, %v7527
    %v7529 = vand.u32 %v7528, 4294901760
    %7530 = vmatpush.msra.mxu0 %v7529
    %v7531 = vand.u32 %v47, 4294901760
    %v7532 = vsub.f32 %v47, %v7531
    %v7533 = vand.u32 %v7532, 4294901760
    %v7534 = vsub.f32 %v7532, %v7533
    %v7535 = vand.u32 %v7534, 4294901760
    %7536 = vmatpush.msra.mxu0 %v7535
    %v7537 = vand.u32 %v46, 4294901760
    %v7538 = vsub.f32 %v46, %v7537
    %v7539 = vand.u32 %v7538, 4294901760
    %v7540 = vsub.f32 %v7538, %v7539
    %v7541 = vand.u32 %v7540, 4294901760
    %7542 = vmatpush.msra.mxu0 %v7541
    %v7543 = vand.u32 %v45, 4294901760
    %v7544 = vsub.f32 %v45, %v7543
    %v7545 = vand.u32 %v7544, 4294901760
    %v7546 = vsub.f32 %v7544, %v7545
    %v7547 = vand.u32 %v7546, 4294901760
    %7548 = vmatpush.msra.mxu0 %v7547
    %v7549 = vand.u32 %v44, 4294901760
    %v7550 = vsub.f32 %v44, %v7549
    %v7551 = vand.u32 %v7550, 4294901760
    %v7552 = vsub.f32 %v7550, %v7551
    %v7553 = vand.u32 %v7552, 4294901760
    %7554 = vmatpush.msra.mxu0 %v7553
    %v7555 = vand.u32 %v7453, 4294901760
    %7556 = vmatmul.f32.gmra.mxu0 %v7555
    %v7557 = vpop.f32.mrf.mxu0
    %v7558 = vadd.f32 %v7489, %v7557
    %v7559 = vand.u32 %v7456, 4294901760
    %7560 = vmatmul.f32.gmra.mxu0 %v7559
    %v7561 = vpop.f32.mrf.mxu0
    %v7562 = vadd.f32 %v7497, %v7561
    %7563 = vdwg.mxu0
    %7564 = vmatpush.msra.mxu0 0.0
    %7565 = vmatpush.msra.mxu0 0.0
    %7566 = vmatpush.msra.mxu0 0.0
    %7567 = vmatpush.msra.mxu0 0.0
    %7568 = vmatpush.msra.mxu0 0.0
    %7569 = vmatpush.msra.mxu0 0.0
    %7570 = vmatpush.msra.mxu0 0.0
    %7571 = vmatpush.msra.mxu0 0.0
    %v7572 = vand.u32 %v51, 4294901760
    %v7573 = vsub.f32 %v51, %v7572
    %7574 = vmatpush.msra.mxu0 %v7573
    %v7575 = vand.u32 %v50, 4294901760
    %v7576 = vsub.f32 %v50, %v7575
    %7577 = vmatpush.msra.mxu0 %v7576
    %v7578 = vand.u32 %v49, 4294901760
    %v7579 = vsub.f32 %v49, %v7578
    %7580 = vmatpush.msra.mxu0 %v7579
    %v7581 = vand.u32 %v48, 4294901760
    %v7582 = vsub.f32 %v48, %v7581
    %7583 = vmatpush.msra.mxu0 %v7582
    %v7584 = vand.u32 %v47, 4294901760
    %v7585 = vsub.f32 %v47, %v7584
    %7586 = vmatpush.msra.mxu0 %v7585
    %v7587 = vand.u32 %v46, 4294901760
    %v7588 = vsub.f32 %v46, %v7587
    %7589 = vmatpush.msra.mxu0 %v7588
    %v7590 = vand.u32 %v45, 4294901760
    %v7591 = vsub.f32 %v45, %v7590
    %7592 = vmatpush.msra.mxu0 %v7591
    %v7593 = vand.u32 %v44, 4294901760
    %v7594 = vsub.f32 %v44, %v7593
    %7595 = vmatpush.msra.mxu0 %v7594
    %v7596 = vand.u32 %v7453, 4294901760
    %v7597 = vsub.f32 %v7453, %v7596
    %7598 = vmatmul.f32.gmra.mxu0 %v7597
    %v7599 = vpop.f32.mrf.mxu0
    %v7600 = vadd.f32 %v7558, %v7599
    %v7601 = vand.u32 %v7456, 4294901760
    %v7602 = vsub.f32 %v7456, %v7601
    %7603 = vmatmul.f32.gmra.mxu0 %v7602
    %v7604 = vpop.f32.mrf.mxu0
    %v7605 = vadd.f32 %v7562, %v7604
    %7606 = vdwg.mxu0
    %7607 = vmatpush.msra.mxu0 0.0
    %7608 = vmatpush.msra.mxu0 0.0
    %7609 = vmatpush.msra.mxu0 0.0
    %7610 = vmatpush.msra.mxu0 0.0
    %7611 = vmatpush.msra.mxu0 0.0
    %7612 = vmatpush.msra.mxu0 0.0
    %7613 = vmatpush.msra.mxu0 0.0
    %7614 = vmatpush.msra.mxu0 0.0
    %v7615 = vand.u32 %v51, 4294901760
    %7616 = vmatpush.msra.mxu0 %v7615
    %v7617 = vand.u32 %v50, 4294901760
    %7618 = vmatpush.msra.mxu0 %v7617
    %v7619 = vand.u32 %v49, 4294901760
    %7620 = vmatpush.msra.mxu0 %v7619
    %v7621 = vand.u32 %v48, 4294901760
    %7622 = vmatpush.msra.mxu0 %v7621
    %v7623 = vand.u32 %v47, 4294901760
    %7624 = vmatpush.msra.mxu0 %v7623
    %v7625 = vand.u32 %v46, 4294901760
    %7626 = vmatpush.msra.mxu0 %v7625
    %v7627 = vand.u32 %v45, 4294901760
    %7628 = vmatpush.msra.mxu0 %v7627
    %v7629 = vand.u32 %v44, 4294901760
    %7630 = vmatpush.msra.mxu0 %v7629
    %v7631 = vand.u32 %v7453, 4294901760
    %v7632 = vsub.f32 %v7453, %v7631
    %v7633 = vand.u32 %v7632, 4294901760
    %7634 = vmatmul.f32.gmra.mxu0 %v7633
    %v7635 = vpop.f32.mrf.mxu0
    %v7636 = vadd.f32 %v7600, %v7635
    %v7637 = vand.u32 %v7456, 4294901760
    %v7638 = vsub.f32 %v7456, %v7637
    %v7639 = vand.u32 %v7638, 4294901760
    %7640 = vmatmul.f32.gmra.mxu0 %v7639
    %v7641 = vpop.f32.mrf.mxu0
    %v7642 = vadd.f32 %v7605, %v7641
    %7643 = vdwg.mxu0
    %7644 = vmatpush.msra.mxu0 0.0
    %7645 = vmatpush.msra.mxu0 0.0
    %7646 = vmatpush.msra.mxu0 0.0
    %7647 = vmatpush.msra.mxu0 0.0
    %7648 = vmatpush.msra.mxu0 0.0
    %7649 = vmatpush.msra.mxu0 0.0
    %7650 = vmatpush.msra.mxu0 0.0
    %7651 = vmatpush.msra.mxu0 0.0
    %v7652 = vand.u32 %v51, 4294901760
    %v7653 = vsub.f32 %v51, %v7652
    %v7654 = vand.u32 %v7653, 4294901760
    %7655 = vmatpush.msra.mxu0 %v7654
    %v7656 = vand.u32 %v50, 4294901760
    %v7657 = vsub.f32 %v50, %v7656
    %v7658 = vand.u32 %v7657, 4294901760
    %7659 = vmatpush.msra.mxu0 %v7658
    %v7660 = vand.u32 %v49, 4294901760
    %v7661 = vsub.f32 %v49, %v7660
    %v7662 = vand.u32 %v7661, 4294901760
    %7663 = vmatpush.msra.mxu0 %v7662
    %v7664 = vand.u32 %v48, 4294901760
    %v7665 = vsub.f32 %v48, %v7664
    %v7666 = vand.u32 %v7665, 4294901760
    %7667 = vmatpush.msra.mxu0 %v7666
    %v7668 = vand.u32 %v47, 4294901760
    %v7669 = vsub.f32 %v47, %v7668
    %v7670 = vand.u32 %v7669, 4294901760
    %7671 = vmatpush.msra.mxu0 %v7670
    %v7672 = vand.u32 %v46, 4294901760
    %v7673 = vsub.f32 %v46, %v7672
    %v7674 = vand.u32 %v7673, 4294901760
    %7675 = vmatpush.msra.mxu0 %v7674
    %v7676 = vand.u32 %v45, 4294901760
    %v7677 = vsub.f32 %v45, %v7676
    %v7678 = vand.u32 %v7677, 4294901760
    %7679 = vmatpush.msra.mxu0 %v7678
    %v7680 = vand.u32 %v44, 4294901760
    %v7681 = vsub.f32 %v44, %v7680
    %v7682 = vand.u32 %v7681, 4294901760
    %7683 = vmatpush.msra.mxu0 %v7682
    %v7684 = vand.u32 %v7453, 4294901760
    %7685 = vmatmul.f32.gmra.mxu0 %v7684
    %v7686 = vpop.f32.mrf.mxu0
    %v7687 = vadd.f32 %v7636, %v7686
    %v7688 = vand.u32 %v7456, 4294901760
    %7689 = vmatmul.f32.gmra.mxu0 %v7688
    %v7690 = vpop.f32.mrf.mxu0
    %v7691 = vadd.f32 %v7642, %v7690
    %7692 = vdwg.mxu0
    %7693 = vmatpush.msra.mxu0 0.0
    %7694 = vmatpush.msra.mxu0 0.0
    %7695 = vmatpush.msra.mxu0 0.0
    %7696 = vmatpush.msra.mxu0 0.0
    %7697 = vmatpush.msra.mxu0 0.0
    %7698 = vmatpush.msra.mxu0 0.0
    %7699 = vmatpush.msra.mxu0 0.0
    %7700 = vmatpush.msra.mxu0 0.0
    %v7701 = vand.u32 %v51, 4294901760
    %7702 = vmatpush.msra.mxu0 %v7701
    %v7703 = vand.u32 %v50, 4294901760
    %7704 = vmatpush.msra.mxu0 %v7703
    %v7705 = vand.u32 %v49, 4294901760
    %7706 = vmatpush.msra.mxu0 %v7705
    %v7707 = vand.u32 %v48, 4294901760
    %7708 = vmatpush.msra.mxu0 %v7707
    %v7709 = vand.u32 %v47, 4294901760
    %7710 = vmatpush.msra.mxu0 %v7709
    %v7711 = vand.u32 %v46, 4294901760
    %7712 = vmatpush.msra.mxu0 %v7711
    %v7713 = vand.u32 %v45, 4294901760
    %7714 = vmatpush.msra.mxu0 %v7713
    %v7715 = vand.u32 %v44, 4294901760
    %7716 = vmatpush.msra.mxu0 %v7715
    %v7717 = vand.u32 %v7453, 4294901760
    %7718 = vmatmul.f32.gmra.mxu0 %v7717
    %v7719 = vpop.f32.mrf.mxu0
    %v7720 = vadd.f32 %v7687, %v7719
    %v7721 = vand.u32 %v7456, 4294901760
    %7722 = vmatmul.f32.gmra.mxu0 %v7721
    %v7723 = vpop.f32.mrf.mxu0
    %v7724 = vadd.f32 %v7691, %v7723
    %7725 = vdwg.mxu0
    %v7726 = vadd.f32 %v7089, %v7720
    %v7727 = vadd.f32 %v7090, %v7724
    %v7728 = vperm.slane %v53, 7
    %v7729 = vadd.f32 %v7726, %v7728
    %v7730 = vadd.f32 %v7727, %v7728
    %v7731 = vsel %vm55, %v7729, 0.0
    %7732 = vadd.xlane.f32.xlu0 %v7731
    %v7733 = vpop.xlane.xlu0 %7732
    %v7734 = vsel %vm55, %v7730, 0.0
    %7735 = vadd.xlane.f32.xlu0 %v7734
    %v7736 = vpop.xlane.xlu0 %7735
    %v7737 = vmul.f32 %v7733, %v68
    %v7738 = vmul.f32 %v7736, %v68
    %v7739 = vsub.f32 %v7729, %v7737
    %v7740 = vsub.f32 %v7730, %v7738
    %v7741 = vmul.f32 %v7739, %v7739
    %v7742 = vmul.f32 %v7740, %v7740
    %v7743 = vsel %vm55, %v7741, 0.0
    %7744 = vadd.xlane.f32.xlu0 %v7743
    %v7745 = vpop.xlane.xlu0 %7744
    %v7746 = vsel %vm55, %v7742, 0.0
    %7747 = vadd.xlane.f32.xlu0 %v7746
    %v7748 = vpop.xlane.xlu0 %7747
    %v7749 = vmul.f32 %v7745, %v68
    %v7750 = vmul.f32 %v7748, %v68
    %v7751 = vadd.f32 %v7749, 1e-05
    %v7752 = vadd.f32 %v7750, 1e-05
    %v7753 = vrsqrt.pop %v7751
    %v7754 = vmul.f32 %v7753, %v7751
    %v7755 = vmul.f32 %v7754, %v7753
    %v7756 = vmul.f32 0.5, %v7755
    %v7757 = vsub.f32 1.5, %v7756
    %v7758 = vmul.f32 %v7753, %v7757
    %vm7759 = vweird.f32 %v7751
    %vm7760 = vweird.f32 %v7753
    %vm7761 = vmor %vm7759, %vm7760
    %v7762 = vsel %vm7761, %v7753, %v7758
    %v7763 = vrsqrt.pop %v7752
    %v7764 = vmul.f32 %v7763, %v7752
    %v7765 = vmul.f32 %v7764, %v7763
    %v7766 = vmul.f32 0.5, %v7765
    %v7767 = vsub.f32 1.5, %v7766
    %v7768 = vmul.f32 %v7763, %v7767
    %vm7769 = vweird.f32 %v7752
    %vm7770 = vweird.f32 %v7763
    %vm7771 = vmor %vm7769, %vm7770
    %v7772 = vsel %vm7771, %v7763, %v7768
    %v7773 = vmul.f32 %v7739, %v7762
    %v7774 = vmul.f32 %v7740, %v7772
    %v7775 = vperm.slane %v54, 0
    %v7776 = vmul.f32 %v7773, %v7775
    %v7777 = vmul.f32 %v7774, %v7775
    %v7778 = vperm.slane %v54, 1
    %v7779 = vadd.f32 %v7776, %v7778
    %v7780 = vadd.f32 %v7777, %v7778
    %7781 = vst.msk [vmem:[#allocation2] sm:$0xff] %vm55, %v7779
    %7782 = vst.msk [vmem:[#allocation2 + $0x8] sm:$0xff] %vm55, %v7780
    // Predicated region
    $region18: #{tpu_custom_call.1} parent=1 // pred_check
      _
    $region19: #{tpu_custom_call.1} parent=1 // pred_check_branch
      %7784 = sbr.rel (0) target = $region21
    $region20: #{tpu_custom_call.1} parent=1 // pred_region
      %7786 = vsyncadd [#allocation3], 0
      %s7787 = sshll.u32 [#allocation2], 4
      %s7788 = int_to_ptr.vmem [resolvable:$true] %s7787
      %s7789 = sshll.u32 %s4, 4
      %s7790 = int_to_ptr.hbm [resolvable:$true] %s7789
      %7795 = dma.vmem_to_hbm [thread:$0]  %s7788, 256, %s7790, [#allocation3], 128, 128, 8
    $region21: #{tpu_custom_call.1} parent=1 // pred_fallthru
      _
    // Predicated region
    $region22: #{tpu_custom_call.1} parent=1 // pred_check
      _
    $region23: #{tpu_custom_call.1} parent=1 // pred_check_branch
      %7797 = sbr.rel (0) target = $region25
    $region24: #{tpu_custom_call.1} parent=1 // pred_region
      %7799 = dma.done [#allocation3], 256
    $region25: #{tpu_custom_call.1} parent=1 // pred_fallthru
      _
    %7800 = vsyncpa [#allocation3], 1

</llo_original>
